<compile_context>
chip_gen: v7x
topology: tpu7x:2x2x1
jax: 0.10.0
libtpu: 0.0.40
codegen_flags: <defaults>
</compile_context>

<pallas_src>
import functools

import jax
import jax.numpy as jnp
from jax.experimental import pallas as pl
from jax.experimental.pallas import tpu as pltpu


# ----------------------------------------------------------------------------
# Plain-JAX reference ops — used ONLY at pack time (weight folding via probing).
# ----------------------------------------------------------------------------
def _im2col_nhwc(x, k, stride, pad):
    """x: [B,H,W,C] -> circular-padded im2col patches [B*Ho*Wo, k*k*C] (K order ky,kx,c)."""
    B, H, W, C = x.shape
    xp = jnp.pad(x, ((0, 0), (pad, pad), (pad, pad), (0, 0)), mode="wrap")
    Ho = (H + 2 * pad - k) // stride + 1
    Wo = (W + 2 * pad - k) // stride + 1
    cols = []
    for ky in range(k):
        for kx in range(k):
            cols.append(xp[:, ky:ky + stride * Ho:stride, kx:kx + stride * Wo:stride, :])
    patches = jnp.stack(cols, axis=3)                      # [B, Ho, Wo, k*k, C]
    return patches.reshape(B * Ho * Wo, k * k * C), (B, Ho, Wo)


def _conv2d_circular(x, w_oihw, b, k, s, p):
    """PyTorch Conv2d(padding_mode='circular') reference; NHWC activations, OIHW weights."""
    cout, cin = w_oihw.shape[0], w_oihw.shape[1]
    patches, (B, Ho, Wo) = _im2col_nhwc(x, k, s, p)
    wf = jnp.transpose(w_oihw, (2, 3, 1, 0)).reshape(k * k * cin, cout)
    out = patches @ wf + b.reshape(1, cout)
    return out.reshape(B, Ho, Wo, cout)


def _s2d(z, r):
    """Space-to-depth; channel order c*r*r + ry*r + rx (inverse of nn.PixelShuffle(r))."""
    if r == 1:
        return z
    B, H, W, C = z.shape
    z = z.reshape(B, H // r, r, W // r, r, C)
    z = jnp.transpose(z, (0, 1, 3, 5, 2, 4))
    return z.reshape(B, H // r, W // r, C * r * r)


def _d2s(u, r):
    """Depth-to-space == nn.PixelShuffle(r) in NHWC; exact inverse of _s2d."""
    if r == 1:
        return u
    B, Hc, Wc, E = u.shape
    C = E // (r * r)
    u = u.reshape(B, Hc, Wc, C, r, r)
    u = jnp.transpose(u, (0, 1, 4, 2, 5, 3))
    return u.reshape(B, Hc * r, Wc * r, C)


def _linearize(apply_fn, ein, hg, wg):
    """Exact (operator, bias) of an affine map (*,hg,wg,ein)->(*,hg,wg,eout),
    in the channel-major flattening col = ch*(hg*wg) + y*wg + x."""
    n_in = ein * hg * wg
    basis = jnp.eye(n_in, dtype=jnp.float32).reshape(n_in, ein, hg, wg)
    basis = jnp.transpose(basis, (0, 2, 3, 1))                       # NHWC probes
    bias_img = apply_fn(jnp.zeros((1, hg, wg, ein), jnp.float32))    # (1,hg,wg,eout)
    eout = bias_img.shape[-1]
    resp = apply_fn(basis) - bias_img                                # (n_in,hg,wg,eout)
    op = jnp.transpose(resp, (0, 3, 1, 2)).reshape(n_in, eout * hg * wg)
    bias = jnp.transpose(bias_img, (0, 3, 1, 2)).reshape(1, eout * hg * wg)
    return op, bias


# ----------------------------------------------------------------------------
# Parameter init (mirrors initialize_weights / bias fills of the PyTorch module)
# ----------------------------------------------------------------------------
def init_params(key, input_channels, hidden_channels, ksizes, strides, pads,
                num_encoder, num_convlstm, upscale_factor):
    c_scale = (1.0 / (3 * 3 * 320)) ** 0.5
    in_chs = [input_channels] + list(hidden_channels)
    raw = {"encoders": [], "convlstm": [], "upscale_factor": upscale_factor}
    k = key

    def uni(kk, shape):
        return jax.random.uniform(kk, shape, jnp.float32, -c_scale, c_scale)

    for i in range(num_encoder):
        k, sk = jax.random.split(k)
        raw["encoders"].append({
            "w": uni(sk, (hidden_channels[i], in_chs[i], ksizes[i], ksizes[i])),
            "b": jnp.zeros((hidden_channels[i],), jnp.float32),
            "k": ksizes[i], "stride": strides[i], "pad": pads[i]})

    for i in range(num_encoder, num_encoder + num_convlstm):
        hc, ic = hidden_channels[i], in_chs[i]
        cell = {"k": ksizes[i], "stride": strides[i], "pad": pads[i], "hc": hc}
        for name in ("Wxi", "Wxf", "Wxc", "Wxo"):
            k, sk = jax.random.split(k)
            cell[name + "_w"] = uni(sk, (hc, ic, ksizes[i], ksizes[i]))
        cell["Wxi_b"] = jnp.zeros((hc,), jnp.float32)
        cell["Wxf_b"] = jnp.zeros((hc,), jnp.float32)
        cell["Wxc_b"] = jnp.zeros((hc,), jnp.float32)
        cell["Wxo_b"] = jnp.ones((hc,), jnp.float32)       # Wxo.bias.data.fill_(1.0)
        for name in ("Whi", "Whf", "Whc", "Who"):          # hidden convs: bias=False
            k, sk = jax.random.split(k)
            cell[name + "_w"] = uni(sk, (hc, hc, 3, 3))
        raw["convlstm"].append(cell)

    k, sk = jax.random.split(k)
    raw["out_w"] = uni(sk, (2, 2, 5, 5))
    raw["out_b"] = jnp.zeros((2,), jnp.float32)
    return raw


# ----------------------------------------------------------------------------
# Pack: fold every conv (+ stride + circular pad + pixel-shuffle) into exact dense
# coarse-grid operators, ONCE, via affine probing of a faithful reference.
# ----------------------------------------------------------------------------
def pack_params(raw, H, W, input_channels):
    r = raw["upscale_factor"]
    Hc, Wc = H // r, W // r

    def lin(fn, ein):
        return _linearize(fn, ein, Hc, Wc)

    packed = {"encoders": [], "convlstm": []}

    # Encoders: the field enters as space-to-depth(r); each stride-s encoder reduces the
    # remaining s2d factor so all layers live on the same (Hc, Wc) coarse grid.
    a = r
    cin = input_channels
    for enc in raw["encoders"]:
        k_, s_, p_ = enc["k"], enc["stride"], enc["pad"]
        a_out = a // s_

        def enc_fn(u, w=enc["w"], b=enc["b"], k_=k_, s_=s_, p_=p_, ai=a, ao=a_out):
            return _s2d(_conv2d_circular(_d2s(u, ai), w, b, k_, s_, p_), ao)

        t, bias = lin(enc_fn, cin * a * a)
        packed["encoders"].append({"t": t, "b": bias})
        cin = enc["w"].shape[0]
        a = a_out
    if a != 1:
        raise NotImplementedError("product of encoder strides must equal upscale_factor")

    for cell in raw["convlstm"]:
        hc = cell["hc"]
        ic = cell["Wxi_w"].shape[1]
        k_, s_, p_ = cell["k"], cell["stride"], cell["pad"]

        def gx_fn(z, cell=cell, k_=k_, s_=s_, p_=p_):
            outs = [_conv2d_circular(z, cell["Wx" + g + "_w"], cell["Wx" + g + "_b"],
                                     k_, s_, p_) for g in "ifco"]
            return jnp.concatenate(outs, axis=-1)

        def gh_fn(h, cell=cell, hc=hc):
            zb = jnp.zeros((hc,), jnp.float32)
            outs = [_conv2d_circular(h, cell["Wh" + g + "_w"], zb, 3, 1, 1) for g in "ifco"]
            return jnp.concatenate(outs, axis=-1)

        tx, bx = lin(gx_fn, ic)
        th, bh = lin(gh_fn, hc)
        packed["convlstm"].append({"tx": tx, "th": th, "b": bx + bh})

    hc_last = raw["convlstm"][-1]["hc"]

    def out_fn(h):  # output 5x5 conv composed with PixelShuffle(r), expressed on the coarse grid
        return _s2d(_conv2d_circular(_d2s(h, r), raw["out_w"], raw["out_b"], 5, 1, 2), r)

    t, bias = lin(out_fn, hc_last)
    packed["out"] = {"t": t, "b": bias}
    return packed


# ----------------------------------------------------------------------------
# Fused Pallas kernel: one grid step == one PhyCRNet timestep (all layers fused).
# ----------------------------------------------------------------------------
def _phycrnet_rollout_kernel(u0_ref, h0_ref, c0_ref,
                             te0_ref, be0_ref, te1_ref, be1_ref,
                             tgx_ref, tgh_ref, bg_ref, tout_ref, bout_ref,
                             outu_ref, outh_ref, outc_ref,
                             u_scr, h_scr, c_scr, *, dt, gw):
    t = pl.program_id(0)

    @pl.when(t == 0)
    def _load_initial_state():
        u_scr[...] = u0_ref[...]
        h_scr[...] = h0_ref[...]
        c_scr[...] = c0_ref[...]

    u = u_scr[...]
    h = h_scr[...]
    c = c_scr[...]
    f32 = jnp.float32

    # encoder stack (stride-2 circular convs folded into coarse operators) + ReLU
    v = jnp.maximum(jnp.dot(u, te0_ref[...], preferred_element_type=f32) + be0_ref[...], 0.0)
    z = jnp.maximum(jnp.dot(v, te1_ref[...], preferred_element_type=f32) + be1_ref[...], 0.0)

    # all 8 ConvLSTM gate convs fused into two lane-dense matmuls (x-part + h-part)
    acc = (jnp.dot(z, tgx_ref[...], preferred_element_type=f32)
           + jnp.dot(h, tgh_ref[...], preferred_element_type=f32)
           + bg_ref[...])
    # full-slab nonlinearity: "c" gate block gets tanh, the rest sigmoid (lane mask select)
    lane = jax.lax.broadcasted_iota(jnp.int32, acc.shape, 1)
    act = jnp.where((lane >= 2 * gw) & (lane < 3 * gw), jnp.tanh(acc), jax.nn.sigmoid(acc))
    i_g = act[:, 0 * gw:1 * gw]
    f_g = act[:, 1 * gw:2 * gw]
    g_g = act[:, 2 * gw:3 * gw]
    o_g = act[:, 3 * gw:4 * gw]
    c_new = f_g * c + i_g * g_g
    h_new = o_g * jnp.tanh(c_new)

    # output 5x5 conv + pixel-shuffle folded into one operator, then the Euler residual
    u_new = u + dt * (jnp.dot(h_new, tout_ref[...], preferred_element_type=f32) + bout_ref[...])

    u_scr[...] = u_new
    h_scr[...] = h_new
    c_scr[...] = c_new
    outu_ref[0] = u_new
    outh_ref[0] = h_new
    outc_ref[0] = c_new


# ----------------------------------------------------------------------------
# Forward (NCHW interface, matching the PyTorch module's forward semantics)
# ----------------------------------------------------------------------------
def phycrnet_forward(packed, initial_state, x_nchw, *, B, H, W, input_channels,
                     hidden_last, upscale, dt, step, effective_step):
    r = upscale
    Hc, Wc = H // r, W // r
    ncell = Hc * Wc
    nu = input_channels * r * r * ncell       # field slab width (lane-dense)
    nh = hidden_last * ncell                  # h / c slab width (lane-dense)

    enc0, enc1 = packed["encoders"]
    cell = packed["convlstm"][0]
    outp = packed["out"]
    weights = (enc0["t"], enc0["b"], enc1["t"], enc1["b"],
               cell["tx"], cell["th"], cell["b"], outp["t"], outp["b"])

    def full_spec(shape):
        nd = len(shape)
        return pl.BlockSpec(shape, lambda t, _nd=nd: (0,) * _nd)

    in_specs = ([full_spec((B, nu)), full_spec((B, nh)), full_spec((B, nh))]
                + [full_spec(w.shape) for w in weights])
    out_specs = (pl.BlockSpec((1, B, nu), lambda t: (t, 0, 0)),
                 pl.BlockSpec((1, B, nh), lambda t: (t, 0, 0)),
                 pl.BlockSpec((1, B, nh), lambda t: (t, 0, 0)))
    out_shape = (jax.ShapeDtypeStruct((step, B, nu), jnp.float32),
                 jax.ShapeDtypeStruct((step, B, nh), jnp.float32),
                 jax.ShapeDtypeStruct((step, B, nh), jnp.float32))

    rollout = pl.pallas_call(
        functools.partial(_phycrnet_rollout_kernel, dt=float(dt), gw=nh),
        out_shape=out_shape,
        grid_spec=pltpu.PrefetchScalarGridSpec(
            num_scalar_prefetch=0,
            grid=(step,),
            in_specs=in_specs,
            out_specs=out_specs,
            scratch_shapes=[pltpu.VMEM((B, nu), jnp.float32),
                            pltpu.VMEM((B, nh), jnp.float32),
                            pltpu.VMEM((B, nh), jnp.float32)],
        ),
        compiler_params=pltpu.CompilerParams(
            dimension_semantics=("arbitrary",),           # recurrence: sequential time grid
            vmem_limit_bytes=32 * 1024 * 1024),
    )

    # NCHW interface -> coarse channel-major slabs (cheap layout glue, fused by jit)
    x_nhwc = jnp.transpose(x_nchw, (0, 2, 3, 1))
    u0 = jnp.transpose(_s2d(x_nhwc, r), (0, 3, 1, 2)).reshape(B, nu)
    h0_nchw, c0_nchw = initial_state[0]
    h0 = h0_nchw.reshape(B, nh)
    c0 = c0_nchw.reshape(B, nh)

    outs_u, outs_h, outs_c = rollout(u0, h0, c0, *weights)

    def field_to_nchw(flat):
        uc = jnp.transpose(flat.reshape(B, input_channels * r * r, Hc, Wc), (0, 2, 3, 1))
        return jnp.transpose(_d2s(uc, r), (0, 3, 1, 2))

    outputs = [field_to_nchw(outs_u[t]) for t in range(step) if t in effective_step]
    second_last_state = []
    if step >= 2:   # matches the PyTorch reference: empty if step == 1
        second_last_state = [(outs_h[step - 2].reshape(B, hidden_last, Hc, Wc),
                              outs_c[step - 2].reshape(B, hidden_last, Hc, Wc))]
    return outputs, second_last_state


# ----------------------------------------------------------------------------
if __name__ == "__main__":
    # PhyCRNet-for-Burgers style config, scaled down:
    # 2 stride-2 encoders (16x16 -> 4x4), 1 ConvLSTM (hc = 32 = 2*upscale^2), pixel-shuffle x4.
    B, H, W = 2, 16, 16
    input_channels = 2
    hidden_channels = [4, 8, 32]
    input_kernel_size = [4, 4, 3]
    input_stride = [2, 2, 1]
    input_padding = [1, 1, 1]
    num_layers = [2, 1]                      # [num_encoder, num_convlstm]
    upscale_factor = 4
    dt = 0.002
    step = 2
    effective_step = [0, 1]

    key = jax.random.PRNGKey(0)
    kp, kx = jax.random.split(key)
    raw = init_params(kp, input_channels, hidden_channels, input_kernel_size,
                      input_stride, input_padding, num_layers[0], num_layers[1],
                      upscale_factor)
    packed = pack_params(raw, H, W, input_channels)

    x = jax.random.normal(kx, (B, input_channels, H, W), jnp.float32)
    Hc, Wc = H // upscale_factor, W // upscale_factor
    h0 = jnp.zeros((B, hidden_channels[-1], Hc, Wc), jnp.float32)
    c0 = jnp.zeros_like(h0)
    initial_state = [(h0, c0)]

    fwd = jax.jit(functools.partial(
        phycrnet_forward,
        B=B, H=H, W=W, input_channels=input_channels,
        hidden_last=hidden_channels[-1], upscale=upscale_factor,
        dt=dt, step=step, effective_step=tuple(effective_step)))

    outputs, second_last_state = fwd(packed, initial_state, x)
    jax.block_until_ready((outputs, second_last_state))

    assert len(outputs) == len([t for t in effective_step if t < step])
    assert outputs[0].shape == (B, input_channels, H, W)
    assert second_last_state[0][0].shape == (B, hidden_channels[-1], Hc, Wc)
    assert all(bool(jnp.all(jnp.isfinite(o))) for o in outputs)
    print("KERNEL_OK")
</pallas_src>

<mosaic_0001>
module attributes {stable_mosaic.version = 11 : i64} {
  func.func @_phycrnet_rollout_kernel(%arg0: i32, %arg1: memref<2x512xf32, #tpu.memory_space<vmem>>, %arg2: memref<2x512xf32, #tpu.memory_space<vmem>>, %arg3: memref<2x512xf32, #tpu.memory_space<vmem>>, %arg4: memref<512x256xf32, #tpu.memory_space<vmem>>, %arg5: memref<1x256xf32, #tpu.memory_space<vmem>>, %arg6: memref<256x128xf32, #tpu.memory_space<vmem>>, %arg7: memref<1x128xf32, #tpu.memory_space<vmem>>, %arg8: memref<128x2048xf32, #tpu.memory_space<vmem>>, %arg9: memref<512x2048xf32, #tpu.memory_space<vmem>>, %arg10: memref<1x2048xf32, #tpu.memory_space<vmem>>, %arg11: memref<512x512xf32, #tpu.memory_space<vmem>>, %arg12: memref<1x512xf32, #tpu.memory_space<vmem>>, %arg13: memref<1x2x512xf32, #tpu.memory_space<vmem>>, %arg14: memref<1x2x512xf32, #tpu.memory_space<vmem>>, %arg15: memref<1x2x512xf32, #tpu.memory_space<vmem>>, %arg16: memref<2x512xf32, #tpu.memory_space<vmem>>, %arg17: memref<2x512xf32, #tpu.memory_space<vmem>>, %arg18: memref<2x512xf32, #tpu.memory_space<vmem>>) attributes {dimension_semantics = [#tpu.dimension_semantics<arbitrary>], iteration_bounds = array<i64: 2>, scalar_prefetch = 0 : i64, scratch_operands = 3 : i64, tpu.core_type = #tpu.core_type<tc>, window_params = [{pipeline_mode = #tpu.pipeline_mode<synchronous>, transform_indices = @transform_0, window_bounds = array<i64: 2, 512>}, {pipeline_mode = #tpu.pipeline_mode<synchronous>, transform_indices = @transform_1, window_bounds = array<i64: 2, 512>}, {pipeline_mode = #tpu.pipeline_mode<synchronous>, transform_indices = @transform_2, window_bounds = array<i64: 2, 512>}, {pipeline_mode = #tpu.pipeline_mode<synchronous>, transform_indices = @transform_3, window_bounds = array<i64: 512, 256>}, {pipeline_mode = #tpu.pipeline_mode<synchronous>, transform_indices = @transform_4, window_bounds = array<i64: 1, 256>}, {pipeline_mode = #tpu.pipeline_mode<synchronous>, transform_indices = @transform_5, window_bounds = array<i64: 256, 128>}, {pipeline_mode = #tpu.pipeline_mode<synchronous>, transform_indices = @transform_6, window_bounds = array<i64: 1, 128>}, {pipeline_mode = #tpu.pipeline_mode<synchronous>, transform_indices = @transform_7, window_bounds = array<i64: 128, 2048>}, {pipeline_mode = #tpu.pipeline_mode<synchronous>, transform_indices = @transform_8, window_bounds = array<i64: 512, 2048>}, {pipeline_mode = #tpu.pipeline_mode<synchronous>, transform_indices = @transform_9, window_bounds = array<i64: 1, 2048>}, {pipeline_mode = #tpu.pipeline_mode<synchronous>, transform_indices = @transform_10, window_bounds = array<i64: 512, 512>}, {pipeline_mode = #tpu.pipeline_mode<synchronous>, transform_indices = @transform_11, window_bounds = array<i64: 1, 512>}, {transform_indices = @transform_12, window_bounds = array<i64: 1, 2, 512>}, {transform_indices = @transform_13, window_bounds = array<i64: 1, 2, 512>}, {transform_indices = @transform_14, window_bounds = array<i64: 1, 2, 512>}]} {
    %c0_i32 = arith.constant 0 : i32
    %0 = arith.cmpi eq, %arg0, %c0_i32 : i32
    %1 = arith.extui %0 : i1 to i32
    %c0_i32_0 = arith.constant 0 : i32
    %2 = arith.cmpi ne, %1, %c0_i32_0 : i32
    scf.if %2 {
      %c0_47 = arith.constant 0 : index
      %c0_48 = arith.constant 0 : index
      %70 = vector.load %arg1[%c0_47, %c0_48] : memref<2x512xf32, #tpu.memory_space<vmem>>, vector<2x512xf32>
      %c0_49 = arith.constant 0 : index
      %c0_50 = arith.constant 0 : index
      %71 = vector.load %arg16[%c0_49, %c0_50] : memref<2x512xf32, #tpu.memory_space<vmem>>, vector<2x512xf32>
      tpu.vector_store %arg16[%c0_49, %c0_50], %70 {strides = array<i32>} : memref<2x512xf32, #tpu.memory_space<vmem>>, vector<2x512xf32>,
      %c0_51 = arith.constant 0 : index
      %c0_52 = arith.constant 0 : index
      %72 = vector.load %arg2[%c0_51, %c0_52] : memref<2x512xf32, #tpu.memory_space<vmem>>, vector<2x512xf32>
      %c0_53 = arith.constant 0 : index
      %c0_54 = arith.constant 0 : index
      %73 = vector.load %arg17[%c0_53, %c0_54] : memref<2x512xf32, #tpu.memory_space<vmem>>, vector<2x512xf32>
      tpu.vector_store %arg17[%c0_53, %c0_54], %72 {strides = array<i32>} : memref<2x512xf32, #tpu.memory_space<vmem>>, vector<2x512xf32>,
      %c0_55 = arith.constant 0 : index
      %c0_56 = arith.constant 0 : index
      %74 = vector.load %arg3[%c0_55, %c0_56] : memref<2x512xf32, #tpu.memory_space<vmem>>, vector<2x512xf32>
      %c0_57 = arith.constant 0 : index
      %c0_58 = arith.constant 0 : index
      %75 = vector.load %arg18[%c0_57, %c0_58] : memref<2x512xf32, #tpu.memory_space<vmem>>, vector<2x512xf32>
      tpu.vector_store %arg18[%c0_57, %c0_58], %74 {strides = array<i32>} : memref<2x512xf32, #tpu.memory_space<vmem>>, vector<2x512xf32>,
    } else {
    }
    %c0 = arith.constant 0 : index
    %c0_1 = arith.constant 0 : index
    %3 = vector.load %arg16[%c0, %c0_1] : memref<2x512xf32, #tpu.memory_space<vmem>>, vector<2x512xf32>
    %c0_2 = arith.constant 0 : index
    %c0_3 = arith.constant 0 : index
    %4 = vector.load %arg17[%c0_2, %c0_3] : memref<2x512xf32, #tpu.memory_space<vmem>>, vector<2x512xf32>
    %c0_4 = arith.constant 0 : index
    %c0_5 = arith.constant 0 : index
    %5 = vector.load %arg18[%c0_4, %c0_5] : memref<2x512xf32, #tpu.memory_space<vmem>>, vector<2x512xf32>
    %c0_6 = arith.constant 0 : index
    %c0_7 = arith.constant 0 : index
    %6 = vector.load %arg4[%c0_6, %c0_7] : memref<512x256xf32, #tpu.memory_space<vmem>>, vector<512x256xf32>
    %cst = arith.constant dense<0.000000e+00> : vector<2x256xf32>
    %7 = tpu.matmul %3, %6, %cst {dimension_numbers = #tpu.dot_dimension_numbers<[1], [0], [0], [1], [0, 0, 1, 1], [], []>} : vector<2x512xf32>, vector<512x256xf32>, vector<2x256xf32> -> vector<2x256xf32>
    %c0_8 = arith.constant 0 : index
    %c0_9 = arith.constant 0 : index
    %8 = vector.load %arg5[%c0_8, %c0_9] : memref<1x256xf32, #tpu.memory_space<vmem>>, vector<1x256xf32>
    %9 = vector.broadcast %8 : vector<1x256xf32> to vector<2x256xf32>
    %10 = arith.addf %7, %9 : vector<2x256xf32>
    %cst_10 = arith.constant 0.000000e+00 : f32
    %11 = vector.broadcast %cst_10 : f32 to vector<2x256xf32>
    %12 = arith.maximumf %10, %11 : vector<2x256xf32>
    %c0_11 = arith.constant 0 : index
    %c0_12 = arith.constant 0 : index
    %13 = vector.load %arg6[%c0_11, %c0_12] : memref<256x128xf32, #tpu.memory_space<vmem>>, vector<256x128xf32>
    %cst_13 = arith.constant dense<0.000000e+00> : vector<2x128xf32>
    %14 = tpu.matmul %12, %13, %cst_13 {dimension_numbers = #tpu.dot_dimension_numbers<[1], [0], [0], [1], [0, 0, 1, 1], [], []>} : vector<2x256xf32>, vector<256x128xf32>, vector<2x128xf32> -> vector<2x128xf32>
    %c0_14 = arith.constant 0 : index
    %c0_15 = arith.constant 0 : index
    %15 = vector.load %arg7[%c0_14, %c0_15] : memref<1x128xf32, #tpu.memory_space<vmem>>, vector<1x128xf32>
    %16 = vector.broadcast %15 : vector<1x128xf32> to vector<2x128xf32>
    %17 = arith.addf %14, %16 : vector<2x128xf32>
    %cst_16 = arith.constant 0.000000e+00 : f32
    %18 = vector.broadcast %cst_16 : f32 to vector<2x128xf32>
    %19 = arith.maximumf %17, %18 : vector<2x128xf32>
    %c0_17 = arith.constant 0 : index
    %c0_18 = arith.constant 0 : index
    %20 = vector.load %arg8[%c0_17, %c0_18] : memref<128x2048xf32, #tpu.memory_space<vmem>>, vector<128x2048xf32>
    %cst_19 = arith.constant dense<0.000000e+00> : vector<2x2048xf32>
    %21 = tpu.matmul %19, %20, %cst_19 {dimension_numbers = #tpu.dot_dimension_numbers<[1], [0], [0], [1], [0, 0, 1, 1], [], []>} : vector<2x128xf32>, vector<128x2048xf32>, vector<2x2048xf32> -> vector<2x2048xf32>
    %c0_20 = arith.constant 0 : index
    %c0_21 = arith.constant 0 : index
    %22 = vector.load %arg9[%c0_20, %c0_21] : memref<512x2048xf32, #tpu.memory_space<vmem>>, vector<512x2048xf32>
    %cst_22 = arith.constant dense<0.000000e+00> : vector<2x2048xf32>
    %23 = tpu.matmul %4, %22, %cst_22 {dimension_numbers = #tpu.dot_dimension_numbers<[1], [0], [0], [1], [0, 0, 1, 1], [], []>} : vector<2x512xf32>, vector<512x2048xf32>, vector<2x2048xf32> -> vector<2x2048xf32>
    %24 = arith.addf %21, %23 : vector<2x2048xf32>
    %c0_23 = arith.constant 0 : index
    %c0_24 = arith.constant 0 : index
    %25 = vector.load %arg10[%c0_23, %c0_24] : memref<1x2048xf32, #tpu.memory_space<vmem>>, vector<1x2048xf32>
    %26 = vector.broadcast %25 : vector<1x2048xf32> to vector<2x2048xf32>
    %27 = arith.addf %24, %26 : vector<2x2048xf32>
    %28 = tpu.iota {dimensions = array<i32: 1>} : vector<2x2048xi32>
    %c1024_i32 = arith.constant 1024 : i32
    %29 = vector.broadcast %c1024_i32 : i32 to vector<2x2048xi32>
    %30 = arith.cmpi sge, %28, %29 : vector<2x2048xi32>
    %c1536_i32 = arith.constant 1536 : i32
    %31 = vector.broadcast %c1536_i32 : i32 to vector<2x2048xi32>
    %32 = arith.cmpi slt, %28, %31 : vector<2x2048xi32>
    %33 = arith.andi %30, %32 : vector<2x2048xi1>
    %34 = math.tanh %27 : vector<2x2048xf32>
    %35 = arith.negf %27 : vector<2x2048xf32>
    %36 = math.exp %35 : vector<2x2048xf32>
    %cst_25 = arith.constant 1.000000e+00 : f32
    %37 = vector.broadcast %cst_25 : f32 to vector<2x2048xf32>
    %38 = arith.addf %37, %36 : vector<2x2048xf32>
    %39 = arith.divf %37, %38 : vector<2x2048xf32>
    %40 = arith.select %33, %34, %39 : vector<2x2048xi1>, vector<2x2048xf32>
    %41 = vector.extract_strided_slice %40 {offsets = [0, 0], sizes = [2, 512], strides = [1, 1]} : vector<2x2048xf32> to vector<2x512xf32>
    %42 = vector.extract_strided_slice %40 {offsets = [0, 512], sizes = [2, 512], strides = [1, 1]} : vector<2x2048xf32> to vector<2x512xf32>
    %43 = vector.extract_strided_slice %40 {offsets = [0, 1024], sizes = [2, 512], strides = [1, 1]} : vector<2x2048xf32> to vector<2x512xf32>
    %44 = vector.extract_strided_slice %40 {offsets = [0, 1536], sizes = [2, 512], strides = [1, 1]} : vector<2x2048xf32> to vector<2x512xf32>
    %45 = arith.mulf %42, %5 : vector<2x512xf32>
    %46 = arith.mulf %41, %43 : vector<2x512xf32>
    %47 = arith.addf %45, %46 : vector<2x512xf32>
    %48 = math.tanh %47 : vector<2x512xf32>
    %49 = arith.mulf %44, %48 : vector<2x512xf32>
    %c0_26 = arith.constant 0 : index
    %c0_27 = arith.constant 0 : index
    %50 = vector.load %arg11[%c0_26, %c0_27] : memref<512x512xf32, #tpu.memory_space<vmem>>, vector<512x512xf32>
    %cst_28 = arith.constant dense<0.000000e+00> : vector<2x512xf32>
    %51 = tpu.matmul %49, %50, %cst_28 {dimension_numbers = #tpu.dot_dimension_numbers<[1], [0], [0], [1], [0, 0, 1, 1], [], []>} : vector<2x512xf32>, vector<512x512xf32>, vector<2x512xf32> -> vector<2x512xf32>
    %c0_29 = arith.constant 0 : index
    %c0_30 = arith.constant 0 : index
    %52 = vector.load %arg12[%c0_29, %c0_30] : memref<1x512xf32, #tpu.memory_space<vmem>>, vector<1x512xf32>
    %53 = vector.broadcast %52 : vector<1x512xf32> to vector<2x512xf32>
    %54 = arith.addf %51, %53 : vector<2x512xf32>
    %cst_31 = arith.constant 2.000000e-03 : f32
    %55 = vector.broadcast %cst_31 : f32 to vector<2x512xf32>
    %56 = arith.mulf %55, %54 : vector<2x512xf32>
    %57 = arith.addf %3, %56 : vector<2x512xf32>
    %c0_32 = arith.constant 0 : index
    %c0_33 = arith.constant 0 : index
    %58 = vector.load %arg16[%c0_32, %c0_33] : memref<2x512xf32, #tpu.memory_space<vmem>>, vector<2x512xf32>
    tpu.vector_store %arg16[%c0_32, %c0_33], %57 {strides = array<i32>} : memref<2x512xf32, #tpu.memory_space<vmem>>, vector<2x512xf32>,
    %c0_34 = arith.constant 0 : index
    %c0_35 = arith.constant 0 : index
    %59 = vector.load %arg17[%c0_34, %c0_35] : memref<2x512xf32, #tpu.memory_space<vmem>>, vector<2x512xf32>
    tpu.vector_store %arg17[%c0_34, %c0_35], %49 {strides = array<i32>} : memref<2x512xf32, #tpu.memory_space<vmem>>, vector<2x512xf32>,
    %c0_36 = arith.constant 0 : index
    %c0_37 = arith.constant 0 : index
    %60 = vector.load %arg18[%c0_36, %c0_37] : memref<2x512xf32, #tpu.memory_space<vmem>>, vector<2x512xf32>
    tpu.vector_store %arg18[%c0_36, %c0_37], %47 {strides = array<i32>} : memref<2x512xf32, #tpu.memory_space<vmem>>, vector<2x512xf32>,
    %c0_38 = arith.constant 0 : index
    %c0_39 = arith.constant 0 : index
    %c0_40 = arith.constant 0 : index
    %61 = vector.load %arg13[%c0_38, %c0_39, %c0_40] : memref<1x2x512xf32, #tpu.memory_space<vmem>>, vector<1x2x512xf32>
    %62 = vector.shape_cast %61 : vector<1x2x512xf32> to vector<2x512xf32>
    %63 = vector.shape_cast %57 : vector<2x512xf32> to vector<1x2x512xf32>
    tpu.vector_store %arg13[%c0_38, %c0_39, %c0_40], %63 {strides = array<i32>} : memref<1x2x512xf32, #tpu.memory_space<vmem>>, vector<1x2x512xf32>,
    %c0_41 = arith.constant 0 : index
    %c0_42 = arith.constant 0 : index
    %c0_43 = arith.constant 0 : index
    %64 = vector.load %arg14[%c0_41, %c0_42, %c0_43] : memref<1x2x512xf32, #tpu.memory_space<vmem>>, vector<1x2x512xf32>
    %65 = vector.shape_cast %64 : vector<1x2x512xf32> to vector<2x512xf32>
    %66 = vector.shape_cast %49 : vector<2x512xf32> to vector<1x2x512xf32>
    tpu.vector_store %arg14[%c0_41, %c0_42, %c0_43], %66 {strides = array<i32>} : memref<1x2x512xf32, #tpu.memory_space<vmem>>, vector<1x2x512xf32>,
    %c0_44 = arith.constant 0 : index
    %c0_45 = arith.constant 0 : index
    %c0_46 = arith.constant 0 : index
    %67 = vector.load %arg15[%c0_44, %c0_45, %c0_46] : memref<1x2x512xf32, #tpu.memory_space<vmem>>, vector<1x2x512xf32>
    %68 = vector.shape_cast %67 : vector<1x2x512xf32> to vector<2x512xf32>
    %69 = vector.shape_cast %47 : vector<2x512xf32> to vector<1x2x512xf32>
    tpu.vector_store %arg15[%c0_44, %c0_45, %c0_46], %69 {strides = array<i32>} : memref<1x2x512xf32, #tpu.memory_space<vmem>>, vector<1x2x512xf32>,
    return
  }
  func.func @transform_0(%arg0: i32) -> (i32, i32) {
    %c0_i32 = arith.constant 0 : i32
    %c0_i32_0 = arith.constant 0 : i32
    %c0_i32_1 = arith.constant 0 : i32
    return %c0_i32, %c0_i32_0 : i32, i32
  }
  func.func @transform_1(%arg0: i32) -> (i32, i32) {
    %c0_i32 = arith.constant 0 : i32
    %c0_i32_0 = arith.constant 0 : i32
    %c0_i32_1 = arith.constant 0 : i32
    return %c0_i32, %c0_i32_0 : i32, i32
  }
  func.func @transform_2(%arg0: i32) -> (i32, i32) {
    %c0_i32 = arith.constant 0 : i32
    %c0_i32_0 = arith.constant 0 : i32
    %c0_i32_1 = arith.constant 0 : i32
    return %c0_i32, %c0_i32_0 : i32, i32
  }
  func.func @transform_3(%arg0: i32) -> (i32, i32) {
    %c0_i32 = arith.constant 0 : i32
    %c0_i32_0 = arith.constant 0 : i32
    %c0_i32_1 = arith.constant 0 : i32
    return %c0_i32, %c0_i32_0 : i32, i32
  }
  func.func @transform_4(%arg0: i32) -> (i32, i32) {
    %c0_i32 = arith.constant 0 : i32
    %c0_i32_0 = arith.constant 0 : i32
    %c0_i32_1 = arith.constant 0 : i32
    return %c0_i32, %c0_i32_0 : i32, i32
  }
  func.func @transform_5(%arg0: i32) -> (i32, i32) {
    %c0_i32 = arith.constant 0 : i32
    %c0_i32_0 = arith.constant 0 : i32
    %c0_i32_1 = arith.constant 0 : i32
    return %c0_i32, %c0_i32_0 : i32, i32
  }
  func.func @transform_6(%arg0: i32) -> (i32, i32) {
    %c0_i32 = arith.constant 0 : i32
    %c0_i32_0 = arith.constant 0 : i32
    %c0_i32_1 = arith.constant 0 : i32
    return %c0_i32, %c0_i32_0 : i32, i32
  }
  func.func @transform_7(%arg0: i32) -> (i32, i32) {
    %c0_i32 = arith.constant 0 : i32
    %c0_i32_0 = arith.constant 0 : i32
    %c0_i32_1 = arith.constant 0 : i32
    return %c0_i32, %c0_i32_0 : i32, i32
  }
  func.func @transform_8(%arg0: i32) -> (i32, i32) {
    %c0_i32 = arith.constant 0 : i32
    %c0_i32_0 = arith.constant 0 : i32
    %c0_i32_1 = arith.constant 0 : i32
    return %c0_i32, %c0_i32_0 : i32, i32
  }
  func.func @transform_9(%arg0: i32) -> (i32, i32) {
    %c0_i32 = arith.constant 0 : i32
    %c0_i32_0 = arith.constant 0 : i32
    %c0_i32_1 = arith.constant 0 : i32
    return %c0_i32, %c0_i32_0 : i32, i32
  }
  func.func @transform_10(%arg0: i32) -> (i32, i32) {
    %c0_i32 = arith.constant 0 : i32
    %c0_i32_0 = arith.constant 0 : i32
    %c0_i32_1 = arith.constant 0 : i32
    return %c0_i32, %c0_i32_0 : i32, i32
  }
  func.func @transform_11(%arg0: i32) -> (i32, i32) {
    %c0_i32 = arith.constant 0 : i32
    %c0_i32_0 = arith.constant 0 : i32
    %c0_i32_1 = arith.constant 0 : i32
    return %c0_i32, %c0_i32_0 : i32, i32
  }
  func.func @transform_12(%arg0: i32) -> (i32, i32, i32) {
    %c0_i32 = arith.constant 0 : i32
    %c0_i32_0 = arith.constant 0 : i32
    %c0_i32_1 = arith.constant 0 : i32
    return %arg0, %c0_i32, %c0_i32_0 : i32, i32, i32
  }
  func.func @transform_13(%arg0: i32) -> (i32, i32, i32) {
    %c0_i32 = arith.constant 0 : i32
    %c0_i32_0 = arith.constant 0 : i32
    %c0_i32_1 = arith.constant 0 : i32
    return %arg0, %c0_i32, %c0_i32_0 : i32, i32, i32
  }
  func.func @transform_14(%arg0: i32) -> (i32, i32, i32) {
    %c0_i32 = arith.constant 0 : i32
    %c0_i32_0 = arith.constant 0 : i32
    %c0_i32_1 = arith.constant 0 : i32
    return %arg0, %c0_i32, %c0_i32_0 : i32, i32, i32
  }
}

</mosaic_0001>

<llo_original>
// kernel: squeeze.5
$region0: #{squeeze.5}
  %s0 = inlined_call_operand.vmem [shape: f32[1,2,512], index: 0, kind: input, shape index: {}]
  %s1 = inlined_call_operand.vmem [shape: f32[2,32,4,4], index: 1, kind: output, shape index: {}]
  $region1: #{squeeze.5} parent=0
    #allocation0 [shape = 'u8[262144]{0}', space=vmem, size = 0x40000, scoped, tag = 'scoped mem for output reshape']
    #allocation1 [shape = 'u8[16384]{0}', space=vmem, size = 0x4000, scoped, tag = 'scoped mem for input reshape']
    %s3 = sshllo.u32 0, 2
    %s4 = smul.addr 2, 3
    %s5 = scalar_lea.vmem %s0, %s4
    %v6 = vld [vmem:[%s5] sm:%s3]
    %s7 = scalar_lea.vmem [#allocation1], 24
    %8 = vst [vmem:[%s7] sm:%s3] %v6
    %s9 = smul.addr 2, 2
    %s10 = scalar_lea.vmem %s0, %s9
    %v11 = vld [vmem:[%s10] sm:%s3]
    %s12 = scalar_lea.vmem [#allocation1], 16
    %13 = vst [vmem:[%s12] sm:%s3] %v11
    %s14 = scalar_lea.vmem %s0, 2
    %v15 = vld [vmem:[%s14] sm:%s3]
    %s16 = scalar_lea.vmem [#allocation1], 8
    %17 = vst [vmem:[%s16] sm:%s3] %v15
    %v18 = vld [vmem:[%s0] sm:%s3]
    %19 = vst [vmem:[#allocation1] sm:%s3] %v18
    %v20 = vld [vmem:[#allocation1] sm:$0x3]
    %vm21 = vcmask 31744
    %22 = vst.msk [vmem:[#allocation0] sm:$0x1] %vm21, %v20
    %s23 = scalar_lea.vmem [#allocation0], 255
    %24 = vst.msk [vmem:[%s23] sm:$0x2] %vm21, %v20
    %s25 = scalar_lea.vmem [#allocation1], 8
    %v26 = vld [vmem:[%s25] sm:$0x3]
    %vm27 = vcmask 31744
    %s28 = scalar_lea.vmem [#allocation0], 64
    %29 = vst.msk [vmem:[%s28] sm:$0x1] %vm27, %v26
    %s30 = scalar_lea.vmem [#allocation0], 319
    %31 = vst.msk [vmem:[%s30] sm:$0x2] %vm27, %v26
    %s32 = scalar_lea.vmem [#allocation1], 16
    %v33 = vld [vmem:[%s32] sm:$0x3]
    %vm34 = vcmask 31744
    %s35 = scalar_lea.vmem [#allocation0], 128
    %36 = vst.msk [vmem:[%s35] sm:$0x1] %vm34, %v33
    %s37 = scalar_lea.vmem [#allocation0], 383
    %38 = vst.msk [vmem:[%s37] sm:$0x2] %vm34, %v33
    %s39 = scalar_lea.vmem [#allocation1], 24
    %v40 = vld [vmem:[%s39] sm:$0x3]
    %vm41 = vcmask 31744
    %s42 = scalar_lea.vmem [#allocation0], 192
    %43 = vst.msk [vmem:[%s42] sm:$0x1] %vm41, %v40
    %s44 = scalar_lea.vmem [#allocation0], 447
    %45 = vst.msk [vmem:[%s44] sm:$0x2] %vm41, %v40
    %v46 = vld.sshfl [vmem:[#allocation1] sm:$0xff pattern:$0x99999810]
    %s47 = scalar_lea.vmem [#allocation1], 16
    %v48 = vld.sshfl [vmem:[%s47] sm:$0xff pattern:$0x98100000]
    %vm49 = vcmask 1047556
    %v50 = vsel %vm49, %v48, %v46
    %51 = vrot.lane.b32.xlu0 %v50, 124
    %v52 = vpop.permute.xlu0 %51
    %vm53 = vcmask 31744
    %s54 = scalar_lea.vmem [#allocation0], 1
    %55 = vst.msk [vmem:[%s54] sm:$0x1] %vm53, %v52
    %s56 = scalar_lea.vmem [#allocation0], 256
    %57 = vst.msk [vmem:[%s56] sm:$0x2] %vm53, %v52
    %s58 = scalar_lea.vmem [#allocation0], 63
    %59 = vst.msk [vmem:[%s58] sm:$0x4] %vm53, %v52
    %s60 = scalar_lea.vmem [#allocation0], 318
    %61 = vst.msk [vmem:[%s60] sm:$0x8] %vm53, %v52
    %s62 = scalar_lea.vmem [#allocation0], 125
    %63 = vst.msk [vmem:[%s62] sm:$0x10] %vm53, %v52
    %s64 = scalar_lea.vmem [#allocation0], 380
    %65 = vst.msk [vmem:[%s64] sm:$0x20] %vm53, %v52
    %s66 = scalar_lea.vmem [#allocation0], 187
    %67 = vst.msk [vmem:[%s66] sm:$0x40] %vm53, %v52
    %s68 = scalar_lea.vmem [#allocation0], 442
    %69 = vst.msk [vmem:[%s68] sm:$0x80] %vm53, %v52
    %v70 = vld.sshfl [vmem:[#allocation1] sm:$0xff pattern:$0x99999810]
    %s71 = scalar_lea.vmem [#allocation1], 16
    %v72 = vld.sshfl [vmem:[%s71] sm:$0xff pattern:$0x98100000]
    %vm73 = vcmask 1047556
    %v74 = vsel %vm73, %v72, %v70
    %75 = vrot.lane.b32.xlu0 %v74, 120
    %v76 = vpop.permute.xlu0 %75
    %vm77 = vcmask 31744
    %s78 = scalar_lea.vmem [#allocation0], 2
    %79 = vst.msk [vmem:[%s78] sm:$0x1] %vm77, %v76
    %s80 = scalar_lea.vmem [#allocation0], 257
    %81 = vst.msk [vmem:[%s80] sm:$0x2] %vm77, %v76
    %s82 = scalar_lea.vmem [#allocation0], 64
    %83 = vst.msk [vmem:[%s82] sm:$0x4] %vm77, %v76
    %s84 = scalar_lea.vmem [#allocation0], 319
    %85 = vst.msk [vmem:[%s84] sm:$0x8] %vm77, %v76
    %s86 = scalar_lea.vmem [#allocation0], 126
    %87 = vst.msk [vmem:[%s86] sm:$0x10] %vm77, %v76
    %s88 = scalar_lea.vmem [#allocation0], 381
    %89 = vst.msk [vmem:[%s88] sm:$0x20] %vm77, %v76
    %s90 = scalar_lea.vmem [#allocation0], 188
    %91 = vst.msk [vmem:[%s90] sm:$0x40] %vm77, %v76
    %s92 = scalar_lea.vmem [#allocation0], 443
    %93 = vst.msk [vmem:[%s92] sm:$0x80] %vm77, %v76
    %v94 = vld.sshfl [vmem:[#allocation1] sm:$0xff pattern:$0x99999810]
    %s95 = scalar_lea.vmem [#allocation1], 16
    %v96 = vld.sshfl [vmem:[%s95] sm:$0xff pattern:$0x98100000]
    %vm97 = vcmask 1047556
    %v98 = vsel %vm97, %v96, %v94
    %99 = vrot.lane.b32.xlu0 %v98, 116
    %v100 = vpop.permute.xlu0 %99
    %vm101 = vcmask 31744
    %s102 = scalar_lea.vmem [#allocation0], 3
    %103 = vst.msk [vmem:[%s102] sm:$0x1] %vm101, %v100
    %s104 = scalar_lea.vmem [#allocation0], 258
    %105 = vst.msk [vmem:[%s104] sm:$0x2] %vm101, %v100
    %s106 = scalar_lea.vmem [#allocation0], 65
    %107 = vst.msk [vmem:[%s106] sm:$0x4] %vm101, %v100
    %s108 = scalar_lea.vmem [#allocation0], 320
    %109 = vst.msk [vmem:[%s108] sm:$0x8] %vm101, %v100
    %s110 = scalar_lea.vmem [#allocation0], 127
    %111 = vst.msk [vmem:[%s110] sm:$0x10] %vm101, %v100
    %s112 = scalar_lea.vmem [#allocation0], 382
    %113 = vst.msk [vmem:[%s112] sm:$0x20] %vm101, %v100
    %s114 = scalar_lea.vmem [#allocation0], 189
    %115 = vst.msk [vmem:[%s114] sm:$0x40] %vm101, %v100
    %s116 = scalar_lea.vmem [#allocation0], 444
    %117 = vst.msk [vmem:[%s116] sm:$0x80] %vm101, %v100
    %v118 = vld.sshfl [vmem:[#allocation1] sm:$0xff pattern:$0x99999810]
    %s119 = scalar_lea.vmem [#allocation1], 16
    %v120 = vld.sshfl [vmem:[%s119] sm:$0xff pattern:$0x98100000]
    %vm121 = vcmask 1047556
    %v122 = vsel %vm121, %v120, %v118
    %123 = vrot.lane.b32.xlu0 %v122, 112
    %v124 = vpop.permute.xlu0 %123
    %vm125 = vcmask 31744
    %s126 = scalar_lea.vmem [#allocation0], 8
    %127 = vst.msk [vmem:[%s126] sm:$0x1] %vm125, %v124
    %s128 = scalar_lea.vmem [#allocation0], 263
    %129 = vst.msk [vmem:[%s128] sm:$0x2] %vm125, %v124
    %s130 = scalar_lea.vmem [#allocation0], 70
    %131 = vst.msk [vmem:[%s130] sm:$0x4] %vm125, %v124
    %s132 = scalar_lea.vmem [#allocation0], 325
    %133 = vst.msk [vmem:[%s132] sm:$0x8] %vm125, %v124
    %s134 = scalar_lea.vmem [#allocation0], 132
    %135 = vst.msk [vmem:[%s134] sm:$0x10] %vm125, %v124
    %s136 = scalar_lea.vmem [#allocation0], 387
    %137 = vst.msk [vmem:[%s136] sm:$0x20] %vm125, %v124
    %s138 = scalar_lea.vmem [#allocation0], 194
    %139 = vst.msk [vmem:[%s138] sm:$0x40] %vm125, %v124
    %s140 = scalar_lea.vmem [#allocation0], 449
    %141 = vst.msk [vmem:[%s140] sm:$0x80] %vm125, %v124
    %v142 = vld.sshfl [vmem:[#allocation1] sm:$0xff pattern:$0x99999810]
    %s143 = scalar_lea.vmem [#allocation1], 16
    %v144 = vld.sshfl [vmem:[%s143] sm:$0xff pattern:$0x98100000]
    %vm145 = vcmask 1047556
    %v146 = vsel %vm145, %v144, %v142
    %147 = vrot.lane.b32.xlu0 %v146, 108
    %v148 = vpop.permute.xlu0 %147
    %vm149 = vcmask 31744
    %s150 = scalar_lea.vmem [#allocation0], 9
    %151 = vst.msk [vmem:[%s150] sm:$0x1] %vm149, %v148
    %s152 = scalar_lea.vmem [#allocation0], 264
    %153 = vst.msk [vmem:[%s152] sm:$0x2] %vm149, %v148
    %s154 = scalar_lea.vmem [#allocation0], 71
    %155 = vst.msk [vmem:[%s154] sm:$0x4] %vm149, %v148
    %s156 = scalar_lea.vmem [#allocation0], 326
    %157 = vst.msk [vmem:[%s156] sm:$0x8] %vm149, %v148
    %s158 = scalar_lea.vmem [#allocation0], 133
    %159 = vst.msk [vmem:[%s158] sm:$0x10] %vm149, %v148
    %s160 = scalar_lea.vmem [#allocation0], 388
    %161 = vst.msk [vmem:[%s160] sm:$0x20] %vm149, %v148
    %s162 = scalar_lea.vmem [#allocation0], 195
    %163 = vst.msk [vmem:[%s162] sm:$0x40] %vm149, %v148
    %s164 = scalar_lea.vmem [#allocation0], 450
    %165 = vst.msk [vmem:[%s164] sm:$0x80] %vm149, %v148
    %v166 = vld.sshfl [vmem:[#allocation1] sm:$0xff pattern:$0x99999810]
    %s167 = scalar_lea.vmem [#allocation1], 16
    %v168 = vld.sshfl [vmem:[%s167] sm:$0xff pattern:$0x98100000]
    %vm169 = vcmask 1047556
    %v170 = vsel %vm169, %v168, %v166
    %171 = vrot.lane.b32.xlu0 %v170, 104
    %v172 = vpop.permute.xlu0 %171
    %vm173 = vcmask 31744
    %s174 = scalar_lea.vmem [#allocation0], 10
    %175 = vst.msk [vmem:[%s174] sm:$0x1] %vm173, %v172
    %s176 = scalar_lea.vmem [#allocation0], 265
    %177 = vst.msk [vmem:[%s176] sm:$0x2] %vm173, %v172
    %s178 = scalar_lea.vmem [#allocation0], 72
    %179 = vst.msk [vmem:[%s178] sm:$0x4] %vm173, %v172
    %s180 = scalar_lea.vmem [#allocation0], 327
    %181 = vst.msk [vmem:[%s180] sm:$0x8] %vm173, %v172
    %s182 = scalar_lea.vmem [#allocation0], 134
    %183 = vst.msk [vmem:[%s182] sm:$0x10] %vm173, %v172
    %s184 = scalar_lea.vmem [#allocation0], 389
    %185 = vst.msk [vmem:[%s184] sm:$0x20] %vm173, %v172
    %s186 = scalar_lea.vmem [#allocation0], 196
    %187 = vst.msk [vmem:[%s186] sm:$0x40] %vm173, %v172
    %s188 = scalar_lea.vmem [#allocation0], 451
    %189 = vst.msk [vmem:[%s188] sm:$0x80] %vm173, %v172
    %v190 = vld.sshfl [vmem:[#allocation1] sm:$0xff pattern:$0x99999810]
    %s191 = scalar_lea.vmem [#allocation1], 16
    %v192 = vld.sshfl [vmem:[%s191] sm:$0xff pattern:$0x98100000]
    %vm193 = vcmask 1047556
    %v194 = vsel %vm193, %v192, %v190
    %195 = vrot.lane.b32.xlu0 %v194, 100
    %v196 = vpop.permute.xlu0 %195
    %vm197 = vcmask 31744
    %s198 = scalar_lea.vmem [#allocation0], 11
    %199 = vst.msk [vmem:[%s198] sm:$0x1] %vm197, %v196
    %s200 = scalar_lea.vmem [#allocation0], 266
    %201 = vst.msk [vmem:[%s200] sm:$0x2] %vm197, %v196
    %s202 = scalar_lea.vmem [#allocation0], 73
    %203 = vst.msk [vmem:[%s202] sm:$0x4] %vm197, %v196
    %s204 = scalar_lea.vmem [#allocation0], 328
    %205 = vst.msk [vmem:[%s204] sm:$0x8] %vm197, %v196
    %s206 = scalar_lea.vmem [#allocation0], 135
    %207 = vst.msk [vmem:[%s206] sm:$0x10] %vm197, %v196
    %s208 = scalar_lea.vmem [#allocation0], 390
    %209 = vst.msk [vmem:[%s208] sm:$0x20] %vm197, %v196
    %s210 = scalar_lea.vmem [#allocation0], 197
    %211 = vst.msk [vmem:[%s210] sm:$0x40] %vm197, %v196
    %s212 = scalar_lea.vmem [#allocation0], 452
    %213 = vst.msk [vmem:[%s212] sm:$0x80] %vm197, %v196
    %v214 = vld.sshfl [vmem:[#allocation1] sm:$0xff pattern:$0x99999810]
    %s215 = scalar_lea.vmem [#allocation1], 16
    %v216 = vld.sshfl [vmem:[%s215] sm:$0xff pattern:$0x98100000]
    %vm217 = vcmask 1047556
    %v218 = vsel %vm217, %v216, %v214
    %219 = vrot.lane.b32.xlu0 %v218, 96
    %v220 = vpop.permute.xlu0 %219
    %vm221 = vcmask 31744
    %s222 = scalar_lea.vmem [#allocation0], 16
    %223 = vst.msk [vmem:[%s222] sm:$0x1] %vm221, %v220
    %s224 = scalar_lea.vmem [#allocation0], 271
    %225 = vst.msk [vmem:[%s224] sm:$0x2] %vm221, %v220
    %s226 = scalar_lea.vmem [#allocation0], 78
    %227 = vst.msk [vmem:[%s226] sm:$0x4] %vm221, %v220
    %s228 = scalar_lea.vmem [#allocation0], 333
    %229 = vst.msk [vmem:[%s228] sm:$0x8] %vm221, %v220
    %s230 = scalar_lea.vmem [#allocation0], 140
    %231 = vst.msk [vmem:[%s230] sm:$0x10] %vm221, %v220
    %s232 = scalar_lea.vmem [#allocation0], 395
    %233 = vst.msk [vmem:[%s232] sm:$0x20] %vm221, %v220
    %s234 = scalar_lea.vmem [#allocation0], 202
    %235 = vst.msk [vmem:[%s234] sm:$0x40] %vm221, %v220
    %s236 = scalar_lea.vmem [#allocation0], 457
    %237 = vst.msk [vmem:[%s236] sm:$0x80] %vm221, %v220
    %v238 = vld.sshfl [vmem:[#allocation1] sm:$0xff pattern:$0x99999810]
    %s239 = scalar_lea.vmem [#allocation1], 16
    %v240 = vld.sshfl [vmem:[%s239] sm:$0xff pattern:$0x98100000]
    %vm241 = vcmask 1047556
    %v242 = vsel %vm241, %v240, %v238
    %243 = vrot.lane.b32.xlu0 %v242, 92
    %v244 = vpop.permute.xlu0 %243
    %vm245 = vcmask 31744
    %s246 = scalar_lea.vmem [#allocation0], 17
    %247 = vst.msk [vmem:[%s246] sm:$0x1] %vm245, %v244
    %s248 = scalar_lea.vmem [#allocation0], 272
    %249 = vst.msk [vmem:[%s248] sm:$0x2] %vm245, %v244
    %s250 = scalar_lea.vmem [#allocation0], 79
    %251 = vst.msk [vmem:[%s250] sm:$0x4] %vm245, %v244
    %s252 = scalar_lea.vmem [#allocation0], 334
    %253 = vst.msk [vmem:[%s252] sm:$0x8] %vm245, %v244
    %s254 = scalar_lea.vmem [#allocation0], 141
    %255 = vst.msk [vmem:[%s254] sm:$0x10] %vm245, %v244
    %s256 = scalar_lea.vmem [#allocation0], 396
    %257 = vst.msk [vmem:[%s256] sm:$0x20] %vm245, %v244
    %s258 = scalar_lea.vmem [#allocation0], 203
    %259 = vst.msk [vmem:[%s258] sm:$0x40] %vm245, %v244
    %s260 = scalar_lea.vmem [#allocation0], 458
    %261 = vst.msk [vmem:[%s260] sm:$0x80] %vm245, %v244
    %v262 = vld.sshfl [vmem:[#allocation1] sm:$0xff pattern:$0x99999810]
    %s263 = scalar_lea.vmem [#allocation1], 16
    %v264 = vld.sshfl [vmem:[%s263] sm:$0xff pattern:$0x98100000]
    %vm265 = vcmask 1047556
    %v266 = vsel %vm265, %v264, %v262
    %267 = vrot.lane.b32.xlu0 %v266, 88
    %v268 = vpop.permute.xlu0 %267
    %vm269 = vcmask 31744
    %s270 = scalar_lea.vmem [#allocation0], 18
    %271 = vst.msk [vmem:[%s270] sm:$0x1] %vm269, %v268
    %s272 = scalar_lea.vmem [#allocation0], 273
    %273 = vst.msk [vmem:[%s272] sm:$0x2] %vm269, %v268
    %s274 = scalar_lea.vmem [#allocation0], 80
    %275 = vst.msk [vmem:[%s274] sm:$0x4] %vm269, %v268
    %s276 = scalar_lea.vmem [#allocation0], 335
    %277 = vst.msk [vmem:[%s276] sm:$0x8] %vm269, %v268
    %s278 = scalar_lea.vmem [#allocation0], 142
    %279 = vst.msk [vmem:[%s278] sm:$0x10] %vm269, %v268
    %s280 = scalar_lea.vmem [#allocation0], 397
    %281 = vst.msk [vmem:[%s280] sm:$0x20] %vm269, %v268
    %s282 = scalar_lea.vmem [#allocation0], 204
    %283 = vst.msk [vmem:[%s282] sm:$0x40] %vm269, %v268
    %s284 = scalar_lea.vmem [#allocation0], 459
    %285 = vst.msk [vmem:[%s284] sm:$0x80] %vm269, %v268
    %v286 = vld.sshfl [vmem:[#allocation1] sm:$0xff pattern:$0x99999810]
    %s287 = scalar_lea.vmem [#allocation1], 16
    %v288 = vld.sshfl [vmem:[%s287] sm:$0xff pattern:$0x98100000]
    %vm289 = vcmask 1047556
    %v290 = vsel %vm289, %v288, %v286
    %291 = vrot.lane.b32.xlu0 %v290, 84
    %v292 = vpop.permute.xlu0 %291
    %vm293 = vcmask 31744
    %s294 = scalar_lea.vmem [#allocation0], 19
    %295 = vst.msk [vmem:[%s294] sm:$0x1] %vm293, %v292
    %s296 = scalar_lea.vmem [#allocation0], 274
    %297 = vst.msk [vmem:[%s296] sm:$0x2] %vm293, %v292
    %s298 = scalar_lea.vmem [#allocation0], 81
    %299 = vst.msk [vmem:[%s298] sm:$0x4] %vm293, %v292
    %s300 = scalar_lea.vmem [#allocation0], 336
    %301 = vst.msk [vmem:[%s300] sm:$0x8] %vm293, %v292
    %s302 = scalar_lea.vmem [#allocation0], 143
    %303 = vst.msk [vmem:[%s302] sm:$0x10] %vm293, %v292
    %s304 = scalar_lea.vmem [#allocation0], 398
    %305 = vst.msk [vmem:[%s304] sm:$0x20] %vm293, %v292
    %s306 = scalar_lea.vmem [#allocation0], 205
    %307 = vst.msk [vmem:[%s306] sm:$0x40] %vm293, %v292
    %s308 = scalar_lea.vmem [#allocation0], 460
    %309 = vst.msk [vmem:[%s308] sm:$0x80] %vm293, %v292
    %v310 = vld.sshfl [vmem:[#allocation1] sm:$0xff pattern:$0x99999810]
    %s311 = scalar_lea.vmem [#allocation1], 16
    %v312 = vld.sshfl [vmem:[%s311] sm:$0xff pattern:$0x98100000]
    %vm313 = vcmask 1047556
    %v314 = vsel %vm313, %v312, %v310
    %315 = vrot.lane.b32.xlu0 %v314, 80
    %v316 = vpop.permute.xlu0 %315
    %vm317 = vcmask 31744
    %s318 = scalar_lea.vmem [#allocation0], 24
    %319 = vst.msk [vmem:[%s318] sm:$0x1] %vm317, %v316
    %s320 = scalar_lea.vmem [#allocation0], 279
    %321 = vst.msk [vmem:[%s320] sm:$0x2] %vm317, %v316
    %s322 = scalar_lea.vmem [#allocation0], 86
    %323 = vst.msk [vmem:[%s322] sm:$0x4] %vm317, %v316
    %s324 = scalar_lea.vmem [#allocation0], 341
    %325 = vst.msk [vmem:[%s324] sm:$0x8] %vm317, %v316
    %s326 = scalar_lea.vmem [#allocation0], 148
    %327 = vst.msk [vmem:[%s326] sm:$0x10] %vm317, %v316
    %s328 = scalar_lea.vmem [#allocation0], 403
    %329 = vst.msk [vmem:[%s328] sm:$0x20] %vm317, %v316
    %s330 = scalar_lea.vmem [#allocation0], 210
    %331 = vst.msk [vmem:[%s330] sm:$0x40] %vm317, %v316
    %s332 = scalar_lea.vmem [#allocation0], 465
    %333 = vst.msk [vmem:[%s332] sm:$0x80] %vm317, %v316
    %v334 = vld.sshfl [vmem:[#allocation1] sm:$0xff pattern:$0x99999810]
    %s335 = scalar_lea.vmem [#allocation1], 16
    %v336 = vld.sshfl [vmem:[%s335] sm:$0xff pattern:$0x98100000]
    %vm337 = vcmask 1047556
    %v338 = vsel %vm337, %v336, %v334
    %339 = vrot.lane.b32.xlu0 %v338, 76
    %v340 = vpop.permute.xlu0 %339
    %vm341 = vcmask 31744
    %s342 = scalar_lea.vmem [#allocation0], 25
    %343 = vst.msk [vmem:[%s342] sm:$0x1] %vm341, %v340
    %s344 = scalar_lea.vmem [#allocation0], 280
    %345 = vst.msk [vmem:[%s344] sm:$0x2] %vm341, %v340
    %s346 = scalar_lea.vmem [#allocation0], 87
    %347 = vst.msk [vmem:[%s346] sm:$0x4] %vm341, %v340
    %s348 = scalar_lea.vmem [#allocation0], 342
    %349 = vst.msk [vmem:[%s348] sm:$0x8] %vm341, %v340
    %s350 = scalar_lea.vmem [#allocation0], 149
    %351 = vst.msk [vmem:[%s350] sm:$0x10] %vm341, %v340
    %s352 = scalar_lea.vmem [#allocation0], 404
    %353 = vst.msk [vmem:[%s352] sm:$0x20] %vm341, %v340
    %s354 = scalar_lea.vmem [#allocation0], 211
    %355 = vst.msk [vmem:[%s354] sm:$0x40] %vm341, %v340
    %s356 = scalar_lea.vmem [#allocation0], 466
    %357 = vst.msk [vmem:[%s356] sm:$0x80] %vm341, %v340
    %v358 = vld.sshfl [vmem:[#allocation1] sm:$0xff pattern:$0x99999810]
    %s359 = scalar_lea.vmem [#allocation1], 16
    %v360 = vld.sshfl [vmem:[%s359] sm:$0xff pattern:$0x98100000]
    %vm361 = vcmask 1047556
    %v362 = vsel %vm361, %v360, %v358
    %363 = vrot.lane.b32.xlu0 %v362, 72
    %v364 = vpop.permute.xlu0 %363
    %vm365 = vcmask 31744
    %s366 = scalar_lea.vmem [#allocation0], 26
    %367 = vst.msk [vmem:[%s366] sm:$0x1] %vm365, %v364
    %s368 = scalar_lea.vmem [#allocation0], 281
    %369 = vst.msk [vmem:[%s368] sm:$0x2] %vm365, %v364
    %s370 = scalar_lea.vmem [#allocation0], 88
    %371 = vst.msk [vmem:[%s370] sm:$0x4] %vm365, %v364
    %s372 = scalar_lea.vmem [#allocation0], 343
    %373 = vst.msk [vmem:[%s372] sm:$0x8] %vm365, %v364
    %s374 = scalar_lea.vmem [#allocation0], 150
    %375 = vst.msk [vmem:[%s374] sm:$0x10] %vm365, %v364
    %s376 = scalar_lea.vmem [#allocation0], 405
    %377 = vst.msk [vmem:[%s376] sm:$0x20] %vm365, %v364
    %s378 = scalar_lea.vmem [#allocation0], 212
    %379 = vst.msk [vmem:[%s378] sm:$0x40] %vm365, %v364
    %s380 = scalar_lea.vmem [#allocation0], 467
    %381 = vst.msk [vmem:[%s380] sm:$0x80] %vm365, %v364
    %v382 = vld.sshfl [vmem:[#allocation1] sm:$0xff pattern:$0x99999810]
    %s383 = scalar_lea.vmem [#allocation1], 16
    %v384 = vld.sshfl [vmem:[%s383] sm:$0xff pattern:$0x98100000]
    %vm385 = vcmask 1047556
    %v386 = vsel %vm385, %v384, %v382
    %387 = vrot.lane.b32.xlu0 %v386, 68
    %v388 = vpop.permute.xlu0 %387
    %vm389 = vcmask 31744
    %s390 = scalar_lea.vmem [#allocation0], 27
    %391 = vst.msk [vmem:[%s390] sm:$0x1] %vm389, %v388
    %s392 = scalar_lea.vmem [#allocation0], 282
    %393 = vst.msk [vmem:[%s392] sm:$0x2] %vm389, %v388
    %s394 = scalar_lea.vmem [#allocation0], 89
    %395 = vst.msk [vmem:[%s394] sm:$0x4] %vm389, %v388
    %s396 = scalar_lea.vmem [#allocation0], 344
    %397 = vst.msk [vmem:[%s396] sm:$0x8] %vm389, %v388
    %s398 = scalar_lea.vmem [#allocation0], 151
    %399 = vst.msk [vmem:[%s398] sm:$0x10] %vm389, %v388
    %s400 = scalar_lea.vmem [#allocation0], 406
    %401 = vst.msk [vmem:[%s400] sm:$0x20] %vm389, %v388
    %s402 = scalar_lea.vmem [#allocation0], 213
    %403 = vst.msk [vmem:[%s402] sm:$0x40] %vm389, %v388
    %s404 = scalar_lea.vmem [#allocation0], 468
    %405 = vst.msk [vmem:[%s404] sm:$0x80] %vm389, %v388
    %v406 = vld.sshfl [vmem:[#allocation1] sm:$0xff pattern:$0x99999810]
    %s407 = scalar_lea.vmem [#allocation1], 16
    %v408 = vld.sshfl [vmem:[%s407] sm:$0xff pattern:$0x98100000]
    %vm409 = vcmask 1047556
    %v410 = vsel %vm409, %v408, %v406
    %411 = vrot.lane.b32.xlu0 %v410, 64
    %v412 = vpop.permute.xlu0 %411
    %vm413 = vcmask 31744
    %s414 = scalar_lea.vmem [#allocation0], 32
    %415 = vst.msk [vmem:[%s414] sm:$0x1] %vm413, %v412
    %s416 = scalar_lea.vmem [#allocation0], 287
    %417 = vst.msk [vmem:[%s416] sm:$0x2] %vm413, %v412
    %s418 = scalar_lea.vmem [#allocation0], 94
    %419 = vst.msk [vmem:[%s418] sm:$0x4] %vm413, %v412
    %s420 = scalar_lea.vmem [#allocation0], 349
    %421 = vst.msk [vmem:[%s420] sm:$0x8] %vm413, %v412
    %s422 = scalar_lea.vmem [#allocation0], 156
    %423 = vst.msk [vmem:[%s422] sm:$0x10] %vm413, %v412
    %s424 = scalar_lea.vmem [#allocation0], 411
    %425 = vst.msk [vmem:[%s424] sm:$0x20] %vm413, %v412
    %s426 = scalar_lea.vmem [#allocation0], 218
    %427 = vst.msk [vmem:[%s426] sm:$0x40] %vm413, %v412
    %s428 = scalar_lea.vmem [#allocation0], 473
    %429 = vst.msk [vmem:[%s428] sm:$0x80] %vm413, %v412
    %v430 = vld.sshfl [vmem:[#allocation1] sm:$0xff pattern:$0x99999810]
    %s431 = scalar_lea.vmem [#allocation1], 16
    %v432 = vld.sshfl [vmem:[%s431] sm:$0xff pattern:$0x98100000]
    %vm433 = vcmask 1047556
    %v434 = vsel %vm433, %v432, %v430
    %435 = vrot.lane.b32.xlu0 %v434, 60
    %v436 = vpop.permute.xlu0 %435
    %vm437 = vcmask 31744
    %s438 = scalar_lea.vmem [#allocation0], 33
    %439 = vst.msk [vmem:[%s438] sm:$0x1] %vm437, %v436
    %s440 = scalar_lea.vmem [#allocation0], 288
    %441 = vst.msk [vmem:[%s440] sm:$0x2] %vm437, %v436
    %s442 = scalar_lea.vmem [#allocation0], 95
    %443 = vst.msk [vmem:[%s442] sm:$0x4] %vm437, %v436
    %s444 = scalar_lea.vmem [#allocation0], 350
    %445 = vst.msk [vmem:[%s444] sm:$0x8] %vm437, %v436
    %s446 = scalar_lea.vmem [#allocation0], 157
    %447 = vst.msk [vmem:[%s446] sm:$0x10] %vm437, %v436
    %s448 = scalar_lea.vmem [#allocation0], 412
    %449 = vst.msk [vmem:[%s448] sm:$0x20] %vm437, %v436
    %s450 = scalar_lea.vmem [#allocation0], 219
    %451 = vst.msk [vmem:[%s450] sm:$0x40] %vm437, %v436
    %s452 = scalar_lea.vmem [#allocation0], 474
    %453 = vst.msk [vmem:[%s452] sm:$0x80] %vm437, %v436
    %v454 = vld.sshfl [vmem:[#allocation1] sm:$0xff pattern:$0x99999810]
    %s455 = scalar_lea.vmem [#allocation1], 16
    %v456 = vld.sshfl [vmem:[%s455] sm:$0xff pattern:$0x98100000]
    %vm457 = vcmask 1047556
    %v458 = vsel %vm457, %v456, %v454
    %459 = vrot.lane.b32.xlu0 %v458, 56
    %v460 = vpop.permute.xlu0 %459
    %vm461 = vcmask 31744
    %s462 = scalar_lea.vmem [#allocation0], 34
    %463 = vst.msk [vmem:[%s462] sm:$0x1] %vm461, %v460
    %s464 = scalar_lea.vmem [#allocation0], 289
    %465 = vst.msk [vmem:[%s464] sm:$0x2] %vm461, %v460
    %s466 = scalar_lea.vmem [#allocation0], 96
    %467 = vst.msk [vmem:[%s466] sm:$0x4] %vm461, %v460
    %s468 = scalar_lea.vmem [#allocation0], 351
    %469 = vst.msk [vmem:[%s468] sm:$0x8] %vm461, %v460
    %s470 = scalar_lea.vmem [#allocation0], 158
    %471 = vst.msk [vmem:[%s470] sm:$0x10] %vm461, %v460
    %s472 = scalar_lea.vmem [#allocation0], 413
    %473 = vst.msk [vmem:[%s472] sm:$0x20] %vm461, %v460
    %s474 = scalar_lea.vmem [#allocation0], 220
    %475 = vst.msk [vmem:[%s474] sm:$0x40] %vm461, %v460
    %s476 = scalar_lea.vmem [#allocation0], 475
    %477 = vst.msk [vmem:[%s476] sm:$0x80] %vm461, %v460
    %v478 = vld.sshfl [vmem:[#allocation1] sm:$0xff pattern:$0x99999810]
    %s479 = scalar_lea.vmem [#allocation1], 16
    %v480 = vld.sshfl [vmem:[%s479] sm:$0xff pattern:$0x98100000]
    %vm481 = vcmask 1047556
    %v482 = vsel %vm481, %v480, %v478
    %483 = vrot.lane.b32.xlu0 %v482, 52
    %v484 = vpop.permute.xlu0 %483
    %vm485 = vcmask 31744
    %s486 = scalar_lea.vmem [#allocation0], 35
    %487 = vst.msk [vmem:[%s486] sm:$0x1] %vm485, %v484
    %s488 = scalar_lea.vmem [#allocation0], 290
    %489 = vst.msk [vmem:[%s488] sm:$0x2] %vm485, %v484
    %s490 = scalar_lea.vmem [#allocation0], 97
    %491 = vst.msk [vmem:[%s490] sm:$0x4] %vm485, %v484
    %s492 = scalar_lea.vmem [#allocation0], 352
    %493 = vst.msk [vmem:[%s492] sm:$0x8] %vm485, %v484
    %s494 = scalar_lea.vmem [#allocation0], 159
    %495 = vst.msk [vmem:[%s494] sm:$0x10] %vm485, %v484
    %s496 = scalar_lea.vmem [#allocation0], 414
    %497 = vst.msk [vmem:[%s496] sm:$0x20] %vm485, %v484
    %s498 = scalar_lea.vmem [#allocation0], 221
    %499 = vst.msk [vmem:[%s498] sm:$0x40] %vm485, %v484
    %s500 = scalar_lea.vmem [#allocation0], 476
    %501 = vst.msk [vmem:[%s500] sm:$0x80] %vm485, %v484
    %v502 = vld.sshfl [vmem:[#allocation1] sm:$0xff pattern:$0x99999810]
    %s503 = scalar_lea.vmem [#allocation1], 16
    %v504 = vld.sshfl [vmem:[%s503] sm:$0xff pattern:$0x98100000]
    %vm505 = vcmask 1047556
    %v506 = vsel %vm505, %v504, %v502
    %507 = vrot.lane.b32.xlu0 %v506, 48
    %v508 = vpop.permute.xlu0 %507
    %vm509 = vcmask 31744
    %s510 = scalar_lea.vmem [#allocation0], 40
    %511 = vst.msk [vmem:[%s510] sm:$0x1] %vm509, %v508
    %s512 = scalar_lea.vmem [#allocation0], 295
    %513 = vst.msk [vmem:[%s512] sm:$0x2] %vm509, %v508
    %s514 = scalar_lea.vmem [#allocation0], 102
    %515 = vst.msk [vmem:[%s514] sm:$0x4] %vm509, %v508
    %s516 = scalar_lea.vmem [#allocation0], 357
    %517 = vst.msk [vmem:[%s516] sm:$0x8] %vm509, %v508
    %s518 = scalar_lea.vmem [#allocation0], 164
    %519 = vst.msk [vmem:[%s518] sm:$0x10] %vm509, %v508
    %s520 = scalar_lea.vmem [#allocation0], 419
    %521 = vst.msk [vmem:[%s520] sm:$0x20] %vm509, %v508
    %s522 = scalar_lea.vmem [#allocation0], 226
    %523 = vst.msk [vmem:[%s522] sm:$0x40] %vm509, %v508
    %s524 = scalar_lea.vmem [#allocation0], 481
    %525 = vst.msk [vmem:[%s524] sm:$0x80] %vm509, %v508
    %v526 = vld.sshfl [vmem:[#allocation1] sm:$0xff pattern:$0x99999810]
    %s527 = scalar_lea.vmem [#allocation1], 16
    %v528 = vld.sshfl [vmem:[%s527] sm:$0xff pattern:$0x98100000]
    %vm529 = vcmask 1047556
    %v530 = vsel %vm529, %v528, %v526
    %531 = vrot.lane.b32.xlu0 %v530, 44
    %v532 = vpop.permute.xlu0 %531
    %vm533 = vcmask 31744
    %s534 = scalar_lea.vmem [#allocation0], 41
    %535 = vst.msk [vmem:[%s534] sm:$0x1] %vm533, %v532
    %s536 = scalar_lea.vmem [#allocation0], 296
    %537 = vst.msk [vmem:[%s536] sm:$0x2] %vm533, %v532
    %s538 = scalar_lea.vmem [#allocation0], 103
    %539 = vst.msk [vmem:[%s538] sm:$0x4] %vm533, %v532
    %s540 = scalar_lea.vmem [#allocation0], 358
    %541 = vst.msk [vmem:[%s540] sm:$0x8] %vm533, %v532
    %s542 = scalar_lea.vmem [#allocation0], 165
    %543 = vst.msk [vmem:[%s542] sm:$0x10] %vm533, %v532
    %s544 = scalar_lea.vmem [#allocation0], 420
    %545 = vst.msk [vmem:[%s544] sm:$0x20] %vm533, %v532
    %s546 = scalar_lea.vmem [#allocation0], 227
    %547 = vst.msk [vmem:[%s546] sm:$0x40] %vm533, %v532
    %s548 = scalar_lea.vmem [#allocation0], 482
    %549 = vst.msk [vmem:[%s548] sm:$0x80] %vm533, %v532
    %v550 = vld.sshfl [vmem:[#allocation1] sm:$0xff pattern:$0x99999810]
    %s551 = scalar_lea.vmem [#allocation1], 16
    %v552 = vld.sshfl [vmem:[%s551] sm:$0xff pattern:$0x98100000]
    %vm553 = vcmask 1047556
    %v554 = vsel %vm553, %v552, %v550
    %555 = vrot.lane.b32.xlu0 %v554, 40
    %v556 = vpop.permute.xlu0 %555
    %vm557 = vcmask 31744
    %s558 = scalar_lea.vmem [#allocation0], 42
    %559 = vst.msk [vmem:[%s558] sm:$0x1] %vm557, %v556
    %s560 = scalar_lea.vmem [#allocation0], 297
    %561 = vst.msk [vmem:[%s560] sm:$0x2] %vm557, %v556
    %s562 = scalar_lea.vmem [#allocation0], 104
    %563 = vst.msk [vmem:[%s562] sm:$0x4] %vm557, %v556
    %s564 = scalar_lea.vmem [#allocation0], 359
    %565 = vst.msk [vmem:[%s564] sm:$0x8] %vm557, %v556
    %s566 = scalar_lea.vmem [#allocation0], 166
    %567 = vst.msk [vmem:[%s566] sm:$0x10] %vm557, %v556
    %s568 = scalar_lea.vmem [#allocation0], 421
    %569 = vst.msk [vmem:[%s568] sm:$0x20] %vm557, %v556
    %s570 = scalar_lea.vmem [#allocation0], 228
    %571 = vst.msk [vmem:[%s570] sm:$0x40] %vm557, %v556
    %s572 = scalar_lea.vmem [#allocation0], 483
    %573 = vst.msk [vmem:[%s572] sm:$0x80] %vm557, %v556
    %v574 = vld.sshfl [vmem:[#allocation1] sm:$0xff pattern:$0x99999810]
    %s575 = scalar_lea.vmem [#allocation1], 16
    %v576 = vld.sshfl [vmem:[%s575] sm:$0xff pattern:$0x98100000]
    %vm577 = vcmask 1047556
    %v578 = vsel %vm577, %v576, %v574
    %579 = vrot.lane.b32.xlu0 %v578, 36
    %v580 = vpop.permute.xlu0 %579
    %vm581 = vcmask 31744
    %s582 = scalar_lea.vmem [#allocation0], 43
    %583 = vst.msk [vmem:[%s582] sm:$0x1] %vm581, %v580
    %s584 = scalar_lea.vmem [#allocation0], 298
    %585 = vst.msk [vmem:[%s584] sm:$0x2] %vm581, %v580
    %s586 = scalar_lea.vmem [#allocation0], 105
    %587 = vst.msk [vmem:[%s586] sm:$0x4] %vm581, %v580
    %s588 = scalar_lea.vmem [#allocation0], 360
    %589 = vst.msk [vmem:[%s588] sm:$0x8] %vm581, %v580
    %s590 = scalar_lea.vmem [#allocation0], 167
    %591 = vst.msk [vmem:[%s590] sm:$0x10] %vm581, %v580
    %s592 = scalar_lea.vmem [#allocation0], 422
    %593 = vst.msk [vmem:[%s592] sm:$0x20] %vm581, %v580
    %s594 = scalar_lea.vmem [#allocation0], 229
    %595 = vst.msk [vmem:[%s594] sm:$0x40] %vm581, %v580
    %s596 = scalar_lea.vmem [#allocation0], 484
    %597 = vst.msk [vmem:[%s596] sm:$0x80] %vm581, %v580
    %v598 = vld.sshfl [vmem:[#allocation1] sm:$0xff pattern:$0x99999810]
    %s599 = scalar_lea.vmem [#allocation1], 16
    %v600 = vld.sshfl [vmem:[%s599] sm:$0xff pattern:$0x98100000]
    %vm601 = vcmask 1047556
    %v602 = vsel %vm601, %v600, %v598
    %603 = vrot.lane.b32.xlu0 %v602, 32
    %v604 = vpop.permute.xlu0 %603
    %vm605 = vcmask 31744
    %s606 = scalar_lea.vmem [#allocation0], 48
    %607 = vst.msk [vmem:[%s606] sm:$0x1] %vm605, %v604
    %s608 = scalar_lea.vmem [#allocation0], 303
    %609 = vst.msk [vmem:[%s608] sm:$0x2] %vm605, %v604
    %s610 = scalar_lea.vmem [#allocation0], 110
    %611 = vst.msk [vmem:[%s610] sm:$0x4] %vm605, %v604
    %s612 = scalar_lea.vmem [#allocation0], 365
    %613 = vst.msk [vmem:[%s612] sm:$0x8] %vm605, %v604
    %s614 = scalar_lea.vmem [#allocation0], 172
    %615 = vst.msk [vmem:[%s614] sm:$0x10] %vm605, %v604
    %s616 = scalar_lea.vmem [#allocation0], 427
    %617 = vst.msk [vmem:[%s616] sm:$0x20] %vm605, %v604
    %s618 = scalar_lea.vmem [#allocation0], 234
    %619 = vst.msk [vmem:[%s618] sm:$0x40] %vm605, %v604
    %s620 = scalar_lea.vmem [#allocation0], 489
    %621 = vst.msk [vmem:[%s620] sm:$0x80] %vm605, %v604
    %v622 = vld.sshfl [vmem:[#allocation1] sm:$0xff pattern:$0x99999810]
    %s623 = scalar_lea.vmem [#allocation1], 16
    %v624 = vld.sshfl [vmem:[%s623] sm:$0xff pattern:$0x98100000]
    %vm625 = vcmask 1047556
    %v626 = vsel %vm625, %v624, %v622
    %627 = vrot.lane.b32.xlu0 %v626, 28
    %v628 = vpop.permute.xlu0 %627
    %vm629 = vcmask 31744
    %s630 = scalar_lea.vmem [#allocation0], 49
    %631 = vst.msk [vmem:[%s630] sm:$0x1] %vm629, %v628
    %s632 = scalar_lea.vmem [#allocation0], 304
    %633 = vst.msk [vmem:[%s632] sm:$0x2] %vm629, %v628
    %s634 = scalar_lea.vmem [#allocation0], 111
    %635 = vst.msk [vmem:[%s634] sm:$0x4] %vm629, %v628
    %s636 = scalar_lea.vmem [#allocation0], 366
    %637 = vst.msk [vmem:[%s636] sm:$0x8] %vm629, %v628
    %s638 = scalar_lea.vmem [#allocation0], 173
    %639 = vst.msk [vmem:[%s638] sm:$0x10] %vm629, %v628
    %s640 = scalar_lea.vmem [#allocation0], 428
    %641 = vst.msk [vmem:[%s640] sm:$0x20] %vm629, %v628
    %s642 = scalar_lea.vmem [#allocation0], 235
    %643 = vst.msk [vmem:[%s642] sm:$0x40] %vm629, %v628
    %s644 = scalar_lea.vmem [#allocation0], 490
    %645 = vst.msk [vmem:[%s644] sm:$0x80] %vm629, %v628
    %v646 = vld.sshfl [vmem:[#allocation1] sm:$0xff pattern:$0x99999810]
    %s647 = scalar_lea.vmem [#allocation1], 16
    %v648 = vld.sshfl [vmem:[%s647] sm:$0xff pattern:$0x98100000]
    %vm649 = vcmask 1047556
    %v650 = vsel %vm649, %v648, %v646
    %651 = vrot.lane.b32.xlu0 %v650, 24
    %v652 = vpop.permute.xlu0 %651
    %vm653 = vcmask 31744
    %s654 = scalar_lea.vmem [#allocation0], 50
    %655 = vst.msk [vmem:[%s654] sm:$0x1] %vm653, %v652
    %s656 = scalar_lea.vmem [#allocation0], 305
    %657 = vst.msk [vmem:[%s656] sm:$0x2] %vm653, %v652
    %s658 = scalar_lea.vmem [#allocation0], 112
    %659 = vst.msk [vmem:[%s658] sm:$0x4] %vm653, %v652
    %s660 = scalar_lea.vmem [#allocation0], 367
    %661 = vst.msk [vmem:[%s660] sm:$0x8] %vm653, %v652
    %s662 = scalar_lea.vmem [#allocation0], 174
    %663 = vst.msk [vmem:[%s662] sm:$0x10] %vm653, %v652
    %s664 = scalar_lea.vmem [#allocation0], 429
    %665 = vst.msk [vmem:[%s664] sm:$0x20] %vm653, %v652
    %s666 = scalar_lea.vmem [#allocation0], 236
    %667 = vst.msk [vmem:[%s666] sm:$0x40] %vm653, %v652
    %s668 = scalar_lea.vmem [#allocation0], 491
    %669 = vst.msk [vmem:[%s668] sm:$0x80] %vm653, %v652
    %v670 = vld.sshfl [vmem:[#allocation1] sm:$0xff pattern:$0x99999810]
    %s671 = scalar_lea.vmem [#allocation1], 16
    %v672 = vld.sshfl [vmem:[%s671] sm:$0xff pattern:$0x98100000]
    %vm673 = vcmask 1047556
    %v674 = vsel %vm673, %v672, %v670
    %675 = vrot.lane.b32.xlu0 %v674, 20
    %v676 = vpop.permute.xlu0 %675
    %vm677 = vcmask 31744
    %s678 = scalar_lea.vmem [#allocation0], 51
    %679 = vst.msk [vmem:[%s678] sm:$0x1] %vm677, %v676
    %s680 = scalar_lea.vmem [#allocation0], 306
    %681 = vst.msk [vmem:[%s680] sm:$0x2] %vm677, %v676
    %s682 = scalar_lea.vmem [#allocation0], 113
    %683 = vst.msk [vmem:[%s682] sm:$0x4] %vm677, %v676
    %s684 = scalar_lea.vmem [#allocation0], 368
    %685 = vst.msk [vmem:[%s684] sm:$0x8] %vm677, %v676
    %s686 = scalar_lea.vmem [#allocation0], 175
    %687 = vst.msk [vmem:[%s686] sm:$0x10] %vm677, %v676
    %s688 = scalar_lea.vmem [#allocation0], 430
    %689 = vst.msk [vmem:[%s688] sm:$0x20] %vm677, %v676
    %s690 = scalar_lea.vmem [#allocation0], 237
    %691 = vst.msk [vmem:[%s690] sm:$0x40] %vm677, %v676
    %s692 = scalar_lea.vmem [#allocation0], 492
    %693 = vst.msk [vmem:[%s692] sm:$0x80] %vm677, %v676
    %v694 = vld.sshfl [vmem:[#allocation1] sm:$0xff pattern:$0x99999810]
    %s695 = scalar_lea.vmem [#allocation1], 16
    %v696 = vld.sshfl [vmem:[%s695] sm:$0xff pattern:$0x98100000]
    %vm697 = vcmask 1047556
    %v698 = vsel %vm697, %v696, %v694
    %699 = vrot.lane.b32.xlu0 %v698, 16
    %v700 = vpop.permute.xlu0 %699
    %vm701 = vcmask 31744
    %s702 = scalar_lea.vmem [#allocation0], 56
    %703 = vst.msk [vmem:[%s702] sm:$0x1] %vm701, %v700
    %s704 = scalar_lea.vmem [#allocation0], 311
    %705 = vst.msk [vmem:[%s704] sm:$0x2] %vm701, %v700
    %s706 = scalar_lea.vmem [#allocation0], 118
    %707 = vst.msk [vmem:[%s706] sm:$0x4] %vm701, %v700
    %s708 = scalar_lea.vmem [#allocation0], 373
    %709 = vst.msk [vmem:[%s708] sm:$0x8] %vm701, %v700
    %s710 = scalar_lea.vmem [#allocation0], 180
    %711 = vst.msk [vmem:[%s710] sm:$0x10] %vm701, %v700
    %s712 = scalar_lea.vmem [#allocation0], 435
    %713 = vst.msk [vmem:[%s712] sm:$0x20] %vm701, %v700
    %s714 = scalar_lea.vmem [#allocation0], 242
    %715 = vst.msk [vmem:[%s714] sm:$0x40] %vm701, %v700
    %s716 = scalar_lea.vmem [#allocation0], 497
    %717 = vst.msk [vmem:[%s716] sm:$0x80] %vm701, %v700
    %v718 = vld.sshfl [vmem:[#allocation1] sm:$0xff pattern:$0x99999810]
    %s719 = scalar_lea.vmem [#allocation1], 16
    %v720 = vld.sshfl [vmem:[%s719] sm:$0xff pattern:$0x98100000]
    %vm721 = vcmask 1047556
    %v722 = vsel %vm721, %v720, %v718
    %723 = vrot.lane.b32.xlu0 %v722, 12
    %v724 = vpop.permute.xlu0 %723
    %vm725 = vcmask 31744
    %s726 = scalar_lea.vmem [#allocation0], 57
    %727 = vst.msk [vmem:[%s726] sm:$0x1] %vm725, %v724
    %s728 = scalar_lea.vmem [#allocation0], 312
    %729 = vst.msk [vmem:[%s728] sm:$0x2] %vm725, %v724
    %s730 = scalar_lea.vmem [#allocation0], 119
    %731 = vst.msk [vmem:[%s730] sm:$0x4] %vm725, %v724
    %s732 = scalar_lea.vmem [#allocation0], 374
    %733 = vst.msk [vmem:[%s732] sm:$0x8] %vm725, %v724
    %s734 = scalar_lea.vmem [#allocation0], 181
    %735 = vst.msk [vmem:[%s734] sm:$0x10] %vm725, %v724
    %s736 = scalar_lea.vmem [#allocation0], 436
    %737 = vst.msk [vmem:[%s736] sm:$0x20] %vm725, %v724
    %s738 = scalar_lea.vmem [#allocation0], 243
    %739 = vst.msk [vmem:[%s738] sm:$0x40] %vm725, %v724
    %s740 = scalar_lea.vmem [#allocation0], 498
    %741 = vst.msk [vmem:[%s740] sm:$0x80] %vm725, %v724
    %v742 = vld.sshfl [vmem:[#allocation1] sm:$0xff pattern:$0x99999810]
    %s743 = scalar_lea.vmem [#allocation1], 16
    %v744 = vld.sshfl [vmem:[%s743] sm:$0xff pattern:$0x98100000]
    %vm745 = vcmask 1047556
    %v746 = vsel %vm745, %v744, %v742
    %747 = vrot.lane.b32.xlu0 %v746, 8
    %v748 = vpop.permute.xlu0 %747
    %vm749 = vcmask 31744
    %s750 = scalar_lea.vmem [#allocation0], 58
    %751 = vst.msk [vmem:[%s750] sm:$0x1] %vm749, %v748
    %s752 = scalar_lea.vmem [#allocation0], 313
    %753 = vst.msk [vmem:[%s752] sm:$0x2] %vm749, %v748
    %s754 = scalar_lea.vmem [#allocation0], 120
    %755 = vst.msk [vmem:[%s754] sm:$0x4] %vm749, %v748
    %s756 = scalar_lea.vmem [#allocation0], 375
    %757 = vst.msk [vmem:[%s756] sm:$0x8] %vm749, %v748
    %s758 = scalar_lea.vmem [#allocation0], 182
    %759 = vst.msk [vmem:[%s758] sm:$0x10] %vm749, %v748
    %s760 = scalar_lea.vmem [#allocation0], 437
    %761 = vst.msk [vmem:[%s760] sm:$0x20] %vm749, %v748
    %s762 = scalar_lea.vmem [#allocation0], 244
    %763 = vst.msk [vmem:[%s762] sm:$0x40] %vm749, %v748
    %s764 = scalar_lea.vmem [#allocation0], 499
    %765 = vst.msk [vmem:[%s764] sm:$0x80] %vm749, %v748
    %v766 = vld.sshfl [vmem:[#allocation1] sm:$0xff pattern:$0x99999810]
    %s767 = scalar_lea.vmem [#allocation1], 16
    %v768 = vld.sshfl [vmem:[%s767] sm:$0xff pattern:$0x98100000]
    %vm769 = vcmask 1047556
    %v770 = vsel %vm769, %v768, %v766
    %771 = vrot.lane.b32.xlu0 %v770, 4
    %v772 = vpop.permute.xlu0 %771
    %vm773 = vcmask 31744
    %s774 = scalar_lea.vmem [#allocation0], 59
    %775 = vst.msk [vmem:[%s774] sm:$0x1] %vm773, %v772
    %s776 = scalar_lea.vmem [#allocation0], 314
    %777 = vst.msk [vmem:[%s776] sm:$0x2] %vm773, %v772
    %s778 = scalar_lea.vmem [#allocation0], 121
    %779 = vst.msk [vmem:[%s778] sm:$0x4] %vm773, %v772
    %s780 = scalar_lea.vmem [#allocation0], 376
    %781 = vst.msk [vmem:[%s780] sm:$0x8] %vm773, %v772
    %s782 = scalar_lea.vmem [#allocation0], 183
    %783 = vst.msk [vmem:[%s782] sm:$0x10] %vm773, %v772
    %s784 = scalar_lea.vmem [#allocation0], 438
    %785 = vst.msk [vmem:[%s784] sm:$0x20] %vm773, %v772
    %s786 = scalar_lea.vmem [#allocation0], 245
    %787 = vst.msk [vmem:[%s786] sm:$0x40] %vm773, %v772
    %s788 = scalar_lea.vmem [#allocation0], 500
    %789 = vst.msk [vmem:[%s788] sm:$0x80] %vm773, %v772
    %s791 = sshllo.u32 0, 4
    %v793 = vld [vmem:[#allocation0] sm:%s791]
    %s794 = sshllo.u32 0, 4
    %795 = vst [vmem:[%s1] sm:%s794] %v793
    %s796 = scalar_lea.vmem [#allocation0], 8
    %v797 = vld [vmem:[%s796] sm:%s791]
    %s798 = sshllo.u32 0, 4
    %s799 = scalar_lea.vmem %s1, 4
    %800 = vst [vmem:[%s799] sm:%s798] %v797
    %s801 = scalar_lea.vmem [#allocation0], 16
    %v802 = vld [vmem:[%s801] sm:%s791]
    %s803 = sshllo.u32 0, 4
    %s804 = smul.addr 4, 2
    %s805 = scalar_lea.vmem %s1, %s804
    %806 = vst [vmem:[%s805] sm:%s803] %v802
    %s807 = scalar_lea.vmem [#allocation0], 24
    %v808 = vld [vmem:[%s807] sm:%s791]
    %s809 = sshllo.u32 0, 4
    %s810 = smul.addr 4, 3
    %s811 = scalar_lea.vmem %s1, %s810
    %812 = vst [vmem:[%s811] sm:%s809] %v808
    %s813 = scalar_lea.vmem [#allocation0], 32
    %v814 = vld [vmem:[%s813] sm:%s791]
    %s815 = sshllo.u32 0, 4
    %s816 = smul.addr 4, 4
    %s817 = scalar_lea.vmem %s1, %s816
    %818 = vst [vmem:[%s817] sm:%s815] %v814
    %s819 = scalar_lea.vmem [#allocation0], 40
    %v820 = vld [vmem:[%s819] sm:%s791]
    %s821 = sshllo.u32 0, 4
    %s822 = smul.addr 4, 5
    %s823 = scalar_lea.vmem %s1, %s822
    %824 = vst [vmem:[%s823] sm:%s821] %v820
    %s825 = scalar_lea.vmem [#allocation0], 48
    %v826 = vld [vmem:[%s825] sm:%s791]
    %s827 = sshllo.u32 0, 4
    %s828 = smul.addr 4, 6
    %s829 = scalar_lea.vmem %s1, %s828
    %830 = vst [vmem:[%s829] sm:%s827] %v826
    %s831 = scalar_lea.vmem [#allocation0], 56
    %v832 = vld [vmem:[%s831] sm:%s791]
    %s833 = sshllo.u32 0, 4
    %s834 = smul.addr 4, 7
    %s835 = scalar_lea.vmem %s1, %s834
    %836 = vst [vmem:[%s835] sm:%s833] %v832
    %s837 = scalar_lea.vmem [#allocation0], 64
    %v838 = vld [vmem:[%s837] sm:%s791]
    %s839 = sshllo.u32 0, 4
    %s840 = smul.addr 4, 8
    %s841 = scalar_lea.vmem %s1, %s840
    %842 = vst [vmem:[%s841] sm:%s839] %v838
    %s843 = scalar_lea.vmem [#allocation0], 72
    %v844 = vld [vmem:[%s843] sm:%s791]
    %s845 = sshllo.u32 0, 4
    %s846 = smul.addr 4, 9
    %s847 = scalar_lea.vmem %s1, %s846
    %848 = vst [vmem:[%s847] sm:%s845] %v844
    %s849 = scalar_lea.vmem [#allocation0], 80
    %v850 = vld [vmem:[%s849] sm:%s791]
    %s851 = sshllo.u32 0, 4
    %s852 = smul.addr 4, 10
    %s853 = scalar_lea.vmem %s1, %s852
    %854 = vst [vmem:[%s853] sm:%s851] %v850
    %s855 = scalar_lea.vmem [#allocation0], 88
    %v856 = vld [vmem:[%s855] sm:%s791]
    %s857 = sshllo.u32 0, 4
    %s858 = smul.addr 4, 11
    %s859 = scalar_lea.vmem %s1, %s858
    %860 = vst [vmem:[%s859] sm:%s857] %v856
    %s861 = scalar_lea.vmem [#allocation0], 96
    %v862 = vld [vmem:[%s861] sm:%s791]
    %s863 = sshllo.u32 0, 4
    %s864 = smul.addr 4, 12
    %s865 = scalar_lea.vmem %s1, %s864
    %866 = vst [vmem:[%s865] sm:%s863] %v862
    %s867 = scalar_lea.vmem [#allocation0], 104
    %v868 = vld [vmem:[%s867] sm:%s791]
    %s869 = sshllo.u32 0, 4
    %s870 = smul.addr 4, 13
    %s871 = scalar_lea.vmem %s1, %s870
    %872 = vst [vmem:[%s871] sm:%s869] %v868
    %s873 = scalar_lea.vmem [#allocation0], 112
    %v874 = vld [vmem:[%s873] sm:%s791]
    %s875 = sshllo.u32 0, 4
    %s876 = smul.addr 4, 14
    %s877 = scalar_lea.vmem %s1, %s876
    %878 = vst [vmem:[%s877] sm:%s875] %v874
    %s879 = scalar_lea.vmem [#allocation0], 120
    %v880 = vld [vmem:[%s879] sm:%s791]
    %s881 = sshllo.u32 0, 4
    %s882 = smul.addr 4, 15
    %s883 = scalar_lea.vmem %s1, %s882
    %884 = vst [vmem:[%s883] sm:%s881] %v880
    %s885 = scalar_lea.vmem [#allocation0], 128
    %v886 = vld [vmem:[%s885] sm:%s791]
    %s887 = sshllo.u32 0, 4
    %s888 = smul.addr 4, 16
    %s889 = scalar_lea.vmem %s1, %s888
    %890 = vst [vmem:[%s889] sm:%s887] %v886
    %s891 = scalar_lea.vmem [#allocation0], 136
    %v892 = vld [vmem:[%s891] sm:%s791]
    %s893 = sshllo.u32 0, 4
    %s894 = smul.addr 4, 17
    %s895 = scalar_lea.vmem %s1, %s894
    %896 = vst [vmem:[%s895] sm:%s893] %v892
    %s897 = scalar_lea.vmem [#allocation0], 144
    %v898 = vld [vmem:[%s897] sm:%s791]
    %s899 = sshllo.u32 0, 4
    %s900 = smul.addr 4, 18
    %s901 = scalar_lea.vmem %s1, %s900
    %902 = vst [vmem:[%s901] sm:%s899] %v898
    %s903 = scalar_lea.vmem [#allocation0], 152
    %v904 = vld [vmem:[%s903] sm:%s791]
    %s905 = sshllo.u32 0, 4
    %s906 = smul.addr 4, 19
    %s907 = scalar_lea.vmem %s1, %s906
    %908 = vst [vmem:[%s907] sm:%s905] %v904
    %s909 = scalar_lea.vmem [#allocation0], 160
    %v910 = vld [vmem:[%s909] sm:%s791]
    %s911 = sshllo.u32 0, 4
    %s912 = smul.addr 4, 20
    %s913 = scalar_lea.vmem %s1, %s912
    %914 = vst [vmem:[%s913] sm:%s911] %v910
    %s915 = scalar_lea.vmem [#allocation0], 168
    %v916 = vld [vmem:[%s915] sm:%s791]
    %s917 = sshllo.u32 0, 4
    %s918 = smul.addr 4, 21
    %s919 = scalar_lea.vmem %s1, %s918
    %920 = vst [vmem:[%s919] sm:%s917] %v916
    %s921 = scalar_lea.vmem [#allocation0], 176
    %v922 = vld [vmem:[%s921] sm:%s791]
    %s923 = sshllo.u32 0, 4
    %s924 = smul.addr 4, 22
    %s925 = scalar_lea.vmem %s1, %s924
    %926 = vst [vmem:[%s925] sm:%s923] %v922
    %s927 = scalar_lea.vmem [#allocation0], 184
    %v928 = vld [vmem:[%s927] sm:%s791]
    %s929 = sshllo.u32 0, 4
    %s930 = smul.addr 4, 23
    %s931 = scalar_lea.vmem %s1, %s930
    %932 = vst [vmem:[%s931] sm:%s929] %v928
    %s933 = scalar_lea.vmem [#allocation0], 192
    %v934 = vld [vmem:[%s933] sm:%s791]
    %s935 = sshllo.u32 0, 4
    %s936 = smul.addr 4, 24
    %s937 = scalar_lea.vmem %s1, %s936
    %938 = vst [vmem:[%s937] sm:%s935] %v934
    %s939 = scalar_lea.vmem [#allocation0], 200
    %v940 = vld [vmem:[%s939] sm:%s791]
    %s941 = sshllo.u32 0, 4
    %s942 = smul.addr 4, 25
    %s943 = scalar_lea.vmem %s1, %s942
    %944 = vst [vmem:[%s943] sm:%s941] %v940
    %s945 = scalar_lea.vmem [#allocation0], 208
    %v946 = vld [vmem:[%s945] sm:%s791]
    %s947 = sshllo.u32 0, 4
    %s948 = smul.addr 4, 26
    %s949 = scalar_lea.vmem %s1, %s948
    %950 = vst [vmem:[%s949] sm:%s947] %v946
    %s951 = scalar_lea.vmem [#allocation0], 216
    %v952 = vld [vmem:[%s951] sm:%s791]
    %s953 = sshllo.u32 0, 4
    %s954 = smul.addr 4, 27
    %s955 = scalar_lea.vmem %s1, %s954
    %956 = vst [vmem:[%s955] sm:%s953] %v952
    %s957 = scalar_lea.vmem [#allocation0], 224
    %v958 = vld [vmem:[%s957] sm:%s791]
    %s959 = sshllo.u32 0, 4
    %s960 = smul.addr 4, 28
    %s961 = scalar_lea.vmem %s1, %s960
    %962 = vst [vmem:[%s961] sm:%s959] %v958
    %s963 = scalar_lea.vmem [#allocation0], 232
    %v964 = vld [vmem:[%s963] sm:%s791]
    %s965 = sshllo.u32 0, 4
    %s966 = smul.addr 4, 29
    %s967 = scalar_lea.vmem %s1, %s966
    %968 = vst [vmem:[%s967] sm:%s965] %v964
    %s969 = scalar_lea.vmem [#allocation0], 240
    %v970 = vld [vmem:[%s969] sm:%s791]
    %s971 = sshllo.u32 0, 4
    %s972 = smul.addr 4, 30
    %s973 = scalar_lea.vmem %s1, %s972
    %974 = vst [vmem:[%s973] sm:%s971] %v970
    %s975 = scalar_lea.vmem [#allocation0], 248
    %v976 = vld [vmem:[%s975] sm:%s791]
    %s977 = sshllo.u32 0, 4
    %s978 = smul.addr 4, 31
    %s979 = scalar_lea.vmem %s1, %s978
    %980 = vst [vmem:[%s979] sm:%s977] %v976
    %s981 = scalar_lea.vmem [#allocation0], 256
    %v982 = vld [vmem:[%s981] sm:%s791]
    %s983 = sshllo.u32 0, 4
    %s984 = smul.addr 4, 32
    %s985 = scalar_lea.vmem %s1, %s984
    %986 = vst [vmem:[%s985] sm:%s983] %v982
    %s987 = scalar_lea.vmem [#allocation0], 264
    %v988 = vld [vmem:[%s987] sm:%s791]
    %s989 = sshllo.u32 0, 4
    %s990 = smul.addr 4, 33
    %s991 = scalar_lea.vmem %s1, %s990
    %992 = vst [vmem:[%s991] sm:%s989] %v988
    %s993 = scalar_lea.vmem [#allocation0], 272
    %v994 = vld [vmem:[%s993] sm:%s791]
    %s995 = sshllo.u32 0, 4
    %s996 = smul.addr 4, 34
    %s997 = scalar_lea.vmem %s1, %s996
    %998 = vst [vmem:[%s997] sm:%s995] %v994
    %s999 = scalar_lea.vmem [#allocation0], 280
    %v1000 = vld [vmem:[%s999] sm:%s791]
    %s1001 = sshllo.u32 0, 4
    %s1002 = smul.addr 4, 35
    %s1003 = scalar_lea.vmem %s1, %s1002
    %1004 = vst [vmem:[%s1003] sm:%s1001] %v1000
    %s1005 = scalar_lea.vmem [#allocation0], 288
    %v1006 = vld [vmem:[%s1005] sm:%s791]
    %s1007 = sshllo.u32 0, 4
    %s1008 = smul.addr 4, 36
    %s1009 = scalar_lea.vmem %s1, %s1008
    %1010 = vst [vmem:[%s1009] sm:%s1007] %v1006
    %s1011 = scalar_lea.vmem [#allocation0], 296
    %v1012 = vld [vmem:[%s1011] sm:%s791]
    %s1013 = sshllo.u32 0, 4
    %s1014 = smul.addr 4, 37
    %s1015 = scalar_lea.vmem %s1, %s1014
    %1016 = vst [vmem:[%s1015] sm:%s1013] %v1012
    %s1017 = scalar_lea.vmem [#allocation0], 304
    %v1018 = vld [vmem:[%s1017] sm:%s791]
    %s1019 = sshllo.u32 0, 4
    %s1020 = smul.addr 4, 38
    %s1021 = scalar_lea.vmem %s1, %s1020
    %1022 = vst [vmem:[%s1021] sm:%s1019] %v1018
    %s1023 = scalar_lea.vmem [#allocation0], 312
    %v1024 = vld [vmem:[%s1023] sm:%s791]
    %s1025 = sshllo.u32 0, 4
    %s1026 = smul.addr 4, 39
    %s1027 = scalar_lea.vmem %s1, %s1026
    %1028 = vst [vmem:[%s1027] sm:%s1025] %v1024
    %s1029 = scalar_lea.vmem [#allocation0], 320
    %v1030 = vld [vmem:[%s1029] sm:%s791]
    %s1031 = sshllo.u32 0, 4
    %s1032 = smul.addr 4, 40
    %s1033 = scalar_lea.vmem %s1, %s1032
    %1034 = vst [vmem:[%s1033] sm:%s1031] %v1030
    %s1035 = scalar_lea.vmem [#allocation0], 328
    %v1036 = vld [vmem:[%s1035] sm:%s791]
    %s1037 = sshllo.u32 0, 4
    %s1038 = smul.addr 4, 41
    %s1039 = scalar_lea.vmem %s1, %s1038
    %1040 = vst [vmem:[%s1039] sm:%s1037] %v1036
    %s1041 = scalar_lea.vmem [#allocation0], 336
    %v1042 = vld [vmem:[%s1041] sm:%s791]
    %s1043 = sshllo.u32 0, 4
    %s1044 = smul.addr 4, 42
    %s1045 = scalar_lea.vmem %s1, %s1044
    %1046 = vst [vmem:[%s1045] sm:%s1043] %v1042
    %s1047 = scalar_lea.vmem [#allocation0], 344
    %v1048 = vld [vmem:[%s1047] sm:%s791]
    %s1049 = sshllo.u32 0, 4
    %s1050 = smul.addr 4, 43
    %s1051 = scalar_lea.vmem %s1, %s1050
    %1052 = vst [vmem:[%s1051] sm:%s1049] %v1048
    %s1053 = scalar_lea.vmem [#allocation0], 352
    %v1054 = vld [vmem:[%s1053] sm:%s791]
    %s1055 = sshllo.u32 0, 4
    %s1056 = smul.addr 4, 44
    %s1057 = scalar_lea.vmem %s1, %s1056
    %1058 = vst [vmem:[%s1057] sm:%s1055] %v1054
    %s1059 = scalar_lea.vmem [#allocation0], 360
    %v1060 = vld [vmem:[%s1059] sm:%s791]
    %s1061 = sshllo.u32 0, 4
    %s1062 = smul.addr 4, 45
    %s1063 = scalar_lea.vmem %s1, %s1062
    %1064 = vst [vmem:[%s1063] sm:%s1061] %v1060
    %s1065 = scalar_lea.vmem [#allocation0], 368
    %v1066 = vld [vmem:[%s1065] sm:%s791]
    %s1067 = sshllo.u32 0, 4
    %s1068 = smul.addr 4, 46
    %s1069 = scalar_lea.vmem %s1, %s1068
    %1070 = vst [vmem:[%s1069] sm:%s1067] %v1066
    %s1071 = scalar_lea.vmem [#allocation0], 376
    %v1072 = vld [vmem:[%s1071] sm:%s791]
    %s1073 = sshllo.u32 0, 4
    %s1074 = smul.addr 4, 47
    %s1075 = scalar_lea.vmem %s1, %s1074
    %1076 = vst [vmem:[%s1075] sm:%s1073] %v1072
    %s1077 = scalar_lea.vmem [#allocation0], 384
    %v1078 = vld [vmem:[%s1077] sm:%s791]
    %s1079 = sshllo.u32 0, 4
    %s1080 = smul.addr 4, 48
    %s1081 = scalar_lea.vmem %s1, %s1080
    %1082 = vst [vmem:[%s1081] sm:%s1079] %v1078
    %s1083 = scalar_lea.vmem [#allocation0], 392
    %v1084 = vld [vmem:[%s1083] sm:%s791]
    %s1085 = sshllo.u32 0, 4
    %s1086 = smul.addr 4, 49
    %s1087 = scalar_lea.vmem %s1, %s1086
    %1088 = vst [vmem:[%s1087] sm:%s1085] %v1084
    %s1089 = scalar_lea.vmem [#allocation0], 400
    %v1090 = vld [vmem:[%s1089] sm:%s791]
    %s1091 = sshllo.u32 0, 4
    %s1092 = smul.addr 4, 50
    %s1093 = scalar_lea.vmem %s1, %s1092
    %1094 = vst [vmem:[%s1093] sm:%s1091] %v1090
    %s1095 = scalar_lea.vmem [#allocation0], 408
    %v1096 = vld [vmem:[%s1095] sm:%s791]
    %s1097 = sshllo.u32 0, 4
    %s1098 = smul.addr 4, 51
    %s1099 = scalar_lea.vmem %s1, %s1098
    %1100 = vst [vmem:[%s1099] sm:%s1097] %v1096
    %s1101 = scalar_lea.vmem [#allocation0], 416
    %v1102 = vld [vmem:[%s1101] sm:%s791]
    %s1103 = sshllo.u32 0, 4
    %s1104 = smul.addr 4, 52
    %s1105 = scalar_lea.vmem %s1, %s1104
    %1106 = vst [vmem:[%s1105] sm:%s1103] %v1102
    %s1107 = scalar_lea.vmem [#allocation0], 424
    %v1108 = vld [vmem:[%s1107] sm:%s791]
    %s1109 = sshllo.u32 0, 4
    %s1110 = smul.addr 4, 53
    %s1111 = scalar_lea.vmem %s1, %s1110
    %1112 = vst [vmem:[%s1111] sm:%s1109] %v1108
    %s1113 = scalar_lea.vmem [#allocation0], 432
    %v1114 = vld [vmem:[%s1113] sm:%s791]
    %s1115 = sshllo.u32 0, 4
    %s1116 = smul.addr 4, 54
    %s1117 = scalar_lea.vmem %s1, %s1116
    %1118 = vst [vmem:[%s1117] sm:%s1115] %v1114
    %s1119 = scalar_lea.vmem [#allocation0], 440
    %v1120 = vld [vmem:[%s1119] sm:%s791]
    %s1121 = sshllo.u32 0, 4
    %s1122 = smul.addr 4, 55
    %s1123 = scalar_lea.vmem %s1, %s1122
    %1124 = vst [vmem:[%s1123] sm:%s1121] %v1120
    %s1125 = scalar_lea.vmem [#allocation0], 448
    %v1126 = vld [vmem:[%s1125] sm:%s791]
    %s1127 = sshllo.u32 0, 4
    %s1128 = smul.addr 4, 56
    %s1129 = scalar_lea.vmem %s1, %s1128
    %1130 = vst [vmem:[%s1129] sm:%s1127] %v1126
    %s1131 = scalar_lea.vmem [#allocation0], 456
    %v1132 = vld [vmem:[%s1131] sm:%s791]
    %s1133 = sshllo.u32 0, 4
    %s1134 = smul.addr 4, 57
    %s1135 = scalar_lea.vmem %s1, %s1134
    %1136 = vst [vmem:[%s1135] sm:%s1133] %v1132
    %s1137 = scalar_lea.vmem [#allocation0], 464
    %v1138 = vld [vmem:[%s1137] sm:%s791]
    %s1139 = sshllo.u32 0, 4
    %s1140 = smul.addr 4, 58
    %s1141 = scalar_lea.vmem %s1, %s1140
    %1142 = vst [vmem:[%s1141] sm:%s1139] %v1138
    %s1143 = scalar_lea.vmem [#allocation0], 472
    %v1144 = vld [vmem:[%s1143] sm:%s791]
    %s1145 = sshllo.u32 0, 4
    %s1146 = smul.addr 4, 59
    %s1147 = scalar_lea.vmem %s1, %s1146
    %1148 = vst [vmem:[%s1147] sm:%s1145] %v1144
    %s1149 = scalar_lea.vmem [#allocation0], 480
    %v1150 = vld [vmem:[%s1149] sm:%s791]
    %s1151 = sshllo.u32 0, 4
    %s1152 = smul.addr 4, 60
    %s1153 = scalar_lea.vmem %s1, %s1152
    %1154 = vst [vmem:[%s1153] sm:%s1151] %v1150
    %s1155 = scalar_lea.vmem [#allocation0], 488
    %v1156 = vld [vmem:[%s1155] sm:%s791]
    %s1157 = sshllo.u32 0, 4
    %s1158 = smul.addr 4, 61
    %s1159 = scalar_lea.vmem %s1, %s1158
    %1160 = vst [vmem:[%s1159] sm:%s1157] %v1156
    %s1161 = scalar_lea.vmem [#allocation0], 496
    %v1162 = vld [vmem:[%s1161] sm:%s791]
    %s1163 = sshllo.u32 0, 4
    %s1164 = smul.addr 4, 62
    %s1165 = scalar_lea.vmem %s1, %s1164
    %1166 = vst [vmem:[%s1165] sm:%s1163] %v1162
    %s1167 = scalar_lea.vmem [#allocation0], 504
    %v1168 = vld [vmem:[%s1167] sm:%s791]
    %s1169 = sshllo.u32 0, 4
    %s1170 = smul.addr 4, 63
    %s1171 = scalar_lea.vmem %s1, %s1170
    %1172 = vst [vmem:[%s1171] sm:%s1169] %v1168

// kernel: phycrnet_forward.1
$region0: #{phycrnet_forward.1}
  #allocation0 [shape = 'u32[]', space=smem, size = 0x4, offset = 0x4, fixed_abs, tag = 'smem constant byte address 0x4 - core index']
  #allocation1 [shape = 'u32[144,128]{1,0:T(1,128)}', space=vmem, size = 0x12000, scoped, tag = 'internal scratch']
  #allocation2 [shape = 'f32[2,512]{1,0:T(2,128)}', space=vmem, size = 0x1000, scoped, tag = 'scratch operand']
  #allocation3 [shape = 'f32[2,512]{1,0:T(2,128)}', space=vmem, size = 0x1000, scoped, tag = 'scratch operand']
  #allocation4 [shape = 'f32[2,512]{1,0:T(2,128)}', space=vmem, size = 0x1000, scoped, tag = 'scratch operand']
  %s0 = inlined_call_operand.vmem [shape: f32[2,512], index: 0, kind: input, shape index: {}]
  %s1 = inlined_call_operand.vmem [shape: f32[2,512], index: 1, kind: input, shape index: {}]
  %s2 = inlined_call_operand.vmem [shape: f32[2,512], index: 2, kind: input, shape index: {}]
  %s3 = inlined_call_operand.hbm [shape: f32[512,256], index: 3, kind: input, shape index: {}]
  %s4 = inlined_call_operand.hbm [shape: f32[1,256], index: 4, kind: input, shape index: {}]
  %s5 = inlined_call_operand.hbm [shape: f32[256,128], index: 5, kind: input, shape index: {}]
  %s6 = inlined_call_operand.hbm [shape: f32[1,128], index: 6, kind: input, shape index: {}]
  %s7 = inlined_call_operand.hbm [shape: f32[128,2048], index: 7, kind: input, shape index: {}]
  %s8 = inlined_call_operand.hbm [shape: f32[512,2048], index: 8, kind: input, shape index: {}]
  %s9 = inlined_call_operand.hbm [shape: f32[1,2048], index: 9, kind: input, shape index: {}]
  %s10 = inlined_call_operand.hbm [shape: f32[512,512], index: 10, kind: input, shape index: {}]
  %s11 = inlined_call_operand.hbm [shape: f32[1,512], index: 11, kind: input, shape index: {}]
  %s12 = inlined_call_operand.vmem [shape: f32[2,2,512], index: 12, kind: output, shape index: {0}]
  %s13 = inlined_call_operand.vmem [shape: f32[2,2,512], index: 13, kind: output, shape index: {1}]
  %s14 = inlined_call_operand.vmem [shape: f32[2,2,512], index: 14, kind: output, shape index: {2}]
  %15 = xla_tuple %s12, %s13, %s14
  %s16 = sld [smem:[#allocation0]]
  $region137: #{phycrnet_forward.1} parent=0
    _
  %s18 = ssub.s32 1, %s16
  %s19 = scalar_select 0, %s18, %s16
  $region1: #{phycrnet_forward.1} parent=0
    #allocation5 [shape = 'u8[524288]{0}', space=vmem, size = 0x80000, scoped, tag = 'input window, operand 3, single buffered']
    #allocation6 [shape = 's32[2]{0}', space=sflag, size = 0x8, scoped, tag = 'scoped memory for phycrnet_forward.1']
    #allocation7 [shape = 'u8[1024]{0}', space=vmem, size = 0x400, scoped, tag = 'input window, operand 4, single buffered']
    #allocation8 [shape = 's32[1]{0}', space=sflag, size = 0x4, scoped, tag = 'scoped memory for phycrnet_forward.1']
    #allocation9 [shape = 'u8[131072]{0}', space=vmem, size = 0x20000, scoped, tag = 'input window, operand 5, single buffered']
    #allocation10 [shape = 'u8[512]{0}', space=vmem, size = 0x400, scoped, tag = 'input window, operand 6, single buffered']
    #allocation11 [shape = 's32[1]{0}', space=sflag, size = 0x4, scoped, tag = 'scoped memory for phycrnet_forward.1']
    #allocation12 [shape = 'u8[1048576]{0}', space=vmem, size = 0x100000, scoped, tag = 'input window, operand 7, single buffered']
    #allocation13 [shape = 'u8[4194304]{0}', space=vmem, size = 0x400000, scoped, tag = 'input window, operand 8, single buffered']
    #allocation14 [shape = 's32[1]{0}', space=sflag, size = 0x4, scoped, tag = 'scoped memory for phycrnet_forward.1']
    #allocation15 [shape = 'u8[8192]{0}', space=vmem, size = 0x2000, scoped, tag = 'input window, operand 9, single buffered']
    #allocation16 [shape = 'u8[1048576]{0}', space=vmem, size = 0x100000, scoped, tag = 'input window, operand 10, single buffered']
    #allocation17 [shape = 's32[1]{0}', space=sflag, size = 0x4, scoped, tag = 'scoped memory for phycrnet_forward.1']
    #allocation18 [shape = 'u8[2048]{0}', space=vmem, size = 0x800, scoped, tag = 'input window, operand 11, single buffered']
    %20 = vsyncpa [#allocation6], 0
    %21 = vsyncpa [#allocation8], 0
    %22 = vsyncpa [#allocation11], 0
    %23 = vsyncpa [#allocation14], 0
    %24 = vsyncpa [#allocation17], 0
    loop: start=0, step=1, limit=4
    $region2: #{phycrnet_forward.1} parent=1 // loop_pre_header
      _
    $region3: #{phycrnet_forward.1} parent=1 // loop_header
      %s26 = sphi 0, %s30
      %p27 = scmp.ge.s32.totalorder %s26, 4
      %s34 = sphi 0, %s34
      %s36 = sphi 0, %s34
      %s37 = sphi 0, %s36
      %s51 = sphi 0, %s37
      %s55 = sphi 0, %s55
      %s57 = sphi 0, %s55
      %s58 = sphi 0, %s57
      %s72 = sphi 0, %s58
      %s76 = sphi 0, %s76
      %s78 = sphi 0, %s76
      %s79 = sphi 0, %s78
      %s93 = sphi 0, %s79
      %s97 = sphi 0, %s97
      %s99 = sphi 0, %s97
      %s100 = sphi 0, %s99
      %s114 = sphi 0, %s100
      %s118 = sphi 0, %s118
      %s120 = sphi 0, %s118
      %s121 = sphi 0, %s120
      %s135 = sphi 0, %s121
      %s139 = sphi 0, %s139
      %s141 = sphi 0, %s139
      %s142 = sphi 0, %s141
      %s156 = sphi 0, %s142
      %s160 = sphi 0, %s160
      %s162 = sphi 0, %s160
      %s163 = sphi 0, %s162
      %s177 = sphi 0, %s163
      %s181 = sphi 0, %s181
      %s183 = sphi 0, %s181
      %s184 = sphi 0, %s183
      %s198 = sphi 0, %s184
      %s202 = sphi 0, %s202
      %s204 = sphi 0, %s202
      %s205 = sphi 0, %s204
      %s219 = sphi 0, %s205
      %s223 = sphi 0, %s223
      %s225 = sphi 0, %s223
      %s226 = sphi 0, %s225
      %s240 = sphi 0, %s226
      %s244 = sphi 0, %s244
      %s246 = sphi 0, %s244
      %s247 = sphi 0, %s246
      %s261 = sphi 0, %s247
      %s265 = sphi 0, %s265
      %s267 = sphi 0, %s265
      %s268 = sphi 0, %s267
      %s282 = sphi 0, %s268
      %s288 = sphi 0, %s290
      %s291 = sphi 0, %s288
      %s292 = sphi 0, %s291
      %s308 = sphi 0, %s292
      %s314 = sphi 0, %s316
      %s317 = sphi 0, %s314
      %s318 = sphi 0, %s317
      %s334 = sphi 0, %s318
      %s340 = sphi 0, %s342
      %s343 = sphi 0, %s340
      %s344 = sphi 0, %s343
      %s360 = sphi 0, %s344
    $region4: #{phycrnet_forward.1} parent=1 // loop_header_branch
      %29 = sbr.rel (%p27) target = $region8
    $region5: #{phycrnet_forward.1} parent=1 // loop_body
      %s31 = ssub.s32 %s26, 1
      %s32 = ssub.s32 %s26, 2
      %s33 = sadd.s32 %s26, 1
      %s35 = sadd.s32 %s34, 1
      %p38 = scmp.eq.s32.totalorder %s26, 1
      %p39 = scmp.ne.s32.totalorder %s34, %s36
      %p40 = scmp.eq.s32.totalorder %s26, 0
      %p41 = por %p39, %p40
      %p42 = scmp.ne.s32.totalorder %s34, %s36
      %p43 = scmp.eq.s32.totalorder %s31, 1
      %p44 = por %p42, %p43
      %p45 = scmp.ne.s32.totalorder %s36, %s37
      %p46 = scmp.eq.s32.totalorder %s31, 0
      %p47 = por %p45, %p46
      %p48 = scmp.ne.s32.totalorder %s36, %s37
      %p49 = scmp.eq.s32.totalorder %s32, 1
      %p50 = por %p48, %p49
      %p52 = scmp.ne.s32.totalorder %s37, %s51
      %p53 = scmp.eq.s32.totalorder %s32, 0
      %p54 = por %p52, %p53
      %s56 = sadd.s32 %s55, 1
      %p59 = scmp.eq.s32.totalorder %s26, 1
      %p60 = scmp.ne.s32.totalorder %s55, %s57
      %p61 = scmp.eq.s32.totalorder %s26, 0
      %p62 = por %p60, %p61
      %p63 = scmp.ne.s32.totalorder %s55, %s57
      %p64 = scmp.eq.s32.totalorder %s31, 1
      %p65 = por %p63, %p64
      %p66 = scmp.ne.s32.totalorder %s57, %s58
      %p67 = scmp.eq.s32.totalorder %s31, 0
      %p68 = por %p66, %p67
      %p69 = scmp.ne.s32.totalorder %s57, %s58
      %p70 = scmp.eq.s32.totalorder %s32, 1
      %p71 = por %p69, %p70
      %p73 = scmp.ne.s32.totalorder %s58, %s72
      %p74 = scmp.eq.s32.totalorder %s32, 0
      %p75 = por %p73, %p74
      %s77 = sadd.s32 %s76, 1
      %p80 = scmp.eq.s32.totalorder %s26, 1
      %p81 = scmp.ne.s32.totalorder %s76, %s78
      %p82 = scmp.eq.s32.totalorder %s26, 0
      %p83 = por %p81, %p82
      %p84 = scmp.ne.s32.totalorder %s76, %s78
      %p85 = scmp.eq.s32.totalorder %s31, 1
      %p86 = por %p84, %p85
      %p87 = scmp.ne.s32.totalorder %s78, %s79
      %p88 = scmp.eq.s32.totalorder %s31, 0
      %p89 = por %p87, %p88
      %p90 = scmp.ne.s32.totalorder %s78, %s79
      %p91 = scmp.eq.s32.totalorder %s32, 1
      %p92 = por %p90, %p91
      %p94 = scmp.ne.s32.totalorder %s79, %s93
      %p95 = scmp.eq.s32.totalorder %s32, 0
      %p96 = por %p94, %p95
      %s98 = sadd.s32 %s97, 1
      %p101 = scmp.eq.s32.totalorder %s26, 1
      %p102 = scmp.ne.s32.totalorder %s97, %s99
      %p103 = scmp.eq.s32.totalorder %s26, 0
      %p104 = por %p102, %p103
      %p105 = scmp.ne.s32.totalorder %s97, %s99
      %p106 = scmp.eq.s32.totalorder %s31, 1
      %p107 = por %p105, %p106
      %p108 = scmp.ne.s32.totalorder %s99, %s100
      %p109 = scmp.eq.s32.totalorder %s31, 0
      %p110 = por %p108, %p109
      %p111 = scmp.ne.s32.totalorder %s99, %s100
      %p112 = scmp.eq.s32.totalorder %s32, 1
      %p113 = por %p111, %p112
      %p115 = scmp.ne.s32.totalorder %s100, %s114
      %p116 = scmp.eq.s32.totalorder %s32, 0
      %p117 = por %p115, %p116
      %s119 = sadd.s32 %s118, 1
      %p122 = scmp.eq.s32.totalorder %s26, 1
      %p123 = scmp.ne.s32.totalorder %s118, %s120
      %p124 = scmp.eq.s32.totalorder %s26, 0
      %p125 = por %p123, %p124
      %p126 = scmp.ne.s32.totalorder %s118, %s120
      %p127 = scmp.eq.s32.totalorder %s31, 1
      %p128 = por %p126, %p127
      %p129 = scmp.ne.s32.totalorder %s120, %s121
      %p130 = scmp.eq.s32.totalorder %s31, 0
      %p131 = por %p129, %p130
      %p132 = scmp.ne.s32.totalorder %s120, %s121
      %p133 = scmp.eq.s32.totalorder %s32, 1
      %p134 = por %p132, %p133
      %p136 = scmp.ne.s32.totalorder %s121, %s135
      %p137 = scmp.eq.s32.totalorder %s32, 0
      %p138 = por %p136, %p137
      %s140 = sadd.s32 %s139, 1
      %p143 = scmp.eq.s32.totalorder %s26, 1
      %p144 = scmp.ne.s32.totalorder %s139, %s141
      %p145 = scmp.eq.s32.totalorder %s26, 0
      %p146 = por %p144, %p145
      %p147 = scmp.ne.s32.totalorder %s139, %s141
      %p148 = scmp.eq.s32.totalorder %s31, 1
      %p149 = por %p147, %p148
      %p150 = scmp.ne.s32.totalorder %s141, %s142
      %p151 = scmp.eq.s32.totalorder %s31, 0
      %p152 = por %p150, %p151
      %p153 = scmp.ne.s32.totalorder %s141, %s142
      %p154 = scmp.eq.s32.totalorder %s32, 1
      %p155 = por %p153, %p154
      %p157 = scmp.ne.s32.totalorder %s142, %s156
      %p158 = scmp.eq.s32.totalorder %s32, 0
      %p159 = por %p157, %p158
      %s161 = sadd.s32 %s160, 1
      %p164 = scmp.eq.s32.totalorder %s26, 1
      %p165 = scmp.ne.s32.totalorder %s160, %s162
      %p166 = scmp.eq.s32.totalorder %s26, 0
      %p167 = por %p165, %p166
      %p168 = scmp.ne.s32.totalorder %s160, %s162
      %p169 = scmp.eq.s32.totalorder %s31, 1
      %p170 = por %p168, %p169
      %p171 = scmp.ne.s32.totalorder %s162, %s163
      %p172 = scmp.eq.s32.totalorder %s31, 0
      %p173 = por %p171, %p172
      %p174 = scmp.ne.s32.totalorder %s162, %s163
      %p175 = scmp.eq.s32.totalorder %s32, 1
      %p176 = por %p174, %p175
      %p178 = scmp.ne.s32.totalorder %s163, %s177
      %p179 = scmp.eq.s32.totalorder %s32, 0
      %p180 = por %p178, %p179
      %s182 = sadd.s32 %s181, 1
      %p185 = scmp.eq.s32.totalorder %s26, 1
      %p186 = scmp.ne.s32.totalorder %s181, %s183
      %p187 = scmp.eq.s32.totalorder %s26, 0
      %p188 = por %p186, %p187
      %p189 = scmp.ne.s32.totalorder %s181, %s183
      %p190 = scmp.eq.s32.totalorder %s31, 1
      %p191 = por %p189, %p190
      %p192 = scmp.ne.s32.totalorder %s183, %s184
      %p193 = scmp.eq.s32.totalorder %s31, 0
      %p194 = por %p192, %p193
      %p195 = scmp.ne.s32.totalorder %s183, %s184
      %p196 = scmp.eq.s32.totalorder %s32, 1
      %p197 = por %p195, %p196
      %p199 = scmp.ne.s32.totalorder %s184, %s198
      %p200 = scmp.eq.s32.totalorder %s32, 0
      %p201 = por %p199, %p200
      %s203 = sadd.s32 %s202, 1
      %p206 = scmp.eq.s32.totalorder %s26, 1
      %p207 = scmp.ne.s32.totalorder %s202, %s204
      %p208 = scmp.eq.s32.totalorder %s26, 0
      %p209 = por %p207, %p208
      %p210 = scmp.ne.s32.totalorder %s202, %s204
      %p211 = scmp.eq.s32.totalorder %s31, 1
      %p212 = por %p210, %p211
      %p213 = scmp.ne.s32.totalorder %s204, %s205
      %p214 = scmp.eq.s32.totalorder %s31, 0
      %p215 = por %p213, %p214
      %p216 = scmp.ne.s32.totalorder %s204, %s205
      %p217 = scmp.eq.s32.totalorder %s32, 1
      %p218 = por %p216, %p217
      %p220 = scmp.ne.s32.totalorder %s205, %s219
      %p221 = scmp.eq.s32.totalorder %s32, 0
      %p222 = por %p220, %p221
      %s224 = sadd.s32 %s223, 1
      %p227 = scmp.eq.s32.totalorder %s26, 1
      %p228 = scmp.ne.s32.totalorder %s223, %s225
      %p229 = scmp.eq.s32.totalorder %s26, 0
      %p230 = por %p228, %p229
      %p231 = scmp.ne.s32.totalorder %s223, %s225
      %p232 = scmp.eq.s32.totalorder %s31, 1
      %p233 = por %p231, %p232
      %p234 = scmp.ne.s32.totalorder %s225, %s226
      %p235 = scmp.eq.s32.totalorder %s31, 0
      %p236 = por %p234, %p235
      %p237 = scmp.ne.s32.totalorder %s225, %s226
      %p238 = scmp.eq.s32.totalorder %s32, 1
      %p239 = por %p237, %p238
      %p241 = scmp.ne.s32.totalorder %s226, %s240
      %p242 = scmp.eq.s32.totalorder %s32, 0
      %p243 = por %p241, %p242
      %s245 = sadd.s32 %s244, 1
      %p248 = scmp.eq.s32.totalorder %s26, 1
      %p249 = scmp.ne.s32.totalorder %s244, %s246
      %p250 = scmp.eq.s32.totalorder %s26, 0
      %p251 = por %p249, %p250
      %p252 = scmp.ne.s32.totalorder %s244, %s246
      %p253 = scmp.eq.s32.totalorder %s31, 1
      %p254 = por %p252, %p253
      %p255 = scmp.ne.s32.totalorder %s246, %s247
      %p256 = scmp.eq.s32.totalorder %s31, 0
      %p257 = por %p255, %p256
      %p258 = scmp.ne.s32.totalorder %s246, %s247
      %p259 = scmp.eq.s32.totalorder %s32, 1
      %p260 = por %p258, %p259
      %p262 = scmp.ne.s32.totalorder %s247, %s261
      %p263 = scmp.eq.s32.totalorder %s32, 0
      %p264 = por %p262, %p263
      %s266 = sadd.s32 %s265, 1
      %p269 = scmp.eq.s32.totalorder %s26, 1
      %p270 = scmp.ne.s32.totalorder %s265, %s267
      %p271 = scmp.eq.s32.totalorder %s26, 0
      %p272 = por %p270, %p271
      %p273 = scmp.ne.s32.totalorder %s265, %s267
      %p274 = scmp.eq.s32.totalorder %s31, 1
      %p275 = por %p273, %p274
      %p276 = scmp.ne.s32.totalorder %s267, %s268
      %p277 = scmp.eq.s32.totalorder %s31, 0
      %p278 = por %p276, %p277
      %p279 = scmp.ne.s32.totalorder %s267, %s268
      %p280 = scmp.eq.s32.totalorder %s32, 1
      %p281 = por %p279, %p280
      %p283 = scmp.ne.s32.totalorder %s268, %s282
      %p284 = scmp.eq.s32.totalorder %s32, 0
      %p285 = por %p283, %p284
      %s286 = ssub.s32 %s26, %s33
      %p287 = scmp.eq.s32.totalorder %s286, 0
      %s289 = sadd.s32 %s288, 1
      %s290 = scalar_select %p287, %s288, %s289
      %p293 = pneg %p287
      %p294 = scmp.eq.s32.totalorder %s26, 1
      %p295 = por %p293, %p294
      %p296 = scmp.ne.s32.totalorder %s288, %s291
      %p297 = scmp.eq.s32.totalorder %s26, 0
      %p298 = por %p296, %p297
      %p299 = scmp.ne.s32.totalorder %s288, %s291
      %p300 = scmp.eq.s32.totalorder %s31, 1
      %p301 = por %p299, %p300
      %p302 = scmp.ne.s32.totalorder %s291, %s292
      %p303 = scmp.eq.s32.totalorder %s31, 0
      %p304 = por %p302, %p303
      %p305 = scmp.ne.s32.totalorder %s291, %s292
      %p306 = scmp.eq.s32.totalorder %s32, 1
      %p307 = por %p305, %p306
      %p309 = scmp.ne.s32.totalorder %s292, %s308
      %p310 = scmp.eq.s32.totalorder %s32, 0
      %p311 = por %p309, %p310
      %s312 = ssub.s32 %s26, %s33
      %p313 = scmp.eq.s32.totalorder %s312, 0
      %s315 = sadd.s32 %s314, 1
      %s316 = scalar_select %p313, %s314, %s315
      %p319 = pneg %p313
      %p320 = scmp.eq.s32.totalorder %s26, 1
      %p321 = por %p319, %p320
      %p322 = scmp.ne.s32.totalorder %s314, %s317
      %p323 = scmp.eq.s32.totalorder %s26, 0
      %p324 = por %p322, %p323
      %p325 = scmp.ne.s32.totalorder %s314, %s317
      %p326 = scmp.eq.s32.totalorder %s31, 1
      %p327 = por %p325, %p326
      %p328 = scmp.ne.s32.totalorder %s317, %s318
      %p329 = scmp.eq.s32.totalorder %s31, 0
      %p330 = por %p328, %p329
      %p331 = scmp.ne.s32.totalorder %s317, %s318
      %p332 = scmp.eq.s32.totalorder %s32, 1
      %p333 = por %p331, %p332
      %p335 = scmp.ne.s32.totalorder %s318, %s334
      %p336 = scmp.eq.s32.totalorder %s32, 0
      %p337 = por %p335, %p336
      %s338 = ssub.s32 %s26, %s33
      %p339 = scmp.eq.s32.totalorder %s338, 0
      %s341 = sadd.s32 %s340, 1
      %s342 = scalar_select %p339, %s340, %s341
      %p345 = pneg %p339
      %p346 = scmp.eq.s32.totalorder %s26, 1
      %p347 = por %p345, %p346
      %p348 = scmp.ne.s32.totalorder %s340, %s343
      %p349 = scmp.eq.s32.totalorder %s26, 0
      %p350 = por %p348, %p349
      %p351 = scmp.ne.s32.totalorder %s340, %s343
      %p352 = scmp.eq.s32.totalorder %s31, 1
      %p353 = por %p351, %p352
      %p354 = scmp.ne.s32.totalorder %s343, %s344
      %p355 = scmp.eq.s32.totalorder %s31, 0
      %p356 = por %p354, %p355
      %p357 = scmp.ne.s32.totalorder %s343, %s344
      %p358 = scmp.eq.s32.totalorder %s32, 1
      %p359 = por %p357, %p358
      %p361 = scmp.ne.s32.totalorder %s344, %s360
      %p362 = scmp.eq.s32.totalorder %s32, 0
      %p363 = por %p361, %p362
      %p364 = scmp.le.s32.totalorder 1, %s26
      %p365 = scmp.lt.s32.totalorder %s26, 3
      %p366 = pnand %p364, %p365
      %p367 = pneg %p366
      // Predicated region
      $region9: #{phycrnet_forward.1} parent=5 // pred_check
        _
      $region10: #{phycrnet_forward.1} parent=5 // pred_check_branch
        %369 = sbr.rel (%p366) target = $region12
      $region11: #{phycrnet_forward.1} parent=5 // pred_region
        %s370 = ssub.s32 %s26, 1
        // Predicated region
        $region13: #{phycrnet_forward.1} parent=11 // pred_check
          %p371 = pneg %p47
        $region14: #{phycrnet_forward.1} parent=11 // pred_check_branch
          %373 = sbr.rel (%p371) target = $region16
        $region15: #{phycrnet_forward.1} parent=11 // pred_region
          _
        $region16: #{phycrnet_forward.1} parent=11 // pred_fallthru
          _
        // Predicated region
        $region17: #{phycrnet_forward.1} parent=11 // pred_check
          %p374 = pneg %p68
        $region18: #{phycrnet_forward.1} parent=11 // pred_check_branch
          %376 = sbr.rel (%p374) target = $region20
        $region19: #{phycrnet_forward.1} parent=11 // pred_region
          _
        $region20: #{phycrnet_forward.1} parent=11 // pred_fallthru
          _
        // Predicated region
        $region21: #{phycrnet_forward.1} parent=11 // pred_check
          %p377 = pneg %p89
        $region22: #{phycrnet_forward.1} parent=11 // pred_check_branch
          %379 = sbr.rel (%p377) target = $region24
        $region23: #{phycrnet_forward.1} parent=11 // pred_region
          _
        $region24: #{phycrnet_forward.1} parent=11 // pred_fallthru
          _
        // Predicated region
        $region25: #{phycrnet_forward.1} parent=11 // pred_check
          %p380 = pneg %p110
        $region26: #{phycrnet_forward.1} parent=11 // pred_check_branch
          %382 = sbr.rel (%p380) target = $region28
        $region27: #{phycrnet_forward.1} parent=11 // pred_region
          %s384 = ssub.s32 16384, 16384
          %385 = vsyncadd [#allocation6], %s384
          %s386 = sshll.u32 [#allocation5], 4
          %s387 = int_to_ptr.vmem [resolvable:$true] %s386
          %392 = dma.hbm_to_vmem [thread:$0]  %s3, 16384, %s387, [#allocation6], 256, 256, 16
        $region28: #{phycrnet_forward.1} parent=11 // pred_fallthru
          _
        // Predicated region
        $region29: #{phycrnet_forward.1} parent=11 // pred_check
          %p393 = pneg %p131
        $region30: #{phycrnet_forward.1} parent=11 // pred_check_branch
          %395 = sbr.rel (%p393) target = $region32
        $region31: #{phycrnet_forward.1} parent=11 // pred_region
          %s397 = ssub.s32 32, 32
          %398 = vsyncadd [#allocation8], %s397
          %s400 = sshll.u32 [#allocation7], 4
          %s401 = int_to_ptr.vmem [resolvable:$true] %s400
          %403 = dma.hbm_to_vmem [thread:$0]  %s4, 32, %s401, [#allocation8]
        $region32: #{phycrnet_forward.1} parent=11 // pred_fallthru
          _
        // Predicated region
        $region33: #{phycrnet_forward.1} parent=11 // pred_check
          %p404 = pneg %p152
        $region34: #{phycrnet_forward.1} parent=11 // pred_check_branch
          %406 = sbr.rel (%p404) target = $region36
        $region35: #{phycrnet_forward.1} parent=11 // pred_region
          %s408 = ssub.s32 4096, 4096
          %409 = vsyncadd [#allocation8], %s408
          %s410 = sshll.u32 [#allocation9], 4
          %s411 = int_to_ptr.vmem [resolvable:$true] %s410
          %416 = dma.hbm_to_vmem [thread:$0]  %s5, 4096, %s411, [#allocation8], 128, 128, 8
        $region36: #{phycrnet_forward.1} parent=11 // pred_fallthru
          _
        // Predicated region
        $region37: #{phycrnet_forward.1} parent=11 // pred_check
          %p417 = pneg %p173
        $region38: #{phycrnet_forward.1} parent=11 // pred_check_branch
          %419 = sbr.rel (%p417) target = $region40
        $region39: #{phycrnet_forward.1} parent=11 // pred_region
          %s421 = ssub.s32 16, 16
          %422 = vsyncadd [#allocation11], %s421
          %s424 = sshll.u32 [#allocation10], 4
          %s425 = int_to_ptr.vmem [resolvable:$true] %s424
          %427 = dma.hbm_to_vmem [thread:$0]  %s6, 16, %s425, [#allocation11]
        $region40: #{phycrnet_forward.1} parent=11 // pred_fallthru
          _
        // Predicated region
        $region41: #{phycrnet_forward.1} parent=11 // pred_check
          %p428 = pneg %p194
        $region42: #{phycrnet_forward.1} parent=11 // pred_check_branch
          %430 = sbr.rel (%p428) target = $region44
        $region43: #{phycrnet_forward.1} parent=11 // pred_region
          %s432 = ssub.s32 32768, 32768
          %433 = vsyncadd [#allocation11], %s432
          %s434 = sshll.u32 [#allocation12], 4
          %s435 = int_to_ptr.vmem [resolvable:$true] %s434
          %440 = dma.hbm_to_vmem [thread:$0]  %s7, 32768, %s435, [#allocation11], 2048, 2048, 128
        $region44: #{phycrnet_forward.1} parent=11 // pred_fallthru
          _
        // Predicated region
        $region45: #{phycrnet_forward.1} parent=11 // pred_check
          %p441 = pneg %p215
        $region46: #{phycrnet_forward.1} parent=11 // pred_check_branch
          %443 = sbr.rel (%p441) target = $region48
        $region47: #{phycrnet_forward.1} parent=11 // pred_region
          %s445 = ssub.s32 131072, 131072
          %446 = vsyncadd [#allocation14], %s445
          %s447 = sshll.u32 [#allocation13], 4
          %s448 = int_to_ptr.vmem [resolvable:$true] %s447
          %453 = dma.hbm_to_vmem [thread:$0]  %s8, 131072, %s448, [#allocation14], 2048, 2048, 128
        $region48: #{phycrnet_forward.1} parent=11 // pred_fallthru
          _
        // Predicated region
        $region49: #{phycrnet_forward.1} parent=11 // pred_check
          %p454 = pneg %p236
        $region50: #{phycrnet_forward.1} parent=11 // pred_check_branch
          %456 = sbr.rel (%p454) target = $region52
        $region51: #{phycrnet_forward.1} parent=11 // pred_region
          %s458 = ssub.s32 256, 256
          %459 = vsyncadd [#allocation14], %s458
          %s461 = sshll.u32 [#allocation15], 4
          %s462 = int_to_ptr.vmem [resolvable:$true] %s461
          %464 = dma.hbm_to_vmem [thread:$0]  %s9, 256, %s462, [#allocation14]
        $region52: #{phycrnet_forward.1} parent=11 // pred_fallthru
          _
        // Predicated region
        $region53: #{phycrnet_forward.1} parent=11 // pred_check
          %p465 = pneg %p257
        $region54: #{phycrnet_forward.1} parent=11 // pred_check_branch
          %467 = sbr.rel (%p465) target = $region56
        $region55: #{phycrnet_forward.1} parent=11 // pred_region
          %s469 = ssub.s32 32768, 32768
          %470 = vsyncadd [#allocation17], %s469
          %s471 = sshll.u32 [#allocation16], 4
          %s472 = int_to_ptr.vmem [resolvable:$true] %s471
          %477 = dma.hbm_to_vmem [thread:$0]  %s10, 32768, %s472, [#allocation17], 512, 512, 32
        $region56: #{phycrnet_forward.1} parent=11 // pred_fallthru
          _
        // Predicated region
        $region57: #{phycrnet_forward.1} parent=11 // pred_check
          %p478 = pneg %p278
        $region58: #{phycrnet_forward.1} parent=11 // pred_check_branch
          %480 = sbr.rel (%p478) target = $region60
        $region59: #{phycrnet_forward.1} parent=11 // pred_region
          %s482 = ssub.s32 64, 64
          %483 = vsyncadd [#allocation17], %s482
          %s485 = sshll.u32 [#allocation18], 4
          %s486 = int_to_ptr.vmem [resolvable:$true] %s485
          %488 = dma.hbm_to_vmem [thread:$0]  %s11, 64, %s486, [#allocation17]
        $region60: #{phycrnet_forward.1} parent=11 // pred_fallthru
          _
      $region12: #{phycrnet_forward.1} parent=5 // pred_fallthru
        _
      %p489 = scmp.lt.s32.totalorder %s26, 2
      // Predicated region
      $region61: #{phycrnet_forward.1} parent=5 // pred_check
        %p490 = pneg %p489
      $region62: #{phycrnet_forward.1} parent=5 // pred_check_branch
        %492 = sbr.rel (%p490) target = $region64
      $region63: #{phycrnet_forward.1} parent=5 // pred_region
        _
      $region64: #{phycrnet_forward.1} parent=5 // pred_fallthru
        _
      %p493 = scmp.le.s32.totalorder 1, %s26
      %p494 = scmp.lt.s32.totalorder %s26, 3
      %p495 = pnand %p493, %p494
      %p496 = pneg %p495
      // Predicated region
      $region65: #{phycrnet_forward.1} parent=5 // pred_check
        _
      $region66: #{phycrnet_forward.1} parent=5 // pred_check_branch
        %498 = sbr.rel (%p495) target = $region68
      $region67: #{phycrnet_forward.1} parent=5 // pred_region
        %s499 = ssub.s32 %s26, 1
        // Predicated region
        $region69: #{phycrnet_forward.1} parent=67 // pred_check
          %p500 = pneg %p110
        $region70: #{phycrnet_forward.1} parent=67 // pred_check_branch
          %502 = sbr.rel (%p500) target = $region72
        $region71: #{phycrnet_forward.1} parent=67 // pred_region
          %503 = dma.done [#allocation6], 16384
        $region72: #{phycrnet_forward.1} parent=67 // pred_fallthru
          _
        // Predicated region
        $region73: #{phycrnet_forward.1} parent=67 // pred_check
          %p504 = pneg %p131
        $region74: #{phycrnet_forward.1} parent=67 // pred_check_branch
          %506 = sbr.rel (%p504) target = $region76
        $region75: #{phycrnet_forward.1} parent=67 // pred_region
          %507 = dma.done [#allocation8], 32
        $region76: #{phycrnet_forward.1} parent=67 // pred_fallthru
          _
        // Predicated region
        $region77: #{phycrnet_forward.1} parent=67 // pred_check
          %p508 = pneg %p152
        $region78: #{phycrnet_forward.1} parent=67 // pred_check_branch
          %510 = sbr.rel (%p508) target = $region80
        $region79: #{phycrnet_forward.1} parent=67 // pred_region
          %511 = dma.done [#allocation8], 4096
        $region80: #{phycrnet_forward.1} parent=67 // pred_fallthru
          _
        // Predicated region
        $region81: #{phycrnet_forward.1} parent=67 // pred_check
          %p512 = pneg %p173
        $region82: #{phycrnet_forward.1} parent=67 // pred_check_branch
          %514 = sbr.rel (%p512) target = $region84
        $region83: #{phycrnet_forward.1} parent=67 // pred_region
          %515 = dma.done [#allocation11], 16
        $region84: #{phycrnet_forward.1} parent=67 // pred_fallthru
          _
        // Predicated region
        $region85: #{phycrnet_forward.1} parent=67 // pred_check
          %p516 = pneg %p194
        $region86: #{phycrnet_forward.1} parent=67 // pred_check_branch
          %518 = sbr.rel (%p516) target = $region88
        $region87: #{phycrnet_forward.1} parent=67 // pred_region
          %519 = dma.done [#allocation11], 32768
        $region88: #{phycrnet_forward.1} parent=67 // pred_fallthru
          _
        // Predicated region
        $region89: #{phycrnet_forward.1} parent=67 // pred_check
          %p520 = pneg %p215
        $region90: #{phycrnet_forward.1} parent=67 // pred_check_branch
          %522 = sbr.rel (%p520) target = $region92
        $region91: #{phycrnet_forward.1} parent=67 // pred_region
          %523 = dma.done [#allocation14], 131072
        $region92: #{phycrnet_forward.1} parent=67 // pred_fallthru
          _
        // Predicated region
        $region93: #{phycrnet_forward.1} parent=67 // pred_check
          %p524 = pneg %p236
        $region94: #{phycrnet_forward.1} parent=67 // pred_check_branch
          %526 = sbr.rel (%p524) target = $region96
        $region95: #{phycrnet_forward.1} parent=67 // pred_region
          %527 = dma.done [#allocation14], 256
        $region96: #{phycrnet_forward.1} parent=67 // pred_fallthru
          _
        // Predicated region
        $region97: #{phycrnet_forward.1} parent=67 // pred_check
          %p528 = pneg %p257
        $region98: #{phycrnet_forward.1} parent=67 // pred_check_branch
          %530 = sbr.rel (%p528) target = $region100
        $region99: #{phycrnet_forward.1} parent=67 // pred_region
          %531 = dma.done [#allocation17], 32768
        $region100: #{phycrnet_forward.1} parent=67 // pred_fallthru
          _
        // Predicated region
        $region101: #{phycrnet_forward.1} parent=67 // pred_check
          %p532 = pneg %p278
        $region102: #{phycrnet_forward.1} parent=67 // pred_check_branch
          %534 = sbr.rel (%p532) target = $region104
        $region103: #{phycrnet_forward.1} parent=67 // pred_region
          %535 = dma.done [#allocation17], 64
        $region104: #{phycrnet_forward.1} parent=67 // pred_fallthru
          _
        %p536 = pneg %p47
        %p537 = pneg %p44
        %p538 = pneg %p68
        %p539 = pneg %p65
        %p540 = pneg %p89
        %p541 = pneg %p86
        %p542 = pneg %p110
        %p543 = pneg %p107
        %p544 = pneg %p131
        %p545 = pneg %p128
        %p546 = pneg %p152
        %p547 = pneg %p149
        %p548 = pneg %p173
        %p549 = pneg %p170
        %p550 = pneg %p194
        %p551 = pneg %p191
        %p552 = pneg %p215
        %p553 = pneg %p212
        %p554 = pneg %p236
        %p555 = pneg %p233
        %p556 = pneg %p257
        %p557 = pneg %p254
        %p558 = pneg %p278
        %p559 = pneg %p275
        %p560 = pneg %p304
        %p561 = pneg %p301
        %p562 = scmp.lt.s32.totalorder %s31, 1
        %s563 = scalar_select %p562, %s31, 1
        %s564 = smul.addr %s563, 4
        %s565 = smul.addr %s564, 2
        %s566 = scalar_lea.vmem %s12, %s565
        %p567 = pneg %p330
        %p568 = pneg %p327
        %p569 = scmp.lt.s32.totalorder %s31, 1
        %s570 = scalar_select %p569, %s31, 1
        %s571 = smul.addr %s570, 4
        %s572 = smul.addr %s571, 2
        %s573 = scalar_lea.vmem %s13, %s572
        %p574 = pneg %p356
        %p575 = pneg %p353
        %p576 = scmp.lt.s32.totalorder %s31, 1
        %s577 = scalar_select %p576, %s31, 1
        %s578 = smul.addr %s577, 4
        %s579 = smul.addr %s578, 2
        %s580 = scalar_lea.vmem %s14, %s579
        %p581 = scmp.lt.s32.totalorder %s31, 1
        %s582 = scalar_select %p581, %s31, 1
        %s583 = smul.addr %s582, 4
        %s584 = smul.addr %s583, 2
        %s585 = scalar_lea.vmem %s12, %s584
        %p586 = scmp.lt.s32.totalorder %s31, 1
        %s587 = scalar_select %p586, %s31, 1
        %s588 = smul.addr %s587, 4
        %s589 = smul.addr %s588, 2
        %s590 = scalar_lea.vmem %s13, %s589
        %p591 = scmp.lt.s32.totalorder %s31, 1
        %s592 = scalar_select %p591, %s31, 1
        %s593 = smul.addr %s592, 4
        %s594 = smul.addr %s593, 2
        %s595 = scalar_lea.vmem %s14, %s594
        %p596 = scmp.eq.s32.totalorder %s31, 0
        // Predicated region
        $region105: #{phycrnet_forward.1} parent=67 // pred_check
          %p597 = pneg %p596
        $region106: #{phycrnet_forward.1} parent=67 // pred_check_branch
          %599 = sbr.rel (%p597) target = $region108
        $region107: #{phycrnet_forward.1} parent=67 // pred_region
          %v600 = vld [vmem:[%s0] sm:$0xff]
          %601 = vst [vmem:[#allocation2] sm:$0xff] %v600
          %v602 = vld [vmem:[%s1] sm:$0xff]
          %603 = vst [vmem:[#allocation3] sm:$0xff] %v602
          %v604 = vld [vmem:[%s2] sm:$0xff]
          %605 = vst [vmem:[#allocation4] sm:$0xff] %v604
        $region108: #{phycrnet_forward.1} parent=67 // pred_fallthru
          _
        %v606 = vld [vmem:[#allocation2] sm:$0xff]
        %v607 = vld [vmem:[#allocation3] sm:$0xff]
        %v608 = vld [vmem:[#allocation4] sm:$0xff]
        %v609 = vld [vmem:[#allocation5] sm:$0xff]
        %v610 = vld [vmem:[#allocation5 + $0x8] sm:$0xff]
        %v611 = vld [vmem:[#allocation5 + $0x10] sm:$0xff]
        %v612 = vld [vmem:[#allocation5 + $0x18] sm:$0xff]
        %v613 = vld [vmem:[#allocation5 + $0x20] sm:$0xff]
        %v614 = vld [vmem:[#allocation5 + $0x28] sm:$0xff]
        %v615 = vld [vmem:[#allocation5 + $0x30] sm:$0xff]
        %v616 = vld [vmem:[#allocation5 + $0x38] sm:$0xff]
        %v617 = vld [vmem:[#allocation5 + $0x40] sm:$0xff]
        %v618 = vld [vmem:[#allocation5 + $0x48] sm:$0xff]
        %v619 = vld [vmem:[#allocation5 + $0x50] sm:$0xff]
        %v620 = vld [vmem:[#allocation5 + $0x58] sm:$0xff]
        %v621 = vld [vmem:[#allocation5 + $0x60] sm:$0xff]
        %v622 = vld [vmem:[#allocation5 + $0x68] sm:$0xff]
        %v623 = vld [vmem:[#allocation5 + $0x70] sm:$0xff]
        %v624 = vld [vmem:[#allocation5 + $0x78] sm:$0xff]
        %v625 = vld [vmem:[#allocation5 + $0x80] sm:$0xff]
        %v626 = vld [vmem:[#allocation5 + $0x88] sm:$0xff]
        %v627 = vld [vmem:[#allocation5 + $0x90] sm:$0xff]
        %v628 = vld [vmem:[#allocation5 + $0x98] sm:$0xff]
        %v629 = vld [vmem:[#allocation5 + $0xa0] sm:$0xff]
        %v630 = vld [vmem:[#allocation5 + $0xa8] sm:$0xff]
        %v631 = vld [vmem:[#allocation5 + $0xb0] sm:$0xff]
        %v632 = vld [vmem:[#allocation5 + $0xb8] sm:$0xff]
        %v633 = vld [vmem:[#allocation5 + $0xc0] sm:$0xff]
        %v634 = vld [vmem:[#allocation5 + $0xc8] sm:$0xff]
        %v635 = vld [vmem:[#allocation5 + $0xd0] sm:$0xff]
        %v636 = vld [vmem:[#allocation5 + $0xd8] sm:$0xff]
        %v637 = vld [vmem:[#allocation5 + $0xe0] sm:$0xff]
        %v638 = vld [vmem:[#allocation5 + $0xe8] sm:$0xff]
        %v639 = vld [vmem:[#allocation5 + $0xf0] sm:$0xff]
        %v640 = vld [vmem:[#allocation5 + $0xf8] sm:$0xff]
        %v641 = vld [vmem:[#allocation5 + $0x100] sm:$0xff]
        %v642 = vld [vmem:[#allocation5 + $0x108] sm:$0xff]
        %v643 = vld [vmem:[#allocation5 + $0x110] sm:$0xff]
        %v644 = vld [vmem:[#allocation5 + $0x118] sm:$0xff]
        %v645 = vld [vmem:[#allocation5 + $0x120] sm:$0xff]
        %v646 = vld [vmem:[#allocation5 + $0x128] sm:$0xff]
        %v647 = vld [vmem:[#allocation5 + $0x130] sm:$0xff]
        %v648 = vld [vmem:[#allocation5 + $0x138] sm:$0xff]
        %v649 = vld [vmem:[#allocation5 + $0x140] sm:$0xff]
        %v650 = vld [vmem:[#allocation5 + $0x148] sm:$0xff]
        %v651 = vld [vmem:[#allocation5 + $0x150] sm:$0xff]
        %v652 = vld [vmem:[#allocation5 + $0x158] sm:$0xff]
        %v653 = vld [vmem:[#allocation5 + $0x160] sm:$0xff]
        %v654 = vld [vmem:[#allocation5 + $0x168] sm:$0xff]
        %v655 = vld [vmem:[#allocation5 + $0x170] sm:$0xff]
        %v656 = vld [vmem:[#allocation5 + $0x178] sm:$0xff]
        %v657 = vld [vmem:[#allocation5 + $0x180] sm:$0xff]
        %v658 = vld [vmem:[#allocation5 + $0x188] sm:$0xff]
        %v659 = vld [vmem:[#allocation5 + $0x190] sm:$0xff]
        %v660 = vld [vmem:[#allocation5 + $0x198] sm:$0xff]
        %v661 = vld [vmem:[#allocation5 + $0x1a0] sm:$0xff]
        %v662 = vld [vmem:[#allocation5 + $0x1a8] sm:$0xff]
        %v663 = vld [vmem:[#allocation5 + $0x1b0] sm:$0xff]
        %v664 = vld [vmem:[#allocation5 + $0x1b8] sm:$0xff]
        %v665 = vld [vmem:[#allocation5 + $0x1c0] sm:$0xff]
        %v666 = vld [vmem:[#allocation5 + $0x1c8] sm:$0xff]
        %v667 = vld [vmem:[#allocation5 + $0x1d0] sm:$0xff]
        %v668 = vld [vmem:[#allocation5 + $0x1d8] sm:$0xff]
        %v669 = vld [vmem:[#allocation5 + $0x1e0] sm:$0xff]
        %v670 = vld [vmem:[#allocation5 + $0x1e8] sm:$0xff]
        %v671 = vld [vmem:[#allocation5 + $0x1f0] sm:$0xff]
        %v672 = vld [vmem:[#allocation5 + $0x1f8] sm:$0xff]
        %v673 = vld [vmem:[#allocation5 + $0x200] sm:$0xff]
        %v674 = vld [vmem:[#allocation5 + $0x208] sm:$0xff]
        %v675 = vld [vmem:[#allocation5 + $0x210] sm:$0xff]
        %v676 = vld [vmem:[#allocation5 + $0x218] sm:$0xff]
        %v677 = vld [vmem:[#allocation5 + $0x220] sm:$0xff]
        %v678 = vld [vmem:[#allocation5 + $0x228] sm:$0xff]
        %v679 = vld [vmem:[#allocation5 + $0x230] sm:$0xff]
        %v680 = vld [vmem:[#allocation5 + $0x238] sm:$0xff]
        %v681 = vld [vmem:[#allocation5 + $0x240] sm:$0xff]
        %v682 = vld [vmem:[#allocation5 + $0x248] sm:$0xff]
        %v683 = vld [vmem:[#allocation5 + $0x250] sm:$0xff]
        %v684 = vld [vmem:[#allocation5 + $0x258] sm:$0xff]
        %v685 = vld [vmem:[#allocation5 + $0x260] sm:$0xff]
        %v686 = vld [vmem:[#allocation5 + $0x268] sm:$0xff]
        %v687 = vld [vmem:[#allocation5 + $0x270] sm:$0xff]
        %v688 = vld [vmem:[#allocation5 + $0x278] sm:$0xff]
        %v689 = vld [vmem:[#allocation5 + $0x280] sm:$0xff]
        %v690 = vld [vmem:[#allocation5 + $0x288] sm:$0xff]
        %v691 = vld [vmem:[#allocation5 + $0x290] sm:$0xff]
        %v692 = vld [vmem:[#allocation5 + $0x298] sm:$0xff]
        %v693 = vld [vmem:[#allocation5 + $0x2a0] sm:$0xff]
        %v694 = vld [vmem:[#allocation5 + $0x2a8] sm:$0xff]
        %v695 = vld [vmem:[#allocation5 + $0x2b0] sm:$0xff]
        %v696 = vld [vmem:[#allocation5 + $0x2b8] sm:$0xff]
        %v697 = vld [vmem:[#allocation5 + $0x2c0] sm:$0xff]
        %v698 = vld [vmem:[#allocation5 + $0x2c8] sm:$0xff]
        %v699 = vld [vmem:[#allocation5 + $0x2d0] sm:$0xff]
        %v700 = vld [vmem:[#allocation5 + $0x2d8] sm:$0xff]
        %v701 = vld [vmem:[#allocation5 + $0x2e0] sm:$0xff]
        %v702 = vld [vmem:[#allocation5 + $0x2e8] sm:$0xff]
        %v703 = vld [vmem:[#allocation5 + $0x2f0] sm:$0xff]
        %v704 = vld [vmem:[#allocation5 + $0x2f8] sm:$0xff]
        %v705 = vld [vmem:[#allocation5 + $0x300] sm:$0xff]
        %v706 = vld [vmem:[#allocation5 + $0x308] sm:$0xff]
        %v707 = vld [vmem:[#allocation5 + $0x310] sm:$0xff]
        %v708 = vld [vmem:[#allocation5 + $0x318] sm:$0xff]
        %v709 = vld [vmem:[#allocation5 + $0x320] sm:$0xff]
        %v710 = vld [vmem:[#allocation5 + $0x328] sm:$0xff]
        %v711 = vld [vmem:[#allocation5 + $0x330] sm:$0xff]
        %v712 = vld [vmem:[#allocation5 + $0x338] sm:$0xff]
        %v713 = vld [vmem:[#allocation5 + $0x340] sm:$0xff]
        %v714 = vld [vmem:[#allocation5 + $0x348] sm:$0xff]
        %v715 = vld [vmem:[#allocation5 + $0x350] sm:$0xff]
        %v716 = vld [vmem:[#allocation5 + $0x358] sm:$0xff]
        %v717 = vld [vmem:[#allocation5 + $0x360] sm:$0xff]
        %v718 = vld [vmem:[#allocation5 + $0x368] sm:$0xff]
        %v719 = vld [vmem:[#allocation5 + $0x370] sm:$0xff]
        %v720 = vld [vmem:[#allocation5 + $0x378] sm:$0xff]
        %v721 = vld [vmem:[#allocation5 + $0x380] sm:$0xff]
        %v722 = vld [vmem:[#allocation5 + $0x388] sm:$0xff]
        %v723 = vld [vmem:[#allocation5 + $0x390] sm:$0xff]
        %v724 = vld [vmem:[#allocation5 + $0x398] sm:$0xff]
        %v725 = vld [vmem:[#allocation5 + $0x3a0] sm:$0xff]
        %v726 = vld [vmem:[#allocation5 + $0x3a8] sm:$0xff]
        %v727 = vld [vmem:[#allocation5 + $0x3b0] sm:$0xff]
        %v728 = vld [vmem:[#allocation5 + $0x3b8] sm:$0xff]
        %v729 = vld [vmem:[#allocation5 + $0x3c0] sm:$0xff]
        %v730 = vld [vmem:[#allocation5 + $0x3c8] sm:$0xff]
        %v731 = vld [vmem:[#allocation5 + $0x3d0] sm:$0xff]
        %v732 = vld [vmem:[#allocation5 + $0x3d8] sm:$0xff]
        %v733 = vld [vmem:[#allocation5 + $0x3e0] sm:$0xff]
        %v734 = vld [vmem:[#allocation5 + $0x3e8] sm:$0xff]
        %v735 = vld [vmem:[#allocation5 + $0x3f0] sm:$0xff]
        %v736 = vld [vmem:[#allocation5 + $0x3f8] sm:$0xff]
        %v737 = vld [vmem:[#allocation7] sm:$0x3]
        %v739 = vlaneseq
        %v740 = vshrl.u32 %v739, 7
        %v741 = vsub.s32 0, %v740
        %v742 = vrot.slane %v737, %v741
        %v743 = vlaneseq
        %v744 = vshrl.u32 %v743, 7
        %v745 = vsub.s32 1, %v744
        %v746 = vrot.slane %v737, %v745
        %v750 = vcombine.high %v606, %v606
        %v752 = vunpack.c.l.s4 1983009808
        %v753 = vunpack.c.0.s8 %v752
        %v754 = vlaneseq
        %v755 = vshrl.u32 %v754, 7
        %v756 = vsub.s32 %v753, %v755
        %v757 = vrot.slane %v606, %v756
        %v759 = vunpack.c.l.s4 1983009808
        %v760 = vunpack.c.0.s8 %v759
        %v761 = vlaneseq
        %v762 = vshrl.u32 %v761, 7
        %v763 = vsub.s32 %v760, %v762
        %v764 = vrot.slane %v750, %v763
        %v765 = vcombine.high %v757, %v757
        %v766 = vcombine.high %v764, %v764
        %771 = vmatprep.subr.mxu0 %v610
        %772 = vmatpush1.msra.mxu0 %v609
        %773 = vmatprep.subr.mxu0 %v612
        %774 = vmatpush1.msra.mxu0 %v611
        %775 = vmatprep.subr.mxu0 %v614
        %776 = vmatpush1.msra.mxu0 %v613
        %777 = vmatprep.subr.mxu0 %v616
        %778 = vmatpush1.msra.mxu0 %v615
        %779 = vmatprep.subr.mxu0 %v618
        %780 = vmatpush1.msra.mxu0 %v617
        %781 = vmatprep.subr.mxu0 %v620
        %782 = vmatpush1.msra.mxu0 %v619
        %783 = vmatprep.subr.mxu0 %v622
        %784 = vmatpush1.msra.mxu0 %v621
        %785 = vmatprep.subr.mxu0 %v624
        %786 = vmatpush1.msra.mxu0 %v623
        %787 = vmatprep.subr.mxu0 %v626
        %788 = vmatpush1.msra.mxu0 %v625
        %789 = vmatprep.subr.mxu0 %v628
        %790 = vmatpush1.msra.mxu0 %v627
        %791 = vmatprep.subr.mxu0 %v630
        %792 = vmatpush1.msra.mxu0 %v629
        %793 = vmatprep.subr.mxu0 %v632
        %794 = vmatpush1.msra.mxu0 %v631
        %795 = vmatprep.subr.mxu0 %v634
        %796 = vmatpush1.msra.mxu0 %v633
        %797 = vmatprep.subr.mxu0 %v636
        %798 = vmatpush1.msra.mxu0 %v635
        %799 = vmatprep.subr.mxu0 %v638
        %800 = vmatpush1.msra.mxu0 %v637
        %801 = vmatprep.subr.mxu0 %v640
        %802 = vmatpush1.msra.mxu0 %v639
        %803 = vmatprep.subr.mxu0 %v642
        %804 = vmatpush1.msra.mxu0 %v641
        %805 = vmatprep.subr.mxu0 %v644
        %806 = vmatpush1.msra.mxu0 %v643
        %807 = vmatprep.subr.mxu0 %v646
        %808 = vmatpush1.msra.mxu0 %v645
        %809 = vmatprep.subr.mxu0 %v648
        %810 = vmatpush1.msra.mxu0 %v647
        %811 = vmatprep.subr.mxu0 %v650
        %812 = vmatpush1.msra.mxu0 %v649
        %813 = vmatprep.subr.mxu0 %v652
        %814 = vmatpush1.msra.mxu0 %v651
        %815 = vmatprep.subr.mxu0 %v654
        %816 = vmatpush1.msra.mxu0 %v653
        %817 = vmatprep.subr.mxu0 %v656
        %818 = vmatpush1.msra.mxu0 %v655
        %819 = vmatprep.subr.mxu0 %v658
        %820 = vmatpush1.msra.mxu0 %v657
        %821 = vmatprep.subr.mxu0 %v660
        %822 = vmatpush1.msra.mxu0 %v659
        %823 = vmatprep.subr.mxu0 %v662
        %824 = vmatpush1.msra.mxu0 %v661
        %825 = vmatprep.subr.mxu0 %v664
        %826 = vmatpush1.msra.mxu0 %v663
        %827 = vmatprep.subr.mxu0 %v666
        %828 = vmatpush1.msra.mxu0 %v665
        %829 = vmatprep.subr.mxu0 %v668
        %830 = vmatpush1.msra.mxu0 %v667
        %831 = vmatprep.subr.mxu0 %v670
        %832 = vmatpush1.msra.mxu0 %v669
        %833 = vmatprep.subr.mxu0 %v672
        %834 = vmatpush1.msra.mxu0 %v671
        %835 = vmatprep.mubr.f32.mxu0 %v765
        %836 = vmatmul.mubr.f32.gmra.mrb[0].mxu0 %v757
        %v837 = vpop.f32.mrb[0].mxu0
        %v838 = vadd.f32 %v742, %v837
        %v839 = vpop.f32.mrb[0].mxu0
        %v840 = vadd.f32 %v746, %v839
        %841 = vdwg.mxu0
        %842 = vmatprep.subr.mxu0 %v674
        %843 = vmatpush1.msra.mxu0 %v673
        %844 = vmatprep.subr.mxu0 %v676
        %845 = vmatpush1.msra.mxu0 %v675
        %846 = vmatprep.subr.mxu0 %v678
        %847 = vmatpush1.msra.mxu0 %v677
        %848 = vmatprep.subr.mxu0 %v680
        %849 = vmatpush1.msra.mxu0 %v679
        %850 = vmatprep.subr.mxu0 %v682
        %851 = vmatpush1.msra.mxu0 %v681
        %852 = vmatprep.subr.mxu0 %v684
        %853 = vmatpush1.msra.mxu0 %v683
        %854 = vmatprep.subr.mxu0 %v686
        %855 = vmatpush1.msra.mxu0 %v685
        %856 = vmatprep.subr.mxu0 %v688
        %857 = vmatpush1.msra.mxu0 %v687
        %858 = vmatprep.subr.mxu0 %v690
        %859 = vmatpush1.msra.mxu0 %v689
        %860 = vmatprep.subr.mxu0 %v692
        %861 = vmatpush1.msra.mxu0 %v691
        %862 = vmatprep.subr.mxu0 %v694
        %863 = vmatpush1.msra.mxu0 %v693
        %864 = vmatprep.subr.mxu0 %v696
        %865 = vmatpush1.msra.mxu0 %v695
        %866 = vmatprep.subr.mxu0 %v698
        %867 = vmatpush1.msra.mxu0 %v697
        %868 = vmatprep.subr.mxu0 %v700
        %869 = vmatpush1.msra.mxu0 %v699
        %870 = vmatprep.subr.mxu0 %v702
        %871 = vmatpush1.msra.mxu0 %v701
        %872 = vmatprep.subr.mxu0 %v704
        %873 = vmatpush1.msra.mxu0 %v703
        %874 = vmatprep.subr.mxu0 %v706
        %875 = vmatpush1.msra.mxu0 %v705
        %876 = vmatprep.subr.mxu0 %v708
        %877 = vmatpush1.msra.mxu0 %v707
        %878 = vmatprep.subr.mxu0 %v710
        %879 = vmatpush1.msra.mxu0 %v709
        %880 = vmatprep.subr.mxu0 %v712
        %881 = vmatpush1.msra.mxu0 %v711
        %882 = vmatprep.subr.mxu0 %v714
        %883 = vmatpush1.msra.mxu0 %v713
        %884 = vmatprep.subr.mxu0 %v716
        %885 = vmatpush1.msra.mxu0 %v715
        %886 = vmatprep.subr.mxu0 %v718
        %887 = vmatpush1.msra.mxu0 %v717
        %888 = vmatprep.subr.mxu0 %v720
        %889 = vmatpush1.msra.mxu0 %v719
        %890 = vmatprep.subr.mxu0 %v722
        %891 = vmatpush1.msra.mxu0 %v721
        %892 = vmatprep.subr.mxu0 %v724
        %893 = vmatpush1.msra.mxu0 %v723
        %894 = vmatprep.subr.mxu0 %v726
        %895 = vmatpush1.msra.mxu0 %v725
        %896 = vmatprep.subr.mxu0 %v728
        %897 = vmatpush1.msra.mxu0 %v727
        %898 = vmatprep.subr.mxu0 %v730
        %899 = vmatpush1.msra.mxu0 %v729
        %900 = vmatprep.subr.mxu0 %v732
        %901 = vmatpush1.msra.mxu0 %v731
        %902 = vmatprep.subr.mxu0 %v734
        %903 = vmatpush1.msra.mxu0 %v733
        %904 = vmatprep.subr.mxu0 %v736
        %905 = vmatpush1.msra.mxu0 %v735
        %906 = vmatprep.mubr.f32.mxu0 %v766
        %907 = vmatmul.mubr.f32.gmra.mrb[0].mxu0 %v764
        %v908 = vpop.f32.mrb[0].mxu0
        %v909 = vadd.f32 %v838, %v908
        %v910 = vpop.f32.mrb[0].mxu0
        %v911 = vadd.f32 %v840, %v910
        %912 = vdwg.mxu0
        %v913 = vmax.f32 %v909, 0.0
        %v914 = vmax.f32 %v911, 0.0
        %v915 = vld [vmem:[#allocation9] sm:$0xff]
        %v916 = vld [vmem:[#allocation9 + $0x8] sm:$0xff]
        %v917 = vld [vmem:[#allocation9 + $0x10] sm:$0xff]
        %v918 = vld [vmem:[#allocation9 + $0x18] sm:$0xff]
        %v919 = vld [vmem:[#allocation9 + $0x20] sm:$0xff]
        %v920 = vld [vmem:[#allocation9 + $0x28] sm:$0xff]
        %v921 = vld [vmem:[#allocation9 + $0x30] sm:$0xff]
        %v922 = vld [vmem:[#allocation9 + $0x38] sm:$0xff]
        %v923 = vld [vmem:[#allocation9 + $0x40] sm:$0xff]
        %v924 = vld [vmem:[#allocation9 + $0x48] sm:$0xff]
        %v925 = vld [vmem:[#allocation9 + $0x50] sm:$0xff]
        %v926 = vld [vmem:[#allocation9 + $0x58] sm:$0xff]
        %v927 = vld [vmem:[#allocation9 + $0x60] sm:$0xff]
        %v928 = vld [vmem:[#allocation9 + $0x68] sm:$0xff]
        %v929 = vld [vmem:[#allocation9 + $0x70] sm:$0xff]
        %v930 = vld [vmem:[#allocation9 + $0x78] sm:$0xff]
        %v931 = vld [vmem:[#allocation9 + $0x80] sm:$0xff]
        %v932 = vld [vmem:[#allocation9 + $0x88] sm:$0xff]
        %v933 = vld [vmem:[#allocation9 + $0x90] sm:$0xff]
        %v934 = vld [vmem:[#allocation9 + $0x98] sm:$0xff]
        %v935 = vld [vmem:[#allocation9 + $0xa0] sm:$0xff]
        %v936 = vld [vmem:[#allocation9 + $0xa8] sm:$0xff]
        %v937 = vld [vmem:[#allocation9 + $0xb0] sm:$0xff]
        %v938 = vld [vmem:[#allocation9 + $0xb8] sm:$0xff]
        %v939 = vld [vmem:[#allocation9 + $0xc0] sm:$0xff]
        %v940 = vld [vmem:[#allocation9 + $0xc8] sm:$0xff]
        %v941 = vld [vmem:[#allocation9 + $0xd0] sm:$0xff]
        %v942 = vld [vmem:[#allocation9 + $0xd8] sm:$0xff]
        %v943 = vld [vmem:[#allocation9 + $0xe0] sm:$0xff]
        %v944 = vld [vmem:[#allocation9 + $0xe8] sm:$0xff]
        %v945 = vld [vmem:[#allocation9 + $0xf0] sm:$0xff]
        %v946 = vld [vmem:[#allocation9 + $0xf8] sm:$0xff]
        %v947 = vld [vmem:[#allocation10] sm:$0x1]
        %v949 = vlaneseq
        %v950 = vshrl.u32 %v949, 7
        %v951 = vsub.s32 0, %v950
        %v952 = vrot.slane %v947, %v951
        %954 = vmatprep.subr.mxu0 0.0
        %955 = vmatpush1.msra.mxu0 %v915
        %956 = vmatprep.subr.mxu0 0.0
        %957 = vmatpush1.msra.mxu0 %v916
        %958 = vmatprep.subr.mxu0 0.0
        %959 = vmatpush1.msra.mxu0 %v917
        %960 = vmatprep.subr.mxu0 0.0
        %961 = vmatpush1.msra.mxu0 %v918
        %962 = vmatprep.subr.mxu0 0.0
        %963 = vmatpush1.msra.mxu0 %v919
        %964 = vmatprep.subr.mxu0 0.0
        %965 = vmatpush1.msra.mxu0 %v920
        %966 = vmatprep.subr.mxu0 0.0
        %967 = vmatpush1.msra.mxu0 %v921
        %968 = vmatprep.subr.mxu0 0.0
        %969 = vmatpush1.msra.mxu0 %v922
        %970 = vmatprep.subr.mxu0 0.0
        %971 = vmatpush1.msra.mxu0 %v923
        %972 = vmatprep.subr.mxu0 0.0
        %973 = vmatpush1.msra.mxu0 %v924
        %974 = vmatprep.subr.mxu0 0.0
        %975 = vmatpush1.msra.mxu0 %v925
        %976 = vmatprep.subr.mxu0 0.0
        %977 = vmatpush1.msra.mxu0 %v926
        %978 = vmatprep.subr.mxu0 0.0
        %979 = vmatpush1.msra.mxu0 %v927
        %980 = vmatprep.subr.mxu0 0.0
        %981 = vmatpush1.msra.mxu0 %v928
        %982 = vmatprep.subr.mxu0 0.0
        %983 = vmatpush1.msra.mxu0 %v929
        %984 = vmatprep.subr.mxu0 0.0
        %985 = vmatpush1.msra.mxu0 %v930
        %986 = vmatprep.subr.mxu0 0.0
        %987 = vmatpush1.msra.mxu0 %v931
        %988 = vmatprep.subr.mxu0 0.0
        %989 = vmatpush1.msra.mxu0 %v932
        %990 = vmatprep.subr.mxu0 0.0
        %991 = vmatpush1.msra.mxu0 %v933
        %992 = vmatprep.subr.mxu0 0.0
        %993 = vmatpush1.msra.mxu0 %v934
        %994 = vmatprep.subr.mxu0 0.0
        %995 = vmatpush1.msra.mxu0 %v935
        %996 = vmatprep.subr.mxu0 0.0
        %997 = vmatpush1.msra.mxu0 %v936
        %998 = vmatprep.subr.mxu0 0.0
        %999 = vmatpush1.msra.mxu0 %v937
        %1000 = vmatprep.subr.mxu0 0.0
        %1001 = vmatpush1.msra.mxu0 %v938
        %1002 = vmatprep.subr.mxu0 0.0
        %1003 = vmatpush1.msra.mxu0 %v939
        %1004 = vmatprep.subr.mxu0 0.0
        %1005 = vmatpush1.msra.mxu0 %v940
        %1006 = vmatprep.subr.mxu0 0.0
        %1007 = vmatpush1.msra.mxu0 %v941
        %1008 = vmatprep.subr.mxu0 0.0
        %1009 = vmatpush1.msra.mxu0 %v942
        %1010 = vmatprep.subr.mxu0 0.0
        %1011 = vmatpush1.msra.mxu0 %v943
        %1012 = vmatprep.subr.mxu0 0.0
        %1013 = vmatpush1.msra.mxu0 %v944
        %1014 = vmatprep.subr.mxu0 0.0
        %1015 = vmatpush1.msra.mxu0 %v945
        %1016 = vmatprep.subr.mxu0 0.0
        %1017 = vmatpush1.msra.mxu0 %v946
        %1018 = vmatprep.mubr.f32.mxu0 %v914
        %1019 = vmatmul.mubr.f32.gmra.mrb[0].mxu0 %v913
        %v1020 = vpop.f32.mrb[0].mxu0
        %v1021 = vadd.f32 %v952, %v1020
        %v1022 = vpop.f32.mrb[0].mxu0
        %1023 = vdwg.mxu0
        %v1024 = vmax.f32 %v1021, 0.0
        %v1025 = vld [vmem:[#allocation12] sm:$0xff]
        %v1026 = vld [vmem:[#allocation12 + $0x8] sm:$0xff]
        %v1027 = vld [vmem:[#allocation12 + $0x10] sm:$0xff]
        %v1028 = vld [vmem:[#allocation12 + $0x18] sm:$0xff]
        %v1029 = vld [vmem:[#allocation12 + $0x20] sm:$0xff]
        %v1030 = vld [vmem:[#allocation12 + $0x28] sm:$0xff]
        %v1031 = vld [vmem:[#allocation12 + $0x30] sm:$0xff]
        %v1032 = vld [vmem:[#allocation12 + $0x38] sm:$0xff]
        %v1033 = vld [vmem:[#allocation12 + $0x40] sm:$0xff]
        %v1034 = vld [vmem:[#allocation12 + $0x48] sm:$0xff]
        %v1035 = vld [vmem:[#allocation12 + $0x50] sm:$0xff]
        %v1036 = vld [vmem:[#allocation12 + $0x58] sm:$0xff]
        %v1037 = vld [vmem:[#allocation12 + $0x60] sm:$0xff]
        %v1038 = vld [vmem:[#allocation12 + $0x68] sm:$0xff]
        %v1039 = vld [vmem:[#allocation12 + $0x70] sm:$0xff]
        %v1040 = vld [vmem:[#allocation12 + $0x78] sm:$0xff]
        %v1041 = vld [vmem:[#allocation12 + $0x80] sm:$0xff]
        %v1042 = vld [vmem:[#allocation12 + $0x88] sm:$0xff]
        %v1043 = vld [vmem:[#allocation12 + $0x90] sm:$0xff]
        %v1044 = vld [vmem:[#allocation12 + $0x98] sm:$0xff]
        %v1045 = vld [vmem:[#allocation12 + $0xa0] sm:$0xff]
        %v1046 = vld [vmem:[#allocation12 + $0xa8] sm:$0xff]
        %v1047 = vld [vmem:[#allocation12 + $0xb0] sm:$0xff]
        %v1048 = vld [vmem:[#allocation12 + $0xb8] sm:$0xff]
        %v1049 = vld [vmem:[#allocation12 + $0xc0] sm:$0xff]
        %v1050 = vld [vmem:[#allocation12 + $0xc8] sm:$0xff]
        %v1051 = vld [vmem:[#allocation12 + $0xd0] sm:$0xff]
        %v1052 = vld [vmem:[#allocation12 + $0xd8] sm:$0xff]
        %v1053 = vld [vmem:[#allocation12 + $0xe0] sm:$0xff]
        %v1054 = vld [vmem:[#allocation12 + $0xe8] sm:$0xff]
        %v1055 = vld [vmem:[#allocation12 + $0xf0] sm:$0xff]
        %v1056 = vld [vmem:[#allocation12 + $0xf8] sm:$0xff]
        %v1057 = vld [vmem:[#allocation12 + $0x100] sm:$0xff]
        %v1058 = vld [vmem:[#allocation12 + $0x108] sm:$0xff]
        %v1059 = vld [vmem:[#allocation12 + $0x110] sm:$0xff]
        %v1060 = vld [vmem:[#allocation12 + $0x118] sm:$0xff]
        %v1061 = vld [vmem:[#allocation12 + $0x120] sm:$0xff]
        %v1062 = vld [vmem:[#allocation12 + $0x128] sm:$0xff]
        %v1063 = vld [vmem:[#allocation12 + $0x130] sm:$0xff]
        %v1064 = vld [vmem:[#allocation12 + $0x138] sm:$0xff]
        %v1065 = vld [vmem:[#allocation12 + $0x140] sm:$0xff]
        %v1066 = vld [vmem:[#allocation12 + $0x148] sm:$0xff]
        %v1067 = vld [vmem:[#allocation12 + $0x150] sm:$0xff]
        %v1068 = vld [vmem:[#allocation12 + $0x158] sm:$0xff]
        %v1069 = vld [vmem:[#allocation12 + $0x160] sm:$0xff]
        %v1070 = vld [vmem:[#allocation12 + $0x168] sm:$0xff]
        %v1071 = vld [vmem:[#allocation12 + $0x170] sm:$0xff]
        %v1072 = vld [vmem:[#allocation12 + $0x178] sm:$0xff]
        %v1073 = vld [vmem:[#allocation12 + $0x180] sm:$0xff]
        %v1074 = vld [vmem:[#allocation12 + $0x188] sm:$0xff]
        %v1075 = vld [vmem:[#allocation12 + $0x190] sm:$0xff]
        %v1076 = vld [vmem:[#allocation12 + $0x198] sm:$0xff]
        %v1077 = vld [vmem:[#allocation12 + $0x1a0] sm:$0xff]
        %v1078 = vld [vmem:[#allocation12 + $0x1a8] sm:$0xff]
        %v1079 = vld [vmem:[#allocation12 + $0x1b0] sm:$0xff]
        %v1080 = vld [vmem:[#allocation12 + $0x1b8] sm:$0xff]
        %v1081 = vld [vmem:[#allocation12 + $0x1c0] sm:$0xff]
        %v1082 = vld [vmem:[#allocation12 + $0x1c8] sm:$0xff]
        %v1083 = vld [vmem:[#allocation12 + $0x1d0] sm:$0xff]
        %v1084 = vld [vmem:[#allocation12 + $0x1d8] sm:$0xff]
        %v1085 = vld [vmem:[#allocation12 + $0x1e0] sm:$0xff]
        %v1086 = vld [vmem:[#allocation12 + $0x1e8] sm:$0xff]
        %v1087 = vld [vmem:[#allocation12 + $0x1f0] sm:$0xff]
        %v1088 = vld [vmem:[#allocation12 + $0x1f8] sm:$0xff]
        %v1089 = vld [vmem:[#allocation12 + $0x200] sm:$0xff]
        %v1090 = vld [vmem:[#allocation12 + $0x208] sm:$0xff]
        %v1091 = vld [vmem:[#allocation12 + $0x210] sm:$0xff]
        %v1092 = vld [vmem:[#allocation12 + $0x218] sm:$0xff]
        %v1093 = vld [vmem:[#allocation12 + $0x220] sm:$0xff]
        %v1094 = vld [vmem:[#allocation12 + $0x228] sm:$0xff]
        %v1095 = vld [vmem:[#allocation12 + $0x230] sm:$0xff]
        %v1096 = vld [vmem:[#allocation12 + $0x238] sm:$0xff]
        %v1097 = vld [vmem:[#allocation12 + $0x240] sm:$0xff]
        %v1098 = vld [vmem:[#allocation12 + $0x248] sm:$0xff]
        %v1099 = vld [vmem:[#allocation12 + $0x250] sm:$0xff]
        %v1100 = vld [vmem:[#allocation12 + $0x258] sm:$0xff]
        %v1101 = vld [vmem:[#allocation12 + $0x260] sm:$0xff]
        %v1102 = vld [vmem:[#allocation12 + $0x268] sm:$0xff]
        %v1103 = vld [vmem:[#allocation12 + $0x270] sm:$0xff]
        %v1104 = vld [vmem:[#allocation12 + $0x278] sm:$0xff]
        %v1105 = vld [vmem:[#allocation12 + $0x280] sm:$0xff]
        %v1106 = vld [vmem:[#allocation12 + $0x288] sm:$0xff]
        %v1107 = vld [vmem:[#allocation12 + $0x290] sm:$0xff]
        %v1108 = vld [vmem:[#allocation12 + $0x298] sm:$0xff]
        %v1109 = vld [vmem:[#allocation12 + $0x2a0] sm:$0xff]
        %v1110 = vld [vmem:[#allocation12 + $0x2a8] sm:$0xff]
        %v1111 = vld [vmem:[#allocation12 + $0x2b0] sm:$0xff]
        %v1112 = vld [vmem:[#allocation12 + $0x2b8] sm:$0xff]
        %v1113 = vld [vmem:[#allocation12 + $0x2c0] sm:$0xff]
        %v1114 = vld [vmem:[#allocation12 + $0x2c8] sm:$0xff]
        %v1115 = vld [vmem:[#allocation12 + $0x2d0] sm:$0xff]
        %v1116 = vld [vmem:[#allocation12 + $0x2d8] sm:$0xff]
        %v1117 = vld [vmem:[#allocation12 + $0x2e0] sm:$0xff]
        %v1118 = vld [vmem:[#allocation12 + $0x2e8] sm:$0xff]
        %v1119 = vld [vmem:[#allocation12 + $0x2f0] sm:$0xff]
        %v1120 = vld [vmem:[#allocation12 + $0x2f8] sm:$0xff]
        %v1121 = vld [vmem:[#allocation12 + $0x300] sm:$0xff]
        %v1122 = vld [vmem:[#allocation12 + $0x308] sm:$0xff]
        %v1123 = vld [vmem:[#allocation12 + $0x310] sm:$0xff]
        %v1124 = vld [vmem:[#allocation12 + $0x318] sm:$0xff]
        %v1125 = vld [vmem:[#allocation12 + $0x320] sm:$0xff]
        %v1126 = vld [vmem:[#allocation12 + $0x328] sm:$0xff]
        %v1127 = vld [vmem:[#allocation12 + $0x330] sm:$0xff]
        %v1128 = vld [vmem:[#allocation12 + $0x338] sm:$0xff]
        %v1129 = vld [vmem:[#allocation12 + $0x340] sm:$0xff]
        %v1130 = vld [vmem:[#allocation12 + $0x348] sm:$0xff]
        %v1131 = vld [vmem:[#allocation12 + $0x350] sm:$0xff]
        %v1132 = vld [vmem:[#allocation12 + $0x358] sm:$0xff]
        %v1133 = vld [vmem:[#allocation12 + $0x360] sm:$0xff]
        %v1134 = vld [vmem:[#allocation12 + $0x368] sm:$0xff]
        %v1135 = vld [vmem:[#allocation12 + $0x370] sm:$0xff]
        %v1136 = vld [vmem:[#allocation12 + $0x378] sm:$0xff]
        %v1137 = vld [vmem:[#allocation12 + $0x380] sm:$0xff]
        %v1138 = vld [vmem:[#allocation12 + $0x388] sm:$0xff]
        %v1139 = vld [vmem:[#allocation12 + $0x390] sm:$0xff]
        %v1140 = vld [vmem:[#allocation12 + $0x398] sm:$0xff]
        %v1141 = vld [vmem:[#allocation12 + $0x3a0] sm:$0xff]
        %v1142 = vld [vmem:[#allocation12 + $0x3a8] sm:$0xff]
        %v1143 = vld [vmem:[#allocation12 + $0x3b0] sm:$0xff]
        %v1144 = vld [vmem:[#allocation12 + $0x3b8] sm:$0xff]
        %v1145 = vld [vmem:[#allocation12 + $0x3c0] sm:$0xff]
        %v1146 = vld [vmem:[#allocation12 + $0x3c8] sm:$0xff]
        %v1147 = vld [vmem:[#allocation12 + $0x3d0] sm:$0xff]
        %v1148 = vld [vmem:[#allocation12 + $0x3d8] sm:$0xff]
        %v1149 = vld [vmem:[#allocation12 + $0x3e0] sm:$0xff]
        %v1150 = vld [vmem:[#allocation12 + $0x3e8] sm:$0xff]
        %v1151 = vld [vmem:[#allocation12 + $0x3f0] sm:$0xff]
        %v1152 = vld [vmem:[#allocation12 + $0x3f8] sm:$0xff]
        %v1153 = vld [vmem:[#allocation12 + $0x400] sm:$0xff]
        %v1154 = vld [vmem:[#allocation12 + $0x408] sm:$0xff]
        %v1155 = vld [vmem:[#allocation12 + $0x410] sm:$0xff]
        %v1156 = vld [vmem:[#allocation12 + $0x418] sm:$0xff]
        %v1157 = vld [vmem:[#allocation12 + $0x420] sm:$0xff]
        %v1158 = vld [vmem:[#allocation12 + $0x428] sm:$0xff]
        %v1159 = vld [vmem:[#allocation12 + $0x430] sm:$0xff]
        %v1160 = vld [vmem:[#allocation12 + $0x438] sm:$0xff]
        %v1161 = vld [vmem:[#allocation12 + $0x440] sm:$0xff]
        %v1162 = vld [vmem:[#allocation12 + $0x448] sm:$0xff]
        %v1163 = vld [vmem:[#allocation12 + $0x450] sm:$0xff]
        %v1164 = vld [vmem:[#allocation12 + $0x458] sm:$0xff]
        %v1165 = vld [vmem:[#allocation12 + $0x460] sm:$0xff]
        %v1166 = vld [vmem:[#allocation12 + $0x468] sm:$0xff]
        %v1167 = vld [vmem:[#allocation12 + $0x470] sm:$0xff]
        %v1168 = vld [vmem:[#allocation12 + $0x478] sm:$0xff]
        %v1169 = vld [vmem:[#allocation12 + $0x480] sm:$0xff]
        %v1170 = vld [vmem:[#allocation12 + $0x488] sm:$0xff]
        %v1171 = vld [vmem:[#allocation12 + $0x490] sm:$0xff]
        %v1172 = vld [vmem:[#allocation12 + $0x498] sm:$0xff]
        %v1173 = vld [vmem:[#allocation12 + $0x4a0] sm:$0xff]
        %v1174 = vld [vmem:[#allocation12 + $0x4a8] sm:$0xff]
        %v1175 = vld [vmem:[#allocation12 + $0x4b0] sm:$0xff]
        %v1176 = vld [vmem:[#allocation12 + $0x4b8] sm:$0xff]
        %v1177 = vld [vmem:[#allocation12 + $0x4c0] sm:$0xff]
        %v1178 = vld [vmem:[#allocation12 + $0x4c8] sm:$0xff]
        %v1179 = vld [vmem:[#allocation12 + $0x4d0] sm:$0xff]
        %v1180 = vld [vmem:[#allocation12 + $0x4d8] sm:$0xff]
        %v1181 = vld [vmem:[#allocation12 + $0x4e0] sm:$0xff]
        %v1182 = vld [vmem:[#allocation12 + $0x4e8] sm:$0xff]
        %v1183 = vld [vmem:[#allocation12 + $0x4f0] sm:$0xff]
        %v1184 = vld [vmem:[#allocation12 + $0x4f8] sm:$0xff]
        %v1185 = vld [vmem:[#allocation12 + $0x500] sm:$0xff]
        %v1186 = vld [vmem:[#allocation12 + $0x508] sm:$0xff]
        %v1187 = vld [vmem:[#allocation12 + $0x510] sm:$0xff]
        %v1188 = vld [vmem:[#allocation12 + $0x518] sm:$0xff]
        %v1189 = vld [vmem:[#allocation12 + $0x520] sm:$0xff]
        %v1190 = vld [vmem:[#allocation12 + $0x528] sm:$0xff]
        %v1191 = vld [vmem:[#allocation12 + $0x530] sm:$0xff]
        %v1192 = vld [vmem:[#allocation12 + $0x538] sm:$0xff]
        %v1193 = vld [vmem:[#allocation12 + $0x540] sm:$0xff]
        %v1194 = vld [vmem:[#allocation12 + $0x548] sm:$0xff]
        %v1195 = vld [vmem:[#allocation12 + $0x550] sm:$0xff]
        %v1196 = vld [vmem:[#allocation12 + $0x558] sm:$0xff]
        %v1197 = vld [vmem:[#allocation12 + $0x560] sm:$0xff]
        %v1198 = vld [vmem:[#allocation12 + $0x568] sm:$0xff]
        %v1199 = vld [vmem:[#allocation12 + $0x570] sm:$0xff]
        %v1200 = vld [vmem:[#allocation12 + $0x578] sm:$0xff]
        %v1201 = vld [vmem:[#allocation12 + $0x580] sm:$0xff]
        %v1202 = vld [vmem:[#allocation12 + $0x588] sm:$0xff]
        %v1203 = vld [vmem:[#allocation12 + $0x590] sm:$0xff]
        %v1204 = vld [vmem:[#allocation12 + $0x598] sm:$0xff]
        %v1205 = vld [vmem:[#allocation12 + $0x5a0] sm:$0xff]
        %v1206 = vld [vmem:[#allocation12 + $0x5a8] sm:$0xff]
        %v1207 = vld [vmem:[#allocation12 + $0x5b0] sm:$0xff]
        %v1208 = vld [vmem:[#allocation12 + $0x5b8] sm:$0xff]
        %v1209 = vld [vmem:[#allocation12 + $0x5c0] sm:$0xff]
        %v1210 = vld [vmem:[#allocation12 + $0x5c8] sm:$0xff]
        %v1211 = vld [vmem:[#allocation12 + $0x5d0] sm:$0xff]
        %v1212 = vld [vmem:[#allocation12 + $0x5d8] sm:$0xff]
        %v1213 = vld [vmem:[#allocation12 + $0x5e0] sm:$0xff]
        %v1214 = vld [vmem:[#allocation12 + $0x5e8] sm:$0xff]
        %v1215 = vld [vmem:[#allocation12 + $0x5f0] sm:$0xff]
        %v1216 = vld [vmem:[#allocation12 + $0x5f8] sm:$0xff]
        %v1217 = vld [vmem:[#allocation12 + $0x600] sm:$0xff]
        %v1218 = vld [vmem:[#allocation12 + $0x608] sm:$0xff]
        %v1219 = vld [vmem:[#allocation12 + $0x610] sm:$0xff]
        %v1220 = vld [vmem:[#allocation12 + $0x618] sm:$0xff]
        %v1221 = vld [vmem:[#allocation12 + $0x620] sm:$0xff]
        %v1222 = vld [vmem:[#allocation12 + $0x628] sm:$0xff]
        %v1223 = vld [vmem:[#allocation12 + $0x630] sm:$0xff]
        %v1224 = vld [vmem:[#allocation12 + $0x638] sm:$0xff]
        %v1225 = vld [vmem:[#allocation12 + $0x640] sm:$0xff]
        %v1226 = vld [vmem:[#allocation12 + $0x648] sm:$0xff]
        %v1227 = vld [vmem:[#allocation12 + $0x650] sm:$0xff]
        %v1228 = vld [vmem:[#allocation12 + $0x658] sm:$0xff]
        %v1229 = vld [vmem:[#allocation12 + $0x660] sm:$0xff]
        %v1230 = vld [vmem:[#allocation12 + $0x668] sm:$0xff]
        %v1231 = vld [vmem:[#allocation12 + $0x670] sm:$0xff]
        %v1232 = vld [vmem:[#allocation12 + $0x678] sm:$0xff]
        %v1233 = vld [vmem:[#allocation12 + $0x680] sm:$0xff]
        %v1234 = vld [vmem:[#allocation12 + $0x688] sm:$0xff]
        %v1235 = vld [vmem:[#allocation12 + $0x690] sm:$0xff]
        %v1236 = vld [vmem:[#allocation12 + $0x698] sm:$0xff]
        %v1237 = vld [vmem:[#allocation12 + $0x6a0] sm:$0xff]
        %v1238 = vld [vmem:[#allocation12 + $0x6a8] sm:$0xff]
        %v1239 = vld [vmem:[#allocation12 + $0x6b0] sm:$0xff]
        %v1240 = vld [vmem:[#allocation12 + $0x6b8] sm:$0xff]
        %v1241 = vld [vmem:[#allocation12 + $0x6c0] sm:$0xff]
        %v1242 = vld [vmem:[#allocation12 + $0x6c8] sm:$0xff]
        %v1243 = vld [vmem:[#allocation12 + $0x6d0] sm:$0xff]
        %v1244 = vld [vmem:[#allocation12 + $0x6d8] sm:$0xff]
        %v1245 = vld [vmem:[#allocation12 + $0x6e0] sm:$0xff]
        %v1246 = vld [vmem:[#allocation12 + $0x6e8] sm:$0xff]
        %v1247 = vld [vmem:[#allocation12 + $0x6f0] sm:$0xff]
        %v1248 = vld [vmem:[#allocation12 + $0x6f8] sm:$0xff]
        %v1249 = vld [vmem:[#allocation12 + $0x700] sm:$0xff]
        %v1250 = vld [vmem:[#allocation12 + $0x708] sm:$0xff]
        %v1251 = vld [vmem:[#allocation12 + $0x710] sm:$0xff]
        %v1252 = vld [vmem:[#allocation12 + $0x718] sm:$0xff]
        %v1253 = vld [vmem:[#allocation12 + $0x720] sm:$0xff]
        %v1254 = vld [vmem:[#allocation12 + $0x728] sm:$0xff]
        %v1255 = vld [vmem:[#allocation12 + $0x730] sm:$0xff]
        %v1256 = vld [vmem:[#allocation12 + $0x738] sm:$0xff]
        %v1257 = vld [vmem:[#allocation12 + $0x740] sm:$0xff]
        %v1258 = vld [vmem:[#allocation12 + $0x748] sm:$0xff]
        %v1259 = vld [vmem:[#allocation12 + $0x750] sm:$0xff]
        %v1260 = vld [vmem:[#allocation12 + $0x758] sm:$0xff]
        %v1261 = vld [vmem:[#allocation12 + $0x760] sm:$0xff]
        %v1262 = vld [vmem:[#allocation12 + $0x768] sm:$0xff]
        %v1263 = vld [vmem:[#allocation12 + $0x770] sm:$0xff]
        %v1264 = vld [vmem:[#allocation12 + $0x778] sm:$0xff]
        %v1265 = vld [vmem:[#allocation12 + $0x780] sm:$0xff]
        %v1266 = vld [vmem:[#allocation12 + $0x788] sm:$0xff]
        %v1267 = vld [vmem:[#allocation12 + $0x790] sm:$0xff]
        %v1268 = vld [vmem:[#allocation12 + $0x798] sm:$0xff]
        %v1269 = vld [vmem:[#allocation12 + $0x7a0] sm:$0xff]
        %v1270 = vld [vmem:[#allocation12 + $0x7a8] sm:$0xff]
        %v1271 = vld [vmem:[#allocation12 + $0x7b0] sm:$0xff]
        %v1272 = vld [vmem:[#allocation12 + $0x7b8] sm:$0xff]
        %v1273 = vld [vmem:[#allocation12 + $0x7c0] sm:$0xff]
        %v1274 = vld [vmem:[#allocation12 + $0x7c8] sm:$0xff]
        %v1275 = vld [vmem:[#allocation12 + $0x7d0] sm:$0xff]
        %v1276 = vld [vmem:[#allocation12 + $0x7d8] sm:$0xff]
        %v1277 = vld [vmem:[#allocation12 + $0x7e0] sm:$0xff]
        %v1278 = vld [vmem:[#allocation12 + $0x7e8] sm:$0xff]
        %v1279 = vld [vmem:[#allocation12 + $0x7f0] sm:$0xff]
        %v1280 = vld [vmem:[#allocation12 + $0x7f8] sm:$0xff]
        %v1281 = vld [vmem:[#allocation13] sm:$0xff]
        %v1282 = vld [vmem:[#allocation13 + $0x8] sm:$0xff]
        %v1283 = vld [vmem:[#allocation13 + $0x10] sm:$0xff]
        %v1284 = vld [vmem:[#allocation13 + $0x18] sm:$0xff]
        %v1285 = vld [vmem:[#allocation13 + $0x20] sm:$0xff]
        %v1286 = vld [vmem:[#allocation13 + $0x28] sm:$0xff]
        %v1287 = vld [vmem:[#allocation13 + $0x30] sm:$0xff]
        %v1288 = vld [vmem:[#allocation13 + $0x38] sm:$0xff]
        %v1289 = vld [vmem:[#allocation13 + $0x40] sm:$0xff]
        %v1290 = vld [vmem:[#allocation13 + $0x48] sm:$0xff]
        %v1291 = vld [vmem:[#allocation13 + $0x50] sm:$0xff]
        %v1292 = vld [vmem:[#allocation13 + $0x58] sm:$0xff]
        %v1293 = vld [vmem:[#allocation13 + $0x60] sm:$0xff]
        %v1294 = vld [vmem:[#allocation13 + $0x68] sm:$0xff]
        %v1295 = vld [vmem:[#allocation13 + $0x70] sm:$0xff]
        %v1296 = vld [vmem:[#allocation13 + $0x78] sm:$0xff]
        %v1297 = vld [vmem:[#allocation13 + $0x80] sm:$0xff]
        %v1298 = vld [vmem:[#allocation13 + $0x88] sm:$0xff]
        %v1299 = vld [vmem:[#allocation13 + $0x90] sm:$0xff]
        %v1300 = vld [vmem:[#allocation13 + $0x98] sm:$0xff]
        %v1301 = vld [vmem:[#allocation13 + $0xa0] sm:$0xff]
        %v1302 = vld [vmem:[#allocation13 + $0xa8] sm:$0xff]
        %v1303 = vld [vmem:[#allocation13 + $0xb0] sm:$0xff]
        %v1304 = vld [vmem:[#allocation13 + $0xb8] sm:$0xff]
        %v1305 = vld [vmem:[#allocation13 + $0xc0] sm:$0xff]
        %v1306 = vld [vmem:[#allocation13 + $0xc8] sm:$0xff]
        %v1307 = vld [vmem:[#allocation13 + $0xd0] sm:$0xff]
        %v1308 = vld [vmem:[#allocation13 + $0xd8] sm:$0xff]
        %v1309 = vld [vmem:[#allocation13 + $0xe0] sm:$0xff]
        %v1310 = vld [vmem:[#allocation13 + $0xe8] sm:$0xff]
        %v1311 = vld [vmem:[#allocation13 + $0xf0] sm:$0xff]
        %v1312 = vld [vmem:[#allocation13 + $0xf8] sm:$0xff]
        %v1313 = vld [vmem:[#allocation13 + $0x100] sm:$0xff]
        %v1314 = vld [vmem:[#allocation13 + $0x108] sm:$0xff]
        %v1315 = vld [vmem:[#allocation13 + $0x110] sm:$0xff]
        %v1316 = vld [vmem:[#allocation13 + $0x118] sm:$0xff]
        %v1317 = vld [vmem:[#allocation13 + $0x120] sm:$0xff]
        %v1318 = vld [vmem:[#allocation13 + $0x128] sm:$0xff]
        %v1319 = vld [vmem:[#allocation13 + $0x130] sm:$0xff]
        %v1320 = vld [vmem:[#allocation13 + $0x138] sm:$0xff]
        %v1321 = vld [vmem:[#allocation13 + $0x140] sm:$0xff]
        %v1322 = vld [vmem:[#allocation13 + $0x148] sm:$0xff]
        %v1323 = vld [vmem:[#allocation13 + $0x150] sm:$0xff]
        %v1324 = vld [vmem:[#allocation13 + $0x158] sm:$0xff]
        %v1325 = vld [vmem:[#allocation13 + $0x160] sm:$0xff]
        %v1326 = vld [vmem:[#allocation13 + $0x168] sm:$0xff]
        %v1327 = vld [vmem:[#allocation13 + $0x170] sm:$0xff]
        %v1328 = vld [vmem:[#allocation13 + $0x178] sm:$0xff]
        %v1329 = vld [vmem:[#allocation13 + $0x180] sm:$0xff]
        %v1330 = vld [vmem:[#allocation13 + $0x188] sm:$0xff]
        %v1331 = vld [vmem:[#allocation13 + $0x190] sm:$0xff]
        %v1332 = vld [vmem:[#allocation13 + $0x198] sm:$0xff]
        %v1333 = vld [vmem:[#allocation13 + $0x1a0] sm:$0xff]
        %v1334 = vld [vmem:[#allocation13 + $0x1a8] sm:$0xff]
        %v1335 = vld [vmem:[#allocation13 + $0x1b0] sm:$0xff]
        %v1336 = vld [vmem:[#allocation13 + $0x1b8] sm:$0xff]
        %v1337 = vld [vmem:[#allocation13 + $0x1c0] sm:$0xff]
        %v1338 = vld [vmem:[#allocation13 + $0x1c8] sm:$0xff]
        %v1339 = vld [vmem:[#allocation13 + $0x1d0] sm:$0xff]
        %v1340 = vld [vmem:[#allocation13 + $0x1d8] sm:$0xff]
        %v1341 = vld [vmem:[#allocation13 + $0x1e0] sm:$0xff]
        %v1342 = vld [vmem:[#allocation13 + $0x1e8] sm:$0xff]
        %v1343 = vld [vmem:[#allocation13 + $0x1f0] sm:$0xff]
        %v1344 = vld [vmem:[#allocation13 + $0x1f8] sm:$0xff]
        %v1345 = vld [vmem:[#allocation13 + $0x200] sm:$0xff]
        %v1346 = vld [vmem:[#allocation13 + $0x208] sm:$0xff]
        %v1347 = vld [vmem:[#allocation13 + $0x210] sm:$0xff]
        %v1348 = vld [vmem:[#allocation13 + $0x218] sm:$0xff]
        %v1349 = vld [vmem:[#allocation13 + $0x220] sm:$0xff]
        %v1350 = vld [vmem:[#allocation13 + $0x228] sm:$0xff]
        %v1351 = vld [vmem:[#allocation13 + $0x230] sm:$0xff]
        %v1352 = vld [vmem:[#allocation13 + $0x238] sm:$0xff]
        %v1353 = vld [vmem:[#allocation13 + $0x240] sm:$0xff]
        %v1354 = vld [vmem:[#allocation13 + $0x248] sm:$0xff]
        %v1355 = vld [vmem:[#allocation13 + $0x250] sm:$0xff]
        %v1356 = vld [vmem:[#allocation13 + $0x258] sm:$0xff]
        %v1357 = vld [vmem:[#allocation13 + $0x260] sm:$0xff]
        %v1358 = vld [vmem:[#allocation13 + $0x268] sm:$0xff]
        %v1359 = vld [vmem:[#allocation13 + $0x270] sm:$0xff]
        %v1360 = vld [vmem:[#allocation13 + $0x278] sm:$0xff]
        %v1361 = vld [vmem:[#allocation13 + $0x280] sm:$0xff]
        %v1362 = vld [vmem:[#allocation13 + $0x288] sm:$0xff]
        %v1363 = vld [vmem:[#allocation13 + $0x290] sm:$0xff]
        %v1364 = vld [vmem:[#allocation13 + $0x298] sm:$0xff]
        %v1365 = vld [vmem:[#allocation13 + $0x2a0] sm:$0xff]
        %v1366 = vld [vmem:[#allocation13 + $0x2a8] sm:$0xff]
        %v1367 = vld [vmem:[#allocation13 + $0x2b0] sm:$0xff]
        %v1368 = vld [vmem:[#allocation13 + $0x2b8] sm:$0xff]
        %v1369 = vld [vmem:[#allocation13 + $0x2c0] sm:$0xff]
        %v1370 = vld [vmem:[#allocation13 + $0x2c8] sm:$0xff]
        %v1371 = vld [vmem:[#allocation13 + $0x2d0] sm:$0xff]
        %v1372 = vld [vmem:[#allocation13 + $0x2d8] sm:$0xff]
        %v1373 = vld [vmem:[#allocation13 + $0x2e0] sm:$0xff]
        %v1374 = vld [vmem:[#allocation13 + $0x2e8] sm:$0xff]
        %v1375 = vld [vmem:[#allocation13 + $0x2f0] sm:$0xff]
        %v1376 = vld [vmem:[#allocation13 + $0x2f8] sm:$0xff]
        %v1377 = vld [vmem:[#allocation13 + $0x300] sm:$0xff]
        %v1378 = vld [vmem:[#allocation13 + $0x308] sm:$0xff]
        %v1379 = vld [vmem:[#allocation13 + $0x310] sm:$0xff]
        %v1380 = vld [vmem:[#allocation13 + $0x318] sm:$0xff]
        %v1381 = vld [vmem:[#allocation13 + $0x320] sm:$0xff]
        %v1382 = vld [vmem:[#allocation13 + $0x328] sm:$0xff]
        %v1383 = vld [vmem:[#allocation13 + $0x330] sm:$0xff]
        %v1384 = vld [vmem:[#allocation13 + $0x338] sm:$0xff]
        %v1385 = vld [vmem:[#allocation13 + $0x340] sm:$0xff]
        %v1386 = vld [vmem:[#allocation13 + $0x348] sm:$0xff]
        %v1387 = vld [vmem:[#allocation13 + $0x350] sm:$0xff]
        %v1388 = vld [vmem:[#allocation13 + $0x358] sm:$0xff]
        %v1389 = vld [vmem:[#allocation13 + $0x360] sm:$0xff]
        %v1390 = vld [vmem:[#allocation13 + $0x368] sm:$0xff]
        %v1391 = vld [vmem:[#allocation13 + $0x370] sm:$0xff]
        %v1392 = vld [vmem:[#allocation13 + $0x378] sm:$0xff]
        %v1393 = vld [vmem:[#allocation13 + $0x380] sm:$0xff]
        %v1394 = vld [vmem:[#allocation13 + $0x388] sm:$0xff]
        %v1395 = vld [vmem:[#allocation13 + $0x390] sm:$0xff]
        %v1396 = vld [vmem:[#allocation13 + $0x398] sm:$0xff]
        %v1397 = vld [vmem:[#allocation13 + $0x3a0] sm:$0xff]
        %v1398 = vld [vmem:[#allocation13 + $0x3a8] sm:$0xff]
        %v1399 = vld [vmem:[#allocation13 + $0x3b0] sm:$0xff]
        %v1400 = vld [vmem:[#allocation13 + $0x3b8] sm:$0xff]
        %v1401 = vld [vmem:[#allocation13 + $0x3c0] sm:$0xff]
        %v1402 = vld [vmem:[#allocation13 + $0x3c8] sm:$0xff]
        %v1403 = vld [vmem:[#allocation13 + $0x3d0] sm:$0xff]
        %v1404 = vld [vmem:[#allocation13 + $0x3d8] sm:$0xff]
        %v1405 = vld [vmem:[#allocation13 + $0x3e0] sm:$0xff]
        %v1406 = vld [vmem:[#allocation13 + $0x3e8] sm:$0xff]
        %v1407 = vld [vmem:[#allocation13 + $0x3f0] sm:$0xff]
        %v1408 = vld [vmem:[#allocation13 + $0x3f8] sm:$0xff]
        %v1409 = vld [vmem:[#allocation13 + $0x400] sm:$0xff]
        %v1410 = vld [vmem:[#allocation13 + $0x408] sm:$0xff]
        %v1411 = vld [vmem:[#allocation13 + $0x410] sm:$0xff]
        %v1412 = vld [vmem:[#allocation13 + $0x418] sm:$0xff]
        %v1413 = vld [vmem:[#allocation13 + $0x420] sm:$0xff]
        %v1414 = vld [vmem:[#allocation13 + $0x428] sm:$0xff]
        %v1415 = vld [vmem:[#allocation13 + $0x430] sm:$0xff]
        %v1416 = vld [vmem:[#allocation13 + $0x438] sm:$0xff]
        %v1417 = vld [vmem:[#allocation13 + $0x440] sm:$0xff]
        %v1418 = vld [vmem:[#allocation13 + $0x448] sm:$0xff]
        %v1419 = vld [vmem:[#allocation13 + $0x450] sm:$0xff]
        %v1420 = vld [vmem:[#allocation13 + $0x458] sm:$0xff]
        %v1421 = vld [vmem:[#allocation13 + $0x460] sm:$0xff]
        %v1422 = vld [vmem:[#allocation13 + $0x468] sm:$0xff]
        %v1423 = vld [vmem:[#allocation13 + $0x470] sm:$0xff]
        %v1424 = vld [vmem:[#allocation13 + $0x478] sm:$0xff]
        %v1425 = vld [vmem:[#allocation13 + $0x480] sm:$0xff]
        %v1426 = vld [vmem:[#allocation13 + $0x488] sm:$0xff]
        %v1427 = vld [vmem:[#allocation13 + $0x490] sm:$0xff]
        %v1428 = vld [vmem:[#allocation13 + $0x498] sm:$0xff]
        %v1429 = vld [vmem:[#allocation13 + $0x4a0] sm:$0xff]
        %v1430 = vld [vmem:[#allocation13 + $0x4a8] sm:$0xff]
        %v1431 = vld [vmem:[#allocation13 + $0x4b0] sm:$0xff]
        %v1432 = vld [vmem:[#allocation13 + $0x4b8] sm:$0xff]
        %v1433 = vld [vmem:[#allocation13 + $0x4c0] sm:$0xff]
        %v1434 = vld [vmem:[#allocation13 + $0x4c8] sm:$0xff]
        %v1435 = vld [vmem:[#allocation13 + $0x4d0] sm:$0xff]
        %v1436 = vld [vmem:[#allocation13 + $0x4d8] sm:$0xff]
        %v1437 = vld [vmem:[#allocation13 + $0x4e0] sm:$0xff]
        %v1438 = vld [vmem:[#allocation13 + $0x4e8] sm:$0xff]
        %v1439 = vld [vmem:[#allocation13 + $0x4f0] sm:$0xff]
        %v1440 = vld [vmem:[#allocation13 + $0x4f8] sm:$0xff]
        %v1441 = vld [vmem:[#allocation13 + $0x500] sm:$0xff]
        %v1442 = vld [vmem:[#allocation13 + $0x508] sm:$0xff]
        %v1443 = vld [vmem:[#allocation13 + $0x510] sm:$0xff]
        %v1444 = vld [vmem:[#allocation13 + $0x518] sm:$0xff]
        %v1445 = vld [vmem:[#allocation13 + $0x520] sm:$0xff]
        %v1446 = vld [vmem:[#allocation13 + $0x528] sm:$0xff]
        %v1447 = vld [vmem:[#allocation13 + $0x530] sm:$0xff]
        %v1448 = vld [vmem:[#allocation13 + $0x538] sm:$0xff]
        %v1449 = vld [vmem:[#allocation13 + $0x540] sm:$0xff]
        %v1450 = vld [vmem:[#allocation13 + $0x548] sm:$0xff]
        %v1451 = vld [vmem:[#allocation13 + $0x550] sm:$0xff]
        %v1452 = vld [vmem:[#allocation13 + $0x558] sm:$0xff]
        %v1453 = vld [vmem:[#allocation13 + $0x560] sm:$0xff]
        %v1454 = vld [vmem:[#allocation13 + $0x568] sm:$0xff]
        %v1455 = vld [vmem:[#allocation13 + $0x570] sm:$0xff]
        %v1456 = vld [vmem:[#allocation13 + $0x578] sm:$0xff]
        %v1457 = vld [vmem:[#allocation13 + $0x580] sm:$0xff]
        %v1458 = vld [vmem:[#allocation13 + $0x588] sm:$0xff]
        %v1459 = vld [vmem:[#allocation13 + $0x590] sm:$0xff]
        %v1460 = vld [vmem:[#allocation13 + $0x598] sm:$0xff]
        %v1461 = vld [vmem:[#allocation13 + $0x5a0] sm:$0xff]
        %v1462 = vld [vmem:[#allocation13 + $0x5a8] sm:$0xff]
        %v1463 = vld [vmem:[#allocation13 + $0x5b0] sm:$0xff]
        %v1464 = vld [vmem:[#allocation13 + $0x5b8] sm:$0xff]
        %v1465 = vld [vmem:[#allocation13 + $0x5c0] sm:$0xff]
        %v1466 = vld [vmem:[#allocation13 + $0x5c8] sm:$0xff]
        %v1467 = vld [vmem:[#allocation13 + $0x5d0] sm:$0xff]
        %v1468 = vld [vmem:[#allocation13 + $0x5d8] sm:$0xff]
        %v1469 = vld [vmem:[#allocation13 + $0x5e0] sm:$0xff]
        %v1470 = vld [vmem:[#allocation13 + $0x5e8] sm:$0xff]
        %v1471 = vld [vmem:[#allocation13 + $0x5f0] sm:$0xff]
        %v1472 = vld [vmem:[#allocation13 + $0x5f8] sm:$0xff]
        %v1473 = vld [vmem:[#allocation13 + $0x600] sm:$0xff]
        %v1474 = vld [vmem:[#allocation13 + $0x608] sm:$0xff]
        %v1475 = vld [vmem:[#allocation13 + $0x610] sm:$0xff]
        %v1476 = vld [vmem:[#allocation13 + $0x618] sm:$0xff]
        %v1477 = vld [vmem:[#allocation13 + $0x620] sm:$0xff]
        %v1478 = vld [vmem:[#allocation13 + $0x628] sm:$0xff]
        %v1479 = vld [vmem:[#allocation13 + $0x630] sm:$0xff]
        %v1480 = vld [vmem:[#allocation13 + $0x638] sm:$0xff]
        %v1481 = vld [vmem:[#allocation13 + $0x640] sm:$0xff]
        %v1482 = vld [vmem:[#allocation13 + $0x648] sm:$0xff]
        %v1483 = vld [vmem:[#allocation13 + $0x650] sm:$0xff]
        %v1484 = vld [vmem:[#allocation13 + $0x658] sm:$0xff]
        %v1485 = vld [vmem:[#allocation13 + $0x660] sm:$0xff]
        %v1486 = vld [vmem:[#allocation13 + $0x668] sm:$0xff]
        %v1487 = vld [vmem:[#allocation13 + $0x670] sm:$0xff]
        %v1488 = vld [vmem:[#allocation13 + $0x678] sm:$0xff]
        %v1489 = vld [vmem:[#allocation13 + $0x680] sm:$0xff]
        %v1490 = vld [vmem:[#allocation13 + $0x688] sm:$0xff]
        %v1491 = vld [vmem:[#allocation13 + $0x690] sm:$0xff]
        %v1492 = vld [vmem:[#allocation13 + $0x698] sm:$0xff]
        %v1493 = vld [vmem:[#allocation13 + $0x6a0] sm:$0xff]
        %v1494 = vld [vmem:[#allocation13 + $0x6a8] sm:$0xff]
        %v1495 = vld [vmem:[#allocation13 + $0x6b0] sm:$0xff]
        %v1496 = vld [vmem:[#allocation13 + $0x6b8] sm:$0xff]
        %v1497 = vld [vmem:[#allocation13 + $0x6c0] sm:$0xff]
        %v1498 = vld [vmem:[#allocation13 + $0x6c8] sm:$0xff]
        %v1499 = vld [vmem:[#allocation13 + $0x6d0] sm:$0xff]
        %v1500 = vld [vmem:[#allocation13 + $0x6d8] sm:$0xff]
        %v1501 = vld [vmem:[#allocation13 + $0x6e0] sm:$0xff]
        %v1502 = vld [vmem:[#allocation13 + $0x6e8] sm:$0xff]
        %v1503 = vld [vmem:[#allocation13 + $0x6f0] sm:$0xff]
        %v1504 = vld [vmem:[#allocation13 + $0x6f8] sm:$0xff]
        %v1505 = vld [vmem:[#allocation13 + $0x700] sm:$0xff]
        %v1506 = vld [vmem:[#allocation13 + $0x708] sm:$0xff]
        %v1507 = vld [vmem:[#allocation13 + $0x710] sm:$0xff]
        %v1508 = vld [vmem:[#allocation13 + $0x718] sm:$0xff]
        %v1509 = vld [vmem:[#allocation13 + $0x720] sm:$0xff]
        %v1510 = vld [vmem:[#allocation13 + $0x728] sm:$0xff]
        %v1511 = vld [vmem:[#allocation13 + $0x730] sm:$0xff]
        %v1512 = vld [vmem:[#allocation13 + $0x738] sm:$0xff]
        %v1513 = vld [vmem:[#allocation13 + $0x740] sm:$0xff]
        %v1514 = vld [vmem:[#allocation13 + $0x748] sm:$0xff]
        %v1515 = vld [vmem:[#allocation13 + $0x750] sm:$0xff]
        %v1516 = vld [vmem:[#allocation13 + $0x758] sm:$0xff]
        %v1517 = vld [vmem:[#allocation13 + $0x760] sm:$0xff]
        %v1518 = vld [vmem:[#allocation13 + $0x768] sm:$0xff]
        %v1519 = vld [vmem:[#allocation13 + $0x770] sm:$0xff]
        %v1520 = vld [vmem:[#allocation13 + $0x778] sm:$0xff]
        %v1521 = vld [vmem:[#allocation13 + $0x780] sm:$0xff]
        %v1522 = vld [vmem:[#allocation13 + $0x788] sm:$0xff]
        %v1523 = vld [vmem:[#allocation13 + $0x790] sm:$0xff]
        %v1524 = vld [vmem:[#allocation13 + $0x798] sm:$0xff]
        %v1525 = vld [vmem:[#allocation13 + $0x7a0] sm:$0xff]
        %v1526 = vld [vmem:[#allocation13 + $0x7a8] sm:$0xff]
        %v1527 = vld [vmem:[#allocation13 + $0x7b0] sm:$0xff]
        %v1528 = vld [vmem:[#allocation13 + $0x7b8] sm:$0xff]
        %v1529 = vld [vmem:[#allocation13 + $0x7c0] sm:$0xff]
        %v1530 = vld [vmem:[#allocation13 + $0x7c8] sm:$0xff]
        %v1531 = vld [vmem:[#allocation13 + $0x7d0] sm:$0xff]
        %v1532 = vld [vmem:[#allocation13 + $0x7d8] sm:$0xff]
        %v1533 = vld [vmem:[#allocation13 + $0x7e0] sm:$0xff]
        %v1534 = vld [vmem:[#allocation13 + $0x7e8] sm:$0xff]
        %v1535 = vld [vmem:[#allocation13 + $0x7f0] sm:$0xff]
        %v1536 = vld [vmem:[#allocation13 + $0x7f8] sm:$0xff]
        %v1537 = vld [vmem:[#allocation13 + $0x800] sm:$0xff]
        %v1538 = vld [vmem:[#allocation13 + $0x808] sm:$0xff]
        %v1539 = vld [vmem:[#allocation13 + $0x810] sm:$0xff]
        %v1540 = vld [vmem:[#allocation13 + $0x818] sm:$0xff]
        %v1541 = vld [vmem:[#allocation13 + $0x820] sm:$0xff]
        %v1542 = vld [vmem:[#allocation13 + $0x828] sm:$0xff]
        %v1543 = vld [vmem:[#allocation13 + $0x830] sm:$0xff]
        %v1544 = vld [vmem:[#allocation13 + $0x838] sm:$0xff]
        %v1545 = vld [vmem:[#allocation13 + $0x840] sm:$0xff]
        %v1546 = vld [vmem:[#allocation13 + $0x848] sm:$0xff]
        %v1547 = vld [vmem:[#allocation13 + $0x850] sm:$0xff]
        %v1548 = vld [vmem:[#allocation13 + $0x858] sm:$0xff]
        %v1549 = vld [vmem:[#allocation13 + $0x860] sm:$0xff]
        %v1550 = vld [vmem:[#allocation13 + $0x868] sm:$0xff]
        %v1551 = vld [vmem:[#allocation13 + $0x870] sm:$0xff]
        %v1552 = vld [vmem:[#allocation13 + $0x878] sm:$0xff]
        %v1553 = vld [vmem:[#allocation13 + $0x880] sm:$0xff]
        %v1554 = vld [vmem:[#allocation13 + $0x888] sm:$0xff]
        %v1555 = vld [vmem:[#allocation13 + $0x890] sm:$0xff]
        %v1556 = vld [vmem:[#allocation13 + $0x898] sm:$0xff]
        %v1557 = vld [vmem:[#allocation13 + $0x8a0] sm:$0xff]
        %v1558 = vld [vmem:[#allocation13 + $0x8a8] sm:$0xff]
        %v1559 = vld [vmem:[#allocation13 + $0x8b0] sm:$0xff]
        %v1560 = vld [vmem:[#allocation13 + $0x8b8] sm:$0xff]
        %v1561 = vld [vmem:[#allocation13 + $0x8c0] sm:$0xff]
        %v1562 = vld [vmem:[#allocation13 + $0x8c8] sm:$0xff]
        %v1563 = vld [vmem:[#allocation13 + $0x8d0] sm:$0xff]
        %v1564 = vld [vmem:[#allocation13 + $0x8d8] sm:$0xff]
        %v1565 = vld [vmem:[#allocation13 + $0x8e0] sm:$0xff]
        %v1566 = vld [vmem:[#allocation13 + $0x8e8] sm:$0xff]
        %v1567 = vld [vmem:[#allocation13 + $0x8f0] sm:$0xff]
        %v1568 = vld [vmem:[#allocation13 + $0x8f8] sm:$0xff]
        %v1569 = vld [vmem:[#allocation13 + $0x900] sm:$0xff]
        %v1570 = vld [vmem:[#allocation13 + $0x908] sm:$0xff]
        %v1571 = vld [vmem:[#allocation13 + $0x910] sm:$0xff]
        %v1572 = vld [vmem:[#allocation13 + $0x918] sm:$0xff]
        %v1573 = vld [vmem:[#allocation13 + $0x920] sm:$0xff]
        %v1574 = vld [vmem:[#allocation13 + $0x928] sm:$0xff]
        %v1575 = vld [vmem:[#allocation13 + $0x930] sm:$0xff]
        %v1576 = vld [vmem:[#allocation13 + $0x938] sm:$0xff]
        %v1577 = vld [vmem:[#allocation13 + $0x940] sm:$0xff]
        %v1578 = vld [vmem:[#allocation13 + $0x948] sm:$0xff]
        %v1579 = vld [vmem:[#allocation13 + $0x950] sm:$0xff]
        %v1580 = vld [vmem:[#allocation13 + $0x958] sm:$0xff]
        %v1581 = vld [vmem:[#allocation13 + $0x960] sm:$0xff]
        %v1582 = vld [vmem:[#allocation13 + $0x968] sm:$0xff]
        %v1583 = vld [vmem:[#allocation13 + $0x970] sm:$0xff]
        %v1584 = vld [vmem:[#allocation13 + $0x978] sm:$0xff]
        %v1585 = vld [vmem:[#allocation13 + $0x980] sm:$0xff]
        %v1586 = vld [vmem:[#allocation13 + $0x988] sm:$0xff]
        %v1587 = vld [vmem:[#allocation13 + $0x990] sm:$0xff]
        %v1588 = vld [vmem:[#allocation13 + $0x998] sm:$0xff]
        %v1589 = vld [vmem:[#allocation13 + $0x9a0] sm:$0xff]
        %v1590 = vld [vmem:[#allocation13 + $0x9a8] sm:$0xff]
        %v1591 = vld [vmem:[#allocation13 + $0x9b0] sm:$0xff]
        %v1592 = vld [vmem:[#allocation13 + $0x9b8] sm:$0xff]
        %v1593 = vld [vmem:[#allocation13 + $0x9c0] sm:$0xff]
        %v1594 = vld [vmem:[#allocation13 + $0x9c8] sm:$0xff]
        %v1595 = vld [vmem:[#allocation13 + $0x9d0] sm:$0xff]
        %v1596 = vld [vmem:[#allocation13 + $0x9d8] sm:$0xff]
        %v1597 = vld [vmem:[#allocation13 + $0x9e0] sm:$0xff]
        %v1598 = vld [vmem:[#allocation13 + $0x9e8] sm:$0xff]
        %v1599 = vld [vmem:[#allocation13 + $0x9f0] sm:$0xff]
        %v1600 = vld [vmem:[#allocation13 + $0x9f8] sm:$0xff]
        %v1601 = vld [vmem:[#allocation13 + $0xa00] sm:$0xff]
        %v1602 = vld [vmem:[#allocation13 + $0xa08] sm:$0xff]
        %v1603 = vld [vmem:[#allocation13 + $0xa10] sm:$0xff]
        %v1604 = vld [vmem:[#allocation13 + $0xa18] sm:$0xff]
        %v1605 = vld [vmem:[#allocation13 + $0xa20] sm:$0xff]
        %v1606 = vld [vmem:[#allocation13 + $0xa28] sm:$0xff]
        %v1607 = vld [vmem:[#allocation13 + $0xa30] sm:$0xff]
        %v1608 = vld [vmem:[#allocation13 + $0xa38] sm:$0xff]
        %v1609 = vld [vmem:[#allocation13 + $0xa40] sm:$0xff]
        %v1610 = vld [vmem:[#allocation13 + $0xa48] sm:$0xff]
        %v1611 = vld [vmem:[#allocation13 + $0xa50] sm:$0xff]
        %v1612 = vld [vmem:[#allocation13 + $0xa58] sm:$0xff]
        %v1613 = vld [vmem:[#allocation13 + $0xa60] sm:$0xff]
        %v1614 = vld [vmem:[#allocation13 + $0xa68] sm:$0xff]
        %v1615 = vld [vmem:[#allocation13 + $0xa70] sm:$0xff]
        %v1616 = vld [vmem:[#allocation13 + $0xa78] sm:$0xff]
        %v1617 = vld [vmem:[#allocation13 + $0xa80] sm:$0xff]
        %v1618 = vld [vmem:[#allocation13 + $0xa88] sm:$0xff]
        %v1619 = vld [vmem:[#allocation13 + $0xa90] sm:$0xff]
        %v1620 = vld [vmem:[#allocation13 + $0xa98] sm:$0xff]
        %v1621 = vld [vmem:[#allocation13 + $0xaa0] sm:$0xff]
        %v1622 = vld [vmem:[#allocation13 + $0xaa8] sm:$0xff]
        %v1623 = vld [vmem:[#allocation13 + $0xab0] sm:$0xff]
        %v1624 = vld [vmem:[#allocation13 + $0xab8] sm:$0xff]
        %v1625 = vld [vmem:[#allocation13 + $0xac0] sm:$0xff]
        %v1626 = vld [vmem:[#allocation13 + $0xac8] sm:$0xff]
        %v1627 = vld [vmem:[#allocation13 + $0xad0] sm:$0xff]
        %v1628 = vld [vmem:[#allocation13 + $0xad8] sm:$0xff]
        %v1629 = vld [vmem:[#allocation13 + $0xae0] sm:$0xff]
        %v1630 = vld [vmem:[#allocation13 + $0xae8] sm:$0xff]
        %v1631 = vld [vmem:[#allocation13 + $0xaf0] sm:$0xff]
        %v1632 = vld [vmem:[#allocation13 + $0xaf8] sm:$0xff]
        %v1633 = vld [vmem:[#allocation13 + $0xb00] sm:$0xff]
        %v1634 = vld [vmem:[#allocation13 + $0xb08] sm:$0xff]
        %v1635 = vld [vmem:[#allocation13 + $0xb10] sm:$0xff]
        %v1636 = vld [vmem:[#allocation13 + $0xb18] sm:$0xff]
        %v1637 = vld [vmem:[#allocation13 + $0xb20] sm:$0xff]
        %v1638 = vld [vmem:[#allocation13 + $0xb28] sm:$0xff]
        %v1639 = vld [vmem:[#allocation13 + $0xb30] sm:$0xff]
        %v1640 = vld [vmem:[#allocation13 + $0xb38] sm:$0xff]
        %v1641 = vld [vmem:[#allocation13 + $0xb40] sm:$0xff]
        %v1642 = vld [vmem:[#allocation13 + $0xb48] sm:$0xff]
        %v1643 = vld [vmem:[#allocation13 + $0xb50] sm:$0xff]
        %v1644 = vld [vmem:[#allocation13 + $0xb58] sm:$0xff]
        %v1645 = vld [vmem:[#allocation13 + $0xb60] sm:$0xff]
        %v1646 = vld [vmem:[#allocation13 + $0xb68] sm:$0xff]
        %v1647 = vld [vmem:[#allocation13 + $0xb70] sm:$0xff]
        %v1648 = vld [vmem:[#allocation13 + $0xb78] sm:$0xff]
        %v1649 = vld [vmem:[#allocation13 + $0xb80] sm:$0xff]
        %v1650 = vld [vmem:[#allocation13 + $0xb88] sm:$0xff]
        %v1651 = vld [vmem:[#allocation13 + $0xb90] sm:$0xff]
        %v1652 = vld [vmem:[#allocation13 + $0xb98] sm:$0xff]
        %v1653 = vld [vmem:[#allocation13 + $0xba0] sm:$0xff]
        %v1654 = vld [vmem:[#allocation13 + $0xba8] sm:$0xff]
        %v1655 = vld [vmem:[#allocation13 + $0xbb0] sm:$0xff]
        %v1656 = vld [vmem:[#allocation13 + $0xbb8] sm:$0xff]
        %v1657 = vld [vmem:[#allocation13 + $0xbc0] sm:$0xff]
        %v1658 = vld [vmem:[#allocation13 + $0xbc8] sm:$0xff]
        %v1659 = vld [vmem:[#allocation13 + $0xbd0] sm:$0xff]
        %v1660 = vld [vmem:[#allocation13 + $0xbd8] sm:$0xff]
        %v1661 = vld [vmem:[#allocation13 + $0xbe0] sm:$0xff]
        %v1662 = vld [vmem:[#allocation13 + $0xbe8] sm:$0xff]
        %v1663 = vld [vmem:[#allocation13 + $0xbf0] sm:$0xff]
        %v1664 = vld [vmem:[#allocation13 + $0xbf8] sm:$0xff]
        %v1665 = vld [vmem:[#allocation13 + $0xc00] sm:$0xff]
        %v1666 = vld [vmem:[#allocation13 + $0xc08] sm:$0xff]
        %v1667 = vld [vmem:[#allocation13 + $0xc10] sm:$0xff]
        %v1668 = vld [vmem:[#allocation13 + $0xc18] sm:$0xff]
        %v1669 = vld [vmem:[#allocation13 + $0xc20] sm:$0xff]
        %v1670 = vld [vmem:[#allocation13 + $0xc28] sm:$0xff]
        %v1671 = vld [vmem:[#allocation13 + $0xc30] sm:$0xff]
        %v1672 = vld [vmem:[#allocation13 + $0xc38] sm:$0xff]
        %v1673 = vld [vmem:[#allocation13 + $0xc40] sm:$0xff]
        %v1674 = vld [vmem:[#allocation13 + $0xc48] sm:$0xff]
        %v1675 = vld [vmem:[#allocation13 + $0xc50] sm:$0xff]
        %v1676 = vld [vmem:[#allocation13 + $0xc58] sm:$0xff]
        %v1677 = vld [vmem:[#allocation13 + $0xc60] sm:$0xff]
        %v1678 = vld [vmem:[#allocation13 + $0xc68] sm:$0xff]
        %v1679 = vld [vmem:[#allocation13 + $0xc70] sm:$0xff]
        %v1680 = vld [vmem:[#allocation13 + $0xc78] sm:$0xff]
        %v1681 = vld [vmem:[#allocation13 + $0xc80] sm:$0xff]
        %v1682 = vld [vmem:[#allocation13 + $0xc88] sm:$0xff]
        %v1683 = vld [vmem:[#allocation13 + $0xc90] sm:$0xff]
        %v1684 = vld [vmem:[#allocation13 + $0xc98] sm:$0xff]
        %v1685 = vld [vmem:[#allocation13 + $0xca0] sm:$0xff]
        %v1686 = vld [vmem:[#allocation13 + $0xca8] sm:$0xff]
        %v1687 = vld [vmem:[#allocation13 + $0xcb0] sm:$0xff]
        %v1688 = vld [vmem:[#allocation13 + $0xcb8] sm:$0xff]
        %v1689 = vld [vmem:[#allocation13 + $0xcc0] sm:$0xff]
        %v1690 = vld [vmem:[#allocation13 + $0xcc8] sm:$0xff]
        %v1691 = vld [vmem:[#allocation13 + $0xcd0] sm:$0xff]
        %v1692 = vld [vmem:[#allocation13 + $0xcd8] sm:$0xff]
        %v1693 = vld [vmem:[#allocation13 + $0xce0] sm:$0xff]
        %v1694 = vld [vmem:[#allocation13 + $0xce8] sm:$0xff]
        %v1695 = vld [vmem:[#allocation13 + $0xcf0] sm:$0xff]
        %v1696 = vld [vmem:[#allocation13 + $0xcf8] sm:$0xff]
        %v1697 = vld [vmem:[#allocation13 + $0xd00] sm:$0xff]
        %v1698 = vld [vmem:[#allocation13 + $0xd08] sm:$0xff]
        %v1699 = vld [vmem:[#allocation13 + $0xd10] sm:$0xff]
        %v1700 = vld [vmem:[#allocation13 + $0xd18] sm:$0xff]
        %v1701 = vld [vmem:[#allocation13 + $0xd20] sm:$0xff]
        %v1702 = vld [vmem:[#allocation13 + $0xd28] sm:$0xff]
        %v1703 = vld [vmem:[#allocation13 + $0xd30] sm:$0xff]
        %v1704 = vld [vmem:[#allocation13 + $0xd38] sm:$0xff]
        %v1705 = vld [vmem:[#allocation13 + $0xd40] sm:$0xff]
        %v1706 = vld [vmem:[#allocation13 + $0xd48] sm:$0xff]
        %v1707 = vld [vmem:[#allocation13 + $0xd50] sm:$0xff]
        %v1708 = vld [vmem:[#allocation13 + $0xd58] sm:$0xff]
        %v1709 = vld [vmem:[#allocation13 + $0xd60] sm:$0xff]
        %v1710 = vld [vmem:[#allocation13 + $0xd68] sm:$0xff]
        %v1711 = vld [vmem:[#allocation13 + $0xd70] sm:$0xff]
        %v1712 = vld [vmem:[#allocation13 + $0xd78] sm:$0xff]
        %v1713 = vld [vmem:[#allocation13 + $0xd80] sm:$0xff]
        %v1714 = vld [vmem:[#allocation13 + $0xd88] sm:$0xff]
        %v1715 = vld [vmem:[#allocation13 + $0xd90] sm:$0xff]
        %v1716 = vld [vmem:[#allocation13 + $0xd98] sm:$0xff]
        %v1717 = vld [vmem:[#allocation13 + $0xda0] sm:$0xff]
        %v1718 = vld [vmem:[#allocation13 + $0xda8] sm:$0xff]
        %v1719 = vld [vmem:[#allocation13 + $0xdb0] sm:$0xff]
        %v1720 = vld [vmem:[#allocation13 + $0xdb8] sm:$0xff]
        %v1721 = vld [vmem:[#allocation13 + $0xdc0] sm:$0xff]
        %v1722 = vld [vmem:[#allocation13 + $0xdc8] sm:$0xff]
        %v1723 = vld [vmem:[#allocation13 + $0xdd0] sm:$0xff]
        %v1724 = vld [vmem:[#allocation13 + $0xdd8] sm:$0xff]
        %v1725 = vld [vmem:[#allocation13 + $0xde0] sm:$0xff]
        %v1726 = vld [vmem:[#allocation13 + $0xde8] sm:$0xff]
        %v1727 = vld [vmem:[#allocation13 + $0xdf0] sm:$0xff]
        %v1728 = vld [vmem:[#allocation13 + $0xdf8] sm:$0xff]
        %v1729 = vld [vmem:[#allocation13 + $0xe00] sm:$0xff]
        %v1730 = vld [vmem:[#allocation13 + $0xe08] sm:$0xff]
        %v1731 = vld [vmem:[#allocation13 + $0xe10] sm:$0xff]
        %v1732 = vld [vmem:[#allocation13 + $0xe18] sm:$0xff]
        %v1733 = vld [vmem:[#allocation13 + $0xe20] sm:$0xff]
        %v1734 = vld [vmem:[#allocation13 + $0xe28] sm:$0xff]
        %v1735 = vld [vmem:[#allocation13 + $0xe30] sm:$0xff]
        %v1736 = vld [vmem:[#allocation13 + $0xe38] sm:$0xff]
        %v1737 = vld [vmem:[#allocation13 + $0xe40] sm:$0xff]
        %v1738 = vld [vmem:[#allocation13 + $0xe48] sm:$0xff]
        %v1739 = vld [vmem:[#allocation13 + $0xe50] sm:$0xff]
        %v1740 = vld [vmem:[#allocation13 + $0xe58] sm:$0xff]
        %v1741 = vld [vmem:[#allocation13 + $0xe60] sm:$0xff]
        %v1742 = vld [vmem:[#allocation13 + $0xe68] sm:$0xff]
        %v1743 = vld [vmem:[#allocation13 + $0xe70] sm:$0xff]
        %v1744 = vld [vmem:[#allocation13 + $0xe78] sm:$0xff]
        %v1745 = vld [vmem:[#allocation13 + $0xe80] sm:$0xff]
        %v1746 = vld [vmem:[#allocation13 + $0xe88] sm:$0xff]
        %v1747 = vld [vmem:[#allocation13 + $0xe90] sm:$0xff]
        %v1748 = vld [vmem:[#allocation13 + $0xe98] sm:$0xff]
        %v1749 = vld [vmem:[#allocation13 + $0xea0] sm:$0xff]
        %v1750 = vld [vmem:[#allocation13 + $0xea8] sm:$0xff]
        %v1751 = vld [vmem:[#allocation13 + $0xeb0] sm:$0xff]
        %v1752 = vld [vmem:[#allocation13 + $0xeb8] sm:$0xff]
        %v1753 = vld [vmem:[#allocation13 + $0xec0] sm:$0xff]
        %v1754 = vld [vmem:[#allocation13 + $0xec8] sm:$0xff]
        %v1755 = vld [vmem:[#allocation13 + $0xed0] sm:$0xff]
        %v1756 = vld [vmem:[#allocation13 + $0xed8] sm:$0xff]
        %v1757 = vld [vmem:[#allocation13 + $0xee0] sm:$0xff]
        %v1758 = vld [vmem:[#allocation13 + $0xee8] sm:$0xff]
        %v1759 = vld [vmem:[#allocation13 + $0xef0] sm:$0xff]
        %v1760 = vld [vmem:[#allocation13 + $0xef8] sm:$0xff]
        %v1761 = vld [vmem:[#allocation13 + $0xf00] sm:$0xff]
        %v1762 = vld [vmem:[#allocation13 + $0xf08] sm:$0xff]
        %v1763 = vld [vmem:[#allocation13 + $0xf10] sm:$0xff]
        %v1764 = vld [vmem:[#allocation13 + $0xf18] sm:$0xff]
        %v1765 = vld [vmem:[#allocation13 + $0xf20] sm:$0xff]
        %v1766 = vld [vmem:[#allocation13 + $0xf28] sm:$0xff]
        %v1767 = vld [vmem:[#allocation13 + $0xf30] sm:$0xff]
        %v1768 = vld [vmem:[#allocation13 + $0xf38] sm:$0xff]
        %v1769 = vld [vmem:[#allocation13 + $0xf40] sm:$0xff]
        %v1770 = vld [vmem:[#allocation13 + $0xf48] sm:$0xff]
        %v1771 = vld [vmem:[#allocation13 + $0xf50] sm:$0xff]
        %v1772 = vld [vmem:[#allocation13 + $0xf58] sm:$0xff]
        %v1773 = vld [vmem:[#allocation13 + $0xf60] sm:$0xff]
        %v1774 = vld [vmem:[#allocation13 + $0xf68] sm:$0xff]
        %v1775 = vld [vmem:[#allocation13 + $0xf70] sm:$0xff]
        %v1776 = vld [vmem:[#allocation13 + $0xf78] sm:$0xff]
        %v1777 = vld [vmem:[#allocation13 + $0xf80] sm:$0xff]
        %v1778 = vld [vmem:[#allocation13 + $0xf88] sm:$0xff]
        %v1779 = vld [vmem:[#allocation13 + $0xf90] sm:$0xff]
        %v1780 = vld [vmem:[#allocation13 + $0xf98] sm:$0xff]
        %v1781 = vld [vmem:[#allocation13 + $0xfa0] sm:$0xff]
        %v1782 = vld [vmem:[#allocation13 + $0xfa8] sm:$0xff]
        %v1783 = vld [vmem:[#allocation13 + $0xfb0] sm:$0xff]
        %v1784 = vld [vmem:[#allocation13 + $0xfb8] sm:$0xff]
        %v1785 = vld [vmem:[#allocation13 + $0xfc0] sm:$0xff]
        %v1786 = vld [vmem:[#allocation13 + $0xfc8] sm:$0xff]
        %v1787 = vld [vmem:[#allocation13 + $0xfd0] sm:$0xff]
        %v1788 = vld [vmem:[#allocation13 + $0xfd8] sm:$0xff]
        %v1789 = vld [vmem:[#allocation13 + $0xfe0] sm:$0xff]
        %v1790 = vld [vmem:[#allocation13 + $0xfe8] sm:$0xff]
        %v1791 = vld [vmem:[#allocation13 + $0xff0] sm:$0xff]
        %v1792 = vld [vmem:[#allocation13 + $0xff8] sm:$0xff]
        %v1793 = vld [vmem:[#allocation13 + $0x1000] sm:$0xff]
        %v1794 = vld [vmem:[#allocation13 + $0x1008] sm:$0xff]
        %v1795 = vld [vmem:[#allocation13 + $0x1010] sm:$0xff]
        %v1796 = vld [vmem:[#allocation13 + $0x1018] sm:$0xff]
        %v1797 = vld [vmem:[#allocation13 + $0x1020] sm:$0xff]
        %v1798 = vld [vmem:[#allocation13 + $0x1028] sm:$0xff]
        %v1799 = vld [vmem:[#allocation13 + $0x1030] sm:$0xff]
        %v1800 = vld [vmem:[#allocation13 + $0x1038] sm:$0xff]
        %v1801 = vld [vmem:[#allocation13 + $0x1040] sm:$0xff]
        %v1802 = vld [vmem:[#allocation13 + $0x1048] sm:$0xff]
        %v1803 = vld [vmem:[#allocation13 + $0x1050] sm:$0xff]
        %v1804 = vld [vmem:[#allocation13 + $0x1058] sm:$0xff]
        %v1805 = vld [vmem:[#allocation13 + $0x1060] sm:$0xff]
        %v1806 = vld [vmem:[#allocation13 + $0x1068] sm:$0xff]
        %v1807 = vld [vmem:[#allocation13 + $0x1070] sm:$0xff]
        %v1808 = vld [vmem:[#allocation13 + $0x1078] sm:$0xff]
        %v1809 = vld [vmem:[#allocation13 + $0x1080] sm:$0xff]
        %v1810 = vld [vmem:[#allocation13 + $0x1088] sm:$0xff]
        %v1811 = vld [vmem:[#allocation13 + $0x1090] sm:$0xff]
        %v1812 = vld [vmem:[#allocation13 + $0x1098] sm:$0xff]
        %v1813 = vld [vmem:[#allocation13 + $0x10a0] sm:$0xff]
        %v1814 = vld [vmem:[#allocation13 + $0x10a8] sm:$0xff]
        %v1815 = vld [vmem:[#allocation13 + $0x10b0] sm:$0xff]
        %v1816 = vld [vmem:[#allocation13 + $0x10b8] sm:$0xff]
        %v1817 = vld [vmem:[#allocation13 + $0x10c0] sm:$0xff]
        %v1818 = vld [vmem:[#allocation13 + $0x10c8] sm:$0xff]
        %v1819 = vld [vmem:[#allocation13 + $0x10d0] sm:$0xff]
        %v1820 = vld [vmem:[#allocation13 + $0x10d8] sm:$0xff]
        %v1821 = vld [vmem:[#allocation13 + $0x10e0] sm:$0xff]
        %v1822 = vld [vmem:[#allocation13 + $0x10e8] sm:$0xff]
        %v1823 = vld [vmem:[#allocation13 + $0x10f0] sm:$0xff]
        %v1824 = vld [vmem:[#allocation13 + $0x10f8] sm:$0xff]
        %v1825 = vld [vmem:[#allocation13 + $0x1100] sm:$0xff]
        %v1826 = vld [vmem:[#allocation13 + $0x1108] sm:$0xff]
        %v1827 = vld [vmem:[#allocation13 + $0x1110] sm:$0xff]
        %v1828 = vld [vmem:[#allocation13 + $0x1118] sm:$0xff]
        %v1829 = vld [vmem:[#allocation13 + $0x1120] sm:$0xff]
        %v1830 = vld [vmem:[#allocation13 + $0x1128] sm:$0xff]
        %v1831 = vld [vmem:[#allocation13 + $0x1130] sm:$0xff]
        %v1832 = vld [vmem:[#allocation13 + $0x1138] sm:$0xff]
        %v1833 = vld [vmem:[#allocation13 + $0x1140] sm:$0xff]
        %v1834 = vld [vmem:[#allocation13 + $0x1148] sm:$0xff]
        %v1835 = vld [vmem:[#allocation13 + $0x1150] sm:$0xff]
        %v1836 = vld [vmem:[#allocation13 + $0x1158] sm:$0xff]
        %v1837 = vld [vmem:[#allocation13 + $0x1160] sm:$0xff]
        %v1838 = vld [vmem:[#allocation13 + $0x1168] sm:$0xff]
        %v1839 = vld [vmem:[#allocation13 + $0x1170] sm:$0xff]
        %v1840 = vld [vmem:[#allocation13 + $0x1178] sm:$0xff]
        %v1841 = vld [vmem:[#allocation13 + $0x1180] sm:$0xff]
        %v1842 = vld [vmem:[#allocation13 + $0x1188] sm:$0xff]
        %v1843 = vld [vmem:[#allocation13 + $0x1190] sm:$0xff]
        %v1844 = vld [vmem:[#allocation13 + $0x1198] sm:$0xff]
        %v1845 = vld [vmem:[#allocation13 + $0x11a0] sm:$0xff]
        %v1846 = vld [vmem:[#allocation13 + $0x11a8] sm:$0xff]
        %v1847 = vld [vmem:[#allocation13 + $0x11b0] sm:$0xff]
        %v1848 = vld [vmem:[#allocation13 + $0x11b8] sm:$0xff]
        %v1849 = vld [vmem:[#allocation13 + $0x11c0] sm:$0xff]
        %v1850 = vld [vmem:[#allocation13 + $0x11c8] sm:$0xff]
        %v1851 = vld [vmem:[#allocation13 + $0x11d0] sm:$0xff]
        %v1852 = vld [vmem:[#allocation13 + $0x11d8] sm:$0xff]
        %v1853 = vld [vmem:[#allocation13 + $0x11e0] sm:$0xff]
        %v1854 = vld [vmem:[#allocation13 + $0x11e8] sm:$0xff]
        %v1855 = vld [vmem:[#allocation13 + $0x11f0] sm:$0xff]
        %v1856 = vld [vmem:[#allocation13 + $0x11f8] sm:$0xff]
        %v1857 = vld [vmem:[#allocation13 + $0x1200] sm:$0xff]
        %v1858 = vld [vmem:[#allocation13 + $0x1208] sm:$0xff]
        %v1859 = vld [vmem:[#allocation13 + $0x1210] sm:$0xff]
        %v1860 = vld [vmem:[#allocation13 + $0x1218] sm:$0xff]
        %v1861 = vld [vmem:[#allocation13 + $0x1220] sm:$0xff]
        %v1862 = vld [vmem:[#allocation13 + $0x1228] sm:$0xff]
        %v1863 = vld [vmem:[#allocation13 + $0x1230] sm:$0xff]
        %v1864 = vld [vmem:[#allocation13 + $0x1238] sm:$0xff]
        %v1865 = vld [vmem:[#allocation13 + $0x1240] sm:$0xff]
        %v1866 = vld [vmem:[#allocation13 + $0x1248] sm:$0xff]
        %v1867 = vld [vmem:[#allocation13 + $0x1250] sm:$0xff]
        %v1868 = vld [vmem:[#allocation13 + $0x1258] sm:$0xff]
        %v1869 = vld [vmem:[#allocation13 + $0x1260] sm:$0xff]
        %v1870 = vld [vmem:[#allocation13 + $0x1268] sm:$0xff]
        %v1871 = vld [vmem:[#allocation13 + $0x1270] sm:$0xff]
        %v1872 = vld [vmem:[#allocation13 + $0x1278] sm:$0xff]
        %v1873 = vld [vmem:[#allocation13 + $0x1280] sm:$0xff]
        %v1874 = vld [vmem:[#allocation13 + $0x1288] sm:$0xff]
        %v1875 = vld [vmem:[#allocation13 + $0x1290] sm:$0xff]
        %v1876 = vld [vmem:[#allocation13 + $0x1298] sm:$0xff]
        %v1877 = vld [vmem:[#allocation13 + $0x12a0] sm:$0xff]
        %v1878 = vld [vmem:[#allocation13 + $0x12a8] sm:$0xff]
        %v1879 = vld [vmem:[#allocation13 + $0x12b0] sm:$0xff]
        %v1880 = vld [vmem:[#allocation13 + $0x12b8] sm:$0xff]
        %v1881 = vld [vmem:[#allocation13 + $0x12c0] sm:$0xff]
        %v1882 = vld [vmem:[#allocation13 + $0x12c8] sm:$0xff]
        %v1883 = vld [vmem:[#allocation13 + $0x12d0] sm:$0xff]
        %v1884 = vld [vmem:[#allocation13 + $0x12d8] sm:$0xff]
        %v1885 = vld [vmem:[#allocation13 + $0x12e0] sm:$0xff]
        %v1886 = vld [vmem:[#allocation13 + $0x12e8] sm:$0xff]
        %v1887 = vld [vmem:[#allocation13 + $0x12f0] sm:$0xff]
        %v1888 = vld [vmem:[#allocation13 + $0x12f8] sm:$0xff]
        %v1889 = vld [vmem:[#allocation13 + $0x1300] sm:$0xff]
        %v1890 = vld [vmem:[#allocation13 + $0x1308] sm:$0xff]
        %v1891 = vld [vmem:[#allocation13 + $0x1310] sm:$0xff]
        %v1892 = vld [vmem:[#allocation13 + $0x1318] sm:$0xff]
        %v1893 = vld [vmem:[#allocation13 + $0x1320] sm:$0xff]
        %v1894 = vld [vmem:[#allocation13 + $0x1328] sm:$0xff]
        %v1895 = vld [vmem:[#allocation13 + $0x1330] sm:$0xff]
        %v1896 = vld [vmem:[#allocation13 + $0x1338] sm:$0xff]
        %v1897 = vld [vmem:[#allocation13 + $0x1340] sm:$0xff]
        %v1898 = vld [vmem:[#allocation13 + $0x1348] sm:$0xff]
        %v1899 = vld [vmem:[#allocation13 + $0x1350] sm:$0xff]
        %v1900 = vld [vmem:[#allocation13 + $0x1358] sm:$0xff]
        %v1901 = vld [vmem:[#allocation13 + $0x1360] sm:$0xff]
        %v1902 = vld [vmem:[#allocation13 + $0x1368] sm:$0xff]
        %v1903 = vld [vmem:[#allocation13 + $0x1370] sm:$0xff]
        %v1904 = vld [vmem:[#allocation13 + $0x1378] sm:$0xff]
        %v1905 = vld [vmem:[#allocation13 + $0x1380] sm:$0xff]
        %v1906 = vld [vmem:[#allocation13 + $0x1388] sm:$0xff]
        %v1907 = vld [vmem:[#allocation13 + $0x1390] sm:$0xff]
        %v1908 = vld [vmem:[#allocation13 + $0x1398] sm:$0xff]
        %v1909 = vld [vmem:[#allocation13 + $0x13a0] sm:$0xff]
        %v1910 = vld [vmem:[#allocation13 + $0x13a8] sm:$0xff]
        %v1911 = vld [vmem:[#allocation13 + $0x13b0] sm:$0xff]
        %v1912 = vld [vmem:[#allocation13 + $0x13b8] sm:$0xff]
        %v1913 = vld [vmem:[#allocation13 + $0x13c0] sm:$0xff]
        %v1914 = vld [vmem:[#allocation13 + $0x13c8] sm:$0xff]
        %v1915 = vld [vmem:[#allocation13 + $0x13d0] sm:$0xff]
        %v1916 = vld [vmem:[#allocation13 + $0x13d8] sm:$0xff]
        %v1917 = vld [vmem:[#allocation13 + $0x13e0] sm:$0xff]
        %v1918 = vld [vmem:[#allocation13 + $0x13e8] sm:$0xff]
        %v1919 = vld [vmem:[#allocation13 + $0x13f0] sm:$0xff]
        %v1920 = vld [vmem:[#allocation13 + $0x13f8] sm:$0xff]
        %v1921 = vld [vmem:[#allocation13 + $0x1400] sm:$0xff]
        %v1922 = vld [vmem:[#allocation13 + $0x1408] sm:$0xff]
        %v1923 = vld [vmem:[#allocation13 + $0x1410] sm:$0xff]
        %v1924 = vld [vmem:[#allocation13 + $0x1418] sm:$0xff]
        %v1925 = vld [vmem:[#allocation13 + $0x1420] sm:$0xff]
        %v1926 = vld [vmem:[#allocation13 + $0x1428] sm:$0xff]
        %v1927 = vld [vmem:[#allocation13 + $0x1430] sm:$0xff]
        %v1928 = vld [vmem:[#allocation13 + $0x1438] sm:$0xff]
        %v1929 = vld [vmem:[#allocation13 + $0x1440] sm:$0xff]
        %v1930 = vld [vmem:[#allocation13 + $0x1448] sm:$0xff]
        %v1931 = vld [vmem:[#allocation13 + $0x1450] sm:$0xff]
        %v1932 = vld [vmem:[#allocation13 + $0x1458] sm:$0xff]
        %v1933 = vld [vmem:[#allocation13 + $0x1460] sm:$0xff]
        %v1934 = vld [vmem:[#allocation13 + $0x1468] sm:$0xff]
        %v1935 = vld [vmem:[#allocation13 + $0x1470] sm:$0xff]
        %v1936 = vld [vmem:[#allocation13 + $0x1478] sm:$0xff]
        %v1937 = vld [vmem:[#allocation13 + $0x1480] sm:$0xff]
        %v1938 = vld [vmem:[#allocation13 + $0x1488] sm:$0xff]
        %v1939 = vld [vmem:[#allocation13 + $0x1490] sm:$0xff]
        %v1940 = vld [vmem:[#allocation13 + $0x1498] sm:$0xff]
        %v1941 = vld [vmem:[#allocation13 + $0x14a0] sm:$0xff]
        %v1942 = vld [vmem:[#allocation13 + $0x14a8] sm:$0xff]
        %v1943 = vld [vmem:[#allocation13 + $0x14b0] sm:$0xff]
        %v1944 = vld [vmem:[#allocation13 + $0x14b8] sm:$0xff]
        %v1945 = vld [vmem:[#allocation13 + $0x14c0] sm:$0xff]
        %v1946 = vld [vmem:[#allocation13 + $0x14c8] sm:$0xff]
        %v1947 = vld [vmem:[#allocation13 + $0x14d0] sm:$0xff]
        %v1948 = vld [vmem:[#allocation13 + $0x14d8] sm:$0xff]
        %v1949 = vld [vmem:[#allocation13 + $0x14e0] sm:$0xff]
        %v1950 = vld [vmem:[#allocation13 + $0x14e8] sm:$0xff]
        %v1951 = vld [vmem:[#allocation13 + $0x14f0] sm:$0xff]
        %v1952 = vld [vmem:[#allocation13 + $0x14f8] sm:$0xff]
        %v1953 = vld [vmem:[#allocation13 + $0x1500] sm:$0xff]
        %v1954 = vld [vmem:[#allocation13 + $0x1508] sm:$0xff]
        %v1955 = vld [vmem:[#allocation13 + $0x1510] sm:$0xff]
        %v1956 = vld [vmem:[#allocation13 + $0x1518] sm:$0xff]
        %v1957 = vld [vmem:[#allocation13 + $0x1520] sm:$0xff]
        %v1958 = vld [vmem:[#allocation13 + $0x1528] sm:$0xff]
        %v1959 = vld [vmem:[#allocation13 + $0x1530] sm:$0xff]
        %v1960 = vld [vmem:[#allocation13 + $0x1538] sm:$0xff]
        %v1961 = vld [vmem:[#allocation13 + $0x1540] sm:$0xff]
        %v1962 = vld [vmem:[#allocation13 + $0x1548] sm:$0xff]
        %v1963 = vld [vmem:[#allocation13 + $0x1550] sm:$0xff]
        %v1964 = vld [vmem:[#allocation13 + $0x1558] sm:$0xff]
        %v1965 = vld [vmem:[#allocation13 + $0x1560] sm:$0xff]
        %v1966 = vld [vmem:[#allocation13 + $0x1568] sm:$0xff]
        %v1967 = vld [vmem:[#allocation13 + $0x1570] sm:$0xff]
        %v1968 = vld [vmem:[#allocation13 + $0x1578] sm:$0xff]
        %v1969 = vld [vmem:[#allocation13 + $0x1580] sm:$0xff]
        %v1970 = vld [vmem:[#allocation13 + $0x1588] sm:$0xff]
        %v1971 = vld [vmem:[#allocation13 + $0x1590] sm:$0xff]
        %v1972 = vld [vmem:[#allocation13 + $0x1598] sm:$0xff]
        %v1973 = vld [vmem:[#allocation13 + $0x15a0] sm:$0xff]
        %v1974 = vld [vmem:[#allocation13 + $0x15a8] sm:$0xff]
        %v1975 = vld [vmem:[#allocation13 + $0x15b0] sm:$0xff]
        %v1976 = vld [vmem:[#allocation13 + $0x15b8] sm:$0xff]
        %v1977 = vld [vmem:[#allocation13 + $0x15c0] sm:$0xff]
        %v1978 = vld [vmem:[#allocation13 + $0x15c8] sm:$0xff]
        %v1979 = vld [vmem:[#allocation13 + $0x15d0] sm:$0xff]
        %v1980 = vld [vmem:[#allocation13 + $0x15d8] sm:$0xff]
        %v1981 = vld [vmem:[#allocation13 + $0x15e0] sm:$0xff]
        %v1982 = vld [vmem:[#allocation13 + $0x15e8] sm:$0xff]
        %v1983 = vld [vmem:[#allocation13 + $0x15f0] sm:$0xff]
        %v1984 = vld [vmem:[#allocation13 + $0x15f8] sm:$0xff]
        %v1985 = vld [vmem:[#allocation13 + $0x1600] sm:$0xff]
        %v1986 = vld [vmem:[#allocation13 + $0x1608] sm:$0xff]
        %v1987 = vld [vmem:[#allocation13 + $0x1610] sm:$0xff]
        %v1988 = vld [vmem:[#allocation13 + $0x1618] sm:$0xff]
        %v1989 = vld [vmem:[#allocation13 + $0x1620] sm:$0xff]
        %v1990 = vld [vmem:[#allocation13 + $0x1628] sm:$0xff]
        %v1991 = vld [vmem:[#allocation13 + $0x1630] sm:$0xff]
        %v1992 = vld [vmem:[#allocation13 + $0x1638] sm:$0xff]
        %v1993 = vld [vmem:[#allocation13 + $0x1640] sm:$0xff]
        %v1994 = vld [vmem:[#allocation13 + $0x1648] sm:$0xff]
        %v1995 = vld [vmem:[#allocation13 + $0x1650] sm:$0xff]
        %v1996 = vld [vmem:[#allocation13 + $0x1658] sm:$0xff]
        %v1997 = vld [vmem:[#allocation13 + $0x1660] sm:$0xff]
        %v1998 = vld [vmem:[#allocation13 + $0x1668] sm:$0xff]
        %v1999 = vld [vmem:[#allocation13 + $0x1670] sm:$0xff]
        %v2000 = vld [vmem:[#allocation13 + $0x1678] sm:$0xff]
        %v2001 = vld [vmem:[#allocation13 + $0x1680] sm:$0xff]
        %v2002 = vld [vmem:[#allocation13 + $0x1688] sm:$0xff]
        %v2003 = vld [vmem:[#allocation13 + $0x1690] sm:$0xff]
        %v2004 = vld [vmem:[#allocation13 + $0x1698] sm:$0xff]
        %v2005 = vld [vmem:[#allocation13 + $0x16a0] sm:$0xff]
        %v2006 = vld [vmem:[#allocation13 + $0x16a8] sm:$0xff]
        %v2007 = vld [vmem:[#allocation13 + $0x16b0] sm:$0xff]
        %v2008 = vld [vmem:[#allocation13 + $0x16b8] sm:$0xff]
        %v2009 = vld [vmem:[#allocation13 + $0x16c0] sm:$0xff]
        %v2010 = vld [vmem:[#allocation13 + $0x16c8] sm:$0xff]
        %v2011 = vld [vmem:[#allocation13 + $0x16d0] sm:$0xff]
        %v2012 = vld [vmem:[#allocation13 + $0x16d8] sm:$0xff]
        %v2013 = vld [vmem:[#allocation13 + $0x16e0] sm:$0xff]
        %v2014 = vld [vmem:[#allocation13 + $0x16e8] sm:$0xff]
        %v2015 = vld [vmem:[#allocation13 + $0x16f0] sm:$0xff]
        %v2016 = vld [vmem:[#allocation13 + $0x16f8] sm:$0xff]
        %v2017 = vld [vmem:[#allocation13 + $0x1700] sm:$0xff]
        %v2018 = vld [vmem:[#allocation13 + $0x1708] sm:$0xff]
        %v2019 = vld [vmem:[#allocation13 + $0x1710] sm:$0xff]
        %v2020 = vld [vmem:[#allocation13 + $0x1718] sm:$0xff]
        %v2021 = vld [vmem:[#allocation13 + $0x1720] sm:$0xff]
        %v2022 = vld [vmem:[#allocation13 + $0x1728] sm:$0xff]
        %v2023 = vld [vmem:[#allocation13 + $0x1730] sm:$0xff]
        %v2024 = vld [vmem:[#allocation13 + $0x1738] sm:$0xff]
        %v2025 = vld [vmem:[#allocation13 + $0x1740] sm:$0xff]
        %v2026 = vld [vmem:[#allocation13 + $0x1748] sm:$0xff]
        %v2027 = vld [vmem:[#allocation13 + $0x1750] sm:$0xff]
        %v2028 = vld [vmem:[#allocation13 + $0x1758] sm:$0xff]
        %v2029 = vld [vmem:[#allocation13 + $0x1760] sm:$0xff]
        %v2030 = vld [vmem:[#allocation13 + $0x1768] sm:$0xff]
        %v2031 = vld [vmem:[#allocation13 + $0x1770] sm:$0xff]
        %v2032 = vld [vmem:[#allocation13 + $0x1778] sm:$0xff]
        %v2033 = vld [vmem:[#allocation13 + $0x1780] sm:$0xff]
        %v2034 = vld [vmem:[#allocation13 + $0x1788] sm:$0xff]
        %v2035 = vld [vmem:[#allocation13 + $0x1790] sm:$0xff]
        %v2036 = vld [vmem:[#allocation13 + $0x1798] sm:$0xff]
        %v2037 = vld [vmem:[#allocation13 + $0x17a0] sm:$0xff]
        %v2038 = vld [vmem:[#allocation13 + $0x17a8] sm:$0xff]
        %v2039 = vld [vmem:[#allocation13 + $0x17b0] sm:$0xff]
        %v2040 = vld [vmem:[#allocation13 + $0x17b8] sm:$0xff]
        %v2041 = vld [vmem:[#allocation13 + $0x17c0] sm:$0xff]
        %v2042 = vld [vmem:[#allocation13 + $0x17c8] sm:$0xff]
        %v2043 = vld [vmem:[#allocation13 + $0x17d0] sm:$0xff]
        %v2044 = vld [vmem:[#allocation13 + $0x17d8] sm:$0xff]
        %v2045 = vld [vmem:[#allocation13 + $0x17e0] sm:$0xff]
        %v2046 = vld [vmem:[#allocation13 + $0x17e8] sm:$0xff]
        %v2047 = vld [vmem:[#allocation13 + $0x17f0] sm:$0xff]
        %v2048 = vld [vmem:[#allocation13 + $0x17f8] sm:$0xff]
        %v2049 = vld [vmem:[#allocation13 + $0x1800] sm:$0xff]
        %v2050 = vld [vmem:[#allocation13 + $0x1808] sm:$0xff]
        %v2051 = vld [vmem:[#allocation13 + $0x1810] sm:$0xff]
        %v2052 = vld [vmem:[#allocation13 + $0x1818] sm:$0xff]
        %v2053 = vld [vmem:[#allocation13 + $0x1820] sm:$0xff]
        %v2054 = vld [vmem:[#allocation13 + $0x1828] sm:$0xff]
        %v2055 = vld [vmem:[#allocation13 + $0x1830] sm:$0xff]
        %v2056 = vld [vmem:[#allocation13 + $0x1838] sm:$0xff]
        %v2057 = vld [vmem:[#allocation13 + $0x1840] sm:$0xff]
        %v2058 = vld [vmem:[#allocation13 + $0x1848] sm:$0xff]
        %v2059 = vld [vmem:[#allocation13 + $0x1850] sm:$0xff]
        %v2060 = vld [vmem:[#allocation13 + $0x1858] sm:$0xff]
        %v2061 = vld [vmem:[#allocation13 + $0x1860] sm:$0xff]
        %v2062 = vld [vmem:[#allocation13 + $0x1868] sm:$0xff]
        %v2063 = vld [vmem:[#allocation13 + $0x1870] sm:$0xff]
        %v2064 = vld [vmem:[#allocation13 + $0x1878] sm:$0xff]
        %v2065 = vld [vmem:[#allocation13 + $0x1880] sm:$0xff]
        %v2066 = vld [vmem:[#allocation13 + $0x1888] sm:$0xff]
        %v2067 = vld [vmem:[#allocation13 + $0x1890] sm:$0xff]
        %v2068 = vld [vmem:[#allocation13 + $0x1898] sm:$0xff]
        %v2069 = vld [vmem:[#allocation13 + $0x18a0] sm:$0xff]
        %v2070 = vld [vmem:[#allocation13 + $0x18a8] sm:$0xff]
        %v2071 = vld [vmem:[#allocation13 + $0x18b0] sm:$0xff]
        %v2072 = vld [vmem:[#allocation13 + $0x18b8] sm:$0xff]
        %v2073 = vld [vmem:[#allocation13 + $0x18c0] sm:$0xff]
        %v2074 = vld [vmem:[#allocation13 + $0x18c8] sm:$0xff]
        %v2075 = vld [vmem:[#allocation13 + $0x18d0] sm:$0xff]
        %v2076 = vld [vmem:[#allocation13 + $0x18d8] sm:$0xff]
        %v2077 = vld [vmem:[#allocation13 + $0x18e0] sm:$0xff]
        %v2078 = vld [vmem:[#allocation13 + $0x18e8] sm:$0xff]
        %v2079 = vld [vmem:[#allocation13 + $0x18f0] sm:$0xff]
        %v2080 = vld [vmem:[#allocation13 + $0x18f8] sm:$0xff]
        %v2081 = vld [vmem:[#allocation13 + $0x1900] sm:$0xff]
        %v2082 = vld [vmem:[#allocation13 + $0x1908] sm:$0xff]
        %v2083 = vld [vmem:[#allocation13 + $0x1910] sm:$0xff]
        %v2084 = vld [vmem:[#allocation13 + $0x1918] sm:$0xff]
        %v2085 = vld [vmem:[#allocation13 + $0x1920] sm:$0xff]
        %v2086 = vld [vmem:[#allocation13 + $0x1928] sm:$0xff]
        %v2087 = vld [vmem:[#allocation13 + $0x1930] sm:$0xff]
        %v2088 = vld [vmem:[#allocation13 + $0x1938] sm:$0xff]
        %v2089 = vld [vmem:[#allocation13 + $0x1940] sm:$0xff]
        %v2090 = vld [vmem:[#allocation13 + $0x1948] sm:$0xff]
        %v2091 = vld [vmem:[#allocation13 + $0x1950] sm:$0xff]
        %v2092 = vld [vmem:[#allocation13 + $0x1958] sm:$0xff]
        %v2093 = vld [vmem:[#allocation13 + $0x1960] sm:$0xff]
        %v2094 = vld [vmem:[#allocation13 + $0x1968] sm:$0xff]
        %v2095 = vld [vmem:[#allocation13 + $0x1970] sm:$0xff]
        %v2096 = vld [vmem:[#allocation13 + $0x1978] sm:$0xff]
        %v2097 = vld [vmem:[#allocation13 + $0x1980] sm:$0xff]
        %v2098 = vld [vmem:[#allocation13 + $0x1988] sm:$0xff]
        %v2099 = vld [vmem:[#allocation13 + $0x1990] sm:$0xff]
        %v2100 = vld [vmem:[#allocation13 + $0x1998] sm:$0xff]
        %v2101 = vld [vmem:[#allocation13 + $0x19a0] sm:$0xff]
        %v2102 = vld [vmem:[#allocation13 + $0x19a8] sm:$0xff]
        %v2103 = vld [vmem:[#allocation13 + $0x19b0] sm:$0xff]
        %v2104 = vld [vmem:[#allocation13 + $0x19b8] sm:$0xff]
        %v2105 = vld [vmem:[#allocation13 + $0x19c0] sm:$0xff]
        %v2106 = vld [vmem:[#allocation13 + $0x19c8] sm:$0xff]
        %v2107 = vld [vmem:[#allocation13 + $0x19d0] sm:$0xff]
        %v2108 = vld [vmem:[#allocation13 + $0x19d8] sm:$0xff]
        %v2109 = vld [vmem:[#allocation13 + $0x19e0] sm:$0xff]
        %v2110 = vld [vmem:[#allocation13 + $0x19e8] sm:$0xff]
        %v2111 = vld [vmem:[#allocation13 + $0x19f0] sm:$0xff]
        %v2112 = vld [vmem:[#allocation13 + $0x19f8] sm:$0xff]
        %v2113 = vld [vmem:[#allocation13 + $0x1a00] sm:$0xff]
        %v2114 = vld [vmem:[#allocation13 + $0x1a08] sm:$0xff]
        %v2115 = vld [vmem:[#allocation13 + $0x1a10] sm:$0xff]
        %v2116 = vld [vmem:[#allocation13 + $0x1a18] sm:$0xff]
        %v2117 = vld [vmem:[#allocation13 + $0x1a20] sm:$0xff]
        %v2118 = vld [vmem:[#allocation13 + $0x1a28] sm:$0xff]
        %v2119 = vld [vmem:[#allocation13 + $0x1a30] sm:$0xff]
        %v2120 = vld [vmem:[#allocation13 + $0x1a38] sm:$0xff]
        %v2121 = vld [vmem:[#allocation13 + $0x1a40] sm:$0xff]
        %v2122 = vld [vmem:[#allocation13 + $0x1a48] sm:$0xff]
        %v2123 = vld [vmem:[#allocation13 + $0x1a50] sm:$0xff]
        %v2124 = vld [vmem:[#allocation13 + $0x1a58] sm:$0xff]
        %v2125 = vld [vmem:[#allocation13 + $0x1a60] sm:$0xff]
        %v2126 = vld [vmem:[#allocation13 + $0x1a68] sm:$0xff]
        %v2127 = vld [vmem:[#allocation13 + $0x1a70] sm:$0xff]
        %v2128 = vld [vmem:[#allocation13 + $0x1a78] sm:$0xff]
        %v2129 = vld [vmem:[#allocation13 + $0x1a80] sm:$0xff]
        %v2130 = vld [vmem:[#allocation13 + $0x1a88] sm:$0xff]
        %v2131 = vld [vmem:[#allocation13 + $0x1a90] sm:$0xff]
        %v2132 = vld [vmem:[#allocation13 + $0x1a98] sm:$0xff]
        %v2133 = vld [vmem:[#allocation13 + $0x1aa0] sm:$0xff]
        %v2134 = vld [vmem:[#allocation13 + $0x1aa8] sm:$0xff]
        %v2135 = vld [vmem:[#allocation13 + $0x1ab0] sm:$0xff]
        %v2136 = vld [vmem:[#allocation13 + $0x1ab8] sm:$0xff]
        %v2137 = vld [vmem:[#allocation13 + $0x1ac0] sm:$0xff]
        %v2138 = vld [vmem:[#allocation13 + $0x1ac8] sm:$0xff]
        %v2139 = vld [vmem:[#allocation13 + $0x1ad0] sm:$0xff]
        %v2140 = vld [vmem:[#allocation13 + $0x1ad8] sm:$0xff]
        %v2141 = vld [vmem:[#allocation13 + $0x1ae0] sm:$0xff]
        %v2142 = vld [vmem:[#allocation13 + $0x1ae8] sm:$0xff]
        %v2143 = vld [vmem:[#allocation13 + $0x1af0] sm:$0xff]
        %v2144 = vld [vmem:[#allocation13 + $0x1af8] sm:$0xff]
        %v2145 = vld [vmem:[#allocation13 + $0x1b00] sm:$0xff]
        %v2146 = vld [vmem:[#allocation13 + $0x1b08] sm:$0xff]
        %v2147 = vld [vmem:[#allocation13 + $0x1b10] sm:$0xff]
        %v2148 = vld [vmem:[#allocation13 + $0x1b18] sm:$0xff]
        %v2149 = vld [vmem:[#allocation13 + $0x1b20] sm:$0xff]
        %v2150 = vld [vmem:[#allocation13 + $0x1b28] sm:$0xff]
        %v2151 = vld [vmem:[#allocation13 + $0x1b30] sm:$0xff]
        %v2152 = vld [vmem:[#allocation13 + $0x1b38] sm:$0xff]
        %v2153 = vld [vmem:[#allocation13 + $0x1b40] sm:$0xff]
        %v2154 = vld [vmem:[#allocation13 + $0x1b48] sm:$0xff]
        %v2155 = vld [vmem:[#allocation13 + $0x1b50] sm:$0xff]
        %v2156 = vld [vmem:[#allocation13 + $0x1b58] sm:$0xff]
        %v2157 = vld [vmem:[#allocation13 + $0x1b60] sm:$0xff]
        %v2158 = vld [vmem:[#allocation13 + $0x1b68] sm:$0xff]
        %v2159 = vld [vmem:[#allocation13 + $0x1b70] sm:$0xff]
        %v2160 = vld [vmem:[#allocation13 + $0x1b78] sm:$0xff]
        %v2161 = vld [vmem:[#allocation13 + $0x1b80] sm:$0xff]
        %v2162 = vld [vmem:[#allocation13 + $0x1b88] sm:$0xff]
        %v2163 = vld [vmem:[#allocation13 + $0x1b90] sm:$0xff]
        %v2164 = vld [vmem:[#allocation13 + $0x1b98] sm:$0xff]
        %v2165 = vld [vmem:[#allocation13 + $0x1ba0] sm:$0xff]
        %v2166 = vld [vmem:[#allocation13 + $0x1ba8] sm:$0xff]
        %v2167 = vld [vmem:[#allocation13 + $0x1bb0] sm:$0xff]
        %v2168 = vld [vmem:[#allocation13 + $0x1bb8] sm:$0xff]
        %v2169 = vld [vmem:[#allocation13 + $0x1bc0] sm:$0xff]
        %v2170 = vld [vmem:[#allocation13 + $0x1bc8] sm:$0xff]
        %v2171 = vld [vmem:[#allocation13 + $0x1bd0] sm:$0xff]
        %v2172 = vld [vmem:[#allocation13 + $0x1bd8] sm:$0xff]
        %v2173 = vld [vmem:[#allocation13 + $0x1be0] sm:$0xff]
        %v2174 = vld [vmem:[#allocation13 + $0x1be8] sm:$0xff]
        %v2175 = vld [vmem:[#allocation13 + $0x1bf0] sm:$0xff]
        %v2176 = vld [vmem:[#allocation13 + $0x1bf8] sm:$0xff]
        %v2177 = vld [vmem:[#allocation13 + $0x1c00] sm:$0xff]
        %v2178 = vld [vmem:[#allocation13 + $0x1c08] sm:$0xff]
        %v2179 = vld [vmem:[#allocation13 + $0x1c10] sm:$0xff]
        %v2180 = vld [vmem:[#allocation13 + $0x1c18] sm:$0xff]
        %v2181 = vld [vmem:[#allocation13 + $0x1c20] sm:$0xff]
        %v2182 = vld [vmem:[#allocation13 + $0x1c28] sm:$0xff]
        %v2183 = vld [vmem:[#allocation13 + $0x1c30] sm:$0xff]
        %v2184 = vld [vmem:[#allocation13 + $0x1c38] sm:$0xff]
        %v2185 = vld [vmem:[#allocation13 + $0x1c40] sm:$0xff]
        %v2186 = vld [vmem:[#allocation13 + $0x1c48] sm:$0xff]
        %v2187 = vld [vmem:[#allocation13 + $0x1c50] sm:$0xff]
        %v2188 = vld [vmem:[#allocation13 + $0x1c58] sm:$0xff]
        %v2189 = vld [vmem:[#allocation13 + $0x1c60] sm:$0xff]
        %v2190 = vld [vmem:[#allocation13 + $0x1c68] sm:$0xff]
        %v2191 = vld [vmem:[#allocation13 + $0x1c70] sm:$0xff]
        %v2192 = vld [vmem:[#allocation13 + $0x1c78] sm:$0xff]
        %v2193 = vld [vmem:[#allocation13 + $0x1c80] sm:$0xff]
        %v2194 = vld [vmem:[#allocation13 + $0x1c88] sm:$0xff]
        %v2195 = vld [vmem:[#allocation13 + $0x1c90] sm:$0xff]
        %v2196 = vld [vmem:[#allocation13 + $0x1c98] sm:$0xff]
        %v2197 = vld [vmem:[#allocation13 + $0x1ca0] sm:$0xff]
        %v2198 = vld [vmem:[#allocation13 + $0x1ca8] sm:$0xff]
        %v2199 = vld [vmem:[#allocation13 + $0x1cb0] sm:$0xff]
        %v2200 = vld [vmem:[#allocation13 + $0x1cb8] sm:$0xff]
        %v2201 = vld [vmem:[#allocation13 + $0x1cc0] sm:$0xff]
        %v2202 = vld [vmem:[#allocation13 + $0x1cc8] sm:$0xff]
        %v2203 = vld [vmem:[#allocation13 + $0x1cd0] sm:$0xff]
        %v2204 = vld [vmem:[#allocation13 + $0x1cd8] sm:$0xff]
        %v2205 = vld [vmem:[#allocation13 + $0x1ce0] sm:$0xff]
        %v2206 = vld [vmem:[#allocation13 + $0x1ce8] sm:$0xff]
        %v2207 = vld [vmem:[#allocation13 + $0x1cf0] sm:$0xff]
        %v2208 = vld [vmem:[#allocation13 + $0x1cf8] sm:$0xff]
        %v2209 = vld [vmem:[#allocation13 + $0x1d00] sm:$0xff]
        %v2210 = vld [vmem:[#allocation13 + $0x1d08] sm:$0xff]
        %v2211 = vld [vmem:[#allocation13 + $0x1d10] sm:$0xff]
        %v2212 = vld [vmem:[#allocation13 + $0x1d18] sm:$0xff]
        %v2213 = vld [vmem:[#allocation13 + $0x1d20] sm:$0xff]
        %v2214 = vld [vmem:[#allocation13 + $0x1d28] sm:$0xff]
        %v2215 = vld [vmem:[#allocation13 + $0x1d30] sm:$0xff]
        %v2216 = vld [vmem:[#allocation13 + $0x1d38] sm:$0xff]
        %v2217 = vld [vmem:[#allocation13 + $0x1d40] sm:$0xff]
        %v2218 = vld [vmem:[#allocation13 + $0x1d48] sm:$0xff]
        %v2219 = vld [vmem:[#allocation13 + $0x1d50] sm:$0xff]
        %v2220 = vld [vmem:[#allocation13 + $0x1d58] sm:$0xff]
        %v2221 = vld [vmem:[#allocation13 + $0x1d60] sm:$0xff]
        %v2222 = vld [vmem:[#allocation13 + $0x1d68] sm:$0xff]
        %v2223 = vld [vmem:[#allocation13 + $0x1d70] sm:$0xff]
        %v2224 = vld [vmem:[#allocation13 + $0x1d78] sm:$0xff]
        %v2225 = vld [vmem:[#allocation13 + $0x1d80] sm:$0xff]
        %v2226 = vld [vmem:[#allocation13 + $0x1d88] sm:$0xff]
        %v2227 = vld [vmem:[#allocation13 + $0x1d90] sm:$0xff]
        %v2228 = vld [vmem:[#allocation13 + $0x1d98] sm:$0xff]
        %v2229 = vld [vmem:[#allocation13 + $0x1da0] sm:$0xff]
        %v2230 = vld [vmem:[#allocation13 + $0x1da8] sm:$0xff]
        %v2231 = vld [vmem:[#allocation13 + $0x1db0] sm:$0xff]
        %v2232 = vld [vmem:[#allocation13 + $0x1db8] sm:$0xff]
        %v2233 = vld [vmem:[#allocation13 + $0x1dc0] sm:$0xff]
        %v2234 = vld [vmem:[#allocation13 + $0x1dc8] sm:$0xff]
        %v2235 = vld [vmem:[#allocation13 + $0x1dd0] sm:$0xff]
        %v2236 = vld [vmem:[#allocation13 + $0x1dd8] sm:$0xff]
        %v2237 = vld [vmem:[#allocation13 + $0x1de0] sm:$0xff]
        %v2238 = vld [vmem:[#allocation13 + $0x1de8] sm:$0xff]
        %v2239 = vld [vmem:[#allocation13 + $0x1df0] sm:$0xff]
        %v2240 = vld [vmem:[#allocation13 + $0x1df8] sm:$0xff]
        %v2241 = vld [vmem:[#allocation13 + $0x1e00] sm:$0xff]
        %v2242 = vld [vmem:[#allocation13 + $0x1e08] sm:$0xff]
        %v2243 = vld [vmem:[#allocation13 + $0x1e10] sm:$0xff]
        %v2244 = vld [vmem:[#allocation13 + $0x1e18] sm:$0xff]
        %v2245 = vld [vmem:[#allocation13 + $0x1e20] sm:$0xff]
        %v2246 = vld [vmem:[#allocation13 + $0x1e28] sm:$0xff]
        %v2247 = vld [vmem:[#allocation13 + $0x1e30] sm:$0xff]
        %v2248 = vld [vmem:[#allocation13 + $0x1e38] sm:$0xff]
        %v2249 = vld [vmem:[#allocation13 + $0x1e40] sm:$0xff]
        %v2250 = vld [vmem:[#allocation13 + $0x1e48] sm:$0xff]
        %v2251 = vld [vmem:[#allocation13 + $0x1e50] sm:$0xff]
        %v2252 = vld [vmem:[#allocation13 + $0x1e58] sm:$0xff]
        %v2253 = vld [vmem:[#allocation13 + $0x1e60] sm:$0xff]
        %v2254 = vld [vmem:[#allocation13 + $0x1e68] sm:$0xff]
        %v2255 = vld [vmem:[#allocation13 + $0x1e70] sm:$0xff]
        %v2256 = vld [vmem:[#allocation13 + $0x1e78] sm:$0xff]
        %v2257 = vld [vmem:[#allocation13 + $0x1e80] sm:$0xff]
        %v2258 = vld [vmem:[#allocation13 + $0x1e88] sm:$0xff]
        %v2259 = vld [vmem:[#allocation13 + $0x1e90] sm:$0xff]
        %v2260 = vld [vmem:[#allocation13 + $0x1e98] sm:$0xff]
        %v2261 = vld [vmem:[#allocation13 + $0x1ea0] sm:$0xff]
        %v2262 = vld [vmem:[#allocation13 + $0x1ea8] sm:$0xff]
        %v2263 = vld [vmem:[#allocation13 + $0x1eb0] sm:$0xff]
        %v2264 = vld [vmem:[#allocation13 + $0x1eb8] sm:$0xff]
        %v2265 = vld [vmem:[#allocation13 + $0x1ec0] sm:$0xff]
        %v2266 = vld [vmem:[#allocation13 + $0x1ec8] sm:$0xff]
        %v2267 = vld [vmem:[#allocation13 + $0x1ed0] sm:$0xff]
        %v2268 = vld [vmem:[#allocation13 + $0x1ed8] sm:$0xff]
        %v2269 = vld [vmem:[#allocation13 + $0x1ee0] sm:$0xff]
        %v2270 = vld [vmem:[#allocation13 + $0x1ee8] sm:$0xff]
        %v2271 = vld [vmem:[#allocation13 + $0x1ef0] sm:$0xff]
        %v2272 = vld [vmem:[#allocation13 + $0x1ef8] sm:$0xff]
        %v2273 = vld [vmem:[#allocation13 + $0x1f00] sm:$0xff]
        %v2274 = vld [vmem:[#allocation13 + $0x1f08] sm:$0xff]
        %v2275 = vld [vmem:[#allocation13 + $0x1f10] sm:$0xff]
        %v2276 = vld [vmem:[#allocation13 + $0x1f18] sm:$0xff]
        %v2277 = vld [vmem:[#allocation13 + $0x1f20] sm:$0xff]
        %v2278 = vld [vmem:[#allocation13 + $0x1f28] sm:$0xff]
        %v2279 = vld [vmem:[#allocation13 + $0x1f30] sm:$0xff]
        %v2280 = vld [vmem:[#allocation13 + $0x1f38] sm:$0xff]
        %v2281 = vld [vmem:[#allocation13 + $0x1f40] sm:$0xff]
        %v2282 = vld [vmem:[#allocation13 + $0x1f48] sm:$0xff]
        %v2283 = vld [vmem:[#allocation13 + $0x1f50] sm:$0xff]
        %v2284 = vld [vmem:[#allocation13 + $0x1f58] sm:$0xff]
        %v2285 = vld [vmem:[#allocation13 + $0x1f60] sm:$0xff]
        %v2286 = vld [vmem:[#allocation13 + $0x1f68] sm:$0xff]
        %v2287 = vld [vmem:[#allocation13 + $0x1f70] sm:$0xff]
        %v2288 = vld [vmem:[#allocation13 + $0x1f78] sm:$0xff]
        %v2289 = vld [vmem:[#allocation13 + $0x1f80] sm:$0xff]
        %v2290 = vld [vmem:[#allocation13 + $0x1f88] sm:$0xff]
        %v2291 = vld [vmem:[#allocation13 + $0x1f90] sm:$0xff]
        %v2292 = vld [vmem:[#allocation13 + $0x1f98] sm:$0xff]
        %v2293 = vld [vmem:[#allocation13 + $0x1fa0] sm:$0xff]
        %v2294 = vld [vmem:[#allocation13 + $0x1fa8] sm:$0xff]
        %v2295 = vld [vmem:[#allocation13 + $0x1fb0] sm:$0xff]
        %v2296 = vld [vmem:[#allocation13 + $0x1fb8] sm:$0xff]
        %v2297 = vld [vmem:[#allocation13 + $0x1fc0] sm:$0xff]
        %v2298 = vld [vmem:[#allocation13 + $0x1fc8] sm:$0xff]
        %v2299 = vld [vmem:[#allocation13 + $0x1fd0] sm:$0xff]
        %v2300 = vld [vmem:[#allocation13 + $0x1fd8] sm:$0xff]
        %v2301 = vld [vmem:[#allocation13 + $0x1fe0] sm:$0xff]
        %v2302 = vld [vmem:[#allocation13 + $0x1fe8] sm:$0xff]
        %v2303 = vld [vmem:[#allocation13 + $0x1ff0] sm:$0xff]
        %v2304 = vld [vmem:[#allocation13 + $0x1ff8] sm:$0xff]
        %v2306 = vcombine.high %v607, %v607
        %v2308 = vunpack.c.l.s4 1983009808
        %v2309 = vunpack.c.0.s8 %v2308
        %v2310 = vlaneseq
        %v2311 = vshrl.u32 %v2310, 7
        %v2312 = vsub.s32 %v2309, %v2311
        %v2313 = vrot.slane %v607, %v2312
        %v2315 = vunpack.c.l.s4 1983009808
        %v2316 = vunpack.c.0.s8 %v2315
        %v2317 = vlaneseq
        %v2318 = vshrl.u32 %v2317, 7
        %v2319 = vsub.s32 %v2316, %v2318
        %v2320 = vrot.slane %v2306, %v2319
        %v2321 = vcombine.high %v2313, %v2313
        %v2322 = vcombine.high %v2320, %v2320
        %2327 = vmatprep.subr.mxu0 %v1282
        %2328 = vmatpush1.msra.mxu0 %v1281
        %2329 = vmatprep.subr.mxu0 %v1298
        %2330 = vmatpush1.msra.mxu0 %v1297
        %2331 = vmatprep.subr.mxu0 %v1314
        %2332 = vmatpush1.msra.mxu0 %v1313
        %2333 = vmatprep.subr.mxu0 %v1330
        %2334 = vmatpush1.msra.mxu0 %v1329
        %2335 = vmatprep.subr.mxu0 %v1346
        %2336 = vmatpush1.msra.mxu0 %v1345
        %2337 = vmatprep.subr.mxu0 %v1362
        %2338 = vmatpush1.msra.mxu0 %v1361
        %2339 = vmatprep.subr.mxu0 %v1378
        %2340 = vmatpush1.msra.mxu0 %v1377
        %2341 = vmatprep.subr.mxu0 %v1394
        %2342 = vmatpush1.msra.mxu0 %v1393
        %2343 = vmatprep.subr.mxu0 %v1410
        %2344 = vmatpush1.msra.mxu0 %v1409
        %2345 = vmatprep.subr.mxu0 %v1426
        %2346 = vmatpush1.msra.mxu0 %v1425
        %2347 = vmatprep.subr.mxu0 %v1442
        %2348 = vmatpush1.msra.mxu0 %v1441
        %2349 = vmatprep.subr.mxu0 %v1458
        %2350 = vmatpush1.msra.mxu0 %v1457
        %2351 = vmatprep.subr.mxu0 %v1474
        %2352 = vmatpush1.msra.mxu0 %v1473
        %2353 = vmatprep.subr.mxu0 %v1490
        %2354 = vmatpush1.msra.mxu0 %v1489
        %2355 = vmatprep.subr.mxu0 %v1506
        %2356 = vmatpush1.msra.mxu0 %v1505
        %2357 = vmatprep.subr.mxu0 %v1522
        %2358 = vmatpush1.msra.mxu0 %v1521
        %2359 = vmatprep.subr.mxu0 %v1538
        %2360 = vmatpush1.msra.mxu0 %v1537
        %2361 = vmatprep.subr.mxu0 %v1554
        %2362 = vmatpush1.msra.mxu0 %v1553
        %2363 = vmatprep.subr.mxu0 %v1570
        %2364 = vmatpush1.msra.mxu0 %v1569
        %2365 = vmatprep.subr.mxu0 %v1586
        %2366 = vmatpush1.msra.mxu0 %v1585
        %2367 = vmatprep.subr.mxu0 %v1602
        %2368 = vmatpush1.msra.mxu0 %v1601
        %2369 = vmatprep.subr.mxu0 %v1618
        %2370 = vmatpush1.msra.mxu0 %v1617
        %2371 = vmatprep.subr.mxu0 %v1634
        %2372 = vmatpush1.msra.mxu0 %v1633
        %2373 = vmatprep.subr.mxu0 %v1650
        %2374 = vmatpush1.msra.mxu0 %v1649
        %2375 = vmatprep.subr.mxu0 %v1666
        %2376 = vmatpush1.msra.mxu0 %v1665
        %2377 = vmatprep.subr.mxu0 %v1682
        %2378 = vmatpush1.msra.mxu0 %v1681
        %2379 = vmatprep.subr.mxu0 %v1698
        %2380 = vmatpush1.msra.mxu0 %v1697
        %2381 = vmatprep.subr.mxu0 %v1714
        %2382 = vmatpush1.msra.mxu0 %v1713
        %2383 = vmatprep.subr.mxu0 %v1730
        %2384 = vmatpush1.msra.mxu0 %v1729
        %2385 = vmatprep.subr.mxu0 %v1746
        %2386 = vmatpush1.msra.mxu0 %v1745
        %2387 = vmatprep.subr.mxu0 %v1762
        %2388 = vmatpush1.msra.mxu0 %v1761
        %2389 = vmatprep.subr.mxu0 %v1778
        %2390 = vmatpush1.msra.mxu0 %v1777
        %2391 = vmatprep.mubr.f32.mxu0 %v2321
        %2392 = vmatmul.mubr.f32.gmra.mrb[0].mxu0 %v2313
        %v2393 = vpop.f32.mrb[0].mxu0
        %v2394 = vadd.f32 0.0, %v2393
        %v2395 = vpop.f32.mrb[0].mxu0
        %v2396 = vadd.f32 0.0, %v2395
        %2397 = vdwg.mxu0
        %2398 = vmatprep.subr.mxu0 %v1794
        %2399 = vmatpush1.msra.mxu0 %v1793
        %2400 = vmatprep.subr.mxu0 %v1810
        %2401 = vmatpush1.msra.mxu0 %v1809
        %2402 = vmatprep.subr.mxu0 %v1826
        %2403 = vmatpush1.msra.mxu0 %v1825
        %2404 = vmatprep.subr.mxu0 %v1842
        %2405 = vmatpush1.msra.mxu0 %v1841
        %2406 = vmatprep.subr.mxu0 %v1858
        %2407 = vmatpush1.msra.mxu0 %v1857
        %2408 = vmatprep.subr.mxu0 %v1874
        %2409 = vmatpush1.msra.mxu0 %v1873
        %2410 = vmatprep.subr.mxu0 %v1890
        %2411 = vmatpush1.msra.mxu0 %v1889
        %2412 = vmatprep.subr.mxu0 %v1906
        %2413 = vmatpush1.msra.mxu0 %v1905
        %2414 = vmatprep.subr.mxu0 %v1922
        %2415 = vmatpush1.msra.mxu0 %v1921
        %2416 = vmatprep.subr.mxu0 %v1938
        %2417 = vmatpush1.msra.mxu0 %v1937
        %2418 = vmatprep.subr.mxu0 %v1954
        %2419 = vmatpush1.msra.mxu0 %v1953
        %2420 = vmatprep.subr.mxu0 %v1970
        %2421 = vmatpush1.msra.mxu0 %v1969
        %2422 = vmatprep.subr.mxu0 %v1986
        %2423 = vmatpush1.msra.mxu0 %v1985
        %2424 = vmatprep.subr.mxu0 %v2002
        %2425 = vmatpush1.msra.mxu0 %v2001
        %2426 = vmatprep.subr.mxu0 %v2018
        %2427 = vmatpush1.msra.mxu0 %v2017
        %2428 = vmatprep.subr.mxu0 %v2034
        %2429 = vmatpush1.msra.mxu0 %v2033
        %2430 = vmatprep.subr.mxu0 %v2050
        %2431 = vmatpush1.msra.mxu0 %v2049
        %2432 = vmatprep.subr.mxu0 %v2066
        %2433 = vmatpush1.msra.mxu0 %v2065
        %2434 = vmatprep.subr.mxu0 %v2082
        %2435 = vmatpush1.msra.mxu0 %v2081
        %2436 = vmatprep.subr.mxu0 %v2098
        %2437 = vmatpush1.msra.mxu0 %v2097
        %2438 = vmatprep.subr.mxu0 %v2114
        %2439 = vmatpush1.msra.mxu0 %v2113
        %2440 = vmatprep.subr.mxu0 %v2130
        %2441 = vmatpush1.msra.mxu0 %v2129
        %2442 = vmatprep.subr.mxu0 %v2146
        %2443 = vmatpush1.msra.mxu0 %v2145
        %2444 = vmatprep.subr.mxu0 %v2162
        %2445 = vmatpush1.msra.mxu0 %v2161
        %2446 = vmatprep.subr.mxu0 %v2178
        %2447 = vmatpush1.msra.mxu0 %v2177
        %2448 = vmatprep.subr.mxu0 %v2194
        %2449 = vmatpush1.msra.mxu0 %v2193
        %2450 = vmatprep.subr.mxu0 %v2210
        %2451 = vmatpush1.msra.mxu0 %v2209
        %2452 = vmatprep.subr.mxu0 %v2226
        %2453 = vmatpush1.msra.mxu0 %v2225
        %2454 = vmatprep.subr.mxu0 %v2242
        %2455 = vmatpush1.msra.mxu0 %v2241
        %2456 = vmatprep.subr.mxu0 %v2258
        %2457 = vmatpush1.msra.mxu0 %v2257
        %2458 = vmatprep.subr.mxu0 %v2274
        %2459 = vmatpush1.msra.mxu0 %v2273
        %2460 = vmatprep.subr.mxu0 %v2290
        %2461 = vmatpush1.msra.mxu0 %v2289
        %2462 = vmatprep.mubr.f32.mxu0 %v2322
        %2463 = vmatmul.mubr.f32.gmra.mrb[0].mxu0 %v2320
        %v2464 = vpop.f32.mrb[0].mxu0
        %v2465 = vadd.f32 %v2394, %v2464
        %v2466 = vpop.f32.mrb[0].mxu0
        %v2467 = vadd.f32 %v2396, %v2466
        %2468 = vdwg.mxu0
        %2469 = vmatprep.subr.mxu0 %v1284
        %2470 = vmatpush1.msra.mxu0 %v1283
        %2471 = vmatprep.subr.mxu0 %v1300
        %2472 = vmatpush1.msra.mxu0 %v1299
        %2473 = vmatprep.subr.mxu0 %v1316
        %2474 = vmatpush1.msra.mxu0 %v1315
        %2475 = vmatprep.subr.mxu0 %v1332
        %2476 = vmatpush1.msra.mxu0 %v1331
        %2477 = vmatprep.subr.mxu0 %v1348
        %2478 = vmatpush1.msra.mxu0 %v1347
        %2479 = vmatprep.subr.mxu0 %v1364
        %2480 = vmatpush1.msra.mxu0 %v1363
        %2481 = vmatprep.subr.mxu0 %v1380
        %2482 = vmatpush1.msra.mxu0 %v1379
        %2483 = vmatprep.subr.mxu0 %v1396
        %2484 = vmatpush1.msra.mxu0 %v1395
        %2485 = vmatprep.subr.mxu0 %v1412
        %2486 = vmatpush1.msra.mxu0 %v1411
        %2487 = vmatprep.subr.mxu0 %v1428
        %2488 = vmatpush1.msra.mxu0 %v1427
        %2489 = vmatprep.subr.mxu0 %v1444
        %2490 = vmatpush1.msra.mxu0 %v1443
        %2491 = vmatprep.subr.mxu0 %v1460
        %2492 = vmatpush1.msra.mxu0 %v1459
        %2493 = vmatprep.subr.mxu0 %v1476
        %2494 = vmatpush1.msra.mxu0 %v1475
        %2495 = vmatprep.subr.mxu0 %v1492
        %2496 = vmatpush1.msra.mxu0 %v1491
        %2497 = vmatprep.subr.mxu0 %v1508
        %2498 = vmatpush1.msra.mxu0 %v1507
        %2499 = vmatprep.subr.mxu0 %v1524
        %2500 = vmatpush1.msra.mxu0 %v1523
        %2501 = vmatprep.subr.mxu0 %v1540
        %2502 = vmatpush1.msra.mxu0 %v1539
        %2503 = vmatprep.subr.mxu0 %v1556
        %2504 = vmatpush1.msra.mxu0 %v1555
        %2505 = vmatprep.subr.mxu0 %v1572
        %2506 = vmatpush1.msra.mxu0 %v1571
        %2507 = vmatprep.subr.mxu0 %v1588
        %2508 = vmatpush1.msra.mxu0 %v1587
        %2509 = vmatprep.subr.mxu0 %v1604
        %2510 = vmatpush1.msra.mxu0 %v1603
        %2511 = vmatprep.subr.mxu0 %v1620
        %2512 = vmatpush1.msra.mxu0 %v1619
        %2513 = vmatprep.subr.mxu0 %v1636
        %2514 = vmatpush1.msra.mxu0 %v1635
        %2515 = vmatprep.subr.mxu0 %v1652
        %2516 = vmatpush1.msra.mxu0 %v1651
        %2517 = vmatprep.subr.mxu0 %v1668
        %2518 = vmatpush1.msra.mxu0 %v1667
        %2519 = vmatprep.subr.mxu0 %v1684
        %2520 = vmatpush1.msra.mxu0 %v1683
        %2521 = vmatprep.subr.mxu0 %v1700
        %2522 = vmatpush1.msra.mxu0 %v1699
        %2523 = vmatprep.subr.mxu0 %v1716
        %2524 = vmatpush1.msra.mxu0 %v1715
        %2525 = vmatprep.subr.mxu0 %v1732
        %2526 = vmatpush1.msra.mxu0 %v1731
        %2527 = vmatprep.subr.mxu0 %v1748
        %2528 = vmatpush1.msra.mxu0 %v1747
        %2529 = vmatprep.subr.mxu0 %v1764
        %2530 = vmatpush1.msra.mxu0 %v1763
        %2531 = vmatprep.subr.mxu0 %v1780
        %2532 = vmatpush1.msra.mxu0 %v1779
        %2533 = vmatprep.mubr.f32.mxu0 %v2321
        %2534 = vmatmul.mubr.f32.gmra.mrb[0].mxu0 %v2313
        %v2535 = vpop.f32.mrb[0].mxu0
        %v2536 = vadd.f32 0.0, %v2535
        %v2537 = vpop.f32.mrb[0].mxu0
        %v2538 = vadd.f32 0.0, %v2537
        %2539 = vdwg.mxu0
        %2540 = vmatprep.subr.mxu0 %v1796
        %2541 = vmatpush1.msra.mxu0 %v1795
        %2542 = vmatprep.subr.mxu0 %v1812
        %2543 = vmatpush1.msra.mxu0 %v1811
        %2544 = vmatprep.subr.mxu0 %v1828
        %2545 = vmatpush1.msra.mxu0 %v1827
        %2546 = vmatprep.subr.mxu0 %v1844
        %2547 = vmatpush1.msra.mxu0 %v1843
        %2548 = vmatprep.subr.mxu0 %v1860
        %2549 = vmatpush1.msra.mxu0 %v1859
        %2550 = vmatprep.subr.mxu0 %v1876
        %2551 = vmatpush1.msra.mxu0 %v1875
        %2552 = vmatprep.subr.mxu0 %v1892
        %2553 = vmatpush1.msra.mxu0 %v1891
        %2554 = vmatprep.subr.mxu0 %v1908
        %2555 = vmatpush1.msra.mxu0 %v1907
        %2556 = vmatprep.subr.mxu0 %v1924
        %2557 = vmatpush1.msra.mxu0 %v1923
        %2558 = vmatprep.subr.mxu0 %v1940
        %2559 = vmatpush1.msra.mxu0 %v1939
        %2560 = vmatprep.subr.mxu0 %v1956
        %2561 = vmatpush1.msra.mxu0 %v1955
        %2562 = vmatprep.subr.mxu0 %v1972
        %2563 = vmatpush1.msra.mxu0 %v1971
        %2564 = vmatprep.subr.mxu0 %v1988
        %2565 = vmatpush1.msra.mxu0 %v1987
        %2566 = vmatprep.subr.mxu0 %v2004
        %2567 = vmatpush1.msra.mxu0 %v2003
        %2568 = vmatprep.subr.mxu0 %v2020
        %2569 = vmatpush1.msra.mxu0 %v2019
        %2570 = vmatprep.subr.mxu0 %v2036
        %2571 = vmatpush1.msra.mxu0 %v2035
        %2572 = vmatprep.subr.mxu0 %v2052
        %2573 = vmatpush1.msra.mxu0 %v2051
        %2574 = vmatprep.subr.mxu0 %v2068
        %2575 = vmatpush1.msra.mxu0 %v2067
        %2576 = vmatprep.subr.mxu0 %v2084
        %2577 = vmatpush1.msra.mxu0 %v2083
        %2578 = vmatprep.subr.mxu0 %v2100
        %2579 = vmatpush1.msra.mxu0 %v2099
        %2580 = vmatprep.subr.mxu0 %v2116
        %2581 = vmatpush1.msra.mxu0 %v2115
        %2582 = vmatprep.subr.mxu0 %v2132
        %2583 = vmatpush1.msra.mxu0 %v2131
        %2584 = vmatprep.subr.mxu0 %v2148
        %2585 = vmatpush1.msra.mxu0 %v2147
        %2586 = vmatprep.subr.mxu0 %v2164
        %2587 = vmatpush1.msra.mxu0 %v2163
        %2588 = vmatprep.subr.mxu0 %v2180
        %2589 = vmatpush1.msra.mxu0 %v2179
        %2590 = vmatprep.subr.mxu0 %v2196
        %2591 = vmatpush1.msra.mxu0 %v2195
        %2592 = vmatprep.subr.mxu0 %v2212
        %2593 = vmatpush1.msra.mxu0 %v2211
        %2594 = vmatprep.subr.mxu0 %v2228
        %2595 = vmatpush1.msra.mxu0 %v2227
        %2596 = vmatprep.subr.mxu0 %v2244
        %2597 = vmatpush1.msra.mxu0 %v2243
        %2598 = vmatprep.subr.mxu0 %v2260
        %2599 = vmatpush1.msra.mxu0 %v2259
        %2600 = vmatprep.subr.mxu0 %v2276
        %2601 = vmatpush1.msra.mxu0 %v2275
        %2602 = vmatprep.subr.mxu0 %v2292
        %2603 = vmatpush1.msra.mxu0 %v2291
        %2604 = vmatprep.mubr.f32.mxu0 %v2322
        %2605 = vmatmul.mubr.f32.gmra.mrb[0].mxu0 %v2320
        %v2606 = vpop.f32.mrb[0].mxu0
        %v2607 = vadd.f32 %v2536, %v2606
        %v2608 = vpop.f32.mrb[0].mxu0
        %v2609 = vadd.f32 %v2538, %v2608
        %2610 = vdwg.mxu0
        %2611 = vmatprep.subr.mxu0 %v1286
        %2612 = vmatpush1.msra.mxu0 %v1285
        %2613 = vmatprep.subr.mxu0 %v1302
        %2614 = vmatpush1.msra.mxu0 %v1301
        %2615 = vmatprep.subr.mxu0 %v1318
        %2616 = vmatpush1.msra.mxu0 %v1317
        %2617 = vmatprep.subr.mxu0 %v1334
        %2618 = vmatpush1.msra.mxu0 %v1333
        %2619 = vmatprep.subr.mxu0 %v1350
        %2620 = vmatpush1.msra.mxu0 %v1349
        %2621 = vmatprep.subr.mxu0 %v1366
        %2622 = vmatpush1.msra.mxu0 %v1365
        %2623 = vmatprep.subr.mxu0 %v1382
        %2624 = vmatpush1.msra.mxu0 %v1381
        %2625 = vmatprep.subr.mxu0 %v1398
        %2626 = vmatpush1.msra.mxu0 %v1397
        %2627 = vmatprep.subr.mxu0 %v1414
        %2628 = vmatpush1.msra.mxu0 %v1413
        %2629 = vmatprep.subr.mxu0 %v1430
        %2630 = vmatpush1.msra.mxu0 %v1429
        %2631 = vmatprep.subr.mxu0 %v1446
        %2632 = vmatpush1.msra.mxu0 %v1445
        %2633 = vmatprep.subr.mxu0 %v1462
        %2634 = vmatpush1.msra.mxu0 %v1461
        %2635 = vmatprep.subr.mxu0 %v1478
        %2636 = vmatpush1.msra.mxu0 %v1477
        %2637 = vmatprep.subr.mxu0 %v1494
        %2638 = vmatpush1.msra.mxu0 %v1493
        %2639 = vmatprep.subr.mxu0 %v1510
        %2640 = vmatpush1.msra.mxu0 %v1509
        %2641 = vmatprep.subr.mxu0 %v1526
        %2642 = vmatpush1.msra.mxu0 %v1525
        %2643 = vmatprep.subr.mxu0 %v1542
        %2644 = vmatpush1.msra.mxu0 %v1541
        %2645 = vmatprep.subr.mxu0 %v1558
        %2646 = vmatpush1.msra.mxu0 %v1557
        %2647 = vmatprep.subr.mxu0 %v1574
        %2648 = vmatpush1.msra.mxu0 %v1573
        %2649 = vmatprep.subr.mxu0 %v1590
        %2650 = vmatpush1.msra.mxu0 %v1589
        %2651 = vmatprep.subr.mxu0 %v1606
        %2652 = vmatpush1.msra.mxu0 %v1605
        %2653 = vmatprep.subr.mxu0 %v1622
        %2654 = vmatpush1.msra.mxu0 %v1621
        %2655 = vmatprep.subr.mxu0 %v1638
        %2656 = vmatpush1.msra.mxu0 %v1637
        %2657 = vmatprep.subr.mxu0 %v1654
        %2658 = vmatpush1.msra.mxu0 %v1653
        %2659 = vmatprep.subr.mxu0 %v1670
        %2660 = vmatpush1.msra.mxu0 %v1669
        %2661 = vmatprep.subr.mxu0 %v1686
        %2662 = vmatpush1.msra.mxu0 %v1685
        %2663 = vmatprep.subr.mxu0 %v1702
        %2664 = vmatpush1.msra.mxu0 %v1701
        %2665 = vmatprep.subr.mxu0 %v1718
        %2666 = vmatpush1.msra.mxu0 %v1717
        %2667 = vmatprep.subr.mxu0 %v1734
        %2668 = vmatpush1.msra.mxu0 %v1733
        %2669 = vmatprep.subr.mxu0 %v1750
        %2670 = vmatpush1.msra.mxu0 %v1749
        %2671 = vmatprep.subr.mxu0 %v1766
        %2672 = vmatpush1.msra.mxu0 %v1765
        %2673 = vmatprep.subr.mxu0 %v1782
        %2674 = vmatpush1.msra.mxu0 %v1781
        %2675 = vmatprep.mubr.f32.mxu0 %v2321
        %2676 = vmatmul.mubr.f32.gmra.mrb[0].mxu0 %v2313
        %v2677 = vpop.f32.mrb[0].mxu0
        %v2678 = vadd.f32 0.0, %v2677
        %v2679 = vpop.f32.mrb[0].mxu0
        %v2680 = vadd.f32 0.0, %v2679
        %2681 = vdwg.mxu0
        %2682 = vmatprep.subr.mxu0 %v1798
        %2683 = vmatpush1.msra.mxu0 %v1797
        %2684 = vmatprep.subr.mxu0 %v1814
        %2685 = vmatpush1.msra.mxu0 %v1813
        %2686 = vmatprep.subr.mxu0 %v1830
        %2687 = vmatpush1.msra.mxu0 %v1829
        %2688 = vmatprep.subr.mxu0 %v1846
        %2689 = vmatpush1.msra.mxu0 %v1845
        %2690 = vmatprep.subr.mxu0 %v1862
        %2691 = vmatpush1.msra.mxu0 %v1861
        %2692 = vmatprep.subr.mxu0 %v1878
        %2693 = vmatpush1.msra.mxu0 %v1877
        %2694 = vmatprep.subr.mxu0 %v1894
        %2695 = vmatpush1.msra.mxu0 %v1893
        %2696 = vmatprep.subr.mxu0 %v1910
        %2697 = vmatpush1.msra.mxu0 %v1909
        %2698 = vmatprep.subr.mxu0 %v1926
        %2699 = vmatpush1.msra.mxu0 %v1925
        %2700 = vmatprep.subr.mxu0 %v1942
        %2701 = vmatpush1.msra.mxu0 %v1941
        %2702 = vmatprep.subr.mxu0 %v1958
        %2703 = vmatpush1.msra.mxu0 %v1957
        %2704 = vmatprep.subr.mxu0 %v1974
        %2705 = vmatpush1.msra.mxu0 %v1973
        %2706 = vmatprep.subr.mxu0 %v1990
        %2707 = vmatpush1.msra.mxu0 %v1989
        %2708 = vmatprep.subr.mxu0 %v2006
        %2709 = vmatpush1.msra.mxu0 %v2005
        %2710 = vmatprep.subr.mxu0 %v2022
        %2711 = vmatpush1.msra.mxu0 %v2021
        %2712 = vmatprep.subr.mxu0 %v2038
        %2713 = vmatpush1.msra.mxu0 %v2037
        %2714 = vmatprep.subr.mxu0 %v2054
        %2715 = vmatpush1.msra.mxu0 %v2053
        %2716 = vmatprep.subr.mxu0 %v2070
        %2717 = vmatpush1.msra.mxu0 %v2069
        %2718 = vmatprep.subr.mxu0 %v2086
        %2719 = vmatpush1.msra.mxu0 %v2085
        %2720 = vmatprep.subr.mxu0 %v2102
        %2721 = vmatpush1.msra.mxu0 %v2101
        %2722 = vmatprep.subr.mxu0 %v2118
        %2723 = vmatpush1.msra.mxu0 %v2117
        %2724 = vmatprep.subr.mxu0 %v2134
        %2725 = vmatpush1.msra.mxu0 %v2133
        %2726 = vmatprep.subr.mxu0 %v2150
        %2727 = vmatpush1.msra.mxu0 %v2149
        %2728 = vmatprep.subr.mxu0 %v2166
        %2729 = vmatpush1.msra.mxu0 %v2165
        %2730 = vmatprep.subr.mxu0 %v2182
        %2731 = vmatpush1.msra.mxu0 %v2181
        %2732 = vmatprep.subr.mxu0 %v2198
        %2733 = vmatpush1.msra.mxu0 %v2197
        %2734 = vmatprep.subr.mxu0 %v2214
        %2735 = vmatpush1.msra.mxu0 %v2213
        %2736 = vmatprep.subr.mxu0 %v2230
        %2737 = vmatpush1.msra.mxu0 %v2229
        %2738 = vmatprep.subr.mxu0 %v2246
        %2739 = vmatpush1.msra.mxu0 %v2245
        %2740 = vmatprep.subr.mxu0 %v2262
        %2741 = vmatpush1.msra.mxu0 %v2261
        %2742 = vmatprep.subr.mxu0 %v2278
        %2743 = vmatpush1.msra.mxu0 %v2277
        %2744 = vmatprep.subr.mxu0 %v2294
        %2745 = vmatpush1.msra.mxu0 %v2293
        %2746 = vmatprep.mubr.f32.mxu0 %v2322
        %2747 = vmatmul.mubr.f32.gmra.mrb[0].mxu0 %v2320
        %v2748 = vpop.f32.mrb[0].mxu0
        %v2749 = vadd.f32 %v2678, %v2748
        %v2750 = vpop.f32.mrb[0].mxu0
        %v2751 = vadd.f32 %v2680, %v2750
        %2752 = vdwg.mxu0
        %2753 = vmatprep.subr.mxu0 %v1288
        %2754 = vmatpush1.msra.mxu0 %v1287
        %2755 = vmatprep.subr.mxu0 %v1304
        %2756 = vmatpush1.msra.mxu0 %v1303
        %2757 = vmatprep.subr.mxu0 %v1320
        %2758 = vmatpush1.msra.mxu0 %v1319
        %2759 = vmatprep.subr.mxu0 %v1336
        %2760 = vmatpush1.msra.mxu0 %v1335
        %2761 = vmatprep.subr.mxu0 %v1352
        %2762 = vmatpush1.msra.mxu0 %v1351
        %2763 = vmatprep.subr.mxu0 %v1368
        %2764 = vmatpush1.msra.mxu0 %v1367
        %2765 = vmatprep.subr.mxu0 %v1384
        %2766 = vmatpush1.msra.mxu0 %v1383
        %2767 = vmatprep.subr.mxu0 %v1400
        %2768 = vmatpush1.msra.mxu0 %v1399
        %2769 = vmatprep.subr.mxu0 %v1416
        %2770 = vmatpush1.msra.mxu0 %v1415
        %2771 = vmatprep.subr.mxu0 %v1432
        %2772 = vmatpush1.msra.mxu0 %v1431
        %2773 = vmatprep.subr.mxu0 %v1448
        %2774 = vmatpush1.msra.mxu0 %v1447
        %2775 = vmatprep.subr.mxu0 %v1464
        %2776 = vmatpush1.msra.mxu0 %v1463
        %2777 = vmatprep.subr.mxu0 %v1480
        %2778 = vmatpush1.msra.mxu0 %v1479
        %2779 = vmatprep.subr.mxu0 %v1496
        %2780 = vmatpush1.msra.mxu0 %v1495
        %2781 = vmatprep.subr.mxu0 %v1512
        %2782 = vmatpush1.msra.mxu0 %v1511
        %2783 = vmatprep.subr.mxu0 %v1528
        %2784 = vmatpush1.msra.mxu0 %v1527
        %2785 = vmatprep.subr.mxu0 %v1544
        %2786 = vmatpush1.msra.mxu0 %v1543
        %2787 = vmatprep.subr.mxu0 %v1560
        %2788 = vmatpush1.msra.mxu0 %v1559
        %2789 = vmatprep.subr.mxu0 %v1576
        %2790 = vmatpush1.msra.mxu0 %v1575
        %2791 = vmatprep.subr.mxu0 %v1592
        %2792 = vmatpush1.msra.mxu0 %v1591
        %2793 = vmatprep.subr.mxu0 %v1608
        %2794 = vmatpush1.msra.mxu0 %v1607
        %2795 = vmatprep.subr.mxu0 %v1624
        %2796 = vmatpush1.msra.mxu0 %v1623
        %2797 = vmatprep.subr.mxu0 %v1640
        %2798 = vmatpush1.msra.mxu0 %v1639
        %2799 = vmatprep.subr.mxu0 %v1656
        %2800 = vmatpush1.msra.mxu0 %v1655
        %2801 = vmatprep.subr.mxu0 %v1672
        %2802 = vmatpush1.msra.mxu0 %v1671
        %2803 = vmatprep.subr.mxu0 %v1688
        %2804 = vmatpush1.msra.mxu0 %v1687
        %2805 = vmatprep.subr.mxu0 %v1704
        %2806 = vmatpush1.msra.mxu0 %v1703
        %2807 = vmatprep.subr.mxu0 %v1720
        %2808 = vmatpush1.msra.mxu0 %v1719
        %2809 = vmatprep.subr.mxu0 %v1736
        %2810 = vmatpush1.msra.mxu0 %v1735
        %2811 = vmatprep.subr.mxu0 %v1752
        %2812 = vmatpush1.msra.mxu0 %v1751
        %2813 = vmatprep.subr.mxu0 %v1768
        %2814 = vmatpush1.msra.mxu0 %v1767
        %2815 = vmatprep.subr.mxu0 %v1784
        %2816 = vmatpush1.msra.mxu0 %v1783
        %2817 = vmatprep.mubr.f32.mxu0 %v2321
        %2818 = vmatmul.mubr.f32.gmra.mrb[0].mxu0 %v2313
        %v2819 = vpop.f32.mrb[0].mxu0
        %v2820 = vadd.f32 0.0, %v2819
        %v2821 = vpop.f32.mrb[0].mxu0
        %v2822 = vadd.f32 0.0, %v2821
        %2823 = vdwg.mxu0
        %2824 = vmatprep.subr.mxu0 %v1800
        %2825 = vmatpush1.msra.mxu0 %v1799
        %2826 = vmatprep.subr.mxu0 %v1816
        %2827 = vmatpush1.msra.mxu0 %v1815
        %2828 = vmatprep.subr.mxu0 %v1832
        %2829 = vmatpush1.msra.mxu0 %v1831
        %2830 = vmatprep.subr.mxu0 %v1848
        %2831 = vmatpush1.msra.mxu0 %v1847
        %2832 = vmatprep.subr.mxu0 %v1864
        %2833 = vmatpush1.msra.mxu0 %v1863
        %2834 = vmatprep.subr.mxu0 %v1880
        %2835 = vmatpush1.msra.mxu0 %v1879
        %2836 = vmatprep.subr.mxu0 %v1896
        %2837 = vmatpush1.msra.mxu0 %v1895
        %2838 = vmatprep.subr.mxu0 %v1912
        %2839 = vmatpush1.msra.mxu0 %v1911
        %2840 = vmatprep.subr.mxu0 %v1928
        %2841 = vmatpush1.msra.mxu0 %v1927
        %2842 = vmatprep.subr.mxu0 %v1944
        %2843 = vmatpush1.msra.mxu0 %v1943
        %2844 = vmatprep.subr.mxu0 %v1960
        %2845 = vmatpush1.msra.mxu0 %v1959
        %2846 = vmatprep.subr.mxu0 %v1976
        %2847 = vmatpush1.msra.mxu0 %v1975
        %2848 = vmatprep.subr.mxu0 %v1992
        %2849 = vmatpush1.msra.mxu0 %v1991
        %2850 = vmatprep.subr.mxu0 %v2008
        %2851 = vmatpush1.msra.mxu0 %v2007
        %2852 = vmatprep.subr.mxu0 %v2024
        %2853 = vmatpush1.msra.mxu0 %v2023
        %2854 = vmatprep.subr.mxu0 %v2040
        %2855 = vmatpush1.msra.mxu0 %v2039
        %2856 = vmatprep.subr.mxu0 %v2056
        %2857 = vmatpush1.msra.mxu0 %v2055
        %2858 = vmatprep.subr.mxu0 %v2072
        %2859 = vmatpush1.msra.mxu0 %v2071
        %2860 = vmatprep.subr.mxu0 %v2088
        %2861 = vmatpush1.msra.mxu0 %v2087
        %2862 = vmatprep.subr.mxu0 %v2104
        %2863 = vmatpush1.msra.mxu0 %v2103
        %2864 = vmatprep.subr.mxu0 %v2120
        %2865 = vmatpush1.msra.mxu0 %v2119
        %2866 = vmatprep.subr.mxu0 %v2136
        %2867 = vmatpush1.msra.mxu0 %v2135
        %2868 = vmatprep.subr.mxu0 %v2152
        %2869 = vmatpush1.msra.mxu0 %v2151
        %2870 = vmatprep.subr.mxu0 %v2168
        %2871 = vmatpush1.msra.mxu0 %v2167
        %2872 = vmatprep.subr.mxu0 %v2184
        %2873 = vmatpush1.msra.mxu0 %v2183
        %2874 = vmatprep.subr.mxu0 %v2200
        %2875 = vmatpush1.msra.mxu0 %v2199
        %2876 = vmatprep.subr.mxu0 %v2216
        %2877 = vmatpush1.msra.mxu0 %v2215
        %2878 = vmatprep.subr.mxu0 %v2232
        %2879 = vmatpush1.msra.mxu0 %v2231
        %2880 = vmatprep.subr.mxu0 %v2248
        %2881 = vmatpush1.msra.mxu0 %v2247
        %2882 = vmatprep.subr.mxu0 %v2264
        %2883 = vmatpush1.msra.mxu0 %v2263
        %2884 = vmatprep.subr.mxu0 %v2280
        %2885 = vmatpush1.msra.mxu0 %v2279
        %2886 = vmatprep.subr.mxu0 %v2296
        %2887 = vmatpush1.msra.mxu0 %v2295
        %2888 = vmatprep.mubr.f32.mxu0 %v2322
        %2889 = vmatmul.mubr.f32.gmra.mrb[0].mxu0 %v2320
        %v2890 = vpop.f32.mrb[0].mxu0
        %v2891 = vadd.f32 %v2820, %v2890
        %v2892 = vpop.f32.mrb[0].mxu0
        %v2893 = vadd.f32 %v2822, %v2892
        %2894 = vdwg.mxu0
        %2895 = vmatprep.subr.mxu0 %v1290
        %2896 = vmatpush1.msra.mxu0 %v1289
        %2897 = vmatprep.subr.mxu0 %v1306
        %2898 = vmatpush1.msra.mxu0 %v1305
        %2899 = vmatprep.subr.mxu0 %v1322
        %2900 = vmatpush1.msra.mxu0 %v1321
        %2901 = vmatprep.subr.mxu0 %v1338
        %2902 = vmatpush1.msra.mxu0 %v1337
        %2903 = vmatprep.subr.mxu0 %v1354
        %2904 = vmatpush1.msra.mxu0 %v1353
        %2905 = vmatprep.subr.mxu0 %v1370
        %2906 = vmatpush1.msra.mxu0 %v1369
        %2907 = vmatprep.subr.mxu0 %v1386
        %2908 = vmatpush1.msra.mxu0 %v1385
        %2909 = vmatprep.subr.mxu0 %v1402
        %2910 = vmatpush1.msra.mxu0 %v1401
        %2911 = vmatprep.subr.mxu0 %v1418
        %2912 = vmatpush1.msra.mxu0 %v1417
        %2913 = vmatprep.subr.mxu0 %v1434
        %2914 = vmatpush1.msra.mxu0 %v1433
        %2915 = vmatprep.subr.mxu0 %v1450
        %2916 = vmatpush1.msra.mxu0 %v1449
        %2917 = vmatprep.subr.mxu0 %v1466
        %2918 = vmatpush1.msra.mxu0 %v1465
        %2919 = vmatprep.subr.mxu0 %v1482
        %2920 = vmatpush1.msra.mxu0 %v1481
        %2921 = vmatprep.subr.mxu0 %v1498
        %2922 = vmatpush1.msra.mxu0 %v1497
        %2923 = vmatprep.subr.mxu0 %v1514
        %2924 = vmatpush1.msra.mxu0 %v1513
        %2925 = vmatprep.subr.mxu0 %v1530
        %2926 = vmatpush1.msra.mxu0 %v1529
        %2927 = vmatprep.subr.mxu0 %v1546
        %2928 = vmatpush1.msra.mxu0 %v1545
        %2929 = vmatprep.subr.mxu0 %v1562
        %2930 = vmatpush1.msra.mxu0 %v1561
        %2931 = vmatprep.subr.mxu0 %v1578
        %2932 = vmatpush1.msra.mxu0 %v1577
        %2933 = vmatprep.subr.mxu0 %v1594
        %2934 = vmatpush1.msra.mxu0 %v1593
        %2935 = vmatprep.subr.mxu0 %v1610
        %2936 = vmatpush1.msra.mxu0 %v1609
        %2937 = vmatprep.subr.mxu0 %v1626
        %2938 = vmatpush1.msra.mxu0 %v1625
        %2939 = vmatprep.subr.mxu0 %v1642
        %2940 = vmatpush1.msra.mxu0 %v1641
        %2941 = vmatprep.subr.mxu0 %v1658
        %2942 = vmatpush1.msra.mxu0 %v1657
        %2943 = vmatprep.subr.mxu0 %v1674
        %2944 = vmatpush1.msra.mxu0 %v1673
        %2945 = vmatprep.subr.mxu0 %v1690
        %2946 = vmatpush1.msra.mxu0 %v1689
        %2947 = vmatprep.subr.mxu0 %v1706
        %2948 = vmatpush1.msra.mxu0 %v1705
        %2949 = vmatprep.subr.mxu0 %v1722
        %2950 = vmatpush1.msra.mxu0 %v1721
        %2951 = vmatprep.subr.mxu0 %v1738
        %2952 = vmatpush1.msra.mxu0 %v1737
        %2953 = vmatprep.subr.mxu0 %v1754
        %2954 = vmatpush1.msra.mxu0 %v1753
        %2955 = vmatprep.subr.mxu0 %v1770
        %2956 = vmatpush1.msra.mxu0 %v1769
        %2957 = vmatprep.subr.mxu0 %v1786
        %2958 = vmatpush1.msra.mxu0 %v1785
        %2959 = vmatprep.mubr.f32.mxu0 %v2321
        %2960 = vmatmul.mubr.f32.gmra.mrb[0].mxu0 %v2313
        %v2961 = vpop.f32.mrb[0].mxu0
        %v2962 = vadd.f32 0.0, %v2961
        %v2963 = vpop.f32.mrb[0].mxu0
        %v2964 = vadd.f32 0.0, %v2963
        %2965 = vdwg.mxu0
        %2966 = vmatprep.subr.mxu0 %v1802
        %2967 = vmatpush1.msra.mxu0 %v1801
        %2968 = vmatprep.subr.mxu0 %v1818
        %2969 = vmatpush1.msra.mxu0 %v1817
        %2970 = vmatprep.subr.mxu0 %v1834
        %2971 = vmatpush1.msra.mxu0 %v1833
        %2972 = vmatprep.subr.mxu0 %v1850
        %2973 = vmatpush1.msra.mxu0 %v1849
        %2974 = vmatprep.subr.mxu0 %v1866
        %2975 = vmatpush1.msra.mxu0 %v1865
        %2976 = vmatprep.subr.mxu0 %v1882
        %2977 = vmatpush1.msra.mxu0 %v1881
        %2978 = vmatprep.subr.mxu0 %v1898
        %2979 = vmatpush1.msra.mxu0 %v1897
        %2980 = vmatprep.subr.mxu0 %v1914
        %2981 = vmatpush1.msra.mxu0 %v1913
        %2982 = vmatprep.subr.mxu0 %v1930
        %2983 = vmatpush1.msra.mxu0 %v1929
        %2984 = vmatprep.subr.mxu0 %v1946
        %2985 = vmatpush1.msra.mxu0 %v1945
        %2986 = vmatprep.subr.mxu0 %v1962
        %2987 = vmatpush1.msra.mxu0 %v1961
        %2988 = vmatprep.subr.mxu0 %v1978
        %2989 = vmatpush1.msra.mxu0 %v1977
        %2990 = vmatprep.subr.mxu0 %v1994
        %2991 = vmatpush1.msra.mxu0 %v1993
        %2992 = vmatprep.subr.mxu0 %v2010
        %2993 = vmatpush1.msra.mxu0 %v2009
        %2994 = vmatprep.subr.mxu0 %v2026
        %2995 = vmatpush1.msra.mxu0 %v2025
        %2996 = vmatprep.subr.mxu0 %v2042
        %2997 = vmatpush1.msra.mxu0 %v2041
        %2998 = vmatprep.subr.mxu0 %v2058
        %2999 = vmatpush1.msra.mxu0 %v2057
        %3000 = vmatprep.subr.mxu0 %v2074
        %3001 = vmatpush1.msra.mxu0 %v2073
        %3002 = vmatprep.subr.mxu0 %v2090
        %3003 = vmatpush1.msra.mxu0 %v2089
        %3004 = vmatprep.subr.mxu0 %v2106
        %3005 = vmatpush1.msra.mxu0 %v2105
        %3006 = vmatprep.subr.mxu0 %v2122
        %3007 = vmatpush1.msra.mxu0 %v2121
        %3008 = vmatprep.subr.mxu0 %v2138
        %3009 = vmatpush1.msra.mxu0 %v2137
        %3010 = vmatprep.subr.mxu0 %v2154
        %3011 = vmatpush1.msra.mxu0 %v2153
        %3012 = vmatprep.subr.mxu0 %v2170
        %3013 = vmatpush1.msra.mxu0 %v2169
        %3014 = vmatprep.subr.mxu0 %v2186
        %3015 = vmatpush1.msra.mxu0 %v2185
        %3016 = vmatprep.subr.mxu0 %v2202
        %3017 = vmatpush1.msra.mxu0 %v2201
        %3018 = vmatprep.subr.mxu0 %v2218
        %3019 = vmatpush1.msra.mxu0 %v2217
        %3020 = vmatprep.subr.mxu0 %v2234
        %3021 = vmatpush1.msra.mxu0 %v2233
        %3022 = vmatprep.subr.mxu0 %v2250
        %3023 = vmatpush1.msra.mxu0 %v2249
        %3024 = vmatprep.subr.mxu0 %v2266
        %3025 = vmatpush1.msra.mxu0 %v2265
        %3026 = vmatprep.subr.mxu0 %v2282
        %3027 = vmatpush1.msra.mxu0 %v2281
        %3028 = vmatprep.subr.mxu0 %v2298
        %3029 = vmatpush1.msra.mxu0 %v2297
        %3030 = vmatprep.mubr.f32.mxu0 %v2322
        %3031 = vmatmul.mubr.f32.gmra.mrb[0].mxu0 %v2320
        %v3032 = vpop.f32.mrb[0].mxu0
        %v3033 = vadd.f32 %v2962, %v3032
        %v3034 = vpop.f32.mrb[0].mxu0
        %v3035 = vadd.f32 %v2964, %v3034
        %3036 = vdwg.mxu0
        %3037 = vmatprep.subr.mxu0 %v1292
        %3038 = vmatpush1.msra.mxu0 %v1291
        %3039 = vmatprep.subr.mxu0 %v1308
        %3040 = vmatpush1.msra.mxu0 %v1307
        %3041 = vmatprep.subr.mxu0 %v1324
        %3042 = vmatpush1.msra.mxu0 %v1323
        %3043 = vmatprep.subr.mxu0 %v1340
        %3044 = vmatpush1.msra.mxu0 %v1339
        %3045 = vmatprep.subr.mxu0 %v1356
        %3046 = vmatpush1.msra.mxu0 %v1355
        %3047 = vmatprep.subr.mxu0 %v1372
        %3048 = vmatpush1.msra.mxu0 %v1371
        %3049 = vmatprep.subr.mxu0 %v1388
        %3050 = vmatpush1.msra.mxu0 %v1387
        %3051 = vmatprep.subr.mxu0 %v1404
        %3052 = vmatpush1.msra.mxu0 %v1403
        %3053 = vmatprep.subr.mxu0 %v1420
        %3054 = vmatpush1.msra.mxu0 %v1419
        %3055 = vmatprep.subr.mxu0 %v1436
        %3056 = vmatpush1.msra.mxu0 %v1435
        %3057 = vmatprep.subr.mxu0 %v1452
        %3058 = vmatpush1.msra.mxu0 %v1451
        %3059 = vmatprep.subr.mxu0 %v1468
        %3060 = vmatpush1.msra.mxu0 %v1467
        %3061 = vmatprep.subr.mxu0 %v1484
        %3062 = vmatpush1.msra.mxu0 %v1483
        %3063 = vmatprep.subr.mxu0 %v1500
        %3064 = vmatpush1.msra.mxu0 %v1499
        %3065 = vmatprep.subr.mxu0 %v1516
        %3066 = vmatpush1.msra.mxu0 %v1515
        %3067 = vmatprep.subr.mxu0 %v1532
        %3068 = vmatpush1.msra.mxu0 %v1531
        %3069 = vmatprep.subr.mxu0 %v1548
        %3070 = vmatpush1.msra.mxu0 %v1547
        %3071 = vmatprep.subr.mxu0 %v1564
        %3072 = vmatpush1.msra.mxu0 %v1563
        %3073 = vmatprep.subr.mxu0 %v1580
        %3074 = vmatpush1.msra.mxu0 %v1579
        %3075 = vmatprep.subr.mxu0 %v1596
        %3076 = vmatpush1.msra.mxu0 %v1595
        %3077 = vmatprep.subr.mxu0 %v1612
        %3078 = vmatpush1.msra.mxu0 %v1611
        %3079 = vmatprep.subr.mxu0 %v1628
        %3080 = vmatpush1.msra.mxu0 %v1627
        %3081 = vmatprep.subr.mxu0 %v1644
        %3082 = vmatpush1.msra.mxu0 %v1643
        %3083 = vmatprep.subr.mxu0 %v1660
        %3084 = vmatpush1.msra.mxu0 %v1659
        %3085 = vmatprep.subr.mxu0 %v1676
        %3086 = vmatpush1.msra.mxu0 %v1675
        %3087 = vmatprep.subr.mxu0 %v1692
        %3088 = vmatpush1.msra.mxu0 %v1691
        %3089 = vmatprep.subr.mxu0 %v1708
        %3090 = vmatpush1.msra.mxu0 %v1707
        %3091 = vmatprep.subr.mxu0 %v1724
        %3092 = vmatpush1.msra.mxu0 %v1723
        %3093 = vmatprep.subr.mxu0 %v1740
        %3094 = vmatpush1.msra.mxu0 %v1739
        %3095 = vmatprep.subr.mxu0 %v1756
        %3096 = vmatpush1.msra.mxu0 %v1755
        %3097 = vmatprep.subr.mxu0 %v1772
        %3098 = vmatpush1.msra.mxu0 %v1771
        %3099 = vmatprep.subr.mxu0 %v1788
        %3100 = vmatpush1.msra.mxu0 %v1787
        %3101 = vmatprep.mubr.f32.mxu0 %v2321
        %3102 = vmatmul.mubr.f32.gmra.mrb[0].mxu0 %v2313
        %v3103 = vpop.f32.mrb[0].mxu0
        %v3104 = vadd.f32 0.0, %v3103
        %v3105 = vpop.f32.mrb[0].mxu0
        %v3106 = vadd.f32 0.0, %v3105
        %3107 = vdwg.mxu0
        %3108 = vmatprep.subr.mxu0 %v1804
        %3109 = vmatpush1.msra.mxu0 %v1803
        %3110 = vmatprep.subr.mxu0 %v1820
        %3111 = vmatpush1.msra.mxu0 %v1819
        %3112 = vmatprep.subr.mxu0 %v1836
        %3113 = vmatpush1.msra.mxu0 %v1835
        %3114 = vmatprep.subr.mxu0 %v1852
        %3115 = vmatpush1.msra.mxu0 %v1851
        %3116 = vmatprep.subr.mxu0 %v1868
        %3117 = vmatpush1.msra.mxu0 %v1867
        %3118 = vmatprep.subr.mxu0 %v1884
        %3119 = vmatpush1.msra.mxu0 %v1883
        %3120 = vmatprep.subr.mxu0 %v1900
        %3121 = vmatpush1.msra.mxu0 %v1899
        %3122 = vmatprep.subr.mxu0 %v1916
        %3123 = vmatpush1.msra.mxu0 %v1915
        %3124 = vmatprep.subr.mxu0 %v1932
        %3125 = vmatpush1.msra.mxu0 %v1931
        %3126 = vmatprep.subr.mxu0 %v1948
        %3127 = vmatpush1.msra.mxu0 %v1947
        %3128 = vmatprep.subr.mxu0 %v1964
        %3129 = vmatpush1.msra.mxu0 %v1963
        %3130 = vmatprep.subr.mxu0 %v1980
        %3131 = vmatpush1.msra.mxu0 %v1979
        %3132 = vmatprep.subr.mxu0 %v1996
        %3133 = vmatpush1.msra.mxu0 %v1995
        %3134 = vmatprep.subr.mxu0 %v2012
        %3135 = vmatpush1.msra.mxu0 %v2011
        %3136 = vmatprep.subr.mxu0 %v2028
        %3137 = vmatpush1.msra.mxu0 %v2027
        %3138 = vmatprep.subr.mxu0 %v2044
        %3139 = vmatpush1.msra.mxu0 %v2043
        %3140 = vmatprep.subr.mxu0 %v2060
        %3141 = vmatpush1.msra.mxu0 %v2059
        %3142 = vmatprep.subr.mxu0 %v2076
        %3143 = vmatpush1.msra.mxu0 %v2075
        %3144 = vmatprep.subr.mxu0 %v2092
        %3145 = vmatpush1.msra.mxu0 %v2091
        %3146 = vmatprep.subr.mxu0 %v2108
        %3147 = vmatpush1.msra.mxu0 %v2107
        %3148 = vmatprep.subr.mxu0 %v2124
        %3149 = vmatpush1.msra.mxu0 %v2123
        %3150 = vmatprep.subr.mxu0 %v2140
        %3151 = vmatpush1.msra.mxu0 %v2139
        %3152 = vmatprep.subr.mxu0 %v2156
        %3153 = vmatpush1.msra.mxu0 %v2155
        %3154 = vmatprep.subr.mxu0 %v2172
        %3155 = vmatpush1.msra.mxu0 %v2171
        %3156 = vmatprep.subr.mxu0 %v2188
        %3157 = vmatpush1.msra.mxu0 %v2187
        %3158 = vmatprep.subr.mxu0 %v2204
        %3159 = vmatpush1.msra.mxu0 %v2203
        %3160 = vmatprep.subr.mxu0 %v2220
        %3161 = vmatpush1.msra.mxu0 %v2219
        %3162 = vmatprep.subr.mxu0 %v2236
        %3163 = vmatpush1.msra.mxu0 %v2235
        %3164 = vmatprep.subr.mxu0 %v2252
        %3165 = vmatpush1.msra.mxu0 %v2251
        %3166 = vmatprep.subr.mxu0 %v2268
        %3167 = vmatpush1.msra.mxu0 %v2267
        %3168 = vmatprep.subr.mxu0 %v2284
        %3169 = vmatpush1.msra.mxu0 %v2283
        %3170 = vmatprep.subr.mxu0 %v2300
        %3171 = vmatpush1.msra.mxu0 %v2299
        %3172 = vmatprep.mubr.f32.mxu0 %v2322
        %3173 = vmatmul.mubr.f32.gmra.mrb[0].mxu0 %v2320
        %v3174 = vpop.f32.mrb[0].mxu0
        %v3175 = vadd.f32 %v3104, %v3174
        %v3176 = vpop.f32.mrb[0].mxu0
        %v3177 = vadd.f32 %v3106, %v3176
        %3178 = vdwg.mxu0
        %3179 = vmatprep.subr.mxu0 %v1294
        %3180 = vmatpush1.msra.mxu0 %v1293
        %3181 = vmatprep.subr.mxu0 %v1310
        %3182 = vmatpush1.msra.mxu0 %v1309
        %3183 = vmatprep.subr.mxu0 %v1326
        %3184 = vmatpush1.msra.mxu0 %v1325
        %3185 = vmatprep.subr.mxu0 %v1342
        %3186 = vmatpush1.msra.mxu0 %v1341
        %3187 = vmatprep.subr.mxu0 %v1358
        %3188 = vmatpush1.msra.mxu0 %v1357
        %3189 = vmatprep.subr.mxu0 %v1374
        %3190 = vmatpush1.msra.mxu0 %v1373
        %3191 = vmatprep.subr.mxu0 %v1390
        %3192 = vmatpush1.msra.mxu0 %v1389
        %3193 = vmatprep.subr.mxu0 %v1406
        %3194 = vmatpush1.msra.mxu0 %v1405
        %3195 = vmatprep.subr.mxu0 %v1422
        %3196 = vmatpush1.msra.mxu0 %v1421
        %3197 = vmatprep.subr.mxu0 %v1438
        %3198 = vmatpush1.msra.mxu0 %v1437
        %3199 = vmatprep.subr.mxu0 %v1454
        %3200 = vmatpush1.msra.mxu0 %v1453
        %3201 = vmatprep.subr.mxu0 %v1470
        %3202 = vmatpush1.msra.mxu0 %v1469
        %3203 = vmatprep.subr.mxu0 %v1486
        %3204 = vmatpush1.msra.mxu0 %v1485
        %3205 = vmatprep.subr.mxu0 %v1502
        %3206 = vmatpush1.msra.mxu0 %v1501
        %3207 = vmatprep.subr.mxu0 %v1518
        %3208 = vmatpush1.msra.mxu0 %v1517
        %3209 = vmatprep.subr.mxu0 %v1534
        %3210 = vmatpush1.msra.mxu0 %v1533
        %3211 = vmatprep.subr.mxu0 %v1550
        %3212 = vmatpush1.msra.mxu0 %v1549
        %3213 = vmatprep.subr.mxu0 %v1566
        %3214 = vmatpush1.msra.mxu0 %v1565
        %3215 = vmatprep.subr.mxu0 %v1582
        %3216 = vmatpush1.msra.mxu0 %v1581
        %3217 = vmatprep.subr.mxu0 %v1598
        %3218 = vmatpush1.msra.mxu0 %v1597
        %3219 = vmatprep.subr.mxu0 %v1614
        %3220 = vmatpush1.msra.mxu0 %v1613
        %3221 = vmatprep.subr.mxu0 %v1630
        %3222 = vmatpush1.msra.mxu0 %v1629
        %3223 = vmatprep.subr.mxu0 %v1646
        %3224 = vmatpush1.msra.mxu0 %v1645
        %3225 = vmatprep.subr.mxu0 %v1662
        %3226 = vmatpush1.msra.mxu0 %v1661
        %3227 = vmatprep.subr.mxu0 %v1678
        %3228 = vmatpush1.msra.mxu0 %v1677
        %3229 = vmatprep.subr.mxu0 %v1694
        %3230 = vmatpush1.msra.mxu0 %v1693
        %3231 = vmatprep.subr.mxu0 %v1710
        %3232 = vmatpush1.msra.mxu0 %v1709
        %3233 = vmatprep.subr.mxu0 %v1726
        %3234 = vmatpush1.msra.mxu0 %v1725
        %3235 = vmatprep.subr.mxu0 %v1742
        %3236 = vmatpush1.msra.mxu0 %v1741
        %3237 = vmatprep.subr.mxu0 %v1758
        %3238 = vmatpush1.msra.mxu0 %v1757
        %3239 = vmatprep.subr.mxu0 %v1774
        %3240 = vmatpush1.msra.mxu0 %v1773
        %3241 = vmatprep.subr.mxu0 %v1790
        %3242 = vmatpush1.msra.mxu0 %v1789
        %3243 = vmatprep.mubr.f32.mxu0 %v2321
        %3244 = vmatmul.mubr.f32.gmra.mrb[0].mxu0 %v2313
        %v3245 = vpop.f32.mrb[0].mxu0
        %v3246 = vadd.f32 0.0, %v3245
        %v3247 = vpop.f32.mrb[0].mxu0
        %v3248 = vadd.f32 0.0, %v3247
        %3249 = vdwg.mxu0
        %3250 = vmatprep.subr.mxu0 %v1806
        %3251 = vmatpush1.msra.mxu0 %v1805
        %3252 = vmatprep.subr.mxu0 %v1822
        %3253 = vmatpush1.msra.mxu0 %v1821
        %3254 = vmatprep.subr.mxu0 %v1838
        %3255 = vmatpush1.msra.mxu0 %v1837
        %3256 = vmatprep.subr.mxu0 %v1854
        %3257 = vmatpush1.msra.mxu0 %v1853
        %3258 = vmatprep.subr.mxu0 %v1870
        %3259 = vmatpush1.msra.mxu0 %v1869
        %3260 = vmatprep.subr.mxu0 %v1886
        %3261 = vmatpush1.msra.mxu0 %v1885
        %3262 = vmatprep.subr.mxu0 %v1902
        %3263 = vmatpush1.msra.mxu0 %v1901
        %3264 = vmatprep.subr.mxu0 %v1918
        %3265 = vmatpush1.msra.mxu0 %v1917
        %3266 = vmatprep.subr.mxu0 %v1934
        %3267 = vmatpush1.msra.mxu0 %v1933
        %3268 = vmatprep.subr.mxu0 %v1950
        %3269 = vmatpush1.msra.mxu0 %v1949
        %3270 = vmatprep.subr.mxu0 %v1966
        %3271 = vmatpush1.msra.mxu0 %v1965
        %3272 = vmatprep.subr.mxu0 %v1982
        %3273 = vmatpush1.msra.mxu0 %v1981
        %3274 = vmatprep.subr.mxu0 %v1998
        %3275 = vmatpush1.msra.mxu0 %v1997
        %3276 = vmatprep.subr.mxu0 %v2014
        %3277 = vmatpush1.msra.mxu0 %v2013
        %3278 = vmatprep.subr.mxu0 %v2030
        %3279 = vmatpush1.msra.mxu0 %v2029
        %3280 = vmatprep.subr.mxu0 %v2046
        %3281 = vmatpush1.msra.mxu0 %v2045
        %3282 = vmatprep.subr.mxu0 %v2062
        %3283 = vmatpush1.msra.mxu0 %v2061
        %3284 = vmatprep.subr.mxu0 %v2078
        %3285 = vmatpush1.msra.mxu0 %v2077
        %3286 = vmatprep.subr.mxu0 %v2094
        %3287 = vmatpush1.msra.mxu0 %v2093
        %3288 = vmatprep.subr.mxu0 %v2110
        %3289 = vmatpush1.msra.mxu0 %v2109
        %3290 = vmatprep.subr.mxu0 %v2126
        %3291 = vmatpush1.msra.mxu0 %v2125
        %3292 = vmatprep.subr.mxu0 %v2142
        %3293 = vmatpush1.msra.mxu0 %v2141
        %3294 = vmatprep.subr.mxu0 %v2158
        %3295 = vmatpush1.msra.mxu0 %v2157
        %3296 = vmatprep.subr.mxu0 %v2174
        %3297 = vmatpush1.msra.mxu0 %v2173
        %3298 = vmatprep.subr.mxu0 %v2190
        %3299 = vmatpush1.msra.mxu0 %v2189
        %3300 = vmatprep.subr.mxu0 %v2206
        %3301 = vmatpush1.msra.mxu0 %v2205
        %3302 = vmatprep.subr.mxu0 %v2222
        %3303 = vmatpush1.msra.mxu0 %v2221
        %3304 = vmatprep.subr.mxu0 %v2238
        %3305 = vmatpush1.msra.mxu0 %v2237
        %3306 = vmatprep.subr.mxu0 %v2254
        %3307 = vmatpush1.msra.mxu0 %v2253
        %3308 = vmatprep.subr.mxu0 %v2270
        %3309 = vmatpush1.msra.mxu0 %v2269
        %3310 = vmatprep.subr.mxu0 %v2286
        %3311 = vmatpush1.msra.mxu0 %v2285
        %3312 = vmatprep.subr.mxu0 %v2302
        %3313 = vmatpush1.msra.mxu0 %v2301
        %3314 = vmatprep.mubr.f32.mxu0 %v2322
        %3315 = vmatmul.mubr.f32.gmra.mrb[0].mxu0 %v2320
        %v3316 = vpop.f32.mrb[0].mxu0
        %v3317 = vadd.f32 %v3246, %v3316
        %v3318 = vpop.f32.mrb[0].mxu0
        %v3319 = vadd.f32 %v3248, %v3318
        %3320 = vdwg.mxu0
        %3321 = vmatprep.subr.mxu0 %v1296
        %3322 = vmatpush1.msra.mxu0 %v1295
        %3323 = vmatprep.subr.mxu0 %v1312
        %3324 = vmatpush1.msra.mxu0 %v1311
        %3325 = vmatprep.subr.mxu0 %v1328
        %3326 = vmatpush1.msra.mxu0 %v1327
        %3327 = vmatprep.subr.mxu0 %v1344
        %3328 = vmatpush1.msra.mxu0 %v1343
        %3329 = vmatprep.subr.mxu0 %v1360
        %3330 = vmatpush1.msra.mxu0 %v1359
        %3331 = vmatprep.subr.mxu0 %v1376
        %3332 = vmatpush1.msra.mxu0 %v1375
        %3333 = vmatprep.subr.mxu0 %v1392
        %3334 = vmatpush1.msra.mxu0 %v1391
        %3335 = vmatprep.subr.mxu0 %v1408
        %3336 = vmatpush1.msra.mxu0 %v1407
        %3337 = vmatprep.subr.mxu0 %v1424
        %3338 = vmatpush1.msra.mxu0 %v1423
        %3339 = vmatprep.subr.mxu0 %v1440
        %3340 = vmatpush1.msra.mxu0 %v1439
        %3341 = vmatprep.subr.mxu0 %v1456
        %3342 = vmatpush1.msra.mxu0 %v1455
        %3343 = vmatprep.subr.mxu0 %v1472
        %3344 = vmatpush1.msra.mxu0 %v1471
        %3345 = vmatprep.subr.mxu0 %v1488
        %3346 = vmatpush1.msra.mxu0 %v1487
        %3347 = vmatprep.subr.mxu0 %v1504
        %3348 = vmatpush1.msra.mxu0 %v1503
        %3349 = vmatprep.subr.mxu0 %v1520
        %3350 = vmatpush1.msra.mxu0 %v1519
        %3351 = vmatprep.subr.mxu0 %v1536
        %3352 = vmatpush1.msra.mxu0 %v1535
        %3353 = vmatprep.subr.mxu0 %v1552
        %3354 = vmatpush1.msra.mxu0 %v1551
        %3355 = vmatprep.subr.mxu0 %v1568
        %3356 = vmatpush1.msra.mxu0 %v1567
        %3357 = vmatprep.subr.mxu0 %v1584
        %3358 = vmatpush1.msra.mxu0 %v1583
        %3359 = vmatprep.subr.mxu0 %v1600
        %3360 = vmatpush1.msra.mxu0 %v1599
        %3361 = vmatprep.subr.mxu0 %v1616
        %3362 = vmatpush1.msra.mxu0 %v1615
        %3363 = vmatprep.subr.mxu0 %v1632
        %3364 = vmatpush1.msra.mxu0 %v1631
        %3365 = vmatprep.subr.mxu0 %v1648
        %3366 = vmatpush1.msra.mxu0 %v1647
        %3367 = vmatprep.subr.mxu0 %v1664
        %3368 = vmatpush1.msra.mxu0 %v1663
        %3369 = vmatprep.subr.mxu0 %v1680
        %3370 = vmatpush1.msra.mxu0 %v1679
        %3371 = vmatprep.subr.mxu0 %v1696
        %3372 = vmatpush1.msra.mxu0 %v1695
        %3373 = vmatprep.subr.mxu0 %v1712
        %3374 = vmatpush1.msra.mxu0 %v1711
        %3375 = vmatprep.subr.mxu0 %v1728
        %3376 = vmatpush1.msra.mxu0 %v1727
        %3377 = vmatprep.subr.mxu0 %v1744
        %3378 = vmatpush1.msra.mxu0 %v1743
        %3379 = vmatprep.subr.mxu0 %v1760
        %3380 = vmatpush1.msra.mxu0 %v1759
        %3381 = vmatprep.subr.mxu0 %v1776
        %3382 = vmatpush1.msra.mxu0 %v1775
        %3383 = vmatprep.subr.mxu0 %v1792
        %3384 = vmatpush1.msra.mxu0 %v1791
        %3385 = vmatprep.mubr.f32.mxu0 %v2321
        %3386 = vmatmul.mubr.f32.gmra.mrb[0].mxu0 %v2313
        %v3387 = vpop.f32.mrb[0].mxu0
        %v3388 = vadd.f32 0.0, %v3387
        %v3389 = vpop.f32.mrb[0].mxu0
        %v3390 = vadd.f32 0.0, %v3389
        %3391 = vdwg.mxu0
        %3392 = vmatprep.subr.mxu0 %v1808
        %3393 = vmatpush1.msra.mxu0 %v1807
        %3394 = vmatprep.subr.mxu0 %v1824
        %3395 = vmatpush1.msra.mxu0 %v1823
        %3396 = vmatprep.subr.mxu0 %v1840
        %3397 = vmatpush1.msra.mxu0 %v1839
        %3398 = vmatprep.subr.mxu0 %v1856
        %3399 = vmatpush1.msra.mxu0 %v1855
        %3400 = vmatprep.subr.mxu0 %v1872
        %3401 = vmatpush1.msra.mxu0 %v1871
        %3402 = vmatprep.subr.mxu0 %v1888
        %3403 = vmatpush1.msra.mxu0 %v1887
        %3404 = vmatprep.subr.mxu0 %v1904
        %3405 = vmatpush1.msra.mxu0 %v1903
        %3406 = vmatprep.subr.mxu0 %v1920
        %3407 = vmatpush1.msra.mxu0 %v1919
        %3408 = vmatprep.subr.mxu0 %v1936
        %3409 = vmatpush1.msra.mxu0 %v1935
        %3410 = vmatprep.subr.mxu0 %v1952
        %3411 = vmatpush1.msra.mxu0 %v1951
        %3412 = vmatprep.subr.mxu0 %v1968
        %3413 = vmatpush1.msra.mxu0 %v1967
        %3414 = vmatprep.subr.mxu0 %v1984
        %3415 = vmatpush1.msra.mxu0 %v1983
        %3416 = vmatprep.subr.mxu0 %v2000
        %3417 = vmatpush1.msra.mxu0 %v1999
        %3418 = vmatprep.subr.mxu0 %v2016
        %3419 = vmatpush1.msra.mxu0 %v2015
        %3420 = vmatprep.subr.mxu0 %v2032
        %3421 = vmatpush1.msra.mxu0 %v2031
        %3422 = vmatprep.subr.mxu0 %v2048
        %3423 = vmatpush1.msra.mxu0 %v2047
        %3424 = vmatprep.subr.mxu0 %v2064
        %3425 = vmatpush1.msra.mxu0 %v2063
        %3426 = vmatprep.subr.mxu0 %v2080
        %3427 = vmatpush1.msra.mxu0 %v2079
        %3428 = vmatprep.subr.mxu0 %v2096
        %3429 = vmatpush1.msra.mxu0 %v2095
        %3430 = vmatprep.subr.mxu0 %v2112
        %3431 = vmatpush1.msra.mxu0 %v2111
        %3432 = vmatprep.subr.mxu0 %v2128
        %3433 = vmatpush1.msra.mxu0 %v2127
        %3434 = vmatprep.subr.mxu0 %v2144
        %3435 = vmatpush1.msra.mxu0 %v2143
        %3436 = vmatprep.subr.mxu0 %v2160
        %3437 = vmatpush1.msra.mxu0 %v2159
        %3438 = vmatprep.subr.mxu0 %v2176
        %3439 = vmatpush1.msra.mxu0 %v2175
        %3440 = vmatprep.subr.mxu0 %v2192
        %3441 = vmatpush1.msra.mxu0 %v2191
        %3442 = vmatprep.subr.mxu0 %v2208
        %3443 = vmatpush1.msra.mxu0 %v2207
        %3444 = vmatprep.subr.mxu0 %v2224
        %3445 = vmatpush1.msra.mxu0 %v2223
        %3446 = vmatprep.subr.mxu0 %v2240
        %3447 = vmatpush1.msra.mxu0 %v2239
        %3448 = vmatprep.subr.mxu0 %v2256
        %3449 = vmatpush1.msra.mxu0 %v2255
        %3450 = vmatprep.subr.mxu0 %v2272
        %3451 = vmatpush1.msra.mxu0 %v2271
        %3452 = vmatprep.subr.mxu0 %v2288
        %3453 = vmatpush1.msra.mxu0 %v2287
        %3454 = vmatprep.subr.mxu0 %v2304
        %3455 = vmatpush1.msra.mxu0 %v2303
        %3456 = vmatprep.mubr.f32.mxu0 %v2322
        %3457 = vmatmul.mubr.f32.gmra.mrb[0].mxu0 %v2320
        %v3458 = vpop.f32.mrb[0].mxu0
        %v3459 = vadd.f32 %v3388, %v3458
        %v3460 = vpop.f32.mrb[0].mxu0
        %v3461 = vadd.f32 %v3390, %v3460
        %3462 = vdwg.mxu0
        %3463 = vmatprep.subr.mxu0 %v1026
        %3464 = vmatpush1.msra.mxu0 %v1025
        %3465 = vmatprep.subr.mxu0 %v1042
        %3466 = vmatpush1.msra.mxu0 %v1041
        %3467 = vmatprep.subr.mxu0 %v1058
        %3468 = vmatpush1.msra.mxu0 %v1057
        %3469 = vmatprep.subr.mxu0 %v1074
        %3470 = vmatpush1.msra.mxu0 %v1073
        %3471 = vmatprep.subr.mxu0 %v1090
        %3472 = vmatpush1.msra.mxu0 %v1089
        %3473 = vmatprep.subr.mxu0 %v1106
        %3474 = vmatpush1.msra.mxu0 %v1105
        %3475 = vmatprep.subr.mxu0 %v1122
        %3476 = vmatpush1.msra.mxu0 %v1121
        %3477 = vmatprep.subr.mxu0 %v1138
        %3478 = vmatpush1.msra.mxu0 %v1137
        %3479 = vmatprep.subr.mxu0 %v1154
        %3480 = vmatpush1.msra.mxu0 %v1153
        %3481 = vmatprep.subr.mxu0 %v1170
        %3482 = vmatpush1.msra.mxu0 %v1169
        %3483 = vmatprep.subr.mxu0 %v1186
        %3484 = vmatpush1.msra.mxu0 %v1185
        %3485 = vmatprep.subr.mxu0 %v1202
        %3486 = vmatpush1.msra.mxu0 %v1201
        %3487 = vmatprep.subr.mxu0 %v1218
        %3488 = vmatpush1.msra.mxu0 %v1217
        %3489 = vmatprep.subr.mxu0 %v1234
        %3490 = vmatpush1.msra.mxu0 %v1233
        %3491 = vmatprep.subr.mxu0 %v1250
        %3492 = vmatpush1.msra.mxu0 %v1249
        %3493 = vmatprep.subr.mxu0 %v1266
        %3494 = vmatpush1.msra.mxu0 %v1265
        %3495 = vmatprep.subr.mxu0 0.0
        %3496 = vmatpush1.msra.mxu0 0.0
        %3497 = vmatprep.subr.mxu0 0.0
        %3498 = vmatpush1.msra.mxu0 0.0
        %3499 = vmatprep.subr.mxu0 0.0
        %3500 = vmatpush1.msra.mxu0 0.0
        %3501 = vmatprep.subr.mxu0 0.0
        %3502 = vmatpush1.msra.mxu0 0.0
        %3503 = vmatprep.subr.mxu0 0.0
        %3504 = vmatpush1.msra.mxu0 0.0
        %3505 = vmatprep.subr.mxu0 0.0
        %3506 = vmatpush1.msra.mxu0 0.0
        %3507 = vmatprep.subr.mxu0 0.0
        %3508 = vmatpush1.msra.mxu0 0.0
        %3509 = vmatprep.subr.mxu0 0.0
        %3510 = vmatpush1.msra.mxu0 0.0
        %3511 = vmatprep.subr.mxu0 0.0
        %3512 = vmatpush1.msra.mxu0 0.0
        %3513 = vmatprep.subr.mxu0 0.0
        %3514 = vmatpush1.msra.mxu0 0.0
        %3515 = vmatprep.subr.mxu0 0.0
        %3516 = vmatpush1.msra.mxu0 0.0
        %3517 = vmatprep.subr.mxu0 0.0
        %3518 = vmatpush1.msra.mxu0 0.0
        %3519 = vmatprep.subr.mxu0 0.0
        %3520 = vmatpush1.msra.mxu0 0.0
        %3521 = vmatprep.subr.mxu0 0.0
        %3522 = vmatpush1.msra.mxu0 0.0
        %3523 = vmatprep.subr.mxu0 0.0
        %3524 = vmatpush1.msra.mxu0 0.0
        %3525 = vmatprep.subr.mxu0 0.0
        %3526 = vmatpush1.msra.mxu0 0.0
        %3527 = vmatprep.mubr.f32.mxu0 0.0
        %3528 = vmatmul.mubr.f32.gmra.mrb[0].mxu0 %v1024
        %v3529 = vpop.f32.mrb[0].mxu0
        %v3530 = vadd.f32 %v2465, %v3529
        %v3531 = vpop.f32.mrb[0].mxu0
        %v3532 = vadd.f32 %v2467, %v3531
        %3533 = vdwg.mxu0
        %3534 = vmatprep.subr.mxu0 %v1028
        %3535 = vmatpush1.msra.mxu0 %v1027
        %3536 = vmatprep.subr.mxu0 %v1044
        %3537 = vmatpush1.msra.mxu0 %v1043
        %3538 = vmatprep.subr.mxu0 %v1060
        %3539 = vmatpush1.msra.mxu0 %v1059
        %3540 = vmatprep.subr.mxu0 %v1076
        %3541 = vmatpush1.msra.mxu0 %v1075
        %3542 = vmatprep.subr.mxu0 %v1092
        %3543 = vmatpush1.msra.mxu0 %v1091
        %3544 = vmatprep.subr.mxu0 %v1108
        %3545 = vmatpush1.msra.mxu0 %v1107
        %3546 = vmatprep.subr.mxu0 %v1124
        %3547 = vmatpush1.msra.mxu0 %v1123
        %3548 = vmatprep.subr.mxu0 %v1140
        %3549 = vmatpush1.msra.mxu0 %v1139
        %3550 = vmatprep.subr.mxu0 %v1156
        %3551 = vmatpush1.msra.mxu0 %v1155
        %3552 = vmatprep.subr.mxu0 %v1172
        %3553 = vmatpush1.msra.mxu0 %v1171
        %3554 = vmatprep.subr.mxu0 %v1188
        %3555 = vmatpush1.msra.mxu0 %v1187
        %3556 = vmatprep.subr.mxu0 %v1204
        %3557 = vmatpush1.msra.mxu0 %v1203
        %3558 = vmatprep.subr.mxu0 %v1220
        %3559 = vmatpush1.msra.mxu0 %v1219
        %3560 = vmatprep.subr.mxu0 %v1236
        %3561 = vmatpush1.msra.mxu0 %v1235
        %3562 = vmatprep.subr.mxu0 %v1252
        %3563 = vmatpush1.msra.mxu0 %v1251
        %3564 = vmatprep.subr.mxu0 %v1268
        %3565 = vmatpush1.msra.mxu0 %v1267
        %3566 = vmatprep.subr.mxu0 0.0
        %3567 = vmatpush1.msra.mxu0 0.0
        %3568 = vmatprep.subr.mxu0 0.0
        %3569 = vmatpush1.msra.mxu0 0.0
        %3570 = vmatprep.subr.mxu0 0.0
        %3571 = vmatpush1.msra.mxu0 0.0
        %3572 = vmatprep.subr.mxu0 0.0
        %3573 = vmatpush1.msra.mxu0 0.0
        %3574 = vmatprep.subr.mxu0 0.0
        %3575 = vmatpush1.msra.mxu0 0.0
        %3576 = vmatprep.subr.mxu0 0.0
        %3577 = vmatpush1.msra.mxu0 0.0
        %3578 = vmatprep.subr.mxu0 0.0
        %3579 = vmatpush1.msra.mxu0 0.0
        %3580 = vmatprep.subr.mxu0 0.0
        %3581 = vmatpush1.msra.mxu0 0.0
        %3582 = vmatprep.subr.mxu0 0.0
        %3583 = vmatpush1.msra.mxu0 0.0
        %3584 = vmatprep.subr.mxu0 0.0
        %3585 = vmatpush1.msra.mxu0 0.0
        %3586 = vmatprep.subr.mxu0 0.0
        %3587 = vmatpush1.msra.mxu0 0.0
        %3588 = vmatprep.subr.mxu0 0.0
        %3589 = vmatpush1.msra.mxu0 0.0
        %3590 = vmatprep.subr.mxu0 0.0
        %3591 = vmatpush1.msra.mxu0 0.0
        %3592 = vmatprep.subr.mxu0 0.0
        %3593 = vmatpush1.msra.mxu0 0.0
        %3594 = vmatprep.subr.mxu0 0.0
        %3595 = vmatpush1.msra.mxu0 0.0
        %3596 = vmatprep.subr.mxu0 0.0
        %3597 = vmatpush1.msra.mxu0 0.0
        %3598 = vmatprep.mubr.f32.mxu0 0.0
        %3599 = vmatmul.mubr.f32.gmra.mrb[0].mxu0 %v1024
        %v3600 = vpop.f32.mrb[0].mxu0
        %v3601 = vadd.f32 %v2607, %v3600
        %v3602 = vpop.f32.mrb[0].mxu0
        %v3603 = vadd.f32 %v2609, %v3602
        %3604 = vdwg.mxu0
        %3605 = vmatprep.subr.mxu0 %v1030
        %3606 = vmatpush1.msra.mxu0 %v1029
        %3607 = vmatprep.subr.mxu0 %v1046
        %3608 = vmatpush1.msra.mxu0 %v1045
        %3609 = vmatprep.subr.mxu0 %v1062
        %3610 = vmatpush1.msra.mxu0 %v1061
        %3611 = vmatprep.subr.mxu0 %v1078
        %3612 = vmatpush1.msra.mxu0 %v1077
        %3613 = vmatprep.subr.mxu0 %v1094
        %3614 = vmatpush1.msra.mxu0 %v1093
        %3615 = vmatprep.subr.mxu0 %v1110
        %3616 = vmatpush1.msra.mxu0 %v1109
        %3617 = vmatprep.subr.mxu0 %v1126
        %3618 = vmatpush1.msra.mxu0 %v1125
        %3619 = vmatprep.subr.mxu0 %v1142
        %3620 = vmatpush1.msra.mxu0 %v1141
        %3621 = vmatprep.subr.mxu0 %v1158
        %3622 = vmatpush1.msra.mxu0 %v1157
        %3623 = vmatprep.subr.mxu0 %v1174
        %3624 = vmatpush1.msra.mxu0 %v1173
        %3625 = vmatprep.subr.mxu0 %v1190
        %3626 = vmatpush1.msra.mxu0 %v1189
        %3627 = vmatprep.subr.mxu0 %v1206
        %3628 = vmatpush1.msra.mxu0 %v1205
        %3629 = vmatprep.subr.mxu0 %v1222
        %3630 = vmatpush1.msra.mxu0 %v1221
        %3631 = vmatprep.subr.mxu0 %v1238
        %3632 = vmatpush1.msra.mxu0 %v1237
        %3633 = vmatprep.subr.mxu0 %v1254
        %3634 = vmatpush1.msra.mxu0 %v1253
        %3635 = vmatprep.subr.mxu0 %v1270
        %3636 = vmatpush1.msra.mxu0 %v1269
        %3637 = vmatprep.subr.mxu0 0.0
        %3638 = vmatpush1.msra.mxu0 0.0
        %3639 = vmatprep.subr.mxu0 0.0
        %3640 = vmatpush1.msra.mxu0 0.0
        %3641 = vmatprep.subr.mxu0 0.0
        %3642 = vmatpush1.msra.mxu0 0.0
        %3643 = vmatprep.subr.mxu0 0.0
        %3644 = vmatpush1.msra.mxu0 0.0
        %3645 = vmatprep.subr.mxu0 0.0
        %3646 = vmatpush1.msra.mxu0 0.0
        %3647 = vmatprep.subr.mxu0 0.0
        %3648 = vmatpush1.msra.mxu0 0.0
        %3649 = vmatprep.subr.mxu0 0.0
        %3650 = vmatpush1.msra.mxu0 0.0
        %3651 = vmatprep.subr.mxu0 0.0
        %3652 = vmatpush1.msra.mxu0 0.0
        %3653 = vmatprep.subr.mxu0 0.0
        %3654 = vmatpush1.msra.mxu0 0.0
        %3655 = vmatprep.subr.mxu0 0.0
        %3656 = vmatpush1.msra.mxu0 0.0
        %3657 = vmatprep.subr.mxu0 0.0
        %3658 = vmatpush1.msra.mxu0 0.0
        %3659 = vmatprep.subr.mxu0 0.0
        %3660 = vmatpush1.msra.mxu0 0.0
        %3661 = vmatprep.subr.mxu0 0.0
        %3662 = vmatpush1.msra.mxu0 0.0
        %3663 = vmatprep.subr.mxu0 0.0
        %3664 = vmatpush1.msra.mxu0 0.0
        %3665 = vmatprep.subr.mxu0 0.0
        %3666 = vmatpush1.msra.mxu0 0.0
        %3667 = vmatprep.subr.mxu0 0.0
        %3668 = vmatpush1.msra.mxu0 0.0
        %3669 = vmatprep.mubr.f32.mxu0 0.0
        %3670 = vmatmul.mubr.f32.gmra.mrb[0].mxu0 %v1024
        %v3671 = vpop.f32.mrb[0].mxu0
        %v3672 = vadd.f32 %v2749, %v3671
        %v3673 = vpop.f32.mrb[0].mxu0
        %v3674 = vadd.f32 %v2751, %v3673
        %3675 = vdwg.mxu0
        %3676 = vmatprep.subr.mxu0 %v1032
        %3677 = vmatpush1.msra.mxu0 %v1031
        %3678 = vmatprep.subr.mxu0 %v1048
        %3679 = vmatpush1.msra.mxu0 %v1047
        %3680 = vmatprep.subr.mxu0 %v1064
        %3681 = vmatpush1.msra.mxu0 %v1063
        %3682 = vmatprep.subr.mxu0 %v1080
        %3683 = vmatpush1.msra.mxu0 %v1079
        %3684 = vmatprep.subr.mxu0 %v1096
        %3685 = vmatpush1.msra.mxu0 %v1095
        %3686 = vmatprep.subr.mxu0 %v1112
        %3687 = vmatpush1.msra.mxu0 %v1111
        %3688 = vmatprep.subr.mxu0 %v1128
        %3689 = vmatpush1.msra.mxu0 %v1127
        %3690 = vmatprep.subr.mxu0 %v1144
        %3691 = vmatpush1.msra.mxu0 %v1143
        %3692 = vmatprep.subr.mxu0 %v1160
        %3693 = vmatpush1.msra.mxu0 %v1159
        %3694 = vmatprep.subr.mxu0 %v1176
        %3695 = vmatpush1.msra.mxu0 %v1175
        %3696 = vmatprep.subr.mxu0 %v1192
        %3697 = vmatpush1.msra.mxu0 %v1191
        %3698 = vmatprep.subr.mxu0 %v1208
        %3699 = vmatpush1.msra.mxu0 %v1207
        %3700 = vmatprep.subr.mxu0 %v1224
        %3701 = vmatpush1.msra.mxu0 %v1223
        %3702 = vmatprep.subr.mxu0 %v1240
        %3703 = vmatpush1.msra.mxu0 %v1239
        %3704 = vmatprep.subr.mxu0 %v1256
        %3705 = vmatpush1.msra.mxu0 %v1255
        %3706 = vmatprep.subr.mxu0 %v1272
        %3707 = vmatpush1.msra.mxu0 %v1271
        %3708 = vmatprep.subr.mxu0 0.0
        %3709 = vmatpush1.msra.mxu0 0.0
        %3710 = vmatprep.subr.mxu0 0.0
        %3711 = vmatpush1.msra.mxu0 0.0
        %3712 = vmatprep.subr.mxu0 0.0
        %3713 = vmatpush1.msra.mxu0 0.0
        %3714 = vmatprep.subr.mxu0 0.0
        %3715 = vmatpush1.msra.mxu0 0.0
        %3716 = vmatprep.subr.mxu0 0.0
        %3717 = vmatpush1.msra.mxu0 0.0
        %3718 = vmatprep.subr.mxu0 0.0
        %3719 = vmatpush1.msra.mxu0 0.0
        %3720 = vmatprep.subr.mxu0 0.0
        %3721 = vmatpush1.msra.mxu0 0.0
        %3722 = vmatprep.subr.mxu0 0.0
        %3723 = vmatpush1.msra.mxu0 0.0
        %3724 = vmatprep.subr.mxu0 0.0
        %3725 = vmatpush1.msra.mxu0 0.0
        %3726 = vmatprep.subr.mxu0 0.0
        %3727 = vmatpush1.msra.mxu0 0.0
        %3728 = vmatprep.subr.mxu0 0.0
        %3729 = vmatpush1.msra.mxu0 0.0
        %3730 = vmatprep.subr.mxu0 0.0
        %3731 = vmatpush1.msra.mxu0 0.0
        %3732 = vmatprep.subr.mxu0 0.0
        %3733 = vmatpush1.msra.mxu0 0.0
        %3734 = vmatprep.subr.mxu0 0.0
        %3735 = vmatpush1.msra.mxu0 0.0
        %3736 = vmatprep.subr.mxu0 0.0
        %3737 = vmatpush1.msra.mxu0 0.0
        %3738 = vmatprep.subr.mxu0 0.0
        %3739 = vmatpush1.msra.mxu0 0.0
        %3740 = vmatprep.mubr.f32.mxu0 0.0
        %3741 = vmatmul.mubr.f32.gmra.mrb[0].mxu0 %v1024
        %v3742 = vpop.f32.mrb[0].mxu0
        %v3743 = vadd.f32 %v2891, %v3742
        %v3744 = vpop.f32.mrb[0].mxu0
        %v3745 = vadd.f32 %v2893, %v3744
        %3746 = vdwg.mxu0
        %3747 = vmatprep.subr.mxu0 %v1034
        %3748 = vmatpush1.msra.mxu0 %v1033
        %3749 = vmatprep.subr.mxu0 %v1050
        %3750 = vmatpush1.msra.mxu0 %v1049
        %3751 = vmatprep.subr.mxu0 %v1066
        %3752 = vmatpush1.msra.mxu0 %v1065
        %3753 = vmatprep.subr.mxu0 %v1082
        %3754 = vmatpush1.msra.mxu0 %v1081
        %3755 = vmatprep.subr.mxu0 %v1098
        %3756 = vmatpush1.msra.mxu0 %v1097
        %3757 = vmatprep.subr.mxu0 %v1114
        %3758 = vmatpush1.msra.mxu0 %v1113
        %3759 = vmatprep.subr.mxu0 %v1130
        %3760 = vmatpush1.msra.mxu0 %v1129
        %3761 = vmatprep.subr.mxu0 %v1146
        %3762 = vmatpush1.msra.mxu0 %v1145
        %3763 = vmatprep.subr.mxu0 %v1162
        %3764 = vmatpush1.msra.mxu0 %v1161
        %3765 = vmatprep.subr.mxu0 %v1178
        %3766 = vmatpush1.msra.mxu0 %v1177
        %3767 = vmatprep.subr.mxu0 %v1194
        %3768 = vmatpush1.msra.mxu0 %v1193
        %3769 = vmatprep.subr.mxu0 %v1210
        %3770 = vmatpush1.msra.mxu0 %v1209
        %3771 = vmatprep.subr.mxu0 %v1226
        %3772 = vmatpush1.msra.mxu0 %v1225
        %3773 = vmatprep.subr.mxu0 %v1242
        %3774 = vmatpush1.msra.mxu0 %v1241
        %3775 = vmatprep.subr.mxu0 %v1258
        %3776 = vmatpush1.msra.mxu0 %v1257
        %3777 = vmatprep.subr.mxu0 %v1274
        %3778 = vmatpush1.msra.mxu0 %v1273
        %3779 = vmatprep.subr.mxu0 0.0
        %3780 = vmatpush1.msra.mxu0 0.0
        %3781 = vmatprep.subr.mxu0 0.0
        %3782 = vmatpush1.msra.mxu0 0.0
        %3783 = vmatprep.subr.mxu0 0.0
        %3784 = vmatpush1.msra.mxu0 0.0
        %3785 = vmatprep.subr.mxu0 0.0
        %3786 = vmatpush1.msra.mxu0 0.0
        %3787 = vmatprep.subr.mxu0 0.0
        %3788 = vmatpush1.msra.mxu0 0.0
        %3789 = vmatprep.subr.mxu0 0.0
        %3790 = vmatpush1.msra.mxu0 0.0
        %3791 = vmatprep.subr.mxu0 0.0
        %3792 = vmatpush1.msra.mxu0 0.0
        %3793 = vmatprep.subr.mxu0 0.0
        %3794 = vmatpush1.msra.mxu0 0.0
        %3795 = vmatprep.subr.mxu0 0.0
        %3796 = vmatpush1.msra.mxu0 0.0
        %3797 = vmatprep.subr.mxu0 0.0
        %3798 = vmatpush1.msra.mxu0 0.0
        %3799 = vmatprep.subr.mxu0 0.0
        %3800 = vmatpush1.msra.mxu0 0.0
        %3801 = vmatprep.subr.mxu0 0.0
        %3802 = vmatpush1.msra.mxu0 0.0
        %3803 = vmatprep.subr.mxu0 0.0
        %3804 = vmatpush1.msra.mxu0 0.0
        %3805 = vmatprep.subr.mxu0 0.0
        %3806 = vmatpush1.msra.mxu0 0.0
        %3807 = vmatprep.subr.mxu0 0.0
        %3808 = vmatpush1.msra.mxu0 0.0
        %3809 = vmatprep.subr.mxu0 0.0
        %3810 = vmatpush1.msra.mxu0 0.0
        %3811 = vmatprep.mubr.f32.mxu0 0.0
        %3812 = vmatmul.mubr.f32.gmra.mrb[0].mxu0 %v1024
        %v3813 = vpop.f32.mrb[0].mxu0
        %v3814 = vadd.f32 %v3033, %v3813
        %v3815 = vpop.f32.mrb[0].mxu0
        %v3816 = vadd.f32 %v3035, %v3815
        %3817 = vdwg.mxu0
        %3818 = vmatprep.subr.mxu0 %v1036
        %3819 = vmatpush1.msra.mxu0 %v1035
        %3820 = vmatprep.subr.mxu0 %v1052
        %3821 = vmatpush1.msra.mxu0 %v1051
        %3822 = vmatprep.subr.mxu0 %v1068
        %3823 = vmatpush1.msra.mxu0 %v1067
        %3824 = vmatprep.subr.mxu0 %v1084
        %3825 = vmatpush1.msra.mxu0 %v1083
        %3826 = vmatprep.subr.mxu0 %v1100
        %3827 = vmatpush1.msra.mxu0 %v1099
        %3828 = vmatprep.subr.mxu0 %v1116
        %3829 = vmatpush1.msra.mxu0 %v1115
        %3830 = vmatprep.subr.mxu0 %v1132
        %3831 = vmatpush1.msra.mxu0 %v1131
        %3832 = vmatprep.subr.mxu0 %v1148
        %3833 = vmatpush1.msra.mxu0 %v1147
        %3834 = vmatprep.subr.mxu0 %v1164
        %3835 = vmatpush1.msra.mxu0 %v1163
        %3836 = vmatprep.subr.mxu0 %v1180
        %3837 = vmatpush1.msra.mxu0 %v1179
        %3838 = vmatprep.subr.mxu0 %v1196
        %3839 = vmatpush1.msra.mxu0 %v1195
        %3840 = vmatprep.subr.mxu0 %v1212
        %3841 = vmatpush1.msra.mxu0 %v1211
        %3842 = vmatprep.subr.mxu0 %v1228
        %3843 = vmatpush1.msra.mxu0 %v1227
        %3844 = vmatprep.subr.mxu0 %v1244
        %3845 = vmatpush1.msra.mxu0 %v1243
        %3846 = vmatprep.subr.mxu0 %v1260
        %3847 = vmatpush1.msra.mxu0 %v1259
        %3848 = vmatprep.subr.mxu0 %v1276
        %3849 = vmatpush1.msra.mxu0 %v1275
        %3850 = vmatprep.subr.mxu0 0.0
        %3851 = vmatpush1.msra.mxu0 0.0
        %3852 = vmatprep.subr.mxu0 0.0
        %3853 = vmatpush1.msra.mxu0 0.0
        %3854 = vmatprep.subr.mxu0 0.0
        %3855 = vmatpush1.msra.mxu0 0.0
        %3856 = vmatprep.subr.mxu0 0.0
        %3857 = vmatpush1.msra.mxu0 0.0
        %3858 = vmatprep.subr.mxu0 0.0
        %3859 = vmatpush1.msra.mxu0 0.0
        %3860 = vmatprep.subr.mxu0 0.0
        %3861 = vmatpush1.msra.mxu0 0.0
        %3862 = vmatprep.subr.mxu0 0.0
        %3863 = vmatpush1.msra.mxu0 0.0
        %3864 = vmatprep.subr.mxu0 0.0
        %3865 = vmatpush1.msra.mxu0 0.0
        %3866 = vmatprep.subr.mxu0 0.0
        %3867 = vmatpush1.msra.mxu0 0.0
        %3868 = vmatprep.subr.mxu0 0.0
        %3869 = vmatpush1.msra.mxu0 0.0
        %3870 = vmatprep.subr.mxu0 0.0
        %3871 = vmatpush1.msra.mxu0 0.0
        %3872 = vmatprep.subr.mxu0 0.0
        %3873 = vmatpush1.msra.mxu0 0.0
        %3874 = vmatprep.subr.mxu0 0.0
        %3875 = vmatpush1.msra.mxu0 0.0
        %3876 = vmatprep.subr.mxu0 0.0
        %3877 = vmatpush1.msra.mxu0 0.0
        %3878 = vmatprep.subr.mxu0 0.0
        %3879 = vmatpush1.msra.mxu0 0.0
        %3880 = vmatprep.subr.mxu0 0.0
        %3881 = vmatpush1.msra.mxu0 0.0
        %3882 = vmatprep.mubr.f32.mxu0 0.0
        %3883 = vmatmul.mubr.f32.gmra.mrb[0].mxu0 %v1024
        %v3884 = vpop.f32.mrb[0].mxu0
        %v3885 = vadd.f32 %v3175, %v3884
        %v3886 = vpop.f32.mrb[0].mxu0
        %v3887 = vadd.f32 %v3177, %v3886
        %3888 = vdwg.mxu0
        %3889 = vmatprep.subr.mxu0 %v1038
        %3890 = vmatpush1.msra.mxu0 %v1037
        %3891 = vmatprep.subr.mxu0 %v1054
        %3892 = vmatpush1.msra.mxu0 %v1053
        %3893 = vmatprep.subr.mxu0 %v1070
        %3894 = vmatpush1.msra.mxu0 %v1069
        %3895 = vmatprep.subr.mxu0 %v1086
        %3896 = vmatpush1.msra.mxu0 %v1085
        %3897 = vmatprep.subr.mxu0 %v1102
        %3898 = vmatpush1.msra.mxu0 %v1101
        %3899 = vmatprep.subr.mxu0 %v1118
        %3900 = vmatpush1.msra.mxu0 %v1117
        %3901 = vmatprep.subr.mxu0 %v1134
        %3902 = vmatpush1.msra.mxu0 %v1133
        %3903 = vmatprep.subr.mxu0 %v1150
        %3904 = vmatpush1.msra.mxu0 %v1149
        %3905 = vmatprep.subr.mxu0 %v1166
        %3906 = vmatpush1.msra.mxu0 %v1165
        %3907 = vmatprep.subr.mxu0 %v1182
        %3908 = vmatpush1.msra.mxu0 %v1181
        %3909 = vmatprep.subr.mxu0 %v1198
        %3910 = vmatpush1.msra.mxu0 %v1197
        %3911 = vmatprep.subr.mxu0 %v1214
        %3912 = vmatpush1.msra.mxu0 %v1213
        %3913 = vmatprep.subr.mxu0 %v1230
        %3914 = vmatpush1.msra.mxu0 %v1229
        %3915 = vmatprep.subr.mxu0 %v1246
        %3916 = vmatpush1.msra.mxu0 %v1245
        %3917 = vmatprep.subr.mxu0 %v1262
        %3918 = vmatpush1.msra.mxu0 %v1261
        %3919 = vmatprep.subr.mxu0 %v1278
        %3920 = vmatpush1.msra.mxu0 %v1277
        %3921 = vmatprep.subr.mxu0 0.0
        %3922 = vmatpush1.msra.mxu0 0.0
        %3923 = vmatprep.subr.mxu0 0.0
        %3924 = vmatpush1.msra.mxu0 0.0
        %3925 = vmatprep.subr.mxu0 0.0
        %3926 = vmatpush1.msra.mxu0 0.0
        %3927 = vmatprep.subr.mxu0 0.0
        %3928 = vmatpush1.msra.mxu0 0.0
        %3929 = vmatprep.subr.mxu0 0.0
        %3930 = vmatpush1.msra.mxu0 0.0
        %3931 = vmatprep.subr.mxu0 0.0
        %3932 = vmatpush1.msra.mxu0 0.0
        %3933 = vmatprep.subr.mxu0 0.0
        %3934 = vmatpush1.msra.mxu0 0.0
        %3935 = vmatprep.subr.mxu0 0.0
        %3936 = vmatpush1.msra.mxu0 0.0
        %3937 = vmatprep.subr.mxu0 0.0
        %3938 = vmatpush1.msra.mxu0 0.0
        %3939 = vmatprep.subr.mxu0 0.0
        %3940 = vmatpush1.msra.mxu0 0.0
        %3941 = vmatprep.subr.mxu0 0.0
        %3942 = vmatpush1.msra.mxu0 0.0
        %3943 = vmatprep.subr.mxu0 0.0
        %3944 = vmatpush1.msra.mxu0 0.0
        %3945 = vmatprep.subr.mxu0 0.0
        %3946 = vmatpush1.msra.mxu0 0.0
        %3947 = vmatprep.subr.mxu0 0.0
        %3948 = vmatpush1.msra.mxu0 0.0
        %3949 = vmatprep.subr.mxu0 0.0
        %3950 = vmatpush1.msra.mxu0 0.0
        %3951 = vmatprep.subr.mxu0 0.0
        %3952 = vmatpush1.msra.mxu0 0.0
        %3953 = vmatprep.mubr.f32.mxu0 0.0
        %3954 = vmatmul.mubr.f32.gmra.mrb[0].mxu0 %v1024
        %v3955 = vpop.f32.mrb[0].mxu0
        %v3956 = vadd.f32 %v3317, %v3955
        %v3957 = vpop.f32.mrb[0].mxu0
        %v3958 = vadd.f32 %v3319, %v3957
        %3959 = vdwg.mxu0
        %3960 = vmatprep.subr.mxu0 %v1040
        %3961 = vmatpush1.msra.mxu0 %v1039
        %3962 = vmatprep.subr.mxu0 %v1056
        %3963 = vmatpush1.msra.mxu0 %v1055
        %3964 = vmatprep.subr.mxu0 %v1072
        %3965 = vmatpush1.msra.mxu0 %v1071
        %3966 = vmatprep.subr.mxu0 %v1088
        %3967 = vmatpush1.msra.mxu0 %v1087
        %3968 = vmatprep.subr.mxu0 %v1104
        %3969 = vmatpush1.msra.mxu0 %v1103
        %3970 = vmatprep.subr.mxu0 %v1120
        %3971 = vmatpush1.msra.mxu0 %v1119
        %3972 = vmatprep.subr.mxu0 %v1136
        %3973 = vmatpush1.msra.mxu0 %v1135
        %3974 = vmatprep.subr.mxu0 %v1152
        %3975 = vmatpush1.msra.mxu0 %v1151
        %3976 = vmatprep.subr.mxu0 %v1168
        %3977 = vmatpush1.msra.mxu0 %v1167
        %3978 = vmatprep.subr.mxu0 %v1184
        %3979 = vmatpush1.msra.mxu0 %v1183
        %3980 = vmatprep.subr.mxu0 %v1200
        %3981 = vmatpush1.msra.mxu0 %v1199
        %3982 = vmatprep.subr.mxu0 %v1216
        %3983 = vmatpush1.msra.mxu0 %v1215
        %3984 = vmatprep.subr.mxu0 %v1232
        %3985 = vmatpush1.msra.mxu0 %v1231
        %3986 = vmatprep.subr.mxu0 %v1248
        %3987 = vmatpush1.msra.mxu0 %v1247
        %3988 = vmatprep.subr.mxu0 %v1264
        %3989 = vmatpush1.msra.mxu0 %v1263
        %3990 = vmatprep.subr.mxu0 %v1280
        %3991 = vmatpush1.msra.mxu0 %v1279
        %3992 = vmatprep.subr.mxu0 0.0
        %3993 = vmatpush1.msra.mxu0 0.0
        %3994 = vmatprep.subr.mxu0 0.0
        %3995 = vmatpush1.msra.mxu0 0.0
        %3996 = vmatprep.subr.mxu0 0.0
        %3997 = vmatpush1.msra.mxu0 0.0
        %3998 = vmatprep.subr.mxu0 0.0
        %3999 = vmatpush1.msra.mxu0 0.0
        %4000 = vmatprep.subr.mxu0 0.0
        %4001 = vmatpush1.msra.mxu0 0.0
        %4002 = vmatprep.subr.mxu0 0.0
        %4003 = vmatpush1.msra.mxu0 0.0
        %4004 = vmatprep.subr.mxu0 0.0
        %4005 = vmatpush1.msra.mxu0 0.0
        %4006 = vmatprep.subr.mxu0 0.0
        %4007 = vmatpush1.msra.mxu0 0.0
        %4008 = vmatprep.subr.mxu0 0.0
        %4009 = vmatpush1.msra.mxu0 0.0
        %4010 = vmatprep.subr.mxu0 0.0
        %4011 = vmatpush1.msra.mxu0 0.0
        %4012 = vmatprep.subr.mxu0 0.0
        %4013 = vmatpush1.msra.mxu0 0.0
        %4014 = vmatprep.subr.mxu0 0.0
        %4015 = vmatpush1.msra.mxu0 0.0
        %4016 = vmatprep.subr.mxu0 0.0
        %4017 = vmatpush1.msra.mxu0 0.0
        %4018 = vmatprep.subr.mxu0 0.0
        %4019 = vmatpush1.msra.mxu0 0.0
        %4020 = vmatprep.subr.mxu0 0.0
        %4021 = vmatpush1.msra.mxu0 0.0
        %4022 = vmatprep.subr.mxu0 0.0
        %4023 = vmatpush1.msra.mxu0 0.0
        %4024 = vmatprep.mubr.f32.mxu0 0.0
        %4025 = vmatmul.mubr.f32.gmra.mrb[0].mxu0 %v1024
        %v4026 = vpop.f32.mrb[0].mxu0
        %v4027 = vadd.f32 %v3459, %v4026
        %v4028 = vpop.f32.mrb[0].mxu0
        %v4029 = vadd.f32 %v3461, %v4028
        %4030 = vdwg.mxu0
        %v4031 = vld [vmem:[#allocation15] sm:$0xff]
        %v4032 = vld [vmem:[#allocation15 + $0x8] sm:$0xff]
        %v4035 = vlaneseq
        %v4036 = vshrl.u32 %v4035, 7
        %v4037 = vsub.s32 0, %v4036
        %v4038 = vrot.slane %v4031, %v4037
        %v4039 = vlaneseq
        %v4040 = vshrl.u32 %v4039, 7
        %v4041 = vsub.s32 1, %v4040
        %v4042 = vrot.slane %v4031, %v4041
        %v4043 = vlaneseq
        %v4044 = vshrl.u32 %v4043, 7
        %v4045 = vsub.s32 2, %v4044
        %v4046 = vrot.slane %v4031, %v4045
        %v4047 = vlaneseq
        %v4048 = vshrl.u32 %v4047, 7
        %v4049 = vsub.s32 3, %v4048
        %v4050 = vrot.slane %v4031, %v4049
        %v4051 = vlaneseq
        %v4052 = vshrl.u32 %v4051, 7
        %v4053 = vsub.s32 4, %v4052
        %v4054 = vrot.slane %v4031, %v4053
        %v4055 = vlaneseq
        %v4056 = vshrl.u32 %v4055, 7
        %v4057 = vsub.s32 5, %v4056
        %v4058 = vrot.slane %v4031, %v4057
        %v4059 = vlaneseq
        %v4060 = vshrl.u32 %v4059, 7
        %v4061 = vsub.s32 6, %v4060
        %v4062 = vrot.slane %v4031, %v4061
        %v4063 = vlaneseq
        %v4064 = vshrl.u32 %v4063, 7
        %v4065 = vsub.s32 7, %v4064
        %v4066 = vrot.slane %v4031, %v4065
        %v4067 = vlaneseq
        %v4068 = vshrl.u32 %v4067, 7
        %v4069 = vsub.s32 0, %v4068
        %v4070 = vrot.slane %v4032, %v4069
        %v4071 = vlaneseq
        %v4072 = vshrl.u32 %v4071, 7
        %v4073 = vsub.s32 1, %v4072
        %v4074 = vrot.slane %v4032, %v4073
        %v4075 = vlaneseq
        %v4076 = vshrl.u32 %v4075, 7
        %v4077 = vsub.s32 2, %v4076
        %v4078 = vrot.slane %v4032, %v4077
        %v4079 = vlaneseq
        %v4080 = vshrl.u32 %v4079, 7
        %v4081 = vsub.s32 3, %v4080
        %v4082 = vrot.slane %v4032, %v4081
        %v4083 = vlaneseq
        %v4084 = vshrl.u32 %v4083, 7
        %v4085 = vsub.s32 4, %v4084
        %v4086 = vrot.slane %v4032, %v4085
        %v4087 = vlaneseq
        %v4088 = vshrl.u32 %v4087, 7
        %v4089 = vsub.s32 5, %v4088
        %v4090 = vrot.slane %v4032, %v4089
        %v4091 = vlaneseq
        %v4092 = vshrl.u32 %v4091, 7
        %v4093 = vsub.s32 6, %v4092
        %v4094 = vrot.slane %v4032, %v4093
        %v4095 = vlaneseq
        %v4096 = vshrl.u32 %v4095, 7
        %v4097 = vsub.s32 7, %v4096
        %v4098 = vrot.slane %v4032, %v4097
        %v4115 = vadd.f32 %v3530, %v4038
        %v4116 = vadd.f32 %v3532, %v4042
        %v4117 = vadd.f32 %v3601, %v4046
        %v4118 = vadd.f32 %v3603, %v4050
        %v4119 = vadd.f32 %v3672, %v4054
        %v4120 = vadd.f32 %v3674, %v4058
        %v4121 = vadd.f32 %v3743, %v4062
        %v4122 = vadd.f32 %v3745, %v4066
        %v4123 = vadd.f32 %v3814, %v4070
        %v4124 = vadd.f32 %v3816, %v4074
        %v4125 = vadd.f32 %v3885, %v4078
        %v4126 = vadd.f32 %v3887, %v4082
        %v4127 = vadd.f32 %v3956, %v4086
        %v4128 = vadd.f32 %v3958, %v4090
        %v4129 = vadd.f32 %v4027, %v4094
        %v4130 = vadd.f32 %v4029, %v4098
        %v4131 = vlaneseq
        %v4132 = vand.u32 %v4131, 127
        %v4133 = vadd.s32 %v4132, 128
        %v4134 = vadd.s32 %v4132, 256
        %v4135 = vadd.s32 %v4132, 384
        %v4136 = vadd.s32 %v4132, 512
        %v4137 = vadd.s32 %v4132, 640
        %v4138 = vadd.s32 %v4132, 768
        %v4139 = vadd.s32 %v4132, 896
        %v4140 = vadd.s32 %v4132, 1024
        %v4141 = vadd.s32 %v4132, 1152
        %v4142 = vadd.s32 %v4132, 1280
        %v4143 = vadd.s32 %v4132, 1408
        %v4144 = vadd.s32 %v4132, 1536
        %v4145 = vadd.s32 %v4132, 1664
        %v4146 = vadd.s32 %v4132, 1792
        %v4147 = vadd.s32 %v4132, 1920
        %vm4148 = vcmp.ge.s32.totalorder %v4132, 1024
        %vm4149 = vcmp.ge.s32.totalorder %v4133, 1024
        %vm4150 = vcmp.ge.s32.totalorder %v4134, 1024
        %vm4151 = vcmp.ge.s32.totalorder %v4135, 1024
        %vm4152 = vcmp.ge.s32.totalorder %v4136, 1024
        %vm4153 = vcmp.ge.s32.totalorder %v4137, 1024
        %vm4154 = vcmp.ge.s32.totalorder %v4138, 1024
        %vm4155 = vcmp.ge.s32.totalorder %v4139, 1024
        %vm4156 = vcmp.ge.s32.totalorder %v4140, 1024
        %vm4157 = vcmp.ge.s32.totalorder %v4141, 1024
        %vm4158 = vcmp.ge.s32.totalorder %v4142, 1024
        %vm4159 = vcmp.ge.s32.totalorder %v4143, 1024
        %vm4160 = vcmp.ge.s32.totalorder %v4144, 1024
        %vm4161 = vcmp.ge.s32.totalorder %v4145, 1024
        %vm4162 = vcmp.ge.s32.totalorder %v4146, 1024
        %vm4163 = vcmp.ge.s32.totalorder %v4147, 1024
        %vm4164 = vcmp.lt.s32.totalorder %v4132, 1536
        %vm4165 = vcmp.lt.s32.totalorder %v4133, 1536
        %vm4166 = vcmp.lt.s32.totalorder %v4134, 1536
        %vm4167 = vcmp.lt.s32.totalorder %v4135, 1536
        %vm4168 = vcmp.lt.s32.totalorder %v4136, 1536
        %vm4169 = vcmp.lt.s32.totalorder %v4137, 1536
        %vm4170 = vcmp.lt.s32.totalorder %v4138, 1536
        %vm4171 = vcmp.lt.s32.totalorder %v4139, 1536
        %vm4172 = vcmp.lt.s32.totalorder %v4140, 1536
        %vm4173 = vcmp.lt.s32.totalorder %v4141, 1536
        %vm4174 = vcmp.lt.s32.totalorder %v4142, 1536
        %vm4175 = vcmp.lt.s32.totalorder %v4143, 1536
        %vm4176 = vcmp.lt.s32.totalorder %v4144, 1536
        %vm4177 = vcmp.lt.s32.totalorder %v4145, 1536
        %vm4178 = vcmp.lt.s32.totalorder %v4146, 1536
        %vm4179 = vcmp.lt.s32.totalorder %v4147, 1536
        %vm4180 = vmand %vm4148, %vm4164
        %vm4181 = vmand %vm4149, %vm4165
        %vm4182 = vmand %vm4150, %vm4166
        %vm4183 = vmand %vm4151, %vm4167
        %vm4184 = vmand %vm4152, %vm4168
        %vm4185 = vmand %vm4153, %vm4169
        %vm4186 = vmand %vm4154, %vm4170
        %vm4187 = vmand %vm4155, %vm4171
        %vm4188 = vmand %vm4156, %vm4172
        %vm4189 = vmand %vm4157, %vm4173
        %vm4190 = vmand %vm4158, %vm4174
        %vm4191 = vmand %vm4159, %vm4175
        %vm4192 = vmand %vm4160, %vm4176
        %vm4193 = vmand %vm4161, %vm4177
        %vm4194 = vmand %vm4162, %vm4178
        %vm4195 = vmand %vm4163, %vm4179
        %v4196 = vtanh.pop %v4115
        %v4197 = vtanh.pop %v4116
        %v4198 = vtanh.pop %v4117
        %v4199 = vtanh.pop %v4118
        %v4200 = vtanh.pop %v4119
        %v4201 = vtanh.pop %v4120
        %v4202 = vtanh.pop %v4121
        %v4203 = vtanh.pop %v4122
        %v4204 = vtanh.pop %v4123
        %v4205 = vtanh.pop %v4124
        %v4206 = vtanh.pop %v4125
        %v4207 = vtanh.pop %v4126
        %v4208 = vtanh.pop %v4127
        %v4209 = vtanh.pop %v4128
        %v4210 = vtanh.pop %v4129
        %v4211 = vtanh.pop %v4130
        %v4212 = vxor.u32 %v4115, 2147483648
        %v4213 = vxor.u32 %v4116, 2147483648
        %v4214 = vxor.u32 %v4117, 2147483648
        %v4215 = vxor.u32 %v4118, 2147483648
        %v4216 = vxor.u32 %v4119, 2147483648
        %v4217 = vxor.u32 %v4120, 2147483648
        %v4218 = vxor.u32 %v4121, 2147483648
        %v4219 = vxor.u32 %v4122, 2147483648
        %v4220 = vxor.u32 %v4123, 2147483648
        %v4221 = vxor.u32 %v4124, 2147483648
        %v4222 = vxor.u32 %v4125, 2147483648
        %v4223 = vxor.u32 %v4126, 2147483648
        %v4224 = vxor.u32 %v4127, 2147483648
        %v4225 = vxor.u32 %v4128, 2147483648
        %v4226 = vxor.u32 %v4129, 2147483648
        %v4227 = vxor.u32 %v4130, 2147483648
        %v4228 = vmul.f32 %v4212, 1.442695
        %v4229 = vpow.pop %v4228
        %v4230 = vmul.f32 %v4213, 1.442695
        %v4231 = vpow.pop %v4230
        %v4232 = vmul.f32 %v4214, 1.442695
        %v4233 = vpow.pop %v4232
        %v4234 = vmul.f32 %v4215, 1.442695
        %v4235 = vpow.pop %v4234
        %v4236 = vmul.f32 %v4216, 1.442695
        %v4237 = vpow.pop %v4236
        %v4238 = vmul.f32 %v4217, 1.442695
        %v4239 = vpow.pop %v4238
        %v4240 = vmul.f32 %v4218, 1.442695
        %v4241 = vpow.pop %v4240
        %v4242 = vmul.f32 %v4219, 1.442695
        %v4243 = vpow.pop %v4242
        %v4244 = vmul.f32 %v4220, 1.442695
        %v4245 = vpow.pop %v4244
        %v4246 = vmul.f32 %v4221, 1.442695
        %v4247 = vpow.pop %v4246
        %v4248 = vmul.f32 %v4222, 1.442695
        %v4249 = vpow.pop %v4248
        %v4250 = vmul.f32 %v4223, 1.442695
        %v4251 = vpow.pop %v4250
        %v4252 = vmul.f32 %v4224, 1.442695
        %v4253 = vpow.pop %v4252
        %v4254 = vmul.f32 %v4225, 1.442695
        %v4255 = vpow.pop %v4254
        %v4256 = vmul.f32 %v4226, 1.442695
        %v4257 = vpow.pop %v4256
        %v4258 = vmul.f32 %v4227, 1.442695
        %v4259 = vpow.pop %v4258
        %v4260 = vadd.f32 %v4229, 1.0
        %v4261 = vadd.f32 %v4231, 1.0
        %v4262 = vadd.f32 %v4233, 1.0
        %v4263 = vadd.f32 %v4235, 1.0
        %v4264 = vadd.f32 %v4237, 1.0
        %v4265 = vadd.f32 %v4239, 1.0
        %v4266 = vadd.f32 %v4241, 1.0
        %v4267 = vadd.f32 %v4243, 1.0
        %v4268 = vadd.f32 %v4245, 1.0
        %v4269 = vadd.f32 %v4247, 1.0
        %v4270 = vadd.f32 %v4249, 1.0
        %v4271 = vadd.f32 %v4251, 1.0
        %v4272 = vadd.f32 %v4253, 1.0
        %v4273 = vadd.f32 %v4255, 1.0
        %v4274 = vadd.f32 %v4257, 1.0
        %v4275 = vadd.f32 %v4259, 1.0
        %v4276 = vrcp.pop %v4260
        %v4277 = vmul.f32 1.0, %v4276
        %v4278 = vrcp.pop %v4261
        %v4279 = vmul.f32 1.0, %v4278
        %v4280 = vrcp.pop %v4262
        %v4281 = vmul.f32 1.0, %v4280
        %v4282 = vrcp.pop %v4263
        %v4283 = vmul.f32 1.0, %v4282
        %v4284 = vrcp.pop %v4264
        %v4285 = vmul.f32 1.0, %v4284
        %v4286 = vrcp.pop %v4265
        %v4287 = vmul.f32 1.0, %v4286
        %v4288 = vrcp.pop %v4266
        %v4289 = vmul.f32 1.0, %v4288
        %v4290 = vrcp.pop %v4267
        %v4291 = vmul.f32 1.0, %v4290
        %v4292 = vrcp.pop %v4268
        %v4293 = vmul.f32 1.0, %v4292
        %v4294 = vrcp.pop %v4269
        %v4295 = vmul.f32 1.0, %v4294
        %v4296 = vrcp.pop %v4270
        %v4297 = vmul.f32 1.0, %v4296
        %v4298 = vrcp.pop %v4271
        %v4299 = vmul.f32 1.0, %v4298
        %v4300 = vrcp.pop %v4272
        %v4301 = vmul.f32 1.0, %v4300
        %v4302 = vrcp.pop %v4273
        %v4303 = vmul.f32 1.0, %v4302
        %v4304 = vrcp.pop %v4274
        %v4305 = vmul.f32 1.0, %v4304
        %v4306 = vrcp.pop %v4275
        %v4307 = vmul.f32 1.0, %v4306
        %v4308 = vsel %vm4180, %v4196, %v4277
        %v4309 = vsel %vm4181, %v4197, %v4279
        %v4310 = vsel %vm4182, %v4198, %v4281
        %v4311 = vsel %vm4183, %v4199, %v4283
        %v4312 = vsel %vm4184, %v4200, %v4285
        %v4313 = vsel %vm4185, %v4201, %v4287
        %v4314 = vsel %vm4186, %v4202, %v4289
        %v4315 = vsel %vm4187, %v4203, %v4291
        %v4316 = vsel %vm4188, %v4204, %v4293
        %v4317 = vsel %vm4189, %v4205, %v4295
        %v4318 = vsel %vm4190, %v4206, %v4297
        %v4319 = vsel %vm4191, %v4207, %v4299
        %v4320 = vsel %vm4192, %v4208, %v4301
        %v4321 = vsel %vm4193, %v4209, %v4303
        %v4322 = vsel %vm4194, %v4210, %v4305
        %v4323 = vsel %vm4195, %v4211, %v4307
        %v4325 = vcombine.high %v608, %v608
        %v4327 = vunpack.c.l.s4 1983009808
        %v4328 = vunpack.c.0.s8 %v4327
        %v4329 = vlaneseq
        %v4330 = vshrl.u32 %v4329, 7
        %v4331 = vsub.s32 %v4328, %v4330
        %v4332 = vrot.slane %v608, %v4331
        %v4334 = vunpack.c.l.s4 1983009808
        %v4335 = vunpack.c.0.s8 %v4334
        %v4336 = vlaneseq
        %v4337 = vshrl.u32 %v4336, 7
        %v4338 = vsub.s32 %v4335, %v4337
        %v4339 = vrot.slane %v4325, %v4338
        %v4340 = vcombine.high %v4332, %v4332
        %v4341 = vcombine.high %v4339, %v4339
        %v4346 = vmul.f32 %v4312, %v4332
        %v4347 = vmul.f32 %v4313, %v4340
        %v4348 = vmul.f32 %v4314, %v4339
        %v4349 = vmul.f32 %v4315, %v4341
        %v4350 = vmul.f32 %v4308, %v4316
        %v4351 = vmul.f32 %v4309, %v4317
        %v4352 = vmul.f32 %v4310, %v4318
        %v4353 = vmul.f32 %v4311, %v4319
        %v4354 = vadd.f32 %v4346, %v4350
        %v4355 = vadd.f32 %v4347, %v4351
        %v4356 = vadd.f32 %v4348, %v4352
        %v4357 = vadd.f32 %v4349, %v4353
        %v4358 = vtanh.pop %v4354
        %v4359 = vtanh.pop %v4355
        %v4360 = vtanh.pop %v4356
        %v4361 = vtanh.pop %v4357
        %v4362 = vmul.f32 %v4320, %v4358
        %v4363 = vmul.f32 %v4321, %v4359
        %v4364 = vmul.f32 %v4322, %v4360
        %v4365 = vmul.f32 %v4323, %v4361
        %v4366 = vld [vmem:[#allocation16] sm:$0xff]
        %v4367 = vld [vmem:[#allocation16 + $0x8] sm:$0xff]
        %v4368 = vld [vmem:[#allocation16 + $0x10] sm:$0xff]
        %v4369 = vld [vmem:[#allocation16 + $0x18] sm:$0xff]
        %v4370 = vld [vmem:[#allocation16 + $0x20] sm:$0xff]
        %v4371 = vld [vmem:[#allocation16 + $0x28] sm:$0xff]
        %v4372 = vld [vmem:[#allocation16 + $0x30] sm:$0xff]
        %v4373 = vld [vmem:[#allocation16 + $0x38] sm:$0xff]
        %v4374 = vld [vmem:[#allocation16 + $0x40] sm:$0xff]
        %v4375 = vld [vmem:[#allocation16 + $0x48] sm:$0xff]
        %v4376 = vld [vmem:[#allocation16 + $0x50] sm:$0xff]
        %v4377 = vld [vmem:[#allocation16 + $0x58] sm:$0xff]
        %v4378 = vld [vmem:[#allocation16 + $0x60] sm:$0xff]
        %v4379 = vld [vmem:[#allocation16 + $0x68] sm:$0xff]
        %v4380 = vld [vmem:[#allocation16 + $0x70] sm:$0xff]
        %v4381 = vld [vmem:[#allocation16 + $0x78] sm:$0xff]
        %v4382 = vld [vmem:[#allocation16 + $0x80] sm:$0xff]
        %v4383 = vld [vmem:[#allocation16 + $0x88] sm:$0xff]
        %v4384 = vld [vmem:[#allocation16 + $0x90] sm:$0xff]
        %v4385 = vld [vmem:[#allocation16 + $0x98] sm:$0xff]
        %v4386 = vld [vmem:[#allocation16 + $0xa0] sm:$0xff]
        %v4387 = vld [vmem:[#allocation16 + $0xa8] sm:$0xff]
        %v4388 = vld [vmem:[#allocation16 + $0xb0] sm:$0xff]
        %v4389 = vld [vmem:[#allocation16 + $0xb8] sm:$0xff]
        %v4390 = vld [vmem:[#allocation16 + $0xc0] sm:$0xff]
        %v4391 = vld [vmem:[#allocation16 + $0xc8] sm:$0xff]
        %v4392 = vld [vmem:[#allocation16 + $0xd0] sm:$0xff]
        %v4393 = vld [vmem:[#allocation16 + $0xd8] sm:$0xff]
        %v4394 = vld [vmem:[#allocation16 + $0xe0] sm:$0xff]
        %v4395 = vld [vmem:[#allocation16 + $0xe8] sm:$0xff]
        %v4396 = vld [vmem:[#allocation16 + $0xf0] sm:$0xff]
        %v4397 = vld [vmem:[#allocation16 + $0xf8] sm:$0xff]
        %v4398 = vld [vmem:[#allocation16 + $0x100] sm:$0xff]
        %v4399 = vld [vmem:[#allocation16 + $0x108] sm:$0xff]
        %v4400 = vld [vmem:[#allocation16 + $0x110] sm:$0xff]
        %v4401 = vld [vmem:[#allocation16 + $0x118] sm:$0xff]
        %v4402 = vld [vmem:[#allocation16 + $0x120] sm:$0xff]
        %v4403 = vld [vmem:[#allocation16 + $0x128] sm:$0xff]
        %v4404 = vld [vmem:[#allocation16 + $0x130] sm:$0xff]
        %v4405 = vld [vmem:[#allocation16 + $0x138] sm:$0xff]
        %v4406 = vld [vmem:[#allocation16 + $0x140] sm:$0xff]
        %v4407 = vld [vmem:[#allocation16 + $0x148] sm:$0xff]
        %v4408 = vld [vmem:[#allocation16 + $0x150] sm:$0xff]
        %v4409 = vld [vmem:[#allocation16 + $0x158] sm:$0xff]
        %v4410 = vld [vmem:[#allocation16 + $0x160] sm:$0xff]
        %v4411 = vld [vmem:[#allocation16 + $0x168] sm:$0xff]
        %v4412 = vld [vmem:[#allocation16 + $0x170] sm:$0xff]
        %v4413 = vld [vmem:[#allocation16 + $0x178] sm:$0xff]
        %v4414 = vld [vmem:[#allocation16 + $0x180] sm:$0xff]
        %v4415 = vld [vmem:[#allocation16 + $0x188] sm:$0xff]
        %v4416 = vld [vmem:[#allocation16 + $0x190] sm:$0xff]
        %v4417 = vld [vmem:[#allocation16 + $0x198] sm:$0xff]
        %v4418 = vld [vmem:[#allocation16 + $0x1a0] sm:$0xff]
        %v4419 = vld [vmem:[#allocation16 + $0x1a8] sm:$0xff]
        %v4420 = vld [vmem:[#allocation16 + $0x1b0] sm:$0xff]
        %v4421 = vld [vmem:[#allocation16 + $0x1b8] sm:$0xff]
        %v4422 = vld [vmem:[#allocation16 + $0x1c0] sm:$0xff]
        %v4423 = vld [vmem:[#allocation16 + $0x1c8] sm:$0xff]
        %v4424 = vld [vmem:[#allocation16 + $0x1d0] sm:$0xff]
        %v4425 = vld [vmem:[#allocation16 + $0x1d8] sm:$0xff]
        %v4426 = vld [vmem:[#allocation16 + $0x1e0] sm:$0xff]
        %v4427 = vld [vmem:[#allocation16 + $0x1e8] sm:$0xff]
        %v4428 = vld [vmem:[#allocation16 + $0x1f0] sm:$0xff]
        %v4429 = vld [vmem:[#allocation16 + $0x1f8] sm:$0xff]
        %v4430 = vld [vmem:[#allocation16 + $0x200] sm:$0xff]
        %v4431 = vld [vmem:[#allocation16 + $0x208] sm:$0xff]
        %v4432 = vld [vmem:[#allocation16 + $0x210] sm:$0xff]
        %v4433 = vld [vmem:[#allocation16 + $0x218] sm:$0xff]
        %v4434 = vld [vmem:[#allocation16 + $0x220] sm:$0xff]
        %v4435 = vld [vmem:[#allocation16 + $0x228] sm:$0xff]
        %v4436 = vld [vmem:[#allocation16 + $0x230] sm:$0xff]
        %v4437 = vld [vmem:[#allocation16 + $0x238] sm:$0xff]
        %v4438 = vld [vmem:[#allocation16 + $0x240] sm:$0xff]
        %v4439 = vld [vmem:[#allocation16 + $0x248] sm:$0xff]
        %v4440 = vld [vmem:[#allocation16 + $0x250] sm:$0xff]
        %v4441 = vld [vmem:[#allocation16 + $0x258] sm:$0xff]
        %v4442 = vld [vmem:[#allocation16 + $0x260] sm:$0xff]
        %v4443 = vld [vmem:[#allocation16 + $0x268] sm:$0xff]
        %v4444 = vld [vmem:[#allocation16 + $0x270] sm:$0xff]
        %v4445 = vld [vmem:[#allocation16 + $0x278] sm:$0xff]
        %v4446 = vld [vmem:[#allocation16 + $0x280] sm:$0xff]
        %v4447 = vld [vmem:[#allocation16 + $0x288] sm:$0xff]
        %v4448 = vld [vmem:[#allocation16 + $0x290] sm:$0xff]
        %v4449 = vld [vmem:[#allocation16 + $0x298] sm:$0xff]
        %v4450 = vld [vmem:[#allocation16 + $0x2a0] sm:$0xff]
        %v4451 = vld [vmem:[#allocation16 + $0x2a8] sm:$0xff]
        %v4452 = vld [vmem:[#allocation16 + $0x2b0] sm:$0xff]
        %v4453 = vld [vmem:[#allocation16 + $0x2b8] sm:$0xff]
        %v4454 = vld [vmem:[#allocation16 + $0x2c0] sm:$0xff]
        %v4455 = vld [vmem:[#allocation16 + $0x2c8] sm:$0xff]
        %v4456 = vld [vmem:[#allocation16 + $0x2d0] sm:$0xff]
        %v4457 = vld [vmem:[#allocation16 + $0x2d8] sm:$0xff]
        %v4458 = vld [vmem:[#allocation16 + $0x2e0] sm:$0xff]
        %v4459 = vld [vmem:[#allocation16 + $0x2e8] sm:$0xff]
        %v4460 = vld [vmem:[#allocation16 + $0x2f0] sm:$0xff]
        %v4461 = vld [vmem:[#allocation16 + $0x2f8] sm:$0xff]
        %v4462 = vld [vmem:[#allocation16 + $0x300] sm:$0xff]
        %v4463 = vld [vmem:[#allocation16 + $0x308] sm:$0xff]
        %v4464 = vld [vmem:[#allocation16 + $0x310] sm:$0xff]
        %v4465 = vld [vmem:[#allocation16 + $0x318] sm:$0xff]
        %v4466 = vld [vmem:[#allocation16 + $0x320] sm:$0xff]
        %v4467 = vld [vmem:[#allocation16 + $0x328] sm:$0xff]
        %v4468 = vld [vmem:[#allocation16 + $0x330] sm:$0xff]
        %v4469 = vld [vmem:[#allocation16 + $0x338] sm:$0xff]
        %v4470 = vld [vmem:[#allocation16 + $0x340] sm:$0xff]
        %v4471 = vld [vmem:[#allocation16 + $0x348] sm:$0xff]
        %v4472 = vld [vmem:[#allocation16 + $0x350] sm:$0xff]
        %v4473 = vld [vmem:[#allocation16 + $0x358] sm:$0xff]
        %v4474 = vld [vmem:[#allocation16 + $0x360] sm:$0xff]
        %v4475 = vld [vmem:[#allocation16 + $0x368] sm:$0xff]
        %v4476 = vld [vmem:[#allocation16 + $0x370] sm:$0xff]
        %v4477 = vld [vmem:[#allocation16 + $0x378] sm:$0xff]
        %v4478 = vld [vmem:[#allocation16 + $0x380] sm:$0xff]
        %v4479 = vld [vmem:[#allocation16 + $0x388] sm:$0xff]
        %v4480 = vld [vmem:[#allocation16 + $0x390] sm:$0xff]
        %v4481 = vld [vmem:[#allocation16 + $0x398] sm:$0xff]
        %v4482 = vld [vmem:[#allocation16 + $0x3a0] sm:$0xff]
        %v4483 = vld [vmem:[#allocation16 + $0x3a8] sm:$0xff]
        %v4484 = vld [vmem:[#allocation16 + $0x3b0] sm:$0xff]
        %v4485 = vld [vmem:[#allocation16 + $0x3b8] sm:$0xff]
        %v4486 = vld [vmem:[#allocation16 + $0x3c0] sm:$0xff]
        %v4487 = vld [vmem:[#allocation16 + $0x3c8] sm:$0xff]
        %v4488 = vld [vmem:[#allocation16 + $0x3d0] sm:$0xff]
        %v4489 = vld [vmem:[#allocation16 + $0x3d8] sm:$0xff]
        %v4490 = vld [vmem:[#allocation16 + $0x3e0] sm:$0xff]
        %v4491 = vld [vmem:[#allocation16 + $0x3e8] sm:$0xff]
        %v4492 = vld [vmem:[#allocation16 + $0x3f0] sm:$0xff]
        %v4493 = vld [vmem:[#allocation16 + $0x3f8] sm:$0xff]
        %v4494 = vld [vmem:[#allocation16 + $0x400] sm:$0xff]
        %v4495 = vld [vmem:[#allocation16 + $0x408] sm:$0xff]
        %v4496 = vld [vmem:[#allocation16 + $0x410] sm:$0xff]
        %v4497 = vld [vmem:[#allocation16 + $0x418] sm:$0xff]
        %v4498 = vld [vmem:[#allocation16 + $0x420] sm:$0xff]
        %v4499 = vld [vmem:[#allocation16 + $0x428] sm:$0xff]
        %v4500 = vld [vmem:[#allocation16 + $0x430] sm:$0xff]
        %v4501 = vld [vmem:[#allocation16 + $0x438] sm:$0xff]
        %v4502 = vld [vmem:[#allocation16 + $0x440] sm:$0xff]
        %v4503 = vld [vmem:[#allocation16 + $0x448] sm:$0xff]
        %v4504 = vld [vmem:[#allocation16 + $0x450] sm:$0xff]
        %v4505 = vld [vmem:[#allocation16 + $0x458] sm:$0xff]
        %v4506 = vld [vmem:[#allocation16 + $0x460] sm:$0xff]
        %v4507 = vld [vmem:[#allocation16 + $0x468] sm:$0xff]
        %v4508 = vld [vmem:[#allocation16 + $0x470] sm:$0xff]
        %v4509 = vld [vmem:[#allocation16 + $0x478] sm:$0xff]
        %v4510 = vld [vmem:[#allocation16 + $0x480] sm:$0xff]
        %v4511 = vld [vmem:[#allocation16 + $0x488] sm:$0xff]
        %v4512 = vld [vmem:[#allocation16 + $0x490] sm:$0xff]
        %v4513 = vld [vmem:[#allocation16 + $0x498] sm:$0xff]
        %v4514 = vld [vmem:[#allocation16 + $0x4a0] sm:$0xff]
        %v4515 = vld [vmem:[#allocation16 + $0x4a8] sm:$0xff]
        %v4516 = vld [vmem:[#allocation16 + $0x4b0] sm:$0xff]
        %v4517 = vld [vmem:[#allocation16 + $0x4b8] sm:$0xff]
        %v4518 = vld [vmem:[#allocation16 + $0x4c0] sm:$0xff]
        %v4519 = vld [vmem:[#allocation16 + $0x4c8] sm:$0xff]
        %v4520 = vld [vmem:[#allocation16 + $0x4d0] sm:$0xff]
        %v4521 = vld [vmem:[#allocation16 + $0x4d8] sm:$0xff]
        %v4522 = vld [vmem:[#allocation16 + $0x4e0] sm:$0xff]
        %v4523 = vld [vmem:[#allocation16 + $0x4e8] sm:$0xff]
        %v4524 = vld [vmem:[#allocation16 + $0x4f0] sm:$0xff]
        %v4525 = vld [vmem:[#allocation16 + $0x4f8] sm:$0xff]
        %v4526 = vld [vmem:[#allocation16 + $0x500] sm:$0xff]
        %v4527 = vld [vmem:[#allocation16 + $0x508] sm:$0xff]
        %v4528 = vld [vmem:[#allocation16 + $0x510] sm:$0xff]
        %v4529 = vld [vmem:[#allocation16 + $0x518] sm:$0xff]
        %v4530 = vld [vmem:[#allocation16 + $0x520] sm:$0xff]
        %v4531 = vld [vmem:[#allocation16 + $0x528] sm:$0xff]
        %v4532 = vld [vmem:[#allocation16 + $0x530] sm:$0xff]
        %v4533 = vld [vmem:[#allocation16 + $0x538] sm:$0xff]
        %v4534 = vld [vmem:[#allocation16 + $0x540] sm:$0xff]
        %v4535 = vld [vmem:[#allocation16 + $0x548] sm:$0xff]
        %v4536 = vld [vmem:[#allocation16 + $0x550] sm:$0xff]
        %v4537 = vld [vmem:[#allocation16 + $0x558] sm:$0xff]
        %v4538 = vld [vmem:[#allocation16 + $0x560] sm:$0xff]
        %v4539 = vld [vmem:[#allocation16 + $0x568] sm:$0xff]
        %v4540 = vld [vmem:[#allocation16 + $0x570] sm:$0xff]
        %v4541 = vld [vmem:[#allocation16 + $0x578] sm:$0xff]
        %v4542 = vld [vmem:[#allocation16 + $0x580] sm:$0xff]
        %v4543 = vld [vmem:[#allocation16 + $0x588] sm:$0xff]
        %v4544 = vld [vmem:[#allocation16 + $0x590] sm:$0xff]
        %v4545 = vld [vmem:[#allocation16 + $0x598] sm:$0xff]
        %v4546 = vld [vmem:[#allocation16 + $0x5a0] sm:$0xff]
        %v4547 = vld [vmem:[#allocation16 + $0x5a8] sm:$0xff]
        %v4548 = vld [vmem:[#allocation16 + $0x5b0] sm:$0xff]
        %v4549 = vld [vmem:[#allocation16 + $0x5b8] sm:$0xff]
        %v4550 = vld [vmem:[#allocation16 + $0x5c0] sm:$0xff]
        %v4551 = vld [vmem:[#allocation16 + $0x5c8] sm:$0xff]
        %v4552 = vld [vmem:[#allocation16 + $0x5d0] sm:$0xff]
        %v4553 = vld [vmem:[#allocation16 + $0x5d8] sm:$0xff]
        %v4554 = vld [vmem:[#allocation16 + $0x5e0] sm:$0xff]
        %v4555 = vld [vmem:[#allocation16 + $0x5e8] sm:$0xff]
        %v4556 = vld [vmem:[#allocation16 + $0x5f0] sm:$0xff]
        %v4557 = vld [vmem:[#allocation16 + $0x5f8] sm:$0xff]
        %v4558 = vld [vmem:[#allocation16 + $0x600] sm:$0xff]
        %v4559 = vld [vmem:[#allocation16 + $0x608] sm:$0xff]
        %v4560 = vld [vmem:[#allocation16 + $0x610] sm:$0xff]
        %v4561 = vld [vmem:[#allocation16 + $0x618] sm:$0xff]
        %v4562 = vld [vmem:[#allocation16 + $0x620] sm:$0xff]
        %v4563 = vld [vmem:[#allocation16 + $0x628] sm:$0xff]
        %v4564 = vld [vmem:[#allocation16 + $0x630] sm:$0xff]
        %v4565 = vld [vmem:[#allocation16 + $0x638] sm:$0xff]
        %v4566 = vld [vmem:[#allocation16 + $0x640] sm:$0xff]
        %v4567 = vld [vmem:[#allocation16 + $0x648] sm:$0xff]
        %v4568 = vld [vmem:[#allocation16 + $0x650] sm:$0xff]
        %v4569 = vld [vmem:[#allocation16 + $0x658] sm:$0xff]
        %v4570 = vld [vmem:[#allocation16 + $0x660] sm:$0xff]
        %v4571 = vld [vmem:[#allocation16 + $0x668] sm:$0xff]
        %v4572 = vld [vmem:[#allocation16 + $0x670] sm:$0xff]
        %v4573 = vld [vmem:[#allocation16 + $0x678] sm:$0xff]
        %v4574 = vld [vmem:[#allocation16 + $0x680] sm:$0xff]
        %v4575 = vld [vmem:[#allocation16 + $0x688] sm:$0xff]
        %v4576 = vld [vmem:[#allocation16 + $0x690] sm:$0xff]
        %v4577 = vld [vmem:[#allocation16 + $0x698] sm:$0xff]
        %v4578 = vld [vmem:[#allocation16 + $0x6a0] sm:$0xff]
        %v4579 = vld [vmem:[#allocation16 + $0x6a8] sm:$0xff]
        %v4580 = vld [vmem:[#allocation16 + $0x6b0] sm:$0xff]
        %v4581 = vld [vmem:[#allocation16 + $0x6b8] sm:$0xff]
        %v4582 = vld [vmem:[#allocation16 + $0x6c0] sm:$0xff]
        %v4583 = vld [vmem:[#allocation16 + $0x6c8] sm:$0xff]
        %v4584 = vld [vmem:[#allocation16 + $0x6d0] sm:$0xff]
        %v4585 = vld [vmem:[#allocation16 + $0x6d8] sm:$0xff]
        %v4586 = vld [vmem:[#allocation16 + $0x6e0] sm:$0xff]
        %v4587 = vld [vmem:[#allocation16 + $0x6e8] sm:$0xff]
        %v4588 = vld [vmem:[#allocation16 + $0x6f0] sm:$0xff]
        %v4589 = vld [vmem:[#allocation16 + $0x6f8] sm:$0xff]
        %v4590 = vld [vmem:[#allocation16 + $0x700] sm:$0xff]
        %v4591 = vld [vmem:[#allocation16 + $0x708] sm:$0xff]
        %v4592 = vld [vmem:[#allocation16 + $0x710] sm:$0xff]
        %v4593 = vld [vmem:[#allocation16 + $0x718] sm:$0xff]
        %v4594 = vld [vmem:[#allocation16 + $0x720] sm:$0xff]
        %v4595 = vld [vmem:[#allocation16 + $0x728] sm:$0xff]
        %v4596 = vld [vmem:[#allocation16 + $0x730] sm:$0xff]
        %v4597 = vld [vmem:[#allocation16 + $0x738] sm:$0xff]
        %v4598 = vld [vmem:[#allocation16 + $0x740] sm:$0xff]
        %v4599 = vld [vmem:[#allocation16 + $0x748] sm:$0xff]
        %v4600 = vld [vmem:[#allocation16 + $0x750] sm:$0xff]
        %v4601 = vld [vmem:[#allocation16 + $0x758] sm:$0xff]
        %v4602 = vld [vmem:[#allocation16 + $0x760] sm:$0xff]
        %v4603 = vld [vmem:[#allocation16 + $0x768] sm:$0xff]
        %v4604 = vld [vmem:[#allocation16 + $0x770] sm:$0xff]
        %v4605 = vld [vmem:[#allocation16 + $0x778] sm:$0xff]
        %v4606 = vld [vmem:[#allocation16 + $0x780] sm:$0xff]
        %v4607 = vld [vmem:[#allocation16 + $0x788] sm:$0xff]
        %v4608 = vld [vmem:[#allocation16 + $0x790] sm:$0xff]
        %v4609 = vld [vmem:[#allocation16 + $0x798] sm:$0xff]
        %v4610 = vld [vmem:[#allocation16 + $0x7a0] sm:$0xff]
        %v4611 = vld [vmem:[#allocation16 + $0x7a8] sm:$0xff]
        %v4612 = vld [vmem:[#allocation16 + $0x7b0] sm:$0xff]
        %v4613 = vld [vmem:[#allocation16 + $0x7b8] sm:$0xff]
        %v4614 = vld [vmem:[#allocation16 + $0x7c0] sm:$0xff]
        %v4615 = vld [vmem:[#allocation16 + $0x7c8] sm:$0xff]
        %v4616 = vld [vmem:[#allocation16 + $0x7d0] sm:$0xff]
        %v4617 = vld [vmem:[#allocation16 + $0x7d8] sm:$0xff]
        %v4618 = vld [vmem:[#allocation16 + $0x7e0] sm:$0xff]
        %v4619 = vld [vmem:[#allocation16 + $0x7e8] sm:$0xff]
        %v4620 = vld [vmem:[#allocation16 + $0x7f0] sm:$0xff]
        %v4621 = vld [vmem:[#allocation16 + $0x7f8] sm:$0xff]
        %v4622 = vld [vmem:[#allocation18] sm:$0xf]
        %v4624 = vlaneseq
        %v4625 = vshrl.u32 %v4624, 7
        %v4626 = vsub.s32 0, %v4625
        %v4627 = vrot.slane %v4622, %v4626
        %v4628 = vlaneseq
        %v4629 = vshrl.u32 %v4628, 7
        %v4630 = vsub.s32 1, %v4629
        %v4631 = vrot.slane %v4622, %v4630
        %v4632 = vlaneseq
        %v4633 = vshrl.u32 %v4632, 7
        %v4634 = vsub.s32 2, %v4633
        %v4635 = vrot.slane %v4622, %v4634
        %v4636 = vlaneseq
        %v4637 = vshrl.u32 %v4636, 7
        %v4638 = vsub.s32 3, %v4637
        %v4639 = vrot.slane %v4622, %v4638
        %4644 = vmatprep.subr.mxu0 %v4367
        %4645 = vmatpush1.msra.mxu0 %v4366
        %4646 = vmatprep.subr.mxu0 %v4371
        %4647 = vmatpush1.msra.mxu0 %v4370
        %4648 = vmatprep.subr.mxu0 %v4375
        %4649 = vmatpush1.msra.mxu0 %v4374
        %4650 = vmatprep.subr.mxu0 %v4379
        %4651 = vmatpush1.msra.mxu0 %v4378
        %4652 = vmatprep.subr.mxu0 %v4383
        %4653 = vmatpush1.msra.mxu0 %v4382
        %4654 = vmatprep.subr.mxu0 %v4387
        %4655 = vmatpush1.msra.mxu0 %v4386
        %4656 = vmatprep.subr.mxu0 %v4391
        %4657 = vmatpush1.msra.mxu0 %v4390
        %4658 = vmatprep.subr.mxu0 %v4395
        %4659 = vmatpush1.msra.mxu0 %v4394
        %4660 = vmatprep.subr.mxu0 %v4399
        %4661 = vmatpush1.msra.mxu0 %v4398
        %4662 = vmatprep.subr.mxu0 %v4403
        %4663 = vmatpush1.msra.mxu0 %v4402
        %4664 = vmatprep.subr.mxu0 %v4407
        %4665 = vmatpush1.msra.mxu0 %v4406
        %4666 = vmatprep.subr.mxu0 %v4411
        %4667 = vmatpush1.msra.mxu0 %v4410
        %4668 = vmatprep.subr.mxu0 %v4415
        %4669 = vmatpush1.msra.mxu0 %v4414
        %4670 = vmatprep.subr.mxu0 %v4419
        %4671 = vmatpush1.msra.mxu0 %v4418
        %4672 = vmatprep.subr.mxu0 %v4423
        %4673 = vmatpush1.msra.mxu0 %v4422
        %4674 = vmatprep.subr.mxu0 %v4427
        %4675 = vmatpush1.msra.mxu0 %v4426
        %4676 = vmatprep.subr.mxu0 %v4431
        %4677 = vmatpush1.msra.mxu0 %v4430
        %4678 = vmatprep.subr.mxu0 %v4435
        %4679 = vmatpush1.msra.mxu0 %v4434
        %4680 = vmatprep.subr.mxu0 %v4439
        %4681 = vmatpush1.msra.mxu0 %v4438
        %4682 = vmatprep.subr.mxu0 %v4443
        %4683 = vmatpush1.msra.mxu0 %v4442
        %4684 = vmatprep.subr.mxu0 %v4447
        %4685 = vmatpush1.msra.mxu0 %v4446
        %4686 = vmatprep.subr.mxu0 %v4451
        %4687 = vmatpush1.msra.mxu0 %v4450
        %4688 = vmatprep.subr.mxu0 %v4455
        %4689 = vmatpush1.msra.mxu0 %v4454
        %4690 = vmatprep.subr.mxu0 %v4459
        %4691 = vmatpush1.msra.mxu0 %v4458
        %4692 = vmatprep.subr.mxu0 %v4463
        %4693 = vmatpush1.msra.mxu0 %v4462
        %4694 = vmatprep.subr.mxu0 %v4467
        %4695 = vmatpush1.msra.mxu0 %v4466
        %4696 = vmatprep.subr.mxu0 %v4471
        %4697 = vmatpush1.msra.mxu0 %v4470
        %4698 = vmatprep.subr.mxu0 %v4475
        %4699 = vmatpush1.msra.mxu0 %v4474
        %4700 = vmatprep.subr.mxu0 %v4479
        %4701 = vmatpush1.msra.mxu0 %v4478
        %4702 = vmatprep.subr.mxu0 %v4483
        %4703 = vmatpush1.msra.mxu0 %v4482
        %4704 = vmatprep.subr.mxu0 %v4487
        %4705 = vmatpush1.msra.mxu0 %v4486
        %4706 = vmatprep.subr.mxu0 %v4491
        %4707 = vmatpush1.msra.mxu0 %v4490
        %4708 = vmatprep.mubr.f32.mxu0 %v4363
        %4709 = vmatmul.mubr.f32.gmra.mrb[0].mxu0 %v4362
        %v4710 = vpop.f32.mrb[0].mxu0
        %v4711 = vadd.f32 %v4627, %v4710
        %v4712 = vpop.f32.mrb[0].mxu0
        %v4713 = vadd.f32 %v4631, %v4712
        %4714 = vdwg.mxu0
        %4715 = vmatprep.subr.mxu0 %v4495
        %4716 = vmatpush1.msra.mxu0 %v4494
        %4717 = vmatprep.subr.mxu0 %v4499
        %4718 = vmatpush1.msra.mxu0 %v4498
        %4719 = vmatprep.subr.mxu0 %v4503
        %4720 = vmatpush1.msra.mxu0 %v4502
        %4721 = vmatprep.subr.mxu0 %v4507
        %4722 = vmatpush1.msra.mxu0 %v4506
        %4723 = vmatprep.subr.mxu0 %v4511
        %4724 = vmatpush1.msra.mxu0 %v4510
        %4725 = vmatprep.subr.mxu0 %v4515
        %4726 = vmatpush1.msra.mxu0 %v4514
        %4727 = vmatprep.subr.mxu0 %v4519
        %4728 = vmatpush1.msra.mxu0 %v4518
        %4729 = vmatprep.subr.mxu0 %v4523
        %4730 = vmatpush1.msra.mxu0 %v4522
        %4731 = vmatprep.subr.mxu0 %v4527
        %4732 = vmatpush1.msra.mxu0 %v4526
        %4733 = vmatprep.subr.mxu0 %v4531
        %4734 = vmatpush1.msra.mxu0 %v4530
        %4735 = vmatprep.subr.mxu0 %v4535
        %4736 = vmatpush1.msra.mxu0 %v4534
        %4737 = vmatprep.subr.mxu0 %v4539
        %4738 = vmatpush1.msra.mxu0 %v4538
        %4739 = vmatprep.subr.mxu0 %v4543
        %4740 = vmatpush1.msra.mxu0 %v4542
        %4741 = vmatprep.subr.mxu0 %v4547
        %4742 = vmatpush1.msra.mxu0 %v4546
        %4743 = vmatprep.subr.mxu0 %v4551
        %4744 = vmatpush1.msra.mxu0 %v4550
        %4745 = vmatprep.subr.mxu0 %v4555
        %4746 = vmatpush1.msra.mxu0 %v4554
        %4747 = vmatprep.subr.mxu0 %v4559
        %4748 = vmatpush1.msra.mxu0 %v4558
        %4749 = vmatprep.subr.mxu0 %v4563
        %4750 = vmatpush1.msra.mxu0 %v4562
        %4751 = vmatprep.subr.mxu0 %v4567
        %4752 = vmatpush1.msra.mxu0 %v4566
        %4753 = vmatprep.subr.mxu0 %v4571
        %4754 = vmatpush1.msra.mxu0 %v4570
        %4755 = vmatprep.subr.mxu0 %v4575
        %4756 = vmatpush1.msra.mxu0 %v4574
        %4757 = vmatprep.subr.mxu0 %v4579
        %4758 = vmatpush1.msra.mxu0 %v4578
        %4759 = vmatprep.subr.mxu0 %v4583
        %4760 = vmatpush1.msra.mxu0 %v4582
        %4761 = vmatprep.subr.mxu0 %v4587
        %4762 = vmatpush1.msra.mxu0 %v4586
        %4763 = vmatprep.subr.mxu0 %v4591
        %4764 = vmatpush1.msra.mxu0 %v4590
        %4765 = vmatprep.subr.mxu0 %v4595
        %4766 = vmatpush1.msra.mxu0 %v4594
        %4767 = vmatprep.subr.mxu0 %v4599
        %4768 = vmatpush1.msra.mxu0 %v4598
        %4769 = vmatprep.subr.mxu0 %v4603
        %4770 = vmatpush1.msra.mxu0 %v4602
        %4771 = vmatprep.subr.mxu0 %v4607
        %4772 = vmatpush1.msra.mxu0 %v4606
        %4773 = vmatprep.subr.mxu0 %v4611
        %4774 = vmatpush1.msra.mxu0 %v4610
        %4775 = vmatprep.subr.mxu0 %v4615
        %4776 = vmatpush1.msra.mxu0 %v4614
        %4777 = vmatprep.subr.mxu0 %v4619
        %4778 = vmatpush1.msra.mxu0 %v4618
        %4779 = vmatprep.mubr.f32.mxu0 %v4365
        %4780 = vmatmul.mubr.f32.gmra.mrb[0].mxu0 %v4364
        %v4781 = vpop.f32.mrb[0].mxu0
        %v4782 = vadd.f32 %v4711, %v4781
        %v4783 = vpop.f32.mrb[0].mxu0
        %v4784 = vadd.f32 %v4713, %v4783
        %4785 = vdwg.mxu0
        %4786 = vmatprep.subr.mxu0 %v4369
        %4787 = vmatpush1.msra.mxu0 %v4368
        %4788 = vmatprep.subr.mxu0 %v4373
        %4789 = vmatpush1.msra.mxu0 %v4372
        %4790 = vmatprep.subr.mxu0 %v4377
        %4791 = vmatpush1.msra.mxu0 %v4376
        %4792 = vmatprep.subr.mxu0 %v4381
        %4793 = vmatpush1.msra.mxu0 %v4380
        %4794 = vmatprep.subr.mxu0 %v4385
        %4795 = vmatpush1.msra.mxu0 %v4384
        %4796 = vmatprep.subr.mxu0 %v4389
        %4797 = vmatpush1.msra.mxu0 %v4388
        %4798 = vmatprep.subr.mxu0 %v4393
        %4799 = vmatpush1.msra.mxu0 %v4392
        %4800 = vmatprep.subr.mxu0 %v4397
        %4801 = vmatpush1.msra.mxu0 %v4396
        %4802 = vmatprep.subr.mxu0 %v4401
        %4803 = vmatpush1.msra.mxu0 %v4400
        %4804 = vmatprep.subr.mxu0 %v4405
        %4805 = vmatpush1.msra.mxu0 %v4404
        %4806 = vmatprep.subr.mxu0 %v4409
        %4807 = vmatpush1.msra.mxu0 %v4408
        %4808 = vmatprep.subr.mxu0 %v4413
        %4809 = vmatpush1.msra.mxu0 %v4412
        %4810 = vmatprep.subr.mxu0 %v4417
        %4811 = vmatpush1.msra.mxu0 %v4416
        %4812 = vmatprep.subr.mxu0 %v4421
        %4813 = vmatpush1.msra.mxu0 %v4420
        %4814 = vmatprep.subr.mxu0 %v4425
        %4815 = vmatpush1.msra.mxu0 %v4424
        %4816 = vmatprep.subr.mxu0 %v4429
        %4817 = vmatpush1.msra.mxu0 %v4428
        %4818 = vmatprep.subr.mxu0 %v4433
        %4819 = vmatpush1.msra.mxu0 %v4432
        %4820 = vmatprep.subr.mxu0 %v4437
        %4821 = vmatpush1.msra.mxu0 %v4436
        %4822 = vmatprep.subr.mxu0 %v4441
        %4823 = vmatpush1.msra.mxu0 %v4440
        %4824 = vmatprep.subr.mxu0 %v4445
        %4825 = vmatpush1.msra.mxu0 %v4444
        %4826 = vmatprep.subr.mxu0 %v4449
        %4827 = vmatpush1.msra.mxu0 %v4448
        %4828 = vmatprep.subr.mxu0 %v4453
        %4829 = vmatpush1.msra.mxu0 %v4452
        %4830 = vmatprep.subr.mxu0 %v4457
        %4831 = vmatpush1.msra.mxu0 %v4456
        %4832 = vmatprep.subr.mxu0 %v4461
        %4833 = vmatpush1.msra.mxu0 %v4460
        %4834 = vmatprep.subr.mxu0 %v4465
        %4835 = vmatpush1.msra.mxu0 %v4464
        %4836 = vmatprep.subr.mxu0 %v4469
        %4837 = vmatpush1.msra.mxu0 %v4468
        %4838 = vmatprep.subr.mxu0 %v4473
        %4839 = vmatpush1.msra.mxu0 %v4472
        %4840 = vmatprep.subr.mxu0 %v4477
        %4841 = vmatpush1.msra.mxu0 %v4476
        %4842 = vmatprep.subr.mxu0 %v4481
        %4843 = vmatpush1.msra.mxu0 %v4480
        %4844 = vmatprep.subr.mxu0 %v4485
        %4845 = vmatpush1.msra.mxu0 %v4484
        %4846 = vmatprep.subr.mxu0 %v4489
        %4847 = vmatpush1.msra.mxu0 %v4488
        %4848 = vmatprep.subr.mxu0 %v4493
        %4849 = vmatpush1.msra.mxu0 %v4492
        %4850 = vmatprep.mubr.f32.mxu0 %v4363
        %4851 = vmatmul.mubr.f32.gmra.mrb[0].mxu0 %v4362
        %v4852 = vpop.f32.mrb[0].mxu0
        %v4853 = vadd.f32 %v4635, %v4852
        %v4854 = vpop.f32.mrb[0].mxu0
        %v4855 = vadd.f32 %v4639, %v4854
        %4856 = vdwg.mxu0
        %4857 = vmatprep.subr.mxu0 %v4497
        %4858 = vmatpush1.msra.mxu0 %v4496
        %4859 = vmatprep.subr.mxu0 %v4501
        %4860 = vmatpush1.msra.mxu0 %v4500
        %4861 = vmatprep.subr.mxu0 %v4505
        %4862 = vmatpush1.msra.mxu0 %v4504
        %4863 = vmatprep.subr.mxu0 %v4509
        %4864 = vmatpush1.msra.mxu0 %v4508
        %4865 = vmatprep.subr.mxu0 %v4513
        %4866 = vmatpush1.msra.mxu0 %v4512
        %4867 = vmatprep.subr.mxu0 %v4517
        %4868 = vmatpush1.msra.mxu0 %v4516
        %4869 = vmatprep.subr.mxu0 %v4521
        %4870 = vmatpush1.msra.mxu0 %v4520
        %4871 = vmatprep.subr.mxu0 %v4525
        %4872 = vmatpush1.msra.mxu0 %v4524
        %4873 = vmatprep.subr.mxu0 %v4529
        %4874 = vmatpush1.msra.mxu0 %v4528
        %4875 = vmatprep.subr.mxu0 %v4533
        %4876 = vmatpush1.msra.mxu0 %v4532
        %4877 = vmatprep.subr.mxu0 %v4537
        %4878 = vmatpush1.msra.mxu0 %v4536
        %4879 = vmatprep.subr.mxu0 %v4541
        %4880 = vmatpush1.msra.mxu0 %v4540
        %4881 = vmatprep.subr.mxu0 %v4545
        %4882 = vmatpush1.msra.mxu0 %v4544
        %4883 = vmatprep.subr.mxu0 %v4549
        %4884 = vmatpush1.msra.mxu0 %v4548
        %4885 = vmatprep.subr.mxu0 %v4553
        %4886 = vmatpush1.msra.mxu0 %v4552
        %4887 = vmatprep.subr.mxu0 %v4557
        %4888 = vmatpush1.msra.mxu0 %v4556
        %4889 = vmatprep.subr.mxu0 %v4561
        %4890 = vmatpush1.msra.mxu0 %v4560
        %4891 = vmatprep.subr.mxu0 %v4565
        %4892 = vmatpush1.msra.mxu0 %v4564
        %4893 = vmatprep.subr.mxu0 %v4569
        %4894 = vmatpush1.msra.mxu0 %v4568
        %4895 = vmatprep.subr.mxu0 %v4573
        %4896 = vmatpush1.msra.mxu0 %v4572
        %4897 = vmatprep.subr.mxu0 %v4577
        %4898 = vmatpush1.msra.mxu0 %v4576
        %4899 = vmatprep.subr.mxu0 %v4581
        %4900 = vmatpush1.msra.mxu0 %v4580
        %4901 = vmatprep.subr.mxu0 %v4585
        %4902 = vmatpush1.msra.mxu0 %v4584
        %4903 = vmatprep.subr.mxu0 %v4589
        %4904 = vmatpush1.msra.mxu0 %v4588
        %4905 = vmatprep.subr.mxu0 %v4593
        %4906 = vmatpush1.msra.mxu0 %v4592
        %4907 = vmatprep.subr.mxu0 %v4597
        %4908 = vmatpush1.msra.mxu0 %v4596
        %4909 = vmatprep.subr.mxu0 %v4601
        %4910 = vmatpush1.msra.mxu0 %v4600
        %4911 = vmatprep.subr.mxu0 %v4605
        %4912 = vmatpush1.msra.mxu0 %v4604
        %4913 = vmatprep.subr.mxu0 %v4609
        %4914 = vmatpush1.msra.mxu0 %v4608
        %4915 = vmatprep.subr.mxu0 %v4613
        %4916 = vmatpush1.msra.mxu0 %v4612
        %4917 = vmatprep.subr.mxu0 %v4617
        %4918 = vmatpush1.msra.mxu0 %v4616
        %4919 = vmatprep.subr.mxu0 %v4621
        %4920 = vmatpush1.msra.mxu0 %v4620
        %4921 = vmatprep.mubr.f32.mxu0 %v4365
        %4922 = vmatmul.mubr.f32.gmra.mrb[0].mxu0 %v4364
        %v4923 = vpop.f32.mrb[0].mxu0
        %v4924 = vadd.f32 %v4853, %v4923
        %v4925 = vpop.f32.mrb[0].mxu0
        %v4926 = vadd.f32 %v4855, %v4925
        %4927 = vdwg.mxu0
        %v4928 = vmul.f32 %v4782, 0.002
        %v4929 = vmul.f32 %v4784, 0.002
        %v4930 = vmul.f32 %v4924, 0.002
        %v4931 = vmul.f32 %v4926, 0.002
        %v4936 = vcombine.low %v4928, %v4929
        %v4937 = vcombine.low %v4930, %v4931
        %v4939 = vunpack.c.l.s4 1983009808
        %v4940 = vunpack.c.0.s8 %v4939
        %v4941 = vlaneseq
        %v4942 = vshrl.u32 %v4941, 7
        %v4943 = vsub.s32 %v4940, %v4942
        %v4944 = vrot.slane %v4936, %v4943
        %v4946 = vunpack.c.l.s4 1983009808
        %v4947 = vunpack.c.0.s8 %v4946
        %v4948 = vlaneseq
        %v4949 = vshrl.u32 %v4948, 7
        %v4950 = vsub.s32 %v4947, %v4949
        %v4951 = vrot.slane %v4937, %v4950
        %v4952 = vcombine.low %v4944, %v4951
        %v4954 = vadd.f32 %v606, %v4952
        %4955 = vst [vmem:[#allocation2] sm:$0xff] %v4954
        %v4960 = vcombine.low %v4362, %v4363
        %v4961 = vcombine.low %v4364, %v4365
        %v4963 = vunpack.c.l.s4 1983009808
        %v4964 = vunpack.c.0.s8 %v4963
        %v4965 = vlaneseq
        %v4966 = vshrl.u32 %v4965, 7
        %v4967 = vsub.s32 %v4964, %v4966
        %v4968 = vrot.slane %v4960, %v4967
        %v4970 = vunpack.c.l.s4 1983009808
        %v4971 = vunpack.c.0.s8 %v4970
        %v4972 = vlaneseq
        %v4973 = vshrl.u32 %v4972, 7
        %v4974 = vsub.s32 %v4971, %v4973
        %v4975 = vrot.slane %v4961, %v4974
        %v4976 = vcombine.low %v4968, %v4975
        %4978 = vst [vmem:[#allocation3] sm:$0xff] %v4976
        %v4983 = vcombine.low %v4354, %v4355
        %v4984 = vcombine.low %v4356, %v4357
        %v4986 = vunpack.c.l.s4 1983009808
        %v4987 = vunpack.c.0.s8 %v4986
        %v4988 = vlaneseq
        %v4989 = vshrl.u32 %v4988, 7
        %v4990 = vsub.s32 %v4987, %v4989
        %v4991 = vrot.slane %v4983, %v4990
        %v4993 = vunpack.c.l.s4 1983009808
        %v4994 = vunpack.c.0.s8 %v4993
        %v4995 = vlaneseq
        %v4996 = vshrl.u32 %v4995, 7
        %v4997 = vsub.s32 %v4994, %v4996
        %v4998 = vrot.slane %v4984, %v4997
        %v4999 = vcombine.low %v4991, %v4998
        %5001 = vst [vmem:[#allocation4] sm:$0xff] %v4999
        %5002 = vst [vmem:[%s585] sm:$0xff] %v4954
        %5003 = vst [vmem:[%s590] sm:$0xff] %v4976
        %5004 = vst [vmem:[%s595] sm:$0xff] %v4999
        %p5005 = scmp.lt.s32.totalorder %s31, 1
        %s5006 = scalar_select %p5005, %s31, 1
        %s5007 = smul.addr %s5006, 4
        %s5008 = smul.addr %s5007, 2
        %s5009 = scalar_lea.vmem %s12, %s5008
        %p5010 = scmp.lt.s32.totalorder %s31, 1
        %s5011 = scalar_select %p5010, %s31, 1
        %s5012 = smul.addr %s5011, 4
        %s5013 = smul.addr %s5012, 2
        %s5014 = scalar_lea.vmem %s13, %s5013
        %p5015 = scmp.lt.s32.totalorder %s31, 1
        %s5016 = scalar_select %p5015, %s31, 1
        %s5017 = smul.addr %s5016, 4
        %s5018 = smul.addr %s5017, 2
        %s5019 = scalar_lea.vmem %s14, %s5018
        // Predicated region
        $region109: #{phycrnet_forward.1} parent=67 // pred_check
          %p5020 = pneg %p301
        $region110: #{phycrnet_forward.1} parent=67 // pred_check_branch
          %5022 = sbr.rel (%p5020) target = $region112
        $region111: #{phycrnet_forward.1} parent=67 // pred_region
          _
        $region112: #{phycrnet_forward.1} parent=67 // pred_fallthru
          _
        // Predicated region
        $region113: #{phycrnet_forward.1} parent=67 // pred_check
          %p5023 = pneg %p327
        $region114: #{phycrnet_forward.1} parent=67 // pred_check_branch
          %5025 = sbr.rel (%p5023) target = $region116
        $region115: #{phycrnet_forward.1} parent=67 // pred_region
          _
        $region116: #{phycrnet_forward.1} parent=67 // pred_fallthru
          _
        // Predicated region
        $region117: #{phycrnet_forward.1} parent=67 // pred_check
          %p5026 = pneg %p353
        $region118: #{phycrnet_forward.1} parent=67 // pred_check_branch
          %5028 = sbr.rel (%p5026) target = $region120
        $region119: #{phycrnet_forward.1} parent=67 // pred_region
          _
        $region120: #{phycrnet_forward.1} parent=67 // pred_fallthru
          _
      $region68: #{phycrnet_forward.1} parent=5 // pred_fallthru
        _
      %p5029 = scmp.le.s32.totalorder 2, %s26
      // Predicated region
      $region121: #{phycrnet_forward.1} parent=5 // pred_check
        %p5030 = pneg %p5029
      $region122: #{phycrnet_forward.1} parent=5 // pred_check_branch
        %5032 = sbr.rel (%p5030) target = $region124
      $region123: #{phycrnet_forward.1} parent=5 // pred_region
        %s5033 = ssub.s32 %s26, 2
        // Predicated region
        $region125: #{phycrnet_forward.1} parent=123 // pred_check
          %p5034 = pneg %p307
        $region126: #{phycrnet_forward.1} parent=123 // pred_check_branch
          %5036 = sbr.rel (%p5034) target = $region128
        $region127: #{phycrnet_forward.1} parent=123 // pred_region
          %p5037 = scmp.lt.s32.totalorder %s32, 1
          %s5038 = scalar_select %p5037, %s32, 1
          %s5039 = smul.addr %s5038, 4
          %s5040 = smul.addr %s5039, 2
          %s5041 = scalar_lea.vmem %s12, %s5040
        $region128: #{phycrnet_forward.1} parent=123 // pred_fallthru
          _
        // Predicated region
        $region129: #{phycrnet_forward.1} parent=123 // pred_check
          %p5042 = pneg %p333
        $region130: #{phycrnet_forward.1} parent=123 // pred_check_branch
          %5044 = sbr.rel (%p5042) target = $region132
        $region131: #{phycrnet_forward.1} parent=123 // pred_region
          %p5045 = scmp.lt.s32.totalorder %s32, 1
          %s5046 = scalar_select %p5045, %s32, 1
          %s5047 = smul.addr %s5046, 4
          %s5048 = smul.addr %s5047, 2
          %s5049 = scalar_lea.vmem %s13, %s5048
        $region132: #{phycrnet_forward.1} parent=123 // pred_fallthru
          _
        // Predicated region
        $region133: #{phycrnet_forward.1} parent=123 // pred_check
          %p5050 = pneg %p359
        $region134: #{phycrnet_forward.1} parent=123 // pred_check_branch
          %5052 = sbr.rel (%p5050) target = $region136
        $region135: #{phycrnet_forward.1} parent=123 // pred_region
          %p5053 = scmp.lt.s32.totalorder %s32, 1
          %s5054 = scalar_select %p5053, %s32, 1
          %s5055 = smul.addr %s5054, 4
          %s5056 = smul.addr %s5055, 2
          %s5057 = scalar_lea.vmem %s14, %s5056
        $region136: #{phycrnet_forward.1} parent=123 // pred_fallthru
          _
      $region124: #{phycrnet_forward.1} parent=5 // pred_fallthru
        _
    $region6: #{phycrnet_forward.1} parent=1 // loop_footer
      %s30 = sadd.s32 1, %s26
    $region7: #{phycrnet_forward.1} parent=1 // loop_footer_branch
      %25 = sbr.rel target = $region3
    $region8: #{phycrnet_forward.1} parent=1 // loop_exit
      _
    %5058 = vsyncpa [#allocation6], 1
    %s5059 = scalar_lea.sflag [#allocation6], 1
    %5060 = vsyncpa %s5059, 1
    %5061 = vsyncpa [#allocation8], 1
    %5062 = vsyncpa [#allocation11], 1
    %5063 = vsyncpa [#allocation14], 1
    %5064 = vsyncpa [#allocation17], 1

</llo_original>
